<compile_context>
chip_gen: v6e
topology: v6e:2x2x1
jax: 0.10.0
libtpu: 0.0.40
codegen_flags: <defaults>
</compile_context>

<pallas_src>
import functools

import numpy as np
import jax
import jax.numpy as jnp
from jax.experimental import pallas as pl
from jax.experimental.pallas import tpu as pltpu


def _swish(v):
    return v * jax.nn.sigmoid(v)


# ---------------------------------------------------------------------------
# Fused kernel.
#
# Activation layout everywhere: rows = (channel, batch) = c*N + n (sublanes),
# columns = sequence position (lanes).  Batch is folded into the matmul
# contraction with block-diagonal weights kron(W, I_N).
#
# Polyphase bookkeeping (K odd, L % 4 == 0, (L-K+1) % 4 == 0):
#   conv1 output phase r (r=0..3) lives in lanes [r*PH, r*PH+J1) of one matmul.
#   pool1: pooled1_even/odd are element-wise maxes of phase pairs; the
#          F.pad(K-1) left-pad reduces to one leading zero column (roll+mask).
#   conv2 even/odd output phases use unit-stride windows of pooled1_even/odd,
#          stacked over the K taps along the contraction (2 matmuls total).
#   pool2: element-wise max of the two conv2 phases; its (K-1)/2 leading zero
#          columns are absorbed by dropping the first (K-1)/2 rows of W_ih.
# ---------------------------------------------------------------------------
def _fused_rnn_model_kernel(xim_ref, w1_ref, g1_ref, b1_ref,
                            w2_ref, g2_ref, b2_ref, gmat_ref,
                            wih_ref, whh_ref, bias_ref, fcw_ref, fcb_ref,
                            out_ref, *, N, K, J1):
    f32 = jnp.float32
    bf16 = jnp.bfloat16
    CN = w1_ref.shape[0]             # hid * N   (rows = (channel, batch))
    PH = xim_ref.shape[1] // 4       # padded per-phase lane width (mult of 128)
    Q2 = wih_ref.shape[0]            # conv2 per-phase output length
    H = whh_ref.shape[0]             # LSTM hidden size
    T = CN // N                      # LSTM sequence length (= hid channels)
    n_cls = fcw_ref.shape[1]
    half = (K - 1) // 2

    # ---------------- conv1: ONE wide lane-dense matmul ---------------------
    y1_all = jnp.dot(w1_ref[...], xim_ref[...],
                     preferred_element_type=f32)                  # (CN, 4*PH)

    # ---------------- BatchNorm1d #1 (training-mode batch stats) ------------
    # Padded zero lanes contribute 0 to both sums; cnt1 uses the true J1.
    gmat = gmat_ref[...]             # kron(I_C, ones(N,N)): batch sum + bcast
    cnt1 = f32(N * 4 * J1)
    rs1 = jnp.sum(y1_all, axis=1, keepdims=True)
    rq1 = jnp.sum(y1_all * y1_all, axis=1, keepdims=True)
    st1 = jnp.dot(gmat, jnp.concatenate([rs1, rq1], axis=1),
                  preferred_element_type=f32) / cnt1
    mean1 = st1[:, 0:1]
    inv1 = jax.lax.rsqrt(st1[:, 1:2] - mean1 * mean1 + 1e-5)
    scale1 = g1_ref[...] * inv1
    shift1 = b1_ref[...] - mean1 * scale1
    act1 = _swish(y1_all * scale1 + shift1)
    a1 = [act1[:, r * PH:r * PH + J1] for r in range(4)]          # 128-aligned

    # ---------------- pool1 (element-wise max; pad = 1 zero column) ---------
    ce = jnp.maximum(a1[0], a1[1])           # even columns of pooled1
    co = jnp.maximum(a1[2], a1[3])           # odd columns of pooled1

    lane_q2 = jax.lax.broadcasted_iota(jnp.int32, (CN, Q2), 1)

    def pooled_slice(core, off):
        # window [off, off+Q2) of the zero-prepended pooled phase [0, core]
        if off == 0:
            s = core[:, 0:Q2]
            r = pltpu.roll(s, shift=1, axis=1)
            return jnp.where(lane_q2 == 0, jnp.zeros_like(r), r).astype(bf16)
        return core[:, off - 1:off - 1 + Q2].astype(bf16)

    se = [pooled_slice(ce, o) for o in range(half + 1)]
    so = [pooled_slice(co, o) for o in range(half + 1)]

    # ---------------- conv2: tap-stacked contraction, 2 matmuls total -------
    rhs_e, rhs_o = [], []
    for k in range(K):
        if k % 2 == 0:
            rhs_e.append(se[k // 2]); rhs_o.append(so[k // 2])
        else:
            rhs_e.append(so[(k - 1) // 2]); rhs_o.append(se[(k + 1) // 2])
    rhs_e = jnp.concatenate(rhs_e, axis=0)                        # (K*CN, Q2)
    rhs_o = jnp.concatenate(rhs_o, axis=0)
    w2 = w2_ref[...]                                              # (CN, K*CN) bf16
    y2e = jnp.dot(w2, rhs_e, preferred_element_type=f32)
    y2o = jnp.dot(w2, rhs_o, preferred_element_type=f32)

    # ---------------- BatchNorm1d #2 + Swish ---------------------------------
    cnt2 = f32(N * 2 * Q2)
    rs2 = jnp.sum(y2e, axis=1, keepdims=True) + jnp.sum(y2o, axis=1, keepdims=True)
    rq2 = (jnp.sum(y2e * y2e, axis=1, keepdims=True)
           + jnp.sum(y2o * y2o, axis=1, keepdims=True))
    st2 = jnp.dot(gmat, jnp.concatenate([rs2, rq2], axis=1),
                  preferred_element_type=f32) / cnt2
    mean2 = st2[:, 0:1]
    inv2 = jax.lax.rsqrt(st2[:, 1:2] - mean2 * mean2 + 1e-5)
    scale2 = g2_ref[...] * inv2
    shift2 = b2_ref[...] - mean2 * scale2
    a2e = _swish(y2e * scale2 + shift2)
    a2o = _swish(y2o * scale2 + shift2)

    # ---------------- pool2 -> LSTM input, rows already ordered (t, n) -------
    core2 = jnp.maximum(a2e, a2o).astype(bf16)                    # (T*N, Q2)

    # ---------------- LSTM: hoisted projection + fully unrolled recurrence ---
    # (the (K-1)/2 leading zero features were absorbed by trimming W_ih rows)
    gx = jnp.dot(core2, wih_ref[...], preferred_element_type=f32) + bias_ref[...]
    whh = whh_ref[...]                                            # (H, 4H) bf16
    fcw = fcw_ref[...]                                            # (T, n_cls) f32
    lane4h = jax.lax.broadcasted_iota(jnp.int32, (1, 4 * H), 1)
    gmask = jnp.logical_and(lane4h >= 2 * H, lane4h < 3 * H)      # g-gate cols

    h = jnp.zeros((N, H), f32)
    c = jnp.zeros((N, H), f32)
    logits = jnp.zeros((N, n_cls), f32)
    inv_h = f32(1.0 / H)
    for t in range(T):                          # static, fully unrolled
        g = gx[t * N:(t + 1) * N, :] + jnp.dot(h.astype(bf16), whh,
                                               preferred_element_type=f32)
        # single EUP pass: sigmoid(x) = 0.5*tanh(x/2) + 0.5
        act = jnp.tanh(jnp.where(gmask, g, 0.5 * g))
        sig = 0.5 * act + 0.5
        i_g = sig[:, 0:H]
        f_g = sig[:, H:2 * H]
        g_g = act[:, 2 * H:3 * H]
        o_g = sig[:, 3 * H:4 * H]
        c = f_g * c + i_g * g_g
        h = o_g * jnp.tanh(c)
        hm = jnp.sum(h, axis=1, keepdims=True) * inv_h     # AdaptiveAvgPool1d(1)
        logits = logits + hm * fcw[t:t + 1, :]             # fused fc accumulation

    out_ref[...] = jnp.maximum(logits + fcb_ref[...], 0.0)        # ReLU(fc)


# ---------------------------------------------------------------------------
# One-time weight preprocessing (hoisted out of the per-call forward).
# ---------------------------------------------------------------------------
def prepare_rnn_params(params, batch_size, kernel_size):
    N, K = batch_size, kernel_size
    f32, bf16 = jnp.float32, jnp.bfloat16
    w1 = params['conv1_w']                       # (hid, Cin, K)
    w2 = params['conv2_w']                       # (hid, hid, K)
    hid, Cin = w1.shape[0], w1.shape[1]
    H = params['w_hh'].shape[1]
    half = (K - 1) // 2
    n_classes = params['fc_w'].shape[0]

    eye_n = jnp.eye(N, dtype=f32)
    w1_kic = jnp.transpose(w1, (0, 2, 1)).reshape(hid, K * Cin)
    w1_blk = jnp.kron(w1_kic, eye_n).astype(bf16)                 # (hid*N, K*Cin*N)
    w2_stack = jnp.concatenate(
        [jnp.kron(w2[:, :, k], eye_n) for k in range(K)],
        axis=1).astype(bf16)                                      # (hid*N, K*hid*N)

    g1 = jnp.repeat(params['bn1_g'].astype(f32), N).reshape(hid * N, 1)
    b1 = jnp.repeat(params['bn1_b'].astype(f32), N).reshape(hid * N, 1)
    g2 = jnp.repeat(params['bn2_g'].astype(f32), N).reshape(hid * N, 1)
    b2 = jnp.repeat(params['bn2_b'].astype(f32), N).reshape(hid * N, 1)
    gmat = jnp.kron(jnp.eye(hid, dtype=f32), jnp.ones((N, N), f32))

    wih_t = jnp.transpose(params['w_ih']).astype(bf16)[half:, :]  # (D-half, 4H)
    whh_t = jnp.transpose(params['w_hh']).astype(bf16)            # (H, 4H) bf16
    bias = (params['b_ih'] + params['b_hh']).astype(f32).reshape(1, 4 * H)
    fcw_t = jnp.transpose(params['fc_w']).astype(f32)             # (hid, n_classes)
    fcb = params['fc_b'].astype(f32).reshape(1, n_classes)

    return dict(w1_blk=w1_blk, g1=g1, b1=b1, w2_stack=w2_stack, g2=g2, b2=b2,
                gmat=gmat, wih_t=wih_t, whh_t=whh_t, bias=bias,
                fcw_t=fcw_t, fcb=fcb)


# ---------------------------------------------------------------------------
# Per-call wrapper: only input im2col layout plumbing + one fused pallas_call.
# ---------------------------------------------------------------------------
@functools.partial(jax.jit, static_argnames="kernel_size")
def rnn_model_forward(prepped, x, kernel_size):
    N, Cin, L = x.shape
    K = kernel_size
    CN = prepped['w1_blk'].shape[0]
    hid = CN // N
    H = prepped['whh_t'].shape[0]
    Q2 = prepped['wih_t'].shape[0]
    n_classes = prepped['fcw_t'].shape[1]
    half = (K - 1) // 2

    assert K % 2 == 1 and L % 4 == 0 and (L - K + 1) % 4 == 0, \
        "polyphase decomposition assumes odd K, L % 4 == 0, (L-K+1) % 4 == 0"
    J1 = (L - K + 1) // 4            # conv1 per-phase output length
    assert Q2 == (L // 2 - K + 1) // 2
    assert Q2 == L // 4 - half, "nn.LSTM(input_size) must equal L/4"
    assert CN == hid * N

    # conv1 im2col, one slab per polyphase output (rows ordered (k, cin, n)),
    # zero-padded to a 128-multiple lane width and lane-concatenated so conv1
    # is a single lane-dense matmul in the kernel.
    # TODO(synk): this im2col could be built in-kernel from (Cin*N, L) with
    # strided lane slices to drop the HBM materialization; kept in the wrapper
    # (lower-priority per perf review).
    PH = ((J1 + 127) // 128) * 128
    f32, bf16 = jnp.float32, jnp.bfloat16
    x_t = jnp.transpose(x, (1, 0, 2)).reshape(Cin * N, L)
    phases = [x_t[:, b::4] for b in range(4)]                 # (Cin*N, L//4)
    slabs = []
    for r in range(4):
        pieces = []
        for k in range(K):
            a, b = divmod(r + k, 4)
            pieces.append(phases[b][:, a:a + J1])
        slab = jnp.concatenate(pieces, axis=0)                # (K*Cin*N, J1)
        slabs.append(jnp.pad(slab, ((0, 0), (0, PH - J1))))
    xim_cat = jnp.concatenate(slabs, axis=1).astype(bf16)     # (K*Cin*N, 4*PH)

    kern = functools.partial(_fused_rnn_model_kernel, N=N, K=K, J1=J1)
    vmem = pl.BlockSpec(memory_space=pltpu.MemorySpace.VMEM)
    # Single program, no grid: total VMEM footprint is ~1-2 MiB, far below the
    # limit on v5e/v6e/v7x; the kernel is latency-bound on the serial LSTM.
    # TODO(synk): on v7x the conv stage is too small (<1 us) to justify
    # splitting across the 2 TensorCores ahead of the serial recurrence.
    return pl.pallas_call(
        kern,
        out_shape=jax.ShapeDtypeStruct((N, n_classes), jnp.float32),
        in_specs=[vmem] * 13,
        out_specs=vmem,
    )(xim_cat, prepped['w1_blk'], prepped['g1'], prepped['b1'],
      prepped['w2_stack'], prepped['g2'], prepped['b2'], prepped['gmat'],
      prepped['wih_t'], prepped['whh_t'], prepped['bias'],
      prepped['fcw_t'], prepped['fcb'])


# ---------------------------------------------------------------------------
# Pure-JAX f32 reference (PyTorch semantics) for the numerical sanity check.
# ---------------------------------------------------------------------------
def reference_forward(params, x, K):
    def cnp(x, w, g, b):
        N, _, L = x.shape
        Cout = w.shape[0]
        L_out = L - K + 1
        acc = jnp.zeros((N, Cout, L_out), jnp.float32)
        for k in range(K):
            acc = acc + jnp.einsum('oi,nil->nol', w[:, :, k], x[:, :, k:k + L_out])
        mean = jnp.mean(acc, axis=(0, 2), keepdims=True)
        var = jnp.mean(jnp.square(acc - mean), axis=(0, 2), keepdims=True)
        y = (acc - mean) * jax.lax.rsqrt(var + 1e-5)
        y = y * g.reshape(1, -1, 1) + b.reshape(1, -1, 1)
        y = y * jax.nn.sigmoid(y)
        y = jnp.pad(y, ((0, 0), (0, 0), (K - 1, 0)))
        return jnp.max(y.reshape(N, Cout, L // 2, 2), axis=-1)

    x = cnp(x, params['conv1_w'], params['bn1_g'], params['bn1_b'])
    x = cnp(x, params['conv2_w'], params['bn2_g'], params['bn2_b'])

    N, T, D = x.shape
    H = params['w_hh'].shape[1]
    wih = params['w_ih'].T
    whh = params['w_hh'].T
    b = params['b_ih'] + params['b_hh']

    def step(carry, x_t):
        h, c = carry
        g = x_t @ wih + h @ whh + b
        i = jax.nn.sigmoid(g[:, :H])
        f = jax.nn.sigmoid(g[:, H:2 * H])
        gg = jnp.tanh(g[:, 2 * H:3 * H])
        o = jax.nn.sigmoid(g[:, 3 * H:])
        c = f * c + i * gg
        h = o * jnp.tanh(c)
        return (h, c), h

    xs = jnp.transpose(x, (1, 0, 2))
    (_, _), outs = jax.lax.scan(
        step, (jnp.zeros((N, H), jnp.float32), jnp.zeros((N, H), jnp.float32)), xs)
    outs = jnp.transpose(outs, (1, 0, 2))        # (N, T, H)
    pooled = jnp.mean(outs, axis=2)              # (N, T)
    return jnp.maximum(pooled @ params['fc_w'].T + params['fc_b'], 0.0)


if __name__ == "__main__":
    INPUT_SIZE = 4     # conv input channels
    HID = 32           # hid_size (conv channels == LSTM hidden == seq len)
    L = 1000           # length; two ConvNormPool blocks -> L/4 = 250,
                       # matching the hard-coded nn.LSTM(input_size=250)
    K = 5              # kernel_size
    N_CLASSES = 30
    N = 2              # batch

    key = jax.random.PRNGKey(0)
    ks = jax.random.split(key, 9)
    params = dict(
        conv1_w=0.2 * jax.random.normal(ks[0], (HID, INPUT_SIZE, K), jnp.float32),
        bn1_g=jnp.ones((HID,), jnp.float32),     # PyTorch BatchNorm default init
        bn1_b=jnp.zeros((HID,), jnp.float32),
        conv2_w=0.2 * jax.random.normal(ks[1], (HID, HID, K), jnp.float32),
        bn2_g=jnp.ones((HID,), jnp.float32),
        bn2_b=jnp.zeros((HID,), jnp.float32),
        w_ih=0.05 * jax.random.normal(ks[2], (4 * HID, 250), jnp.float32),
        w_hh=0.05 * jax.random.normal(ks[3], (4 * HID, HID), jnp.float32),
        b_ih=0.05 * jax.random.normal(ks[4], (4 * HID,), jnp.float32),
        b_hh=0.05 * jax.random.normal(ks[5], (4 * HID,), jnp.float32),
        fc_w=0.1 * jax.random.normal(ks[6], (N_CLASSES, HID), jnp.float32),
        fc_b=0.1 * jax.random.normal(ks[7], (N_CLASSES,), jnp.float32),
    )
    x = jax.random.normal(ks[8], (N, INPUT_SIZE, L), jnp.float32)

    prepped = jax.block_until_ready(prepare_rnn_params(params, N, K))  # once
    out = jax.block_until_ready(rnn_model_forward(prepped, x, K))
    assert out.shape == (N, N_CLASSES), out.shape

    ref = jax.block_until_ready(reference_forward(params, x, K))
    np.testing.assert_allclose(np.asarray(out), np.asarray(ref),
                               rtol=2e-2, atol=2e-2)

    # TODO(synk): LSTM dropout_p is inactive (num_rnn_layers=1) and BatchNorm
    # running-stat updates don't affect the forward output, so neither is modeled.
    print("KERNEL_OK")
</pallas_src>

<mosaic_0001>
module attributes {stable_mosaic.version = 11 : i64} {
  func.func @_fused_rnn_model_kernel(%arg0: memref<40x1024xbf16, #tpu.memory_space<vmem>>, %arg1: memref<64x40xbf16, #tpu.memory_space<vmem>>, %arg2: memref<64x1xf32, #tpu.memory_space<vmem>>, %arg3: memref<64x1xf32, #tpu.memory_space<vmem>>, %arg4: memref<64x320xbf16, #tpu.memory_space<vmem>>, %arg5: memref<64x1xf32, #tpu.memory_space<vmem>>, %arg6: memref<64x1xf32, #tpu.memory_space<vmem>>, %arg7: memref<64x64xf32, #tpu.memory_space<vmem>>, %arg8: memref<248x128xbf16, #tpu.memory_space<vmem>>, %arg9: memref<32x128xbf16, #tpu.memory_space<vmem>>, %arg10: memref<1x128xf32, #tpu.memory_space<vmem>>, %arg11: memref<32x30xf32, #tpu.memory_space<vmem>>, %arg12: memref<1x30xf32, #tpu.memory_space<vmem>>, %arg13: memref<2x30xf32, #tpu.memory_space<vmem>>) attributes {dimension_semantics = [], scalar_prefetch = 0 : i64, scratch_operands = 0 : i64, tpu.core_type = #tpu.core_type<tc>} {
    %c0 = arith.constant 0 : index
    %c0_0 = arith.constant 0 : index
    %0 = vector.load %arg1[%c0, %c0_0] : memref<64x40xbf16, #tpu.memory_space<vmem>>, vector<64x40xbf16>
    %c0_1 = arith.constant 0 : index
    %c0_2 = arith.constant 0 : index
    %1 = vector.load %arg0[%c0_1, %c0_2] : memref<40x1024xbf16, #tpu.memory_space<vmem>>, vector<40x1024xbf16>
    %cst = arith.constant dense<0.000000e+00> : vector<64x1024xf32>
    %2 = tpu.matmul %0, %1, %cst {dimension_numbers = #tpu.dot_dimension_numbers<[1], [0], [0], [1], [0, 0, 1, 1], [], []>} : vector<64x40xbf16>, vector<40x1024xbf16>, vector<64x1024xf32> -> vector<64x1024xf32>
    %c0_3 = arith.constant 0 : index
    %c0_4 = arith.constant 0 : index
    %3 = vector.load %arg7[%c0_3, %c0_4] : memref<64x64xf32, #tpu.memory_space<vmem>>, vector<64x64xf32>
    %cst_5 = arith.constant dense<0.000000e+00> : vector<64xf32>
    %4 = vector.multi_reduction <add>, %2, %cst_5 [1] : vector<64x1024xf32> to vector<64xf32>
    %5 = vector.shape_cast %4 : vector<64xf32> to vector<64x1xf32>
    %6 = arith.mulf %2, %2 : vector<64x1024xf32>
    %cst_6 = arith.constant dense<0.000000e+00> : vector<64xf32>
    %7 = vector.multi_reduction <add>, %6, %cst_6 [1] : vector<64x1024xf32> to vector<64xf32>
    %8 = vector.shape_cast %7 : vector<64xf32> to vector<64x1xf32>
    %9 = tpu.concatenate %5, %8 in 1 : vector<64x1xf32>, vector<64x1xf32> -> vector<64x2xf32>
    %cst_7 = arith.constant dense<0.000000e+00> : vector<64x2xf32>
    %10 = tpu.matmul %3, %9, %cst_7 {dimension_numbers = #tpu.dot_dimension_numbers<[1], [0], [0], [1], [0, 0, 1, 1], [], []>} : vector<64x64xf32>, vector<64x2xf32>, vector<64x2xf32> -> vector<64x2xf32>
    %cst_8 = arith.constant 1.992000e+03 : f32
    %11 = vector.broadcast %cst_8 : f32 to vector<64x2xf32>
    %12 = arith.divf %10, %11 : vector<64x2xf32>
    %13 = vector.extract_strided_slice %12 {offsets = [0, 0], sizes = [64, 1], strides = [1, 1]} : vector<64x2xf32> to vector<64x1xf32>
    %14 = vector.extract_strided_slice %12 {offsets = [0, 1], sizes = [64, 1], strides = [1, 1]} : vector<64x2xf32> to vector<64x1xf32>
    %15 = arith.mulf %13, %13 : vector<64x1xf32>
    %16 = arith.subf %14, %15 : vector<64x1xf32>
    %cst_9 = arith.constant 9.99999974E-6 : f32
    %17 = vector.broadcast %cst_9 : f32 to vector<64x1xf32>
    %18 = arith.addf %16, %17 : vector<64x1xf32>
    %19 = math.rsqrt %18 : vector<64x1xf32>
    %c0_10 = arith.constant 0 : index
    %c0_11 = arith.constant 0 : index
    %20 = vector.load %arg2[%c0_10, %c0_11] : memref<64x1xf32, #tpu.memory_space<vmem>>, vector<64x1xf32>
    %21 = arith.mulf %20, %19 : vector<64x1xf32>
    %c0_12 = arith.constant 0 : index
    %c0_13 = arith.constant 0 : index
    %22 = vector.load %arg3[%c0_12, %c0_13] : memref<64x1xf32, #tpu.memory_space<vmem>>, vector<64x1xf32>
    %23 = arith.mulf %13, %21 : vector<64x1xf32>
    %24 = arith.subf %22, %23 : vector<64x1xf32>
    %25 = vector.broadcast %21 : vector<64x1xf32> to vector<64x1024xf32>
    %26 = arith.mulf %2, %25 : vector<64x1024xf32>
    %27 = vector.broadcast %24 : vector<64x1xf32> to vector<64x1024xf32>
    %28 = arith.addf %26, %27 : vector<64x1024xf32>
    %29 = arith.negf %28 : vector<64x1024xf32>
    %30 = math.exp %29 : vector<64x1024xf32>
    %cst_14 = arith.constant 1.000000e+00 : f32
    %31 = vector.broadcast %cst_14 : f32 to vector<64x1024xf32>
    %32 = arith.addf %31, %30 : vector<64x1024xf32>
    %33 = arith.divf %31, %32 : vector<64x1024xf32>
    %34 = arith.mulf %28, %33 : vector<64x1024xf32>
    %35 = vector.extract_strided_slice %34 {offsets = [0, 0], sizes = [64, 249], strides = [1, 1]} : vector<64x1024xf32> to vector<64x249xf32>
    %36 = vector.extract_strided_slice %34 {offsets = [0, 256], sizes = [64, 249], strides = [1, 1]} : vector<64x1024xf32> to vector<64x249xf32>
    %37 = vector.extract_strided_slice %34 {offsets = [0, 512], sizes = [64, 249], strides = [1, 1]} : vector<64x1024xf32> to vector<64x249xf32>
    %38 = vector.extract_strided_slice %34 {offsets = [0, 768], sizes = [64, 249], strides = [1, 1]} : vector<64x1024xf32> to vector<64x249xf32>
    %39 = arith.maximumf %35, %36 : vector<64x249xf32>
    %40 = arith.maximumf %37, %38 : vector<64x249xf32>
    %41 = tpu.iota {dimensions = array<i32: 1>} : vector<64x248xi32>
    %42 = vector.extract_strided_slice %39 {offsets = [0, 0], sizes = [64, 248], strides = [1, 1]} : vector<64x249xf32> to vector<64x248xf32>
    %c1_i32 = arith.constant 1 : i32
    %43 = tpu.dynamic_rotate %42 by %c1_i32 dim 1 : vector<64x248xf32>, i32 -> vector<64x248xf32>
    %c0_i32 = arith.constant 0 : i32
    %44 = vector.broadcast %c0_i32 : i32 to vector<64x248xi32>
    %45 = arith.cmpi eq, %41, %44 : vector<64x248xi32>
    %cst_15 = arith.constant 0.000000e+00 : f32
    %46 = vector.broadcast %cst_15 : f32 to vector<64x248xf32>
    %47 = arith.select %45, %46, %43 : vector<64x248xi1>, vector<64x248xf32>
    %48 = arith.truncf %47 : vector<64x248xf32> to vector<64x248xbf16>
    %49 = vector.extract_strided_slice %39 {offsets = [0, 0], sizes = [64, 248], strides = [1, 1]} : vector<64x249xf32> to vector<64x248xf32>
    %50 = arith.truncf %49 : vector<64x248xf32> to vector<64x248xbf16>
    %51 = vector.extract_strided_slice %39 {offsets = [0, 1], sizes = [64, 248], strides = [1, 1]} : vector<64x249xf32> to vector<64x248xf32>
    %52 = arith.truncf %51 : vector<64x248xf32> to vector<64x248xbf16>
    %53 = vector.extract_strided_slice %40 {offsets = [0, 0], sizes = [64, 248], strides = [1, 1]} : vector<64x249xf32> to vector<64x248xf32>
    %c1_i32_16 = arith.constant 1 : i32
    %54 = tpu.dynamic_rotate %53 by %c1_i32_16 dim 1 : vector<64x248xf32>, i32 -> vector<64x248xf32>
    %c0_i32_17 = arith.constant 0 : i32
    %55 = vector.broadcast %c0_i32_17 : i32 to vector<64x248xi32>
    %56 = arith.cmpi eq, %41, %55 : vector<64x248xi32>
    %cst_18 = arith.constant 0.000000e+00 : f32
    %57 = vector.broadcast %cst_18 : f32 to vector<64x248xf32>
    %58 = arith.select %56, %57, %54 : vector<64x248xi1>, vector<64x248xf32>
    %59 = arith.truncf %58 : vector<64x248xf32> to vector<64x248xbf16>
    %60 = vector.extract_strided_slice %40 {offsets = [0, 0], sizes = [64, 248], strides = [1, 1]} : vector<64x249xf32> to vector<64x248xf32>
    %61 = arith.truncf %60 : vector<64x248xf32> to vector<64x248xbf16>
    %62 = vector.extract_strided_slice %40 {offsets = [0, 1], sizes = [64, 248], strides = [1, 1]} : vector<64x249xf32> to vector<64x248xf32>
    %63 = arith.truncf %62 : vector<64x248xf32> to vector<64x248xbf16>
    %64 = tpu.concatenate %48, %59, %50, %61, %52 in 0 : vector<64x248xbf16>, vector<64x248xbf16>, vector<64x248xbf16>, vector<64x248xbf16>, vector<64x248xbf16> -> vector<320x248xbf16>
    %65 = tpu.concatenate %59, %50, %61, %52, %63 in 0 : vector<64x248xbf16>, vector<64x248xbf16>, vector<64x248xbf16>, vector<64x248xbf16>, vector<64x248xbf16> -> vector<320x248xbf16>
    %c0_19 = arith.constant 0 : index
    %c0_20 = arith.constant 0 : index
    %66 = vector.load %arg4[%c0_19, %c0_20] : memref<64x320xbf16, #tpu.memory_space<vmem>>, vector<64x320xbf16>
    %cst_21 = arith.constant dense<0.000000e+00> : vector<64x248xf32>
    %67 = tpu.matmul %66, %64, %cst_21 {dimension_numbers = #tpu.dot_dimension_numbers<[1], [0], [0], [1], [0, 0, 1, 1], [], []>} : vector<64x320xbf16>, vector<320x248xbf16>, vector<64x248xf32> -> vector<64x248xf32>
    %cst_22 = arith.constant dense<0.000000e+00> : vector<64x248xf32>
    %68 = tpu.matmul %66, %65, %cst_22 {dimension_numbers = #tpu.dot_dimension_numbers<[1], [0], [0], [1], [0, 0, 1, 1], [], []>} : vector<64x320xbf16>, vector<320x248xbf16>, vector<64x248xf32> -> vector<64x248xf32>
    %cst_23 = arith.constant dense<0.000000e+00> : vector<64xf32>
    %69 = vector.multi_reduction <add>, %67, %cst_23 [1] : vector<64x248xf32> to vector<64xf32>
    %70 = vector.shape_cast %69 : vector<64xf32> to vector<64x1xf32>
    %cst_24 = arith.constant dense<0.000000e+00> : vector<64xf32>
    %71 = vector.multi_reduction <add>, %68, %cst_24 [1] : vector<64x248xf32> to vector<64xf32>
    %72 = vector.shape_cast %71 : vector<64xf32> to vector<64x1xf32>
    %73 = arith.addf %70, %72 : vector<64x1xf32>
    %74 = arith.mulf %67, %67 : vector<64x248xf32>
    %cst_25 = arith.constant dense<0.000000e+00> : vector<64xf32>
    %75 = vector.multi_reduction <add>, %74, %cst_25 [1] : vector<64x248xf32> to vector<64xf32>
    %76 = vector.shape_cast %75 : vector<64xf32> to vector<64x1xf32>
    %77 = arith.mulf %68, %68 : vector<64x248xf32>
    %cst_26 = arith.constant dense<0.000000e+00> : vector<64xf32>
    %78 = vector.multi_reduction <add>, %77, %cst_26 [1] : vector<64x248xf32> to vector<64xf32>
    %79 = vector.shape_cast %78 : vector<64xf32> to vector<64x1xf32>
    %80 = arith.addf %76, %79 : vector<64x1xf32>
    %81 = tpu.concatenate %73, %80 in 1 : vector<64x1xf32>, vector<64x1xf32> -> vector<64x2xf32>
    %cst_27 = arith.constant dense<0.000000e+00> : vector<64x2xf32>
    %82 = tpu.matmul %3, %81, %cst_27 {dimension_numbers = #tpu.dot_dimension_numbers<[1], [0], [0], [1], [0, 0, 1, 1], [], []>} : vector<64x64xf32>, vector<64x2xf32>, vector<64x2xf32> -> vector<64x2xf32>
    %cst_28 = arith.constant 9.920000e+02 : f32
    %83 = vector.broadcast %cst_28 : f32 to vector<64x2xf32>
    %84 = arith.divf %82, %83 : vector<64x2xf32>
    %85 = vector.extract_strided_slice %84 {offsets = [0, 0], sizes = [64, 1], strides = [1, 1]} : vector<64x2xf32> to vector<64x1xf32>
    %86 = vector.extract_strided_slice %84 {offsets = [0, 1], sizes = [64, 1], strides = [1, 1]} : vector<64x2xf32> to vector<64x1xf32>
    %87 = arith.mulf %85, %85 : vector<64x1xf32>
    %88 = arith.subf %86, %87 : vector<64x1xf32>
    %cst_29 = arith.constant 9.99999974E-6 : f32
    %89 = vector.broadcast %cst_29 : f32 to vector<64x1xf32>
    %90 = arith.addf %88, %89 : vector<64x1xf32>
    %91 = math.rsqrt %90 : vector<64x1xf32>
    %c0_30 = arith.constant 0 : index
    %c0_31 = arith.constant 0 : index
    %92 = vector.load %arg5[%c0_30, %c0_31] : memref<64x1xf32, #tpu.memory_space<vmem>>, vector<64x1xf32>
    %93 = arith.mulf %92, %91 : vector<64x1xf32>
    %c0_32 = arith.constant 0 : index
    %c0_33 = arith.constant 0 : index
    %94 = vector.load %arg6[%c0_32, %c0_33] : memref<64x1xf32, #tpu.memory_space<vmem>>, vector<64x1xf32>
    %95 = arith.mulf %85, %93 : vector<64x1xf32>
    %96 = arith.subf %94, %95 : vector<64x1xf32>
    %97 = vector.broadcast %93 : vector<64x1xf32> to vector<64x248xf32>
    %98 = arith.mulf %67, %97 : vector<64x248xf32>
    %99 = vector.broadcast %96 : vector<64x1xf32> to vector<64x248xf32>
    %100 = arith.addf %98, %99 : vector<64x248xf32>
    %101 = arith.negf %100 : vector<64x248xf32>
    %102 = math.exp %101 : vector<64x248xf32>
    %cst_34 = arith.constant 1.000000e+00 : f32
    %103 = vector.broadcast %cst_34 : f32 to vector<64x248xf32>
    %104 = arith.addf %103, %102 : vector<64x248xf32>
    %105 = arith.divf %103, %104 : vector<64x248xf32>
    %106 = arith.mulf %100, %105 : vector<64x248xf32>
    %107 = vector.broadcast %93 : vector<64x1xf32> to vector<64x248xf32>
    %108 = arith.mulf %68, %107 : vector<64x248xf32>
    %109 = vector.broadcast %96 : vector<64x1xf32> to vector<64x248xf32>
    %110 = arith.addf %108, %109 : vector<64x248xf32>
    %111 = arith.negf %110 : vector<64x248xf32>
    %112 = math.exp %111 : vector<64x248xf32>
    %cst_35 = arith.constant 1.000000e+00 : f32
    %113 = vector.broadcast %cst_35 : f32 to vector<64x248xf32>
    %114 = arith.addf %113, %112 : vector<64x248xf32>
    %115 = arith.divf %113, %114 : vector<64x248xf32>
    %116 = arith.mulf %110, %115 : vector<64x248xf32>
    %117 = arith.maximumf %106, %116 : vector<64x248xf32>
    %118 = arith.truncf %117 : vector<64x248xf32> to vector<64x248xbf16>
    %c0_36 = arith.constant 0 : index
    %c0_37 = arith.constant 0 : index
    %119 = vector.load %arg8[%c0_36, %c0_37] : memref<248x128xbf16, #tpu.memory_space<vmem>>, vector<248x128xbf16>
    %cst_38 = arith.constant dense<0.000000e+00> : vector<64x128xf32>
    %120 = tpu.matmul %118, %119, %cst_38 {dimension_numbers = #tpu.dot_dimension_numbers<[1], [0], [0], [1], [0, 0, 1, 1], [], []>} : vector<64x248xbf16>, vector<248x128xbf16>, vector<64x128xf32> -> vector<64x128xf32>
    %c0_39 = arith.constant 0 : index
    %c0_40 = arith.constant 0 : index
    %121 = vector.load %arg10[%c0_39, %c0_40] : memref<1x128xf32, #tpu.memory_space<vmem>>, vector<1x128xf32>
    %122 = vector.broadcast %121 : vector<1x128xf32> to vector<64x128xf32>
    %123 = arith.addf %120, %122 : vector<64x128xf32>
    %c0_41 = arith.constant 0 : index
    %c0_42 = arith.constant 0 : index
    %124 = vector.load %arg9[%c0_41, %c0_42] : memref<32x128xbf16, #tpu.memory_space<vmem>>, vector<32x128xbf16>
    %c0_43 = arith.constant 0 : index
    %c0_44 = arith.constant 0 : index
    %125 = vector.load %arg11[%c0_43, %c0_44] : memref<32x30xf32, #tpu.memory_space<vmem>>, vector<32x30xf32>
    %126 = tpu.iota {dimensions = array<i32: 1>} : vector<1x128xi32>
    %c64_i32 = arith.constant 64 : i32
    %127 = vector.broadcast %c64_i32 : i32 to vector<1x128xi32>
    %128 = arith.cmpi sge, %126, %127 : vector<1x128xi32>
    %c96_i32 = arith.constant 96 : i32
    %129 = vector.broadcast %c96_i32 : i32 to vector<1x128xi32>
    %130 = arith.cmpi slt, %126, %129 : vector<1x128xi32>
    %131 = arith.andi %128, %130 : vector<1x128xi1>
    %cst_45 = arith.constant 0.000000e+00 : f32
    %132 = vector.broadcast %cst_45 : f32 to vector<2x32xf32>
    %cst_46 = arith.constant 0.000000e+00 : f32
    %133 = vector.broadcast %cst_46 : f32 to vector<2x32xf32>
    %cst_47 = arith.constant 0.000000e+00 : f32
    %134 = vector.broadcast %cst_47 : f32 to vector<2x30xf32>
    %135 = vector.extract_strided_slice %123 {offsets = [0, 0], sizes = [2, 128], strides = [1, 1]} : vector<64x128xf32> to vector<2x128xf32>
    %136 = arith.truncf %132 : vector<2x32xf32> to vector<2x32xbf16>
    %cst_48 = arith.constant dense<0.000000e+00> : vector<2x128xf32>
    %137 = tpu.matmul %136, %124, %cst_48 {dimension_numbers = #tpu.dot_dimension_numbers<[1], [0], [0], [1], [0, 0, 1, 1], [], []>} : vector<2x32xbf16>, vector<32x128xbf16>, vector<2x128xf32> -> vector<2x128xf32>
    %138 = arith.addf %135, %137 : vector<2x128xf32>
    %cst_49 = arith.constant 5.000000e-01 : f32
    %139 = vector.broadcast %cst_49 : f32 to vector<2x128xf32>
    %140 = arith.mulf %139, %138 : vector<2x128xf32>
    %141 = vector.shape_cast %131 : vector<1x128xi1> to vector<1x128xi1>
    %142 = vector.broadcast %141 : vector<1x128xi1> to vector<2x128xi1>
    %143 = arith.select %142, %138, %140 : vector<2x128xi1>, vector<2x128xf32>
    %144 = math.tanh %143 : vector<2x128xf32>
    %cst_50 = arith.constant 5.000000e-01 : f32
    %145 = vector.broadcast %cst_50 : f32 to vector<2x128xf32>
    %146 = arith.mulf %145, %144 : vector<2x128xf32>
    %cst_51 = arith.constant 5.000000e-01 : f32
    %147 = vector.broadcast %cst_51 : f32 to vector<2x128xf32>
    %148 = arith.addf %146, %147 : vector<2x128xf32>
    %149 = vector.extract_strided_slice %148 {offsets = [0, 0], sizes = [2, 32], strides = [1, 1]} : vector<2x128xf32> to vector<2x32xf32>
    %150 = vector.extract_strided_slice %148 {offsets = [0, 32], sizes = [2, 32], strides = [1, 1]} : vector<2x128xf32> to vector<2x32xf32>
    %151 = vector.extract_strided_slice %144 {offsets = [0, 64], sizes = [2, 32], strides = [1, 1]} : vector<2x128xf32> to vector<2x32xf32>
    %152 = vector.extract_strided_slice %148 {offsets = [0, 96], sizes = [2, 32], strides = [1, 1]} : vector<2x128xf32> to vector<2x32xf32>
    %153 = arith.mulf %150, %133 : vector<2x32xf32>
    %154 = arith.mulf %149, %151 : vector<2x32xf32>
    %155 = arith.addf %153, %154 : vector<2x32xf32>
    %156 = math.tanh %155 : vector<2x32xf32>
    %157 = arith.mulf %152, %156 : vector<2x32xf32>
    %cst_52 = arith.constant dense<0.000000e+00> : vector<2xf32>
    %158 = vector.multi_reduction <add>, %157, %cst_52 [1] : vector<2x32xf32> to vector<2xf32>
    %159 = vector.shape_cast %158 : vector<2xf32> to vector<2x1xf32>
    %cst_53 = arith.constant 3.125000e-02 : f32
    %160 = vector.broadcast %cst_53 : f32 to vector<2x1xf32>
    %161 = arith.mulf %159, %160 : vector<2x1xf32>
    %162 = vector.extract_strided_slice %125 {offsets = [0, 0], sizes = [1, 30], strides = [1, 1]} : vector<32x30xf32> to vector<1x30xf32>
    %163 = vector.broadcast %161 : vector<2x1xf32> to vector<2x30xf32>
    %164 = vector.broadcast %162 : vector<1x30xf32> to vector<2x30xf32>
    %165 = arith.mulf %163, %164 : vector<2x30xf32>
    %166 = arith.addf %134, %165 : vector<2x30xf32>
    %167 = vector.extract_strided_slice %123 {offsets = [2, 0], sizes = [2, 128], strides = [1, 1]} : vector<64x128xf32> to vector<2x128xf32>
    %168 = arith.truncf %157 : vector<2x32xf32> to vector<2x32xbf16>
    %cst_54 = arith.constant dense<0.000000e+00> : vector<2x128xf32>
    %169 = tpu.matmul %168, %124, %cst_54 {dimension_numbers = #tpu.dot_dimension_numbers<[1], [0], [0], [1], [0, 0, 1, 1], [], []>} : vector<2x32xbf16>, vector<32x128xbf16>, vector<2x128xf32> -> vector<2x128xf32>
    %170 = arith.addf %167, %169 : vector<2x128xf32>
    %cst_55 = arith.constant 5.000000e-01 : f32
    %171 = vector.broadcast %cst_55 : f32 to vector<2x128xf32>
    %172 = arith.mulf %171, %170 : vector<2x128xf32>
    %173 = vector.shape_cast %131 : vector<1x128xi1> to vector<1x128xi1>
    %174 = vector.broadcast %173 : vector<1x128xi1> to vector<2x128xi1>
    %175 = arith.select %174, %170, %172 : vector<2x128xi1>, vector<2x128xf32>
    %176 = math.tanh %175 : vector<2x128xf32>
    %cst_56 = arith.constant 5.000000e-01 : f32
    %177 = vector.broadcast %cst_56 : f32 to vector<2x128xf32>
    %178 = arith.mulf %177, %176 : vector<2x128xf32>
    %cst_57 = arith.constant 5.000000e-01 : f32
    %179 = vector.broadcast %cst_57 : f32 to vector<2x128xf32>
    %180 = arith.addf %178, %179 : vector<2x128xf32>
    %181 = vector.extract_strided_slice %180 {offsets = [0, 0], sizes = [2, 32], strides = [1, 1]} : vector<2x128xf32> to vector<2x32xf32>
    %182 = vector.extract_strided_slice %180 {offsets = [0, 32], sizes = [2, 32], strides = [1, 1]} : vector<2x128xf32> to vector<2x32xf32>
    %183 = vector.extract_strided_slice %176 {offsets = [0, 64], sizes = [2, 32], strides = [1, 1]} : vector<2x128xf32> to vector<2x32xf32>
    %184 = vector.extract_strided_slice %180 {offsets = [0, 96], sizes = [2, 32], strides = [1, 1]} : vector<2x128xf32> to vector<2x32xf32>
    %185 = arith.mulf %182, %155 : vector<2x32xf32>
    %186 = arith.mulf %181, %183 : vector<2x32xf32>
    %187 = arith.addf %185, %186 : vector<2x32xf32>
    %188 = math.tanh %187 : vector<2x32xf32>
    %189 = arith.mulf %184, %188 : vector<2x32xf32>
    %cst_58 = arith.constant dense<0.000000e+00> : vector<2xf32>
    %190 = vector.multi_reduction <add>, %189, %cst_58 [1] : vector<2x32xf32> to vector<2xf32>
    %191 = vector.shape_cast %190 : vector<2xf32> to vector<2x1xf32>
    %cst_59 = arith.constant 3.125000e-02 : f32
    %192 = vector.broadcast %cst_59 : f32 to vector<2x1xf32>
    %193 = arith.mulf %191, %192 : vector<2x1xf32>
    %194 = vector.extract_strided_slice %125 {offsets = [1, 0], sizes = [1, 30], strides = [1, 1]} : vector<32x30xf32> to vector<1x30xf32>
    %195 = vector.broadcast %193 : vector<2x1xf32> to vector<2x30xf32>
    %196 = vector.broadcast %194 : vector<1x30xf32> to vector<2x30xf32>
    %197 = arith.mulf %195, %196 : vector<2x30xf32>
    %198 = arith.addf %166, %197 : vector<2x30xf32>
    %199 = vector.extract_strided_slice %123 {offsets = [4, 0], sizes = [2, 128], strides = [1, 1]} : vector<64x128xf32> to vector<2x128xf32>
    %200 = arith.truncf %189 : vector<2x32xf32> to vector<2x32xbf16>
    %cst_60 = arith.constant dense<0.000000e+00> : vector<2x128xf32>
    %201 = tpu.matmul %200, %124, %cst_60 {dimension_numbers = #tpu.dot_dimension_numbers<[1], [0], [0], [1], [0, 0, 1, 1], [], []>} : vector<2x32xbf16>, vector<32x128xbf16>, vector<2x128xf32> -> vector<2x128xf32>
    %202 = arith.addf %199, %201 : vector<2x128xf32>
    %cst_61 = arith.constant 5.000000e-01 : f32
    %203 = vector.broadcast %cst_61 : f32 to vector<2x128xf32>
    %204 = arith.mulf %203, %202 : vector<2x128xf32>
    %205 = vector.shape_cast %131 : vector<1x128xi1> to vector<1x128xi1>
    %206 = vector.broadcast %205 : vector<1x128xi1> to vector<2x128xi1>
    %207 = arith.select %206, %202, %204 : vector<2x128xi1>, vector<2x128xf32>
    %208 = math.tanh %207 : vector<2x128xf32>
    %cst_62 = arith.constant 5.000000e-01 : f32
    %209 = vector.broadcast %cst_62 : f32 to vector<2x128xf32>
    %210 = arith.mulf %209, %208 : vector<2x128xf32>
    %cst_63 = arith.constant 5.000000e-01 : f32
    %211 = vector.broadcast %cst_63 : f32 to vector<2x128xf32>
    %212 = arith.addf %210, %211 : vector<2x128xf32>
    %213 = vector.extract_strided_slice %212 {offsets = [0, 0], sizes = [2, 32], strides = [1, 1]} : vector<2x128xf32> to vector<2x32xf32>
    %214 = vector.extract_strided_slice %212 {offsets = [0, 32], sizes = [2, 32], strides = [1, 1]} : vector<2x128xf32> to vector<2x32xf32>
    %215 = vector.extract_strided_slice %208 {offsets = [0, 64], sizes = [2, 32], strides = [1, 1]} : vector<2x128xf32> to vector<2x32xf32>
    %216 = vector.extract_strided_slice %212 {offsets = [0, 96], sizes = [2, 32], strides = [1, 1]} : vector<2x128xf32> to vector<2x32xf32>
    %217 = arith.mulf %214, %187 : vector<2x32xf32>
    %218 = arith.mulf %213, %215 : vector<2x32xf32>
    %219 = arith.addf %217, %218 : vector<2x32xf32>
    %220 = math.tanh %219 : vector<2x32xf32>
    %221 = arith.mulf %216, %220 : vector<2x32xf32>
    %cst_64 = arith.constant dense<0.000000e+00> : vector<2xf32>
    %222 = vector.multi_reduction <add>, %221, %cst_64 [1] : vector<2x32xf32> to vector<2xf32>
    %223 = vector.shape_cast %222 : vector<2xf32> to vector<2x1xf32>
    %cst_65 = arith.constant 3.125000e-02 : f32
    %224 = vector.broadcast %cst_65 : f32 to vector<2x1xf32>
    %225 = arith.mulf %223, %224 : vector<2x1xf32>
    %226 = vector.extract_strided_slice %125 {offsets = [2, 0], sizes = [1, 30], strides = [1, 1]} : vector<32x30xf32> to vector<1x30xf32>
    %227 = vector.broadcast %225 : vector<2x1xf32> to vector<2x30xf32>
    %228 = vector.broadcast %226 : vector<1x30xf32> to vector<2x30xf32>
    %229 = arith.mulf %227, %228 : vector<2x30xf32>
    %230 = arith.addf %198, %229 : vector<2x30xf32>
    %231 = vector.extract_strided_slice %123 {offsets = [6, 0], sizes = [2, 128], strides = [1, 1]} : vector<64x128xf32> to vector<2x128xf32>
    %232 = arith.truncf %221 : vector<2x32xf32> to vector<2x32xbf16>
    %cst_66 = arith.constant dense<0.000000e+00> : vector<2x128xf32>
    %233 = tpu.matmul %232, %124, %cst_66 {dimension_numbers = #tpu.dot_dimension_numbers<[1], [0], [0], [1], [0, 0, 1, 1], [], []>} : vector<2x32xbf16>, vector<32x128xbf16>, vector<2x128xf32> -> vector<2x128xf32>
    %234 = arith.addf %231, %233 : vector<2x128xf32>
    %cst_67 = arith.constant 5.000000e-01 : f32
    %235 = vector.broadcast %cst_67 : f32 to vector<2x128xf32>
    %236 = arith.mulf %235, %234 : vector<2x128xf32>
    %237 = vector.shape_cast %131 : vector<1x128xi1> to vector<1x128xi1>
    %238 = vector.broadcast %237 : vector<1x128xi1> to vector<2x128xi1>
    %239 = arith.select %238, %234, %236 : vector<2x128xi1>, vector<2x128xf32>
    %240 = math.tanh %239 : vector<2x128xf32>
    %cst_68 = arith.constant 5.000000e-01 : f32
    %241 = vector.broadcast %cst_68 : f32 to vector<2x128xf32>
    %242 = arith.mulf %241, %240 : vector<2x128xf32>
    %cst_69 = arith.constant 5.000000e-01 : f32
    %243 = vector.broadcast %cst_69 : f32 to vector<2x128xf32>
    %244 = arith.addf %242, %243 : vector<2x128xf32>
    %245 = vector.extract_strided_slice %244 {offsets = [0, 0], sizes = [2, 32], strides = [1, 1]} : vector<2x128xf32> to vector<2x32xf32>
    %246 = vector.extract_strided_slice %244 {offsets = [0, 32], sizes = [2, 32], strides = [1, 1]} : vector<2x128xf32> to vector<2x32xf32>
    %247 = vector.extract_strided_slice %240 {offsets = [0, 64], sizes = [2, 32], strides = [1, 1]} : vector<2x128xf32> to vector<2x32xf32>
    %248 = vector.extract_strided_slice %244 {offsets = [0, 96], sizes = [2, 32], strides = [1, 1]} : vector<2x128xf32> to vector<2x32xf32>
    %249 = arith.mulf %246, %219 : vector<2x32xf32>
    %250 = arith.mulf %245, %247 : vector<2x32xf32>
    %251 = arith.addf %249, %250 : vector<2x32xf32>
    %252 = math.tanh %251 : vector<2x32xf32>
    %253 = arith.mulf %248, %252 : vector<2x32xf32>
    %cst_70 = arith.constant dense<0.000000e+00> : vector<2xf32>
    %254 = vector.multi_reduction <add>, %253, %cst_70 [1] : vector<2x32xf32> to vector<2xf32>
    %255 = vector.shape_cast %254 : vector<2xf32> to vector<2x1xf32>
    %cst_71 = arith.constant 3.125000e-02 : f32
    %256 = vector.broadcast %cst_71 : f32 to vector<2x1xf32>
    %257 = arith.mulf %255, %256 : vector<2x1xf32>
    %258 = vector.extract_strided_slice %125 {offsets = [3, 0], sizes = [1, 30], strides = [1, 1]} : vector<32x30xf32> to vector<1x30xf32>
    %259 = vector.broadcast %257 : vector<2x1xf32> to vector<2x30xf32>
    %260 = vector.broadcast %258 : vector<1x30xf32> to vector<2x30xf32>
    %261 = arith.mulf %259, %260 : vector<2x30xf32>
    %262 = arith.addf %230, %261 : vector<2x30xf32>
    %263 = vector.extract_strided_slice %123 {offsets = [8, 0], sizes = [2, 128], strides = [1, 1]} : vector<64x128xf32> to vector<2x128xf32>
    %264 = arith.truncf %253 : vector<2x32xf32> to vector<2x32xbf16>
    %cst_72 = arith.constant dense<0.000000e+00> : vector<2x128xf32>
    %265 = tpu.matmul %264, %124, %cst_72 {dimension_numbers = #tpu.dot_dimension_numbers<[1], [0], [0], [1], [0, 0, 1, 1], [], []>} : vector<2x32xbf16>, vector<32x128xbf16>, vector<2x128xf32> -> vector<2x128xf32>
    %266 = arith.addf %263, %265 : vector<2x128xf32>
    %cst_73 = arith.constant 5.000000e-01 : f32
    %267 = vector.broadcast %cst_73 : f32 to vector<2x128xf32>
    %268 = arith.mulf %267, %266 : vector<2x128xf32>
    %269 = vector.shape_cast %131 : vector<1x128xi1> to vector<1x128xi1>
    %270 = vector.broadcast %269 : vector<1x128xi1> to vector<2x128xi1>
    %271 = arith.select %270, %266, %268 : vector<2x128xi1>, vector<2x128xf32>
    %272 = math.tanh %271 : vector<2x128xf32>
    %cst_74 = arith.constant 5.000000e-01 : f32
    %273 = vector.broadcast %cst_74 : f32 to vector<2x128xf32>
    %274 = arith.mulf %273, %272 : vector<2x128xf32>
    %cst_75 = arith.constant 5.000000e-01 : f32
    %275 = vector.broadcast %cst_75 : f32 to vector<2x128xf32>
    %276 = arith.addf %274, %275 : vector<2x128xf32>
    %277 = vector.extract_strided_slice %276 {offsets = [0, 0], sizes = [2, 32], strides = [1, 1]} : vector<2x128xf32> to vector<2x32xf32>
    %278 = vector.extract_strided_slice %276 {offsets = [0, 32], sizes = [2, 32], strides = [1, 1]} : vector<2x128xf32> to vector<2x32xf32>
    %279 = vector.extract_strided_slice %272 {offsets = [0, 64], sizes = [2, 32], strides = [1, 1]} : vector<2x128xf32> to vector<2x32xf32>
    %280 = vector.extract_strided_slice %276 {offsets = [0, 96], sizes = [2, 32], strides = [1, 1]} : vector<2x128xf32> to vector<2x32xf32>
    %281 = arith.mulf %278, %251 : vector<2x32xf32>
    %282 = arith.mulf %277, %279 : vector<2x32xf32>
    %283 = arith.addf %281, %282 : vector<2x32xf32>
    %284 = math.tanh %283 : vector<2x32xf32>
    %285 = arith.mulf %280, %284 : vector<2x32xf32>
    %cst_76 = arith.constant dense<0.000000e+00> : vector<2xf32>
    %286 = vector.multi_reduction <add>, %285, %cst_76 [1] : vector<2x32xf32> to vector<2xf32>
    %287 = vector.shape_cast %286 : vector<2xf32> to vector<2x1xf32>
    %cst_77 = arith.constant 3.125000e-02 : f32
    %288 = vector.broadcast %cst_77 : f32 to vector<2x1xf32>
    %289 = arith.mulf %287, %288 : vector<2x1xf32>
    %290 = vector.extract_strided_slice %125 {offsets = [4, 0], sizes = [1, 30], strides = [1, 1]} : vector<32x30xf32> to vector<1x30xf32>
    %291 = vector.broadcast %289 : vector<2x1xf32> to vector<2x30xf32>
    %292 = vector.broadcast %290 : vector<1x30xf32> to vector<2x30xf32>
    %293 = arith.mulf %291, %292 : vector<2x30xf32>
    %294 = arith.addf %262, %293 : vector<2x30xf32>
    %295 = vector.extract_strided_slice %123 {offsets = [10, 0], sizes = [2, 128], strides = [1, 1]} : vector<64x128xf32> to vector<2x128xf32>
    %296 = arith.truncf %285 : vector<2x32xf32> to vector<2x32xbf16>
    %cst_78 = arith.constant dense<0.000000e+00> : vector<2x128xf32>
    %297 = tpu.matmul %296, %124, %cst_78 {dimension_numbers = #tpu.dot_dimension_numbers<[1], [0], [0], [1], [0, 0, 1, 1], [], []>} : vector<2x32xbf16>, vector<32x128xbf16>, vector<2x128xf32> -> vector<2x128xf32>
    %298 = arith.addf %295, %297 : vector<2x128xf32>
    %cst_79 = arith.constant 5.000000e-01 : f32
    %299 = vector.broadcast %cst_79 : f32 to vector<2x128xf32>
    %300 = arith.mulf %299, %298 : vector<2x128xf32>
    %301 = vector.shape_cast %131 : vector<1x128xi1> to vector<1x128xi1>
    %302 = vector.broadcast %301 : vector<1x128xi1> to vector<2x128xi1>
    %303 = arith.select %302, %298, %300 : vector<2x128xi1>, vector<2x128xf32>
    %304 = math.tanh %303 : vector<2x128xf32>
    %cst_80 = arith.constant 5.000000e-01 : f32
    %305 = vector.broadcast %cst_80 : f32 to vector<2x128xf32>
    %306 = arith.mulf %305, %304 : vector<2x128xf32>
    %cst_81 = arith.constant 5.000000e-01 : f32
    %307 = vector.broadcast %cst_81 : f32 to vector<2x128xf32>
    %308 = arith.addf %306, %307 : vector<2x128xf32>
    %309 = vector.extract_strided_slice %308 {offsets = [0, 0], sizes = [2, 32], strides = [1, 1]} : vector<2x128xf32> to vector<2x32xf32>
    %310 = vector.extract_strided_slice %308 {offsets = [0, 32], sizes = [2, 32], strides = [1, 1]} : vector<2x128xf32> to vector<2x32xf32>
    %311 = vector.extract_strided_slice %304 {offsets = [0, 64], sizes = [2, 32], strides = [1, 1]} : vector<2x128xf32> to vector<2x32xf32>
    %312 = vector.extract_strided_slice %308 {offsets = [0, 96], sizes = [2, 32], strides = [1, 1]} : vector<2x128xf32> to vector<2x32xf32>
    %313 = arith.mulf %310, %283 : vector<2x32xf32>
    %314 = arith.mulf %309, %311 : vector<2x32xf32>
    %315 = arith.addf %313, %314 : vector<2x32xf32>
    %316 = math.tanh %315 : vector<2x32xf32>
    %317 = arith.mulf %312, %316 : vector<2x32xf32>
    %cst_82 = arith.constant dense<0.000000e+00> : vector<2xf32>
    %318 = vector.multi_reduction <add>, %317, %cst_82 [1] : vector<2x32xf32> to vector<2xf32>
    %319 = vector.shape_cast %318 : vector<2xf32> to vector<2x1xf32>
    %cst_83 = arith.constant 3.125000e-02 : f32
    %320 = vector.broadcast %cst_83 : f32 to vector<2x1xf32>
    %321 = arith.mulf %319, %320 : vector<2x1xf32>
    %322 = vector.extract_strided_slice %125 {offsets = [5, 0], sizes = [1, 30], strides = [1, 1]} : vector<32x30xf32> to vector<1x30xf32>
    %323 = vector.broadcast %321 : vector<2x1xf32> to vector<2x30xf32>
    %324 = vector.broadcast %322 : vector<1x30xf32> to vector<2x30xf32>
    %325 = arith.mulf %323, %324 : vector<2x30xf32>
    %326 = arith.addf %294, %325 : vector<2x30xf32>
    %327 = vector.extract_strided_slice %123 {offsets = [12, 0], sizes = [2, 128], strides = [1, 1]} : vector<64x128xf32> to vector<2x128xf32>
    %328 = arith.truncf %317 : vector<2x32xf32> to vector<2x32xbf16>
    %cst_84 = arith.constant dense<0.000000e+00> : vector<2x128xf32>
    %329 = tpu.matmul %328, %124, %cst_84 {dimension_numbers = #tpu.dot_dimension_numbers<[1], [0], [0], [1], [0, 0, 1, 1], [], []>} : vector<2x32xbf16>, vector<32x128xbf16>, vector<2x128xf32> -> vector<2x128xf32>
    %330 = arith.addf %327, %329 : vector<2x128xf32>
    %cst_85 = arith.constant 5.000000e-01 : f32
    %331 = vector.broadcast %cst_85 : f32 to vector<2x128xf32>
    %332 = arith.mulf %331, %330 : vector<2x128xf32>
    %333 = vector.shape_cast %131 : vector<1x128xi1> to vector<1x128xi1>
    %334 = vector.broadcast %333 : vector<1x128xi1> to vector<2x128xi1>
    %335 = arith.select %334, %330, %332 : vector<2x128xi1>, vector<2x128xf32>
    %336 = math.tanh %335 : vector<2x128xf32>
    %cst_86 = arith.constant 5.000000e-01 : f32
    %337 = vector.broadcast %cst_86 : f32 to vector<2x128xf32>
    %338 = arith.mulf %337, %336 : vector<2x128xf32>
    %cst_87 = arith.constant 5.000000e-01 : f32
    %339 = vector.broadcast %cst_87 : f32 to vector<2x128xf32>
    %340 = arith.addf %338, %339 : vector<2x128xf32>
    %341 = vector.extract_strided_slice %340 {offsets = [0, 0], sizes = [2, 32], strides = [1, 1]} : vector<2x128xf32> to vector<2x32xf32>
    %342 = vector.extract_strided_slice %340 {offsets = [0, 32], sizes = [2, 32], strides = [1, 1]} : vector<2x128xf32> to vector<2x32xf32>
    %343 = vector.extract_strided_slice %336 {offsets = [0, 64], sizes = [2, 32], strides = [1, 1]} : vector<2x128xf32> to vector<2x32xf32>
    %344 = vector.extract_strided_slice %340 {offsets = [0, 96], sizes = [2, 32], strides = [1, 1]} : vector<2x128xf32> to vector<2x32xf32>
    %345 = arith.mulf %342, %315 : vector<2x32xf32>
    %346 = arith.mulf %341, %343 : vector<2x32xf32>
    %347 = arith.addf %345, %346 : vector<2x32xf32>
    %348 = math.tanh %347 : vector<2x32xf32>
    %349 = arith.mulf %344, %348 : vector<2x32xf32>
    %cst_88 = arith.constant dense<0.000000e+00> : vector<2xf32>
    %350 = vector.multi_reduction <add>, %349, %cst_88 [1] : vector<2x32xf32> to vector<2xf32>
    %351 = vector.shape_cast %350 : vector<2xf32> to vector<2x1xf32>
    %cst_89 = arith.constant 3.125000e-02 : f32
    %352 = vector.broadcast %cst_89 : f32 to vector<2x1xf32>
    %353 = arith.mulf %351, %352 : vector<2x1xf32>
    %354 = vector.extract_strided_slice %125 {offsets = [6, 0], sizes = [1, 30], strides = [1, 1]} : vector<32x30xf32> to vector<1x30xf32>
    %355 = vector.broadcast %353 : vector<2x1xf32> to vector<2x30xf32>
    %356 = vector.broadcast %354 : vector<1x30xf32> to vector<2x30xf32>
    %357 = arith.mulf %355, %356 : vector<2x30xf32>
    %358 = arith.addf %326, %357 : vector<2x30xf32>
    %359 = vector.extract_strided_slice %123 {offsets = [14, 0], sizes = [2, 128], strides = [1, 1]} : vector<64x128xf32> to vector<2x128xf32>
    %360 = arith.truncf %349 : vector<2x32xf32> to vector<2x32xbf16>
    %cst_90 = arith.constant dense<0.000000e+00> : vector<2x128xf32>
    %361 = tpu.matmul %360, %124, %cst_90 {dimension_numbers = #tpu.dot_dimension_numbers<[1], [0], [0], [1], [0, 0, 1, 1], [], []>} : vector<2x32xbf16>, vector<32x128xbf16>, vector<2x128xf32> -> vector<2x128xf32>
    %362 = arith.addf %359, %361 : vector<2x128xf32>
    %cst_91 = arith.constant 5.000000e-01 : f32
    %363 = vector.broadcast %cst_91 : f32 to vector<2x128xf32>
    %364 = arith.mulf %363, %362 : vector<2x128xf32>
    %365 = vector.shape_cast %131 : vector<1x128xi1> to vector<1x128xi1>
    %366 = vector.broadcast %365 : vector<1x128xi1> to vector<2x128xi1>
    %367 = arith.select %366, %362, %364 : vector<2x128xi1>, vector<2x128xf32>
    %368 = math.tanh %367 : vector<2x128xf32>
    %cst_92 = arith.constant 5.000000e-01 : f32
    %369 = vector.broadcast %cst_92 : f32 to vector<2x128xf32>
    %370 = arith.mulf %369, %368 : vector<2x128xf32>
    %cst_93 = arith.constant 5.000000e-01 : f32
    %371 = vector.broadcast %cst_93 : f32 to vector<2x128xf32>
    %372 = arith.addf %370, %371 : vector<2x128xf32>
    %373 = vector.extract_strided_slice %372 {offsets = [0, 0], sizes = [2, 32], strides = [1, 1]} : vector<2x128xf32> to vector<2x32xf32>
    %374 = vector.extract_strided_slice %372 {offsets = [0, 32], sizes = [2, 32], strides = [1, 1]} : vector<2x128xf32> to vector<2x32xf32>
    %375 = vector.extract_strided_slice %368 {offsets = [0, 64], sizes = [2, 32], strides = [1, 1]} : vector<2x128xf32> to vector<2x32xf32>
    %376 = vector.extract_strided_slice %372 {offsets = [0, 96], sizes = [2, 32], strides = [1, 1]} : vector<2x128xf32> to vector<2x32xf32>
    %377 = arith.mulf %374, %347 : vector<2x32xf32>
    %378 = arith.mulf %373, %375 : vector<2x32xf32>
    %379 = arith.addf %377, %378 : vector<2x32xf32>
    %380 = math.tanh %379 : vector<2x32xf32>
    %381 = arith.mulf %376, %380 : vector<2x32xf32>
    %cst_94 = arith.constant dense<0.000000e+00> : vector<2xf32>
    %382 = vector.multi_reduction <add>, %381, %cst_94 [1] : vector<2x32xf32> to vector<2xf32>
    %383 = vector.shape_cast %382 : vector<2xf32> to vector<2x1xf32>
    %cst_95 = arith.constant 3.125000e-02 : f32
    %384 = vector.broadcast %cst_95 : f32 to vector<2x1xf32>
    %385 = arith.mulf %383, %384 : vector<2x1xf32>
    %386 = vector.extract_strided_slice %125 {offsets = [7, 0], sizes = [1, 30], strides = [1, 1]} : vector<32x30xf32> to vector<1x30xf32>
    %387 = vector.broadcast %385 : vector<2x1xf32> to vector<2x30xf32>
    %388 = vector.broadcast %386 : vector<1x30xf32> to vector<2x30xf32>
    %389 = arith.mulf %387, %388 : vector<2x30xf32>
    %390 = arith.addf %358, %389 : vector<2x30xf32>
    %391 = vector.extract_strided_slice %123 {offsets = [16, 0], sizes = [2, 128], strides = [1, 1]} : vector<64x128xf32> to vector<2x128xf32>
    %392 = arith.truncf %381 : vector<2x32xf32> to vector<2x32xbf16>
    %cst_96 = arith.constant dense<0.000000e+00> : vector<2x128xf32>
    %393 = tpu.matmul %392, %124, %cst_96 {dimension_numbers = #tpu.dot_dimension_numbers<[1], [0], [0], [1], [0, 0, 1, 1], [], []>} : vector<2x32xbf16>, vector<32x128xbf16>, vector<2x128xf32> -> vector<2x128xf32>
    %394 = arith.addf %391, %393 : vector<2x128xf32>
    %cst_97 = arith.constant 5.000000e-01 : f32
    %395 = vector.broadcast %cst_97 : f32 to vector<2x128xf32>
    %396 = arith.mulf %395, %394 : vector<2x128xf32>
    %397 = vector.shape_cast %131 : vector<1x128xi1> to vector<1x128xi1>
    %398 = vector.broadcast %397 : vector<1x128xi1> to vector<2x128xi1>
    %399 = arith.select %398, %394, %396 : vector<2x128xi1>, vector<2x128xf32>
    %400 = math.tanh %399 : vector<2x128xf32>
    %cst_98 = arith.constant 5.000000e-01 : f32
    %401 = vector.broadcast %cst_98 : f32 to vector<2x128xf32>
    %402 = arith.mulf %401, %400 : vector<2x128xf32>
    %cst_99 = arith.constant 5.000000e-01 : f32
    %403 = vector.broadcast %cst_99 : f32 to vector<2x128xf32>
    %404 = arith.addf %402, %403 : vector<2x128xf32>
    %405 = vector.extract_strided_slice %404 {offsets = [0, 0], sizes = [2, 32], strides = [1, 1]} : vector<2x128xf32> to vector<2x32xf32>
    %406 = vector.extract_strided_slice %404 {offsets = [0, 32], sizes = [2, 32], strides = [1, 1]} : vector<2x128xf32> to vector<2x32xf32>
    %407 = vector.extract_strided_slice %400 {offsets = [0, 64], sizes = [2, 32], strides = [1, 1]} : vector<2x128xf32> to vector<2x32xf32>
    %408 = vector.extract_strided_slice %404 {offsets = [0, 96], sizes = [2, 32], strides = [1, 1]} : vector<2x128xf32> to vector<2x32xf32>
    %409 = arith.mulf %406, %379 : vector<2x32xf32>
    %410 = arith.mulf %405, %407 : vector<2x32xf32>
    %411 = arith.addf %409, %410 : vector<2x32xf32>
    %412 = math.tanh %411 : vector<2x32xf32>
    %413 = arith.mulf %408, %412 : vector<2x32xf32>
    %cst_100 = arith.constant dense<0.000000e+00> : vector<2xf32>
    %414 = vector.multi_reduction <add>, %413, %cst_100 [1] : vector<2x32xf32> to vector<2xf32>
    %415 = vector.shape_cast %414 : vector<2xf32> to vector<2x1xf32>
    %cst_101 = arith.constant 3.125000e-02 : f32
    %416 = vector.broadcast %cst_101 : f32 to vector<2x1xf32>
    %417 = arith.mulf %415, %416 : vector<2x1xf32>
    %418 = vector.extract_strided_slice %125 {offsets = [8, 0], sizes = [1, 30], strides = [1, 1]} : vector<32x30xf32> to vector<1x30xf32>
    %419 = vector.broadcast %417 : vector<2x1xf32> to vector<2x30xf32>
    %420 = vector.broadcast %418 : vector<1x30xf32> to vector<2x30xf32>
    %421 = arith.mulf %419, %420 : vector<2x30xf32>
    %422 = arith.addf %390, %421 : vector<2x30xf32>
    %423 = vector.extract_strided_slice %123 {offsets = [18, 0], sizes = [2, 128], strides = [1, 1]} : vector<64x128xf32> to vector<2x128xf32>
    %424 = arith.truncf %413 : vector<2x32xf32> to vector<2x32xbf16>
    %cst_102 = arith.constant dense<0.000000e+00> : vector<2x128xf32>
    %425 = tpu.matmul %424, %124, %cst_102 {dimension_numbers = #tpu.dot_dimension_numbers<[1], [0], [0], [1], [0, 0, 1, 1], [], []>} : vector<2x32xbf16>, vector<32x128xbf16>, vector<2x128xf32> -> vector<2x128xf32>
    %426 = arith.addf %423, %425 : vector<2x128xf32>
    %cst_103 = arith.constant 5.000000e-01 : f32
    %427 = vector.broadcast %cst_103 : f32 to vector<2x128xf32>
    %428 = arith.mulf %427, %426 : vector<2x128xf32>
    %429 = vector.shape_cast %131 : vector<1x128xi1> to vector<1x128xi1>
    %430 = vector.broadcast %429 : vector<1x128xi1> to vector<2x128xi1>
    %431 = arith.select %430, %426, %428 : vector<2x128xi1>, vector<2x128xf32>
    %432 = math.tanh %431 : vector<2x128xf32>
    %cst_104 = arith.constant 5.000000e-01 : f32
    %433 = vector.broadcast %cst_104 : f32 to vector<2x128xf32>
    %434 = arith.mulf %433, %432 : vector<2x128xf32>
    %cst_105 = arith.constant 5.000000e-01 : f32
    %435 = vector.broadcast %cst_105 : f32 to vector<2x128xf32>
    %436 = arith.addf %434, %435 : vector<2x128xf32>
    %437 = vector.extract_strided_slice %436 {offsets = [0, 0], sizes = [2, 32], strides = [1, 1]} : vector<2x128xf32> to vector<2x32xf32>
    %438 = vector.extract_strided_slice %436 {offsets = [0, 32], sizes = [2, 32], strides = [1, 1]} : vector<2x128xf32> to vector<2x32xf32>
    %439 = vector.extract_strided_slice %432 {offsets = [0, 64], sizes = [2, 32], strides = [1, 1]} : vector<2x128xf32> to vector<2x32xf32>
    %440 = vector.extract_strided_slice %436 {offsets = [0, 96], sizes = [2, 32], strides = [1, 1]} : vector<2x128xf32> to vector<2x32xf32>
    %441 = arith.mulf %438, %411 : vector<2x32xf32>
    %442 = arith.mulf %437, %439 : vector<2x32xf32>
    %443 = arith.addf %441, %442 : vector<2x32xf32>
    %444 = math.tanh %443 : vector<2x32xf32>
    %445 = arith.mulf %440, %444 : vector<2x32xf32>
    %cst_106 = arith.constant dense<0.000000e+00> : vector<2xf32>
    %446 = vector.multi_reduction <add>, %445, %cst_106 [1] : vector<2x32xf32> to vector<2xf32>
    %447 = vector.shape_cast %446 : vector<2xf32> to vector<2x1xf32>
    %cst_107 = arith.constant 3.125000e-02 : f32
    %448 = vector.broadcast %cst_107 : f32 to vector<2x1xf32>
    %449 = arith.mulf %447, %448 : vector<2x1xf32>
    %450 = vector.extract_strided_slice %125 {offsets = [9, 0], sizes = [1, 30], strides = [1, 1]} : vector<32x30xf32> to vector<1x30xf32>
    %451 = vector.broadcast %449 : vector<2x1xf32> to vector<2x30xf32>
    %452 = vector.broadcast %450 : vector<1x30xf32> to vector<2x30xf32>
    %453 = arith.mulf %451, %452 : vector<2x30xf32>
    %454 = arith.addf %422, %453 : vector<2x30xf32>
    %455 = vector.extract_strided_slice %123 {offsets = [20, 0], sizes = [2, 128], strides = [1, 1]} : vector<64x128xf32> to vector<2x128xf32>
    %456 = arith.truncf %445 : vector<2x32xf32> to vector<2x32xbf16>
    %cst_108 = arith.constant dense<0.000000e+00> : vector<2x128xf32>
    %457 = tpu.matmul %456, %124, %cst_108 {dimension_numbers = #tpu.dot_dimension_numbers<[1], [0], [0], [1], [0, 0, 1, 1], [], []>} : vector<2x32xbf16>, vector<32x128xbf16>, vector<2x128xf32> -> vector<2x128xf32>
    %458 = arith.addf %455, %457 : vector<2x128xf32>
    %cst_109 = arith.constant 5.000000e-01 : f32
    %459 = vector.broadcast %cst_109 : f32 to vector<2x128xf32>
    %460 = arith.mulf %459, %458 : vector<2x128xf32>
    %461 = vector.shape_cast %131 : vector<1x128xi1> to vector<1x128xi1>
    %462 = vector.broadcast %461 : vector<1x128xi1> to vector<2x128xi1>
    %463 = arith.select %462, %458, %460 : vector<2x128xi1>, vector<2x128xf32>
    %464 = math.tanh %463 : vector<2x128xf32>
    %cst_110 = arith.constant 5.000000e-01 : f32
    %465 = vector.broadcast %cst_110 : f32 to vector<2x128xf32>
    %466 = arith.mulf %465, %464 : vector<2x128xf32>
    %cst_111 = arith.constant 5.000000e-01 : f32
    %467 = vector.broadcast %cst_111 : f32 to vector<2x128xf32>
    %468 = arith.addf %466, %467 : vector<2x128xf32>
    %469 = vector.extract_strided_slice %468 {offsets = [0, 0], sizes = [2, 32], strides = [1, 1]} : vector<2x128xf32> to vector<2x32xf32>
    %470 = vector.extract_strided_slice %468 {offsets = [0, 32], sizes = [2, 32], strides = [1, 1]} : vector<2x128xf32> to vector<2x32xf32>
    %471 = vector.extract_strided_slice %464 {offsets = [0, 64], sizes = [2, 32], strides = [1, 1]} : vector<2x128xf32> to vector<2x32xf32>
    %472 = vector.extract_strided_slice %468 {offsets = [0, 96], sizes = [2, 32], strides = [1, 1]} : vector<2x128xf32> to vector<2x32xf32>
    %473 = arith.mulf %470, %443 : vector<2x32xf32>
    %474 = arith.mulf %469, %471 : vector<2x32xf32>
    %475 = arith.addf %473, %474 : vector<2x32xf32>
    %476 = math.tanh %475 : vector<2x32xf32>
    %477 = arith.mulf %472, %476 : vector<2x32xf32>
    %cst_112 = arith.constant dense<0.000000e+00> : vector<2xf32>
    %478 = vector.multi_reduction <add>, %477, %cst_112 [1] : vector<2x32xf32> to vector<2xf32>
    %479 = vector.shape_cast %478 : vector<2xf32> to vector<2x1xf32>
    %cst_113 = arith.constant 3.125000e-02 : f32
    %480 = vector.broadcast %cst_113 : f32 to vector<2x1xf32>
    %481 = arith.mulf %479, %480 : vector<2x1xf32>
    %482 = vector.extract_strided_slice %125 {offsets = [10, 0], sizes = [1, 30], strides = [1, 1]} : vector<32x30xf32> to vector<1x30xf32>
    %483 = vector.broadcast %481 : vector<2x1xf32> to vector<2x30xf32>
    %484 = vector.broadcast %482 : vector<1x30xf32> to vector<2x30xf32>
    %485 = arith.mulf %483, %484 : vector<2x30xf32>
    %486 = arith.addf %454, %485 : vector<2x30xf32>
    %487 = vector.extract_strided_slice %123 {offsets = [22, 0], sizes = [2, 128], strides = [1, 1]} : vector<64x128xf32> to vector<2x128xf32>
    %488 = arith.truncf %477 : vector<2x32xf32> to vector<2x32xbf16>
    %cst_114 = arith.constant dense<0.000000e+00> : vector<2x128xf32>
    %489 = tpu.matmul %488, %124, %cst_114 {dimension_numbers = #tpu.dot_dimension_numbers<[1], [0], [0], [1], [0, 0, 1, 1], [], []>} : vector<2x32xbf16>, vector<32x128xbf16>, vector<2x128xf32> -> vector<2x128xf32>
    %490 = arith.addf %487, %489 : vector<2x128xf32>
    %cst_115 = arith.constant 5.000000e-01 : f32
    %491 = vector.broadcast %cst_115 : f32 to vector<2x128xf32>
    %492 = arith.mulf %491, %490 : vector<2x128xf32>
    %493 = vector.shape_cast %131 : vector<1x128xi1> to vector<1x128xi1>
    %494 = vector.broadcast %493 : vector<1x128xi1> to vector<2x128xi1>
    %495 = arith.select %494, %490, %492 : vector<2x128xi1>, vector<2x128xf32>
    %496 = math.tanh %495 : vector<2x128xf32>
    %cst_116 = arith.constant 5.000000e-01 : f32
    %497 = vector.broadcast %cst_116 : f32 to vector<2x128xf32>
    %498 = arith.mulf %497, %496 : vector<2x128xf32>
    %cst_117 = arith.constant 5.000000e-01 : f32
    %499 = vector.broadcast %cst_117 : f32 to vector<2x128xf32>
    %500 = arith.addf %498, %499 : vector<2x128xf32>
    %501 = vector.extract_strided_slice %500 {offsets = [0, 0], sizes = [2, 32], strides = [1, 1]} : vector<2x128xf32> to vector<2x32xf32>
    %502 = vector.extract_strided_slice %500 {offsets = [0, 32], sizes = [2, 32], strides = [1, 1]} : vector<2x128xf32> to vector<2x32xf32>
    %503 = vector.extract_strided_slice %496 {offsets = [0, 64], sizes = [2, 32], strides = [1, 1]} : vector<2x128xf32> to vector<2x32xf32>
    %504 = vector.extract_strided_slice %500 {offsets = [0, 96], sizes = [2, 32], strides = [1, 1]} : vector<2x128xf32> to vector<2x32xf32>
    %505 = arith.mulf %502, %475 : vector<2x32xf32>
    %506 = arith.mulf %501, %503 : vector<2x32xf32>
    %507 = arith.addf %505, %506 : vector<2x32xf32>
    %508 = math.tanh %507 : vector<2x32xf32>
    %509 = arith.mulf %504, %508 : vector<2x32xf32>
    %cst_118 = arith.constant dense<0.000000e+00> : vector<2xf32>
    %510 = vector.multi_reduction <add>, %509, %cst_118 [1] : vector<2x32xf32> to vector<2xf32>
    %511 = vector.shape_cast %510 : vector<2xf32> to vector<2x1xf32>
    %cst_119 = arith.constant 3.125000e-02 : f32
    %512 = vector.broadcast %cst_119 : f32 to vector<2x1xf32>
    %513 = arith.mulf %511, %512 : vector<2x1xf32>
    %514 = vector.extract_strided_slice %125 {offsets = [11, 0], sizes = [1, 30], strides = [1, 1]} : vector<32x30xf32> to vector<1x30xf32>
    %515 = vector.broadcast %513 : vector<2x1xf32> to vector<2x30xf32>
    %516 = vector.broadcast %514 : vector<1x30xf32> to vector<2x30xf32>
    %517 = arith.mulf %515, %516 : vector<2x30xf32>
    %518 = arith.addf %486, %517 : vector<2x30xf32>
    %519 = vector.extract_strided_slice %123 {offsets = [24, 0], sizes = [2, 128], strides = [1, 1]} : vector<64x128xf32> to vector<2x128xf32>
    %520 = arith.truncf %509 : vector<2x32xf32> to vector<2x32xbf16>
    %cst_120 = arith.constant dense<0.000000e+00> : vector<2x128xf32>
    %521 = tpu.matmul %520, %124, %cst_120 {dimension_numbers = #tpu.dot_dimension_numbers<[1], [0], [0], [1], [0, 0, 1, 1], [], []>} : vector<2x32xbf16>, vector<32x128xbf16>, vector<2x128xf32> -> vector<2x128xf32>
    %522 = arith.addf %519, %521 : vector<2x128xf32>
    %cst_121 = arith.constant 5.000000e-01 : f32
    %523 = vector.broadcast %cst_121 : f32 to vector<2x128xf32>
    %524 = arith.mulf %523, %522 : vector<2x128xf32>
    %525 = vector.shape_cast %131 : vector<1x128xi1> to vector<1x128xi1>
    %526 = vector.broadcast %525 : vector<1x128xi1> to vector<2x128xi1>
    %527 = arith.select %526, %522, %524 : vector<2x128xi1>, vector<2x128xf32>
    %528 = math.tanh %527 : vector<2x128xf32>
    %cst_122 = arith.constant 5.000000e-01 : f32
    %529 = vector.broadcast %cst_122 : f32 to vector<2x128xf32>
    %530 = arith.mulf %529, %528 : vector<2x128xf32>
    %cst_123 = arith.constant 5.000000e-01 : f32
    %531 = vector.broadcast %cst_123 : f32 to vector<2x128xf32>
    %532 = arith.addf %530, %531 : vector<2x128xf32>
    %533 = vector.extract_strided_slice %532 {offsets = [0, 0], sizes = [2, 32], strides = [1, 1]} : vector<2x128xf32> to vector<2x32xf32>
    %534 = vector.extract_strided_slice %532 {offsets = [0, 32], sizes = [2, 32], strides = [1, 1]} : vector<2x128xf32> to vector<2x32xf32>
    %535 = vector.extract_strided_slice %528 {offsets = [0, 64], sizes = [2, 32], strides = [1, 1]} : vector<2x128xf32> to vector<2x32xf32>
    %536 = vector.extract_strided_slice %532 {offsets = [0, 96], sizes = [2, 32], strides = [1, 1]} : vector<2x128xf32> to vector<2x32xf32>
    %537 = arith.mulf %534, %507 : vector<2x32xf32>
    %538 = arith.mulf %533, %535 : vector<2x32xf32>
    %539 = arith.addf %537, %538 : vector<2x32xf32>
    %540 = math.tanh %539 : vector<2x32xf32>
    %541 = arith.mulf %536, %540 : vector<2x32xf32>
    %cst_124 = arith.constant dense<0.000000e+00> : vector<2xf32>
    %542 = vector.multi_reduction <add>, %541, %cst_124 [1] : vector<2x32xf32> to vector<2xf32>
    %543 = vector.shape_cast %542 : vector<2xf32> to vector<2x1xf32>
    %cst_125 = arith.constant 3.125000e-02 : f32
    %544 = vector.broadcast %cst_125 : f32 to vector<2x1xf32>
    %545 = arith.mulf %543, %544 : vector<2x1xf32>
    %546 = vector.extract_strided_slice %125 {offsets = [12, 0], sizes = [1, 30], strides = [1, 1]} : vector<32x30xf32> to vector<1x30xf32>
    %547 = vector.broadcast %545 : vector<2x1xf32> to vector<2x30xf32>
    %548 = vector.broadcast %546 : vector<1x30xf32> to vector<2x30xf32>
    %549 = arith.mulf %547, %548 : vector<2x30xf32>
    %550 = arith.addf %518, %549 : vector<2x30xf32>
    %551 = vector.extract_strided_slice %123 {offsets = [26, 0], sizes = [2, 128], strides = [1, 1]} : vector<64x128xf32> to vector<2x128xf32>
    %552 = arith.truncf %541 : vector<2x32xf32> to vector<2x32xbf16>
    %cst_126 = arith.constant dense<0.000000e+00> : vector<2x128xf32>
    %553 = tpu.matmul %552, %124, %cst_126 {dimension_numbers = #tpu.dot_dimension_numbers<[1], [0], [0], [1], [0, 0, 1, 1], [], []>} : vector<2x32xbf16>, vector<32x128xbf16>, vector<2x128xf32> -> vector<2x128xf32>
    %554 = arith.addf %551, %553 : vector<2x128xf32>
    %cst_127 = arith.constant 5.000000e-01 : f32
    %555 = vector.broadcast %cst_127 : f32 to vector<2x128xf32>
    %556 = arith.mulf %555, %554 : vector<2x128xf32>
    %557 = vector.shape_cast %131 : vector<1x128xi1> to vector<1x128xi1>
    %558 = vector.broadcast %557 : vector<1x128xi1> to vector<2x128xi1>
    %559 = arith.select %558, %554, %556 : vector<2x128xi1>, vector<2x128xf32>
    %560 = math.tanh %559 : vector<2x128xf32>
    %cst_128 = arith.constant 5.000000e-01 : f32
    %561 = vector.broadcast %cst_128 : f32 to vector<2x128xf32>
    %562 = arith.mulf %561, %560 : vector<2x128xf32>
    %cst_129 = arith.constant 5.000000e-01 : f32
    %563 = vector.broadcast %cst_129 : f32 to vector<2x128xf32>
    %564 = arith.addf %562, %563 : vector<2x128xf32>
    %565 = vector.extract_strided_slice %564 {offsets = [0, 0], sizes = [2, 32], strides = [1, 1]} : vector<2x128xf32> to vector<2x32xf32>
    %566 = vector.extract_strided_slice %564 {offsets = [0, 32], sizes = [2, 32], strides = [1, 1]} : vector<2x128xf32> to vector<2x32xf32>
    %567 = vector.extract_strided_slice %560 {offsets = [0, 64], sizes = [2, 32], strides = [1, 1]} : vector<2x128xf32> to vector<2x32xf32>
    %568 = vector.extract_strided_slice %564 {offsets = [0, 96], sizes = [2, 32], strides = [1, 1]} : vector<2x128xf32> to vector<2x32xf32>
    %569 = arith.mulf %566, %539 : vector<2x32xf32>
    %570 = arith.mulf %565, %567 : vector<2x32xf32>
    %571 = arith.addf %569, %570 : vector<2x32xf32>
    %572 = math.tanh %571 : vector<2x32xf32>
    %573 = arith.mulf %568, %572 : vector<2x32xf32>
    %cst_130 = arith.constant dense<0.000000e+00> : vector<2xf32>
    %574 = vector.multi_reduction <add>, %573, %cst_130 [1] : vector<2x32xf32> to vector<2xf32>
    %575 = vector.shape_cast %574 : vector<2xf32> to vector<2x1xf32>
    %cst_131 = arith.constant 3.125000e-02 : f32
    %576 = vector.broadcast %cst_131 : f32 to vector<2x1xf32>
    %577 = arith.mulf %575, %576 : vector<2x1xf32>
    %578 = vector.extract_strided_slice %125 {offsets = [13, 0], sizes = [1, 30], strides = [1, 1]} : vector<32x30xf32> to vector<1x30xf32>
    %579 = vector.broadcast %577 : vector<2x1xf32> to vector<2x30xf32>
    %580 = vector.broadcast %578 : vector<1x30xf32> to vector<2x30xf32>
    %581 = arith.mulf %579, %580 : vector<2x30xf32>
    %582 = arith.addf %550, %581 : vector<2x30xf32>
    %583 = vector.extract_strided_slice %123 {offsets = [28, 0], sizes = [2, 128], strides = [1, 1]} : vector<64x128xf32> to vector<2x128xf32>
    %584 = arith.truncf %573 : vector<2x32xf32> to vector<2x32xbf16>
    %cst_132 = arith.constant dense<0.000000e+00> : vector<2x128xf32>
    %585 = tpu.matmul %584, %124, %cst_132 {dimension_numbers = #tpu.dot_dimension_numbers<[1], [0], [0], [1], [0, 0, 1, 1], [], []>} : vector<2x32xbf16>, vector<32x128xbf16>, vector<2x128xf32> -> vector<2x128xf32>
    %586 = arith.addf %583, %585 : vector<2x128xf32>
    %cst_133 = arith.constant 5.000000e-01 : f32
    %587 = vector.broadcast %cst_133 : f32 to vector<2x128xf32>
    %588 = arith.mulf %587, %586 : vector<2x128xf32>
    %589 = vector.shape_cast %131 : vector<1x128xi1> to vector<1x128xi1>
    %590 = vector.broadcast %589 : vector<1x128xi1> to vector<2x128xi1>
    %591 = arith.select %590, %586, %588 : vector<2x128xi1>, vector<2x128xf32>
    %592 = math.tanh %591 : vector<2x128xf32>
    %cst_134 = arith.constant 5.000000e-01 : f32
    %593 = vector.broadcast %cst_134 : f32 to vector<2x128xf32>
    %594 = arith.mulf %593, %592 : vector<2x128xf32>
    %cst_135 = arith.constant 5.000000e-01 : f32
    %595 = vector.broadcast %cst_135 : f32 to vector<2x128xf32>
    %596 = arith.addf %594, %595 : vector<2x128xf32>
    %597 = vector.extract_strided_slice %596 {offsets = [0, 0], sizes = [2, 32], strides = [1, 1]} : vector<2x128xf32> to vector<2x32xf32>
    %598 = vector.extract_strided_slice %596 {offsets = [0, 32], sizes = [2, 32], strides = [1, 1]} : vector<2x128xf32> to vector<2x32xf32>
    %599 = vector.extract_strided_slice %592 {offsets = [0, 64], sizes = [2, 32], strides = [1, 1]} : vector<2x128xf32> to vector<2x32xf32>
    %600 = vector.extract_strided_slice %596 {offsets = [0, 96], sizes = [2, 32], strides = [1, 1]} : vector<2x128xf32> to vector<2x32xf32>
    %601 = arith.mulf %598, %571 : vector<2x32xf32>
    %602 = arith.mulf %597, %599 : vector<2x32xf32>
    %603 = arith.addf %601, %602 : vector<2x32xf32>
    %604 = math.tanh %603 : vector<2x32xf32>
    %605 = arith.mulf %600, %604 : vector<2x32xf32>
    %cst_136 = arith.constant dense<0.000000e+00> : vector<2xf32>
    %606 = vector.multi_reduction <add>, %605, %cst_136 [1] : vector<2x32xf32> to vector<2xf32>
    %607 = vector.shape_cast %606 : vector<2xf32> to vector<2x1xf32>
    %cst_137 = arith.constant 3.125000e-02 : f32
    %608 = vector.broadcast %cst_137 : f32 to vector<2x1xf32>
    %609 = arith.mulf %607, %608 : vector<2x1xf32>
    %610 = vector.extract_strided_slice %125 {offsets = [14, 0], sizes = [1, 30], strides = [1, 1]} : vector<32x30xf32> to vector<1x30xf32>
    %611 = vector.broadcast %609 : vector<2x1xf32> to vector<2x30xf32>
    %612 = vector.broadcast %610 : vector<1x30xf32> to vector<2x30xf32>
    %613 = arith.mulf %611, %612 : vector<2x30xf32>
    %614 = arith.addf %582, %613 : vector<2x30xf32>
    %615 = vector.extract_strided_slice %123 {offsets = [30, 0], sizes = [2, 128], strides = [1, 1]} : vector<64x128xf32> to vector<2x128xf32>
    %616 = arith.truncf %605 : vector<2x32xf32> to vector<2x32xbf16>
    %cst_138 = arith.constant dense<0.000000e+00> : vector<2x128xf32>
    %617 = tpu.matmul %616, %124, %cst_138 {dimension_numbers = #tpu.dot_dimension_numbers<[1], [0], [0], [1], [0, 0, 1, 1], [], []>} : vector<2x32xbf16>, vector<32x128xbf16>, vector<2x128xf32> -> vector<2x128xf32>
    %618 = arith.addf %615, %617 : vector<2x128xf32>
    %cst_139 = arith.constant 5.000000e-01 : f32
    %619 = vector.broadcast %cst_139 : f32 to vector<2x128xf32>
    %620 = arith.mulf %619, %618 : vector<2x128xf32>
    %621 = vector.shape_cast %131 : vector<1x128xi1> to vector<1x128xi1>
    %622 = vector.broadcast %621 : vector<1x128xi1> to vector<2x128xi1>
    %623 = arith.select %622, %618, %620 : vector<2x128xi1>, vector<2x128xf32>
    %624 = math.tanh %623 : vector<2x128xf32>
    %cst_140 = arith.constant 5.000000e-01 : f32
    %625 = vector.broadcast %cst_140 : f32 to vector<2x128xf32>
    %626 = arith.mulf %625, %624 : vector<2x128xf32>
    %cst_141 = arith.constant 5.000000e-01 : f32
    %627 = vector.broadcast %cst_141 : f32 to vector<2x128xf32>
    %628 = arith.addf %626, %627 : vector<2x128xf32>
    %629 = vector.extract_strided_slice %628 {offsets = [0, 0], sizes = [2, 32], strides = [1, 1]} : vector<2x128xf32> to vector<2x32xf32>
    %630 = vector.extract_strided_slice %628 {offsets = [0, 32], sizes = [2, 32], strides = [1, 1]} : vector<2x128xf32> to vector<2x32xf32>
    %631 = vector.extract_strided_slice %624 {offsets = [0, 64], sizes = [2, 32], strides = [1, 1]} : vector<2x128xf32> to vector<2x32xf32>
    %632 = vector.extract_strided_slice %628 {offsets = [0, 96], sizes = [2, 32], strides = [1, 1]} : vector<2x128xf32> to vector<2x32xf32>
    %633 = arith.mulf %630, %603 : vector<2x32xf32>
    %634 = arith.mulf %629, %631 : vector<2x32xf32>
    %635 = arith.addf %633, %634 : vector<2x32xf32>
    %636 = math.tanh %635 : vector<2x32xf32>
    %637 = arith.mulf %632, %636 : vector<2x32xf32>
    %cst_142 = arith.constant dense<0.000000e+00> : vector<2xf32>
    %638 = vector.multi_reduction <add>, %637, %cst_142 [1] : vector<2x32xf32> to vector<2xf32>
    %639 = vector.shape_cast %638 : vector<2xf32> to vector<2x1xf32>
    %cst_143 = arith.constant 3.125000e-02 : f32
    %640 = vector.broadcast %cst_143 : f32 to vector<2x1xf32>
    %641 = arith.mulf %639, %640 : vector<2x1xf32>
    %642 = vector.extract_strided_slice %125 {offsets = [15, 0], sizes = [1, 30], strides = [1, 1]} : vector<32x30xf32> to vector<1x30xf32>
    %643 = vector.broadcast %641 : vector<2x1xf32> to vector<2x30xf32>
    %644 = vector.broadcast %642 : vector<1x30xf32> to vector<2x30xf32>
    %645 = arith.mulf %643, %644 : vector<2x30xf32>
    %646 = arith.addf %614, %645 : vector<2x30xf32>
    %647 = vector.extract_strided_slice %123 {offsets = [32, 0], sizes = [2, 128], strides = [1, 1]} : vector<64x128xf32> to vector<2x128xf32>
    %648 = arith.truncf %637 : vector<2x32xf32> to vector<2x32xbf16>
    %cst_144 = arith.constant dense<0.000000e+00> : vector<2x128xf32>
    %649 = tpu.matmul %648, %124, %cst_144 {dimension_numbers = #tpu.dot_dimension_numbers<[1], [0], [0], [1], [0, 0, 1, 1], [], []>} : vector<2x32xbf16>, vector<32x128xbf16>, vector<2x128xf32> -> vector<2x128xf32>
    %650 = arith.addf %647, %649 : vector<2x128xf32>
    %cst_145 = arith.constant 5.000000e-01 : f32
    %651 = vector.broadcast %cst_145 : f32 to vector<2x128xf32>
    %652 = arith.mulf %651, %650 : vector<2x128xf32>
    %653 = vector.shape_cast %131 : vector<1x128xi1> to vector<1x128xi1>
    %654 = vector.broadcast %653 : vector<1x128xi1> to vector<2x128xi1>
    %655 = arith.select %654, %650, %652 : vector<2x128xi1>, vector<2x128xf32>
    %656 = math.tanh %655 : vector<2x128xf32>
    %cst_146 = arith.constant 5.000000e-01 : f32
    %657 = vector.broadcast %cst_146 : f32 to vector<2x128xf32>
    %658 = arith.mulf %657, %656 : vector<2x128xf32>
    %cst_147 = arith.constant 5.000000e-01 : f32
    %659 = vector.broadcast %cst_147 : f32 to vector<2x128xf32>
    %660 = arith.addf %658, %659 : vector<2x128xf32>
    %661 = vector.extract_strided_slice %660 {offsets = [0, 0], sizes = [2, 32], strides = [1, 1]} : vector<2x128xf32> to vector<2x32xf32>
    %662 = vector.extract_strided_slice %660 {offsets = [0, 32], sizes = [2, 32], strides = [1, 1]} : vector<2x128xf32> to vector<2x32xf32>
    %663 = vector.extract_strided_slice %656 {offsets = [0, 64], sizes = [2, 32], strides = [1, 1]} : vector<2x128xf32> to vector<2x32xf32>
    %664 = vector.extract_strided_slice %660 {offsets = [0, 96], sizes = [2, 32], strides = [1, 1]} : vector<2x128xf32> to vector<2x32xf32>
    %665 = arith.mulf %662, %635 : vector<2x32xf32>
    %666 = arith.mulf %661, %663 : vector<2x32xf32>
    %667 = arith.addf %665, %666 : vector<2x32xf32>
    %668 = math.tanh %667 : vector<2x32xf32>
    %669 = arith.mulf %664, %668 : vector<2x32xf32>
    %cst_148 = arith.constant dense<0.000000e+00> : vector<2xf32>
    %670 = vector.multi_reduction <add>, %669, %cst_148 [1] : vector<2x32xf32> to vector<2xf32>
    %671 = vector.shape_cast %670 : vector<2xf32> to vector<2x1xf32>
    %cst_149 = arith.constant 3.125000e-02 : f32
    %672 = vector.broadcast %cst_149 : f32 to vector<2x1xf32>
    %673 = arith.mulf %671, %672 : vector<2x1xf32>
    %674 = vector.extract_strided_slice %125 {offsets = [16, 0], sizes = [1, 30], strides = [1, 1]} : vector<32x30xf32> to vector<1x30xf32>
    %675 = vector.broadcast %673 : vector<2x1xf32> to vector<2x30xf32>
    %676 = vector.broadcast %674 : vector<1x30xf32> to vector<2x30xf32>
    %677 = arith.mulf %675, %676 : vector<2x30xf32>
    %678 = arith.addf %646, %677 : vector<2x30xf32>
    %679 = vector.extract_strided_slice %123 {offsets = [34, 0], sizes = [2, 128], strides = [1, 1]} : vector<64x128xf32> to vector<2x128xf32>
    %680 = arith.truncf %669 : vector<2x32xf32> to vector<2x32xbf16>
    %cst_150 = arith.constant dense<0.000000e+00> : vector<2x128xf32>
    %681 = tpu.matmul %680, %124, %cst_150 {dimension_numbers = #tpu.dot_dimension_numbers<[1], [0], [0], [1], [0, 0, 1, 1], [], []>} : vector<2x32xbf16>, vector<32x128xbf16>, vector<2x128xf32> -> vector<2x128xf32>
    %682 = arith.addf %679, %681 : vector<2x128xf32>
    %cst_151 = arith.constant 5.000000e-01 : f32
    %683 = vector.broadcast %cst_151 : f32 to vector<2x128xf32>
    %684 = arith.mulf %683, %682 : vector<2x128xf32>
    %685 = vector.shape_cast %131 : vector<1x128xi1> to vector<1x128xi1>
    %686 = vector.broadcast %685 : vector<1x128xi1> to vector<2x128xi1>
    %687 = arith.select %686, %682, %684 : vector<2x128xi1>, vector<2x128xf32>
    %688 = math.tanh %687 : vector<2x128xf32>
    %cst_152 = arith.constant 5.000000e-01 : f32
    %689 = vector.broadcast %cst_152 : f32 to vector<2x128xf32>
    %690 = arith.mulf %689, %688 : vector<2x128xf32>
    %cst_153 = arith.constant 5.000000e-01 : f32
    %691 = vector.broadcast %cst_153 : f32 to vector<2x128xf32>
    %692 = arith.addf %690, %691 : vector<2x128xf32>
    %693 = vector.extract_strided_slice %692 {offsets = [0, 0], sizes = [2, 32], strides = [1, 1]} : vector<2x128xf32> to vector<2x32xf32>
    %694 = vector.extract_strided_slice %692 {offsets = [0, 32], sizes = [2, 32], strides = [1, 1]} : vector<2x128xf32> to vector<2x32xf32>
    %695 = vector.extract_strided_slice %688 {offsets = [0, 64], sizes = [2, 32], strides = [1, 1]} : vector<2x128xf32> to vector<2x32xf32>
    %696 = vector.extract_strided_slice %692 {offsets = [0, 96], sizes = [2, 32], strides = [1, 1]} : vector<2x128xf32> to vector<2x32xf32>
    %697 = arith.mulf %694, %667 : vector<2x32xf32>
    %698 = arith.mulf %693, %695 : vector<2x32xf32>
    %699 = arith.addf %697, %698 : vector<2x32xf32>
    %700 = math.tanh %699 : vector<2x32xf32>
    %701 = arith.mulf %696, %700 : vector<2x32xf32>
    %cst_154 = arith.constant dense<0.000000e+00> : vector<2xf32>
    %702 = vector.multi_reduction <add>, %701, %cst_154 [1] : vector<2x32xf32> to vector<2xf32>
    %703 = vector.shape_cast %702 : vector<2xf32> to vector<2x1xf32>
    %cst_155 = arith.constant 3.125000e-02 : f32
    %704 = vector.broadcast %cst_155 : f32 to vector<2x1xf32>
    %705 = arith.mulf %703, %704 : vector<2x1xf32>
    %706 = vector.extract_strided_slice %125 {offsets = [17, 0], sizes = [1, 30], strides = [1, 1]} : vector<32x30xf32> to vector<1x30xf32>
    %707 = vector.broadcast %705 : vector<2x1xf32> to vector<2x30xf32>
    %708 = vector.broadcast %706 : vector<1x30xf32> to vector<2x30xf32>
    %709 = arith.mulf %707, %708 : vector<2x30xf32>
    %710 = arith.addf %678, %709 : vector<2x30xf32>
    %711 = vector.extract_strided_slice %123 {offsets = [36, 0], sizes = [2, 128], strides = [1, 1]} : vector<64x128xf32> to vector<2x128xf32>
    %712 = arith.truncf %701 : vector<2x32xf32> to vector<2x32xbf16>
    %cst_156 = arith.constant dense<0.000000e+00> : vector<2x128xf32>
    %713 = tpu.matmul %712, %124, %cst_156 {dimension_numbers = #tpu.dot_dimension_numbers<[1], [0], [0], [1], [0, 0, 1, 1], [], []>} : vector<2x32xbf16>, vector<32x128xbf16>, vector<2x128xf32> -> vector<2x128xf32>
    %714 = arith.addf %711, %713 : vector<2x128xf32>
    %cst_157 = arith.constant 5.000000e-01 : f32
    %715 = vector.broadcast %cst_157 : f32 to vector<2x128xf32>
    %716 = arith.mulf %715, %714 : vector<2x128xf32>
    %717 = vector.shape_cast %131 : vector<1x128xi1> to vector<1x128xi1>
    %718 = vector.broadcast %717 : vector<1x128xi1> to vector<2x128xi1>
    %719 = arith.select %718, %714, %716 : vector<2x128xi1>, vector<2x128xf32>
    %720 = math.tanh %719 : vector<2x128xf32>
    %cst_158 = arith.constant 5.000000e-01 : f32
    %721 = vector.broadcast %cst_158 : f32 to vector<2x128xf32>
    %722 = arith.mulf %721, %720 : vector<2x128xf32>
    %cst_159 = arith.constant 5.000000e-01 : f32
    %723 = vector.broadcast %cst_159 : f32 to vector<2x128xf32>
    %724 = arith.addf %722, %723 : vector<2x128xf32>
    %725 = vector.extract_strided_slice %724 {offsets = [0, 0], sizes = [2, 32], strides = [1, 1]} : vector<2x128xf32> to vector<2x32xf32>
    %726 = vector.extract_strided_slice %724 {offsets = [0, 32], sizes = [2, 32], strides = [1, 1]} : vector<2x128xf32> to vector<2x32xf32>
    %727 = vector.extract_strided_slice %720 {offsets = [0, 64], sizes = [2, 32], strides = [1, 1]} : vector<2x128xf32> to vector<2x32xf32>
    %728 = vector.extract_strided_slice %724 {offsets = [0, 96], sizes = [2, 32], strides = [1, 1]} : vector<2x128xf32> to vector<2x32xf32>
    %729 = arith.mulf %726, %699 : vector<2x32xf32>
    %730 = arith.mulf %725, %727 : vector<2x32xf32>
    %731 = arith.addf %729, %730 : vector<2x32xf32>
    %732 = math.tanh %731 : vector<2x32xf32>
    %733 = arith.mulf %728, %732 : vector<2x32xf32>
    %cst_160 = arith.constant dense<0.000000e+00> : vector<2xf32>
    %734 = vector.multi_reduction <add>, %733, %cst_160 [1] : vector<2x32xf32> to vector<2xf32>
    %735 = vector.shape_cast %734 : vector<2xf32> to vector<2x1xf32>
    %cst_161 = arith.constant 3.125000e-02 : f32
    %736 = vector.broadcast %cst_161 : f32 to vector<2x1xf32>
    %737 = arith.mulf %735, %736 : vector<2x1xf32>
    %738 = vector.extract_strided_slice %125 {offsets = [18, 0], sizes = [1, 30], strides = [1, 1]} : vector<32x30xf32> to vector<1x30xf32>
    %739 = vector.broadcast %737 : vector<2x1xf32> to vector<2x30xf32>
    %740 = vector.broadcast %738 : vector<1x30xf32> to vector<2x30xf32>
    %741 = arith.mulf %739, %740 : vector<2x30xf32>
    %742 = arith.addf %710, %741 : vector<2x30xf32>
    %743 = vector.extract_strided_slice %123 {offsets = [38, 0], sizes = [2, 128], strides = [1, 1]} : vector<64x128xf32> to vector<2x128xf32>
    %744 = arith.truncf %733 : vector<2x32xf32> to vector<2x32xbf16>
    %cst_162 = arith.constant dense<0.000000e+00> : vector<2x128xf32>
    %745 = tpu.matmul %744, %124, %cst_162 {dimension_numbers = #tpu.dot_dimension_numbers<[1], [0], [0], [1], [0, 0, 1, 1], [], []>} : vector<2x32xbf16>, vector<32x128xbf16>, vector<2x128xf32> -> vector<2x128xf32>
    %746 = arith.addf %743, %745 : vector<2x128xf32>
    %cst_163 = arith.constant 5.000000e-01 : f32
    %747 = vector.broadcast %cst_163 : f32 to vector<2x128xf32>
    %748 = arith.mulf %747, %746 : vector<2x128xf32>
    %749 = vector.shape_cast %131 : vector<1x128xi1> to vector<1x128xi1>
    %750 = vector.broadcast %749 : vector<1x128xi1> to vector<2x128xi1>
    %751 = arith.select %750, %746, %748 : vector<2x128xi1>, vector<2x128xf32>
    %752 = math.tanh %751 : vector<2x128xf32>
    %cst_164 = arith.constant 5.000000e-01 : f32
    %753 = vector.broadcast %cst_164 : f32 to vector<2x128xf32>
    %754 = arith.mulf %753, %752 : vector<2x128xf32>
    %cst_165 = arith.constant 5.000000e-01 : f32
    %755 = vector.broadcast %cst_165 : f32 to vector<2x128xf32>
    %756 = arith.addf %754, %755 : vector<2x128xf32>
    %757 = vector.extract_strided_slice %756 {offsets = [0, 0], sizes = [2, 32], strides = [1, 1]} : vector<2x128xf32> to vector<2x32xf32>
    %758 = vector.extract_strided_slice %756 {offsets = [0, 32], sizes = [2, 32], strides = [1, 1]} : vector<2x128xf32> to vector<2x32xf32>
    %759 = vector.extract_strided_slice %752 {offsets = [0, 64], sizes = [2, 32], strides = [1, 1]} : vector<2x128xf32> to vector<2x32xf32>
    %760 = vector.extract_strided_slice %756 {offsets = [0, 96], sizes = [2, 32], strides = [1, 1]} : vector<2x128xf32> to vector<2x32xf32>
    %761 = arith.mulf %758, %731 : vector<2x32xf32>
    %762 = arith.mulf %757, %759 : vector<2x32xf32>
    %763 = arith.addf %761, %762 : vector<2x32xf32>
    %764 = math.tanh %763 : vector<2x32xf32>
    %765 = arith.mulf %760, %764 : vector<2x32xf32>
    %cst_166 = arith.constant dense<0.000000e+00> : vector<2xf32>
    %766 = vector.multi_reduction <add>, %765, %cst_166 [1] : vector<2x32xf32> to vector<2xf32>
    %767 = vector.shape_cast %766 : vector<2xf32> to vector<2x1xf32>
    %cst_167 = arith.constant 3.125000e-02 : f32
    %768 = vector.broadcast %cst_167 : f32 to vector<2x1xf32>
    %769 = arith.mulf %767, %768 : vector<2x1xf32>
    %770 = vector.extract_strided_slice %125 {offsets = [19, 0], sizes = [1, 30], strides = [1, 1]} : vector<32x30xf32> to vector<1x30xf32>
    %771 = vector.broadcast %769 : vector<2x1xf32> to vector<2x30xf32>
    %772 = vector.broadcast %770 : vector<1x30xf32> to vector<2x30xf32>
    %773 = arith.mulf %771, %772 : vector<2x30xf32>
    %774 = arith.addf %742, %773 : vector<2x30xf32>
    %775 = vector.extract_strided_slice %123 {offsets = [40, 0], sizes = [2, 128], strides = [1, 1]} : vector<64x128xf32> to vector<2x128xf32>
    %776 = arith.truncf %765 : vector<2x32xf32> to vector<2x32xbf16>
    %cst_168 = arith.constant dense<0.000000e+00> : vector<2x128xf32>
    %777 = tpu.matmul %776, %124, %cst_168 {dimension_numbers = #tpu.dot_dimension_numbers<[1], [0], [0], [1], [0, 0, 1, 1], [], []>} : vector<2x32xbf16>, vector<32x128xbf16>, vector<2x128xf32> -> vector<2x128xf32>
    %778 = arith.addf %775, %777 : vector<2x128xf32>
    %cst_169 = arith.constant 5.000000e-01 : f32
    %779 = vector.broadcast %cst_169 : f32 to vector<2x128xf32>
    %780 = arith.mulf %779, %778 : vector<2x128xf32>
    %781 = vector.shape_cast %131 : vector<1x128xi1> to vector<1x128xi1>
    %782 = vector.broadcast %781 : vector<1x128xi1> to vector<2x128xi1>
    %783 = arith.select %782, %778, %780 : vector<2x128xi1>, vector<2x128xf32>
    %784 = math.tanh %783 : vector<2x128xf32>
    %cst_170 = arith.constant 5.000000e-01 : f32
    %785 = vector.broadcast %cst_170 : f32 to vector<2x128xf32>
    %786 = arith.mulf %785, %784 : vector<2x128xf32>
    %cst_171 = arith.constant 5.000000e-01 : f32
    %787 = vector.broadcast %cst_171 : f32 to vector<2x128xf32>
    %788 = arith.addf %786, %787 : vector<2x128xf32>
    %789 = vector.extract_strided_slice %788 {offsets = [0, 0], sizes = [2, 32], strides = [1, 1]} : vector<2x128xf32> to vector<2x32xf32>
    %790 = vector.extract_strided_slice %788 {offsets = [0, 32], sizes = [2, 32], strides = [1, 1]} : vector<2x128xf32> to vector<2x32xf32>
    %791 = vector.extract_strided_slice %784 {offsets = [0, 64], sizes = [2, 32], strides = [1, 1]} : vector<2x128xf32> to vector<2x32xf32>
    %792 = vector.extract_strided_slice %788 {offsets = [0, 96], sizes = [2, 32], strides = [1, 1]} : vector<2x128xf32> to vector<2x32xf32>
    %793 = arith.mulf %790, %763 : vector<2x32xf32>
    %794 = arith.mulf %789, %791 : vector<2x32xf32>
    %795 = arith.addf %793, %794 : vector<2x32xf32>
    %796 = math.tanh %795 : vector<2x32xf32>
    %797 = arith.mulf %792, %796 : vector<2x32xf32>
    %cst_172 = arith.constant dense<0.000000e+00> : vector<2xf32>
    %798 = vector.multi_reduction <add>, %797, %cst_172 [1] : vector<2x32xf32> to vector<2xf32>
    %799 = vector.shape_cast %798 : vector<2xf32> to vector<2x1xf32>
    %cst_173 = arith.constant 3.125000e-02 : f32
    %800 = vector.broadcast %cst_173 : f32 to vector<2x1xf32>
    %801 = arith.mulf %799, %800 : vector<2x1xf32>
    %802 = vector.extract_strided_slice %125 {offsets = [20, 0], sizes = [1, 30], strides = [1, 1]} : vector<32x30xf32> to vector<1x30xf32>
    %803 = vector.broadcast %801 : vector<2x1xf32> to vector<2x30xf32>
    %804 = vector.broadcast %802 : vector<1x30xf32> to vector<2x30xf32>
    %805 = arith.mulf %803, %804 : vector<2x30xf32>
    %806 = arith.addf %774, %805 : vector<2x30xf32>
    %807 = vector.extract_strided_slice %123 {offsets = [42, 0], sizes = [2, 128], strides = [1, 1]} : vector<64x128xf32> to vector<2x128xf32>
    %808 = arith.truncf %797 : vector<2x32xf32> to vector<2x32xbf16>
    %cst_174 = arith.constant dense<0.000000e+00> : vector<2x128xf32>
    %809 = tpu.matmul %808, %124, %cst_174 {dimension_numbers = #tpu.dot_dimension_numbers<[1], [0], [0], [1], [0, 0, 1, 1], [], []>} : vector<2x32xbf16>, vector<32x128xbf16>, vector<2x128xf32> -> vector<2x128xf32>
    %810 = arith.addf %807, %809 : vector<2x128xf32>
    %cst_175 = arith.constant 5.000000e-01 : f32
    %811 = vector.broadcast %cst_175 : f32 to vector<2x128xf32>
    %812 = arith.mulf %811, %810 : vector<2x128xf32>
    %813 = vector.shape_cast %131 : vector<1x128xi1> to vector<1x128xi1>
    %814 = vector.broadcast %813 : vector<1x128xi1> to vector<2x128xi1>
    %815 = arith.select %814, %810, %812 : vector<2x128xi1>, vector<2x128xf32>
    %816 = math.tanh %815 : vector<2x128xf32>
    %cst_176 = arith.constant 5.000000e-01 : f32
    %817 = vector.broadcast %cst_176 : f32 to vector<2x128xf32>
    %818 = arith.mulf %817, %816 : vector<2x128xf32>
    %cst_177 = arith.constant 5.000000e-01 : f32
    %819 = vector.broadcast %cst_177 : f32 to vector<2x128xf32>
    %820 = arith.addf %818, %819 : vector<2x128xf32>
    %821 = vector.extract_strided_slice %820 {offsets = [0, 0], sizes = [2, 32], strides = [1, 1]} : vector<2x128xf32> to vector<2x32xf32>
    %822 = vector.extract_strided_slice %820 {offsets = [0, 32], sizes = [2, 32], strides = [1, 1]} : vector<2x128xf32> to vector<2x32xf32>
    %823 = vector.extract_strided_slice %816 {offsets = [0, 64], sizes = [2, 32], strides = [1, 1]} : vector<2x128xf32> to vector<2x32xf32>
    %824 = vector.extract_strided_slice %820 {offsets = [0, 96], sizes = [2, 32], strides = [1, 1]} : vector<2x128xf32> to vector<2x32xf32>
    %825 = arith.mulf %822, %795 : vector<2x32xf32>
    %826 = arith.mulf %821, %823 : vector<2x32xf32>
    %827 = arith.addf %825, %826 : vector<2x32xf32>
    %828 = math.tanh %827 : vector<2x32xf32>
    %829 = arith.mulf %824, %828 : vector<2x32xf32>
    %cst_178 = arith.constant dense<0.000000e+00> : vector<2xf32>
    %830 = vector.multi_reduction <add>, %829, %cst_178 [1] : vector<2x32xf32> to vector<2xf32>
    %831 = vector.shape_cast %830 : vector<2xf32> to vector<2x1xf32>
    %cst_179 = arith.constant 3.125000e-02 : f32
    %832 = vector.broadcast %cst_179 : f32 to vector<2x1xf32>
    %833 = arith.mulf %831, %832 : vector<2x1xf32>
    %834 = vector.extract_strided_slice %125 {offsets = [21, 0], sizes = [1, 30], strides = [1, 1]} : vector<32x30xf32> to vector<1x30xf32>
    %835 = vector.broadcast %833 : vector<2x1xf32> to vector<2x30xf32>
    %836 = vector.broadcast %834 : vector<1x30xf32> to vector<2x30xf32>
    %837 = arith.mulf %835, %836 : vector<2x30xf32>
    %838 = arith.addf %806, %837 : vector<2x30xf32>
    %839 = vector.extract_strided_slice %123 {offsets = [44, 0], sizes = [2, 128], strides = [1, 1]} : vector<64x128xf32> to vector<2x128xf32>
    %840 = arith.truncf %829 : vector<2x32xf32> to vector<2x32xbf16>
    %cst_180 = arith.constant dense<0.000000e+00> : vector<2x128xf32>
    %841 = tpu.matmul %840, %124, %cst_180 {dimension_numbers = #tpu.dot_dimension_numbers<[1], [0], [0], [1], [0, 0, 1, 1], [], []>} : vector<2x32xbf16>, vector<32x128xbf16>, vector<2x128xf32> -> vector<2x128xf32>
    %842 = arith.addf %839, %841 : vector<2x128xf32>
    %cst_181 = arith.constant 5.000000e-01 : f32
    %843 = vector.broadcast %cst_181 : f32 to vector<2x128xf32>
    %844 = arith.mulf %843, %842 : vector<2x128xf32>
    %845 = vector.shape_cast %131 : vector<1x128xi1> to vector<1x128xi1>
    %846 = vector.broadcast %845 : vector<1x128xi1> to vector<2x128xi1>
    %847 = arith.select %846, %842, %844 : vector<2x128xi1>, vector<2x128xf32>
    %848 = math.tanh %847 : vector<2x128xf32>
    %cst_182 = arith.constant 5.000000e-01 : f32
    %849 = vector.broadcast %cst_182 : f32 to vector<2x128xf32>
    %850 = arith.mulf %849, %848 : vector<2x128xf32>
    %cst_183 = arith.constant 5.000000e-01 : f32
    %851 = vector.broadcast %cst_183 : f32 to vector<2x128xf32>
    %852 = arith.addf %850, %851 : vector<2x128xf32>
    %853 = vector.extract_strided_slice %852 {offsets = [0, 0], sizes = [2, 32], strides = [1, 1]} : vector<2x128xf32> to vector<2x32xf32>
    %854 = vector.extract_strided_slice %852 {offsets = [0, 32], sizes = [2, 32], strides = [1, 1]} : vector<2x128xf32> to vector<2x32xf32>
    %855 = vector.extract_strided_slice %848 {offsets = [0, 64], sizes = [2, 32], strides = [1, 1]} : vector<2x128xf32> to vector<2x32xf32>
    %856 = vector.extract_strided_slice %852 {offsets = [0, 96], sizes = [2, 32], strides = [1, 1]} : vector<2x128xf32> to vector<2x32xf32>
    %857 = arith.mulf %854, %827 : vector<2x32xf32>
    %858 = arith.mulf %853, %855 : vector<2x32xf32>
    %859 = arith.addf %857, %858 : vector<2x32xf32>
    %860 = math.tanh %859 : vector<2x32xf32>
    %861 = arith.mulf %856, %860 : vector<2x32xf32>
    %cst_184 = arith.constant dense<0.000000e+00> : vector<2xf32>
    %862 = vector.multi_reduction <add>, %861, %cst_184 [1] : vector<2x32xf32> to vector<2xf32>
    %863 = vector.shape_cast %862 : vector<2xf32> to vector<2x1xf32>
    %cst_185 = arith.constant 3.125000e-02 : f32
    %864 = vector.broadcast %cst_185 : f32 to vector<2x1xf32>
    %865 = arith.mulf %863, %864 : vector<2x1xf32>
    %866 = vector.extract_strided_slice %125 {offsets = [22, 0], sizes = [1, 30], strides = [1, 1]} : vector<32x30xf32> to vector<1x30xf32>
    %867 = vector.broadcast %865 : vector<2x1xf32> to vector<2x30xf32>
    %868 = vector.broadcast %866 : vector<1x30xf32> to vector<2x30xf32>
    %869 = arith.mulf %867, %868 : vector<2x30xf32>
    %870 = arith.addf %838, %869 : vector<2x30xf32>
    %871 = vector.extract_strided_slice %123 {offsets = [46, 0], sizes = [2, 128], strides = [1, 1]} : vector<64x128xf32> to vector<2x128xf32>
    %872 = arith.truncf %861 : vector<2x32xf32> to vector<2x32xbf16>
    %cst_186 = arith.constant dense<0.000000e+00> : vector<2x128xf32>
    %873 = tpu.matmul %872, %124, %cst_186 {dimension_numbers = #tpu.dot_dimension_numbers<[1], [0], [0], [1], [0, 0, 1, 1], [], []>} : vector<2x32xbf16>, vector<32x128xbf16>, vector<2x128xf32> -> vector<2x128xf32>
    %874 = arith.addf %871, %873 : vector<2x128xf32>
    %cst_187 = arith.constant 5.000000e-01 : f32
    %875 = vector.broadcast %cst_187 : f32 to vector<2x128xf32>
    %876 = arith.mulf %875, %874 : vector<2x128xf32>
    %877 = vector.shape_cast %131 : vector<1x128xi1> to vector<1x128xi1>
    %878 = vector.broadcast %877 : vector<1x128xi1> to vector<2x128xi1>
    %879 = arith.select %878, %874, %876 : vector<2x128xi1>, vector<2x128xf32>
    %880 = math.tanh %879 : vector<2x128xf32>
    %cst_188 = arith.constant 5.000000e-01 : f32
    %881 = vector.broadcast %cst_188 : f32 to vector<2x128xf32>
    %882 = arith.mulf %881, %880 : vector<2x128xf32>
    %cst_189 = arith.constant 5.000000e-01 : f32
    %883 = vector.broadcast %cst_189 : f32 to vector<2x128xf32>
    %884 = arith.addf %882, %883 : vector<2x128xf32>
    %885 = vector.extract_strided_slice %884 {offsets = [0, 0], sizes = [2, 32], strides = [1, 1]} : vector<2x128xf32> to vector<2x32xf32>
    %886 = vector.extract_strided_slice %884 {offsets = [0, 32], sizes = [2, 32], strides = [1, 1]} : vector<2x128xf32> to vector<2x32xf32>
    %887 = vector.extract_strided_slice %880 {offsets = [0, 64], sizes = [2, 32], strides = [1, 1]} : vector<2x128xf32> to vector<2x32xf32>
    %888 = vector.extract_strided_slice %884 {offsets = [0, 96], sizes = [2, 32], strides = [1, 1]} : vector<2x128xf32> to vector<2x32xf32>
    %889 = arith.mulf %886, %859 : vector<2x32xf32>
    %890 = arith.mulf %885, %887 : vector<2x32xf32>
    %891 = arith.addf %889, %890 : vector<2x32xf32>
    %892 = math.tanh %891 : vector<2x32xf32>
    %893 = arith.mulf %888, %892 : vector<2x32xf32>
    %cst_190 = arith.constant dense<0.000000e+00> : vector<2xf32>
    %894 = vector.multi_reduction <add>, %893, %cst_190 [1] : vector<2x32xf32> to vector<2xf32>
    %895 = vector.shape_cast %894 : vector<2xf32> to vector<2x1xf32>
    %cst_191 = arith.constant 3.125000e-02 : f32
    %896 = vector.broadcast %cst_191 : f32 to vector<2x1xf32>
    %897 = arith.mulf %895, %896 : vector<2x1xf32>
    %898 = vector.extract_strided_slice %125 {offsets = [23, 0], sizes = [1, 30], strides = [1, 1]} : vector<32x30xf32> to vector<1x30xf32>
    %899 = vector.broadcast %897 : vector<2x1xf32> to vector<2x30xf32>
    %900 = vector.broadcast %898 : vector<1x30xf32> to vector<2x30xf32>
    %901 = arith.mulf %899, %900 : vector<2x30xf32>
    %902 = arith.addf %870, %901 : vector<2x30xf32>
    %903 = vector.extract_strided_slice %123 {offsets = [48, 0], sizes = [2, 128], strides = [1, 1]} : vector<64x128xf32> to vector<2x128xf32>
    %904 = arith.truncf %893 : vector<2x32xf32> to vector<2x32xbf16>
    %cst_192 = arith.constant dense<0.000000e+00> : vector<2x128xf32>
    %905 = tpu.matmul %904, %124, %cst_192 {dimension_numbers = #tpu.dot_dimension_numbers<[1], [0], [0], [1], [0, 0, 1, 1], [], []>} : vector<2x32xbf16>, vector<32x128xbf16>, vector<2x128xf32> -> vector<2x128xf32>
    %906 = arith.addf %903, %905 : vector<2x128xf32>
    %cst_193 = arith.constant 5.000000e-01 : f32
    %907 = vector.broadcast %cst_193 : f32 to vector<2x128xf32>
    %908 = arith.mulf %907, %906 : vector<2x128xf32>
    %909 = vector.shape_cast %131 : vector<1x128xi1> to vector<1x128xi1>
    %910 = vector.broadcast %909 : vector<1x128xi1> to vector<2x128xi1>
    %911 = arith.select %910, %906, %908 : vector<2x128xi1>, vector<2x128xf32>
    %912 = math.tanh %911 : vector<2x128xf32>
    %cst_194 = arith.constant 5.000000e-01 : f32
    %913 = vector.broadcast %cst_194 : f32 to vector<2x128xf32>
    %914 = arith.mulf %913, %912 : vector<2x128xf32>
    %cst_195 = arith.constant 5.000000e-01 : f32
    %915 = vector.broadcast %cst_195 : f32 to vector<2x128xf32>
    %916 = arith.addf %914, %915 : vector<2x128xf32>
    %917 = vector.extract_strided_slice %916 {offsets = [0, 0], sizes = [2, 32], strides = [1, 1]} : vector<2x128xf32> to vector<2x32xf32>
    %918 = vector.extract_strided_slice %916 {offsets = [0, 32], sizes = [2, 32], strides = [1, 1]} : vector<2x128xf32> to vector<2x32xf32>
    %919 = vector.extract_strided_slice %912 {offsets = [0, 64], sizes = [2, 32], strides = [1, 1]} : vector<2x128xf32> to vector<2x32xf32>
    %920 = vector.extract_strided_slice %916 {offsets = [0, 96], sizes = [2, 32], strides = [1, 1]} : vector<2x128xf32> to vector<2x32xf32>
    %921 = arith.mulf %918, %891 : vector<2x32xf32>
    %922 = arith.mulf %917, %919 : vector<2x32xf32>
    %923 = arith.addf %921, %922 : vector<2x32xf32>
    %924 = math.tanh %923 : vector<2x32xf32>
    %925 = arith.mulf %920, %924 : vector<2x32xf32>
    %cst_196 = arith.constant dense<0.000000e+00> : vector<2xf32>
    %926 = vector.multi_reduction <add>, %925, %cst_196 [1] : vector<2x32xf32> to vector<2xf32>
    %927 = vector.shape_cast %926 : vector<2xf32> to vector<2x1xf32>
    %cst_197 = arith.constant 3.125000e-02 : f32
    %928 = vector.broadcast %cst_197 : f32 to vector<2x1xf32>
    %929 = arith.mulf %927, %928 : vector<2x1xf32>
    %930 = vector.extract_strided_slice %125 {offsets = [24, 0], sizes = [1, 30], strides = [1, 1]} : vector<32x30xf32> to vector<1x30xf32>
    %931 = vector.broadcast %929 : vector<2x1xf32> to vector<2x30xf32>
    %932 = vector.broadcast %930 : vector<1x30xf32> to vector<2x30xf32>
    %933 = arith.mulf %931, %932 : vector<2x30xf32>
    %934 = arith.addf %902, %933 : vector<2x30xf32>
    %935 = vector.extract_strided_slice %123 {offsets = [50, 0], sizes = [2, 128], strides = [1, 1]} : vector<64x128xf32> to vector<2x128xf32>
    %936 = arith.truncf %925 : vector<2x32xf32> to vector<2x32xbf16>
    %cst_198 = arith.constant dense<0.000000e+00> : vector<2x128xf32>
    %937 = tpu.matmul %936, %124, %cst_198 {dimension_numbers = #tpu.dot_dimension_numbers<[1], [0], [0], [1], [0, 0, 1, 1], [], []>} : vector<2x32xbf16>, vector<32x128xbf16>, vector<2x128xf32> -> vector<2x128xf32>
    %938 = arith.addf %935, %937 : vector<2x128xf32>
    %cst_199 = arith.constant 5.000000e-01 : f32
    %939 = vector.broadcast %cst_199 : f32 to vector<2x128xf32>
    %940 = arith.mulf %939, %938 : vector<2x128xf32>
    %941 = vector.shape_cast %131 : vector<1x128xi1> to vector<1x128xi1>
    %942 = vector.broadcast %941 : vector<1x128xi1> to vector<2x128xi1>
    %943 = arith.select %942, %938, %940 : vector<2x128xi1>, vector<2x128xf32>
    %944 = math.tanh %943 : vector<2x128xf32>
    %cst_200 = arith.constant 5.000000e-01 : f32
    %945 = vector.broadcast %cst_200 : f32 to vector<2x128xf32>
    %946 = arith.mulf %945, %944 : vector<2x128xf32>
    %cst_201 = arith.constant 5.000000e-01 : f32
    %947 = vector.broadcast %cst_201 : f32 to vector<2x128xf32>
    %948 = arith.addf %946, %947 : vector<2x128xf32>
    %949 = vector.extract_strided_slice %948 {offsets = [0, 0], sizes = [2, 32], strides = [1, 1]} : vector<2x128xf32> to vector<2x32xf32>
    %950 = vector.extract_strided_slice %948 {offsets = [0, 32], sizes = [2, 32], strides = [1, 1]} : vector<2x128xf32> to vector<2x32xf32>
    %951 = vector.extract_strided_slice %944 {offsets = [0, 64], sizes = [2, 32], strides = [1, 1]} : vector<2x128xf32> to vector<2x32xf32>
    %952 = vector.extract_strided_slice %948 {offsets = [0, 96], sizes = [2, 32], strides = [1, 1]} : vector<2x128xf32> to vector<2x32xf32>
    %953 = arith.mulf %950, %923 : vector<2x32xf32>
    %954 = arith.mulf %949, %951 : vector<2x32xf32>
    %955 = arith.addf %953, %954 : vector<2x32xf32>
    %956 = math.tanh %955 : vector<2x32xf32>
    %957 = arith.mulf %952, %956 : vector<2x32xf32>
    %cst_202 = arith.constant dense<0.000000e+00> : vector<2xf32>
    %958 = vector.multi_reduction <add>, %957, %cst_202 [1] : vector<2x32xf32> to vector<2xf32>
    %959 = vector.shape_cast %958 : vector<2xf32> to vector<2x1xf32>
    %cst_203 = arith.constant 3.125000e-02 : f32
    %960 = vector.broadcast %cst_203 : f32 to vector<2x1xf32>
    %961 = arith.mulf %959, %960 : vector<2x1xf32>
    %962 = vector.extract_strided_slice %125 {offsets = [25, 0], sizes = [1, 30], strides = [1, 1]} : vector<32x30xf32> to vector<1x30xf32>
    %963 = vector.broadcast %961 : vector<2x1xf32> to vector<2x30xf32>
    %964 = vector.broadcast %962 : vector<1x30xf32> to vector<2x30xf32>
    %965 = arith.mulf %963, %964 : vector<2x30xf32>
    %966 = arith.addf %934, %965 : vector<2x30xf32>
    %967 = vector.extract_strided_slice %123 {offsets = [52, 0], sizes = [2, 128], strides = [1, 1]} : vector<64x128xf32> to vector<2x128xf32>
    %968 = arith.truncf %957 : vector<2x32xf32> to vector<2x32xbf16>
    %cst_204 = arith.constant dense<0.000000e+00> : vector<2x128xf32>
    %969 = tpu.matmul %968, %124, %cst_204 {dimension_numbers = #tpu.dot_dimension_numbers<[1], [0], [0], [1], [0, 0, 1, 1], [], []>} : vector<2x32xbf16>, vector<32x128xbf16>, vector<2x128xf32> -> vector<2x128xf32>
    %970 = arith.addf %967, %969 : vector<2x128xf32>
    %cst_205 = arith.constant 5.000000e-01 : f32
    %971 = vector.broadcast %cst_205 : f32 to vector<2x128xf32>
    %972 = arith.mulf %971, %970 : vector<2x128xf32>
    %973 = vector.shape_cast %131 : vector<1x128xi1> to vector<1x128xi1>
    %974 = vector.broadcast %973 : vector<1x128xi1> to vector<2x128xi1>
    %975 = arith.select %974, %970, %972 : vector<2x128xi1>, vector<2x128xf32>
    %976 = math.tanh %975 : vector<2x128xf32>
    %cst_206 = arith.constant 5.000000e-01 : f32
    %977 = vector.broadcast %cst_206 : f32 to vector<2x128xf32>
    %978 = arith.mulf %977, %976 : vector<2x128xf32>
    %cst_207 = arith.constant 5.000000e-01 : f32
    %979 = vector.broadcast %cst_207 : f32 to vector<2x128xf32>
    %980 = arith.addf %978, %979 : vector<2x128xf32>
    %981 = vector.extract_strided_slice %980 {offsets = [0, 0], sizes = [2, 32], strides = [1, 1]} : vector<2x128xf32> to vector<2x32xf32>
    %982 = vector.extract_strided_slice %980 {offsets = [0, 32], sizes = [2, 32], strides = [1, 1]} : vector<2x128xf32> to vector<2x32xf32>
    %983 = vector.extract_strided_slice %976 {offsets = [0, 64], sizes = [2, 32], strides = [1, 1]} : vector<2x128xf32> to vector<2x32xf32>
    %984 = vector.extract_strided_slice %980 {offsets = [0, 96], sizes = [2, 32], strides = [1, 1]} : vector<2x128xf32> to vector<2x32xf32>
    %985 = arith.mulf %982, %955 : vector<2x32xf32>
    %986 = arith.mulf %981, %983 : vector<2x32xf32>
    %987 = arith.addf %985, %986 : vector<2x32xf32>
    %988 = math.tanh %987 : vector<2x32xf32>
    %989 = arith.mulf %984, %988 : vector<2x32xf32>
    %cst_208 = arith.constant dense<0.000000e+00> : vector<2xf32>
    %990 = vector.multi_reduction <add>, %989, %cst_208 [1] : vector<2x32xf32> to vector<2xf32>
    %991 = vector.shape_cast %990 : vector<2xf32> to vector<2x1xf32>
    %cst_209 = arith.constant 3.125000e-02 : f32
    %992 = vector.broadcast %cst_209 : f32 to vector<2x1xf32>
    %993 = arith.mulf %991, %992 : vector<2x1xf32>
    %994 = vector.extract_strided_slice %125 {offsets = [26, 0], sizes = [1, 30], strides = [1, 1]} : vector<32x30xf32> to vector<1x30xf32>
    %995 = vector.broadcast %993 : vector<2x1xf32> to vector<2x30xf32>
    %996 = vector.broadcast %994 : vector<1x30xf32> to vector<2x30xf32>
    %997 = arith.mulf %995, %996 : vector<2x30xf32>
    %998 = arith.addf %966, %997 : vector<2x30xf32>
    %999 = vector.extract_strided_slice %123 {offsets = [54, 0], sizes = [2, 128], strides = [1, 1]} : vector<64x128xf32> to vector<2x128xf32>
    %1000 = arith.truncf %989 : vector<2x32xf32> to vector<2x32xbf16>
    %cst_210 = arith.constant dense<0.000000e+00> : vector<2x128xf32>
    %1001 = tpu.matmul %1000, %124, %cst_210 {dimension_numbers = #tpu.dot_dimension_numbers<[1], [0], [0], [1], [0, 0, 1, 1], [], []>} : vector<2x32xbf16>, vector<32x128xbf16>, vector<2x128xf32> -> vector<2x128xf32>
    %1002 = arith.addf %999, %1001 : vector<2x128xf32>
    %cst_211 = arith.constant 5.000000e-01 : f32
    %1003 = vector.broadcast %cst_211 : f32 to vector<2x128xf32>
    %1004 = arith.mulf %1003, %1002 : vector<2x128xf32>
    %1005 = vector.shape_cast %131 : vector<1x128xi1> to vector<1x128xi1>
    %1006 = vector.broadcast %1005 : vector<1x128xi1> to vector<2x128xi1>
    %1007 = arith.select %1006, %1002, %1004 : vector<2x128xi1>, vector<2x128xf32>
    %1008 = math.tanh %1007 : vector<2x128xf32>
    %cst_212 = arith.constant 5.000000e-01 : f32
    %1009 = vector.broadcast %cst_212 : f32 to vector<2x128xf32>
    %1010 = arith.mulf %1009, %1008 : vector<2x128xf32>
    %cst_213 = arith.constant 5.000000e-01 : f32
    %1011 = vector.broadcast %cst_213 : f32 to vector<2x128xf32>
    %1012 = arith.addf %1010, %1011 : vector<2x128xf32>
    %1013 = vector.extract_strided_slice %1012 {offsets = [0, 0], sizes = [2, 32], strides = [1, 1]} : vector<2x128xf32> to vector<2x32xf32>
    %1014 = vector.extract_strided_slice %1012 {offsets = [0, 32], sizes = [2, 32], strides = [1, 1]} : vector<2x128xf32> to vector<2x32xf32>
    %1015 = vector.extract_strided_slice %1008 {offsets = [0, 64], sizes = [2, 32], strides = [1, 1]} : vector<2x128xf32> to vector<2x32xf32>
    %1016 = vector.extract_strided_slice %1012 {offsets = [0, 96], sizes = [2, 32], strides = [1, 1]} : vector<2x128xf32> to vector<2x32xf32>
    %1017 = arith.mulf %1014, %987 : vector<2x32xf32>
    %1018 = arith.mulf %1013, %1015 : vector<2x32xf32>
    %1019 = arith.addf %1017, %1018 : vector<2x32xf32>
    %1020 = math.tanh %1019 : vector<2x32xf32>
    %1021 = arith.mulf %1016, %1020 : vector<2x32xf32>
    %cst_214 = arith.constant dense<0.000000e+00> : vector<2xf32>
    %1022 = vector.multi_reduction <add>, %1021, %cst_214 [1] : vector<2x32xf32> to vector<2xf32>
    %1023 = vector.shape_cast %1022 : vector<2xf32> to vector<2x1xf32>
    %cst_215 = arith.constant 3.125000e-02 : f32
    %1024 = vector.broadcast %cst_215 : f32 to vector<2x1xf32>
    %1025 = arith.mulf %1023, %1024 : vector<2x1xf32>
    %1026 = vector.extract_strided_slice %125 {offsets = [27, 0], sizes = [1, 30], strides = [1, 1]} : vector<32x30xf32> to vector<1x30xf32>
    %1027 = vector.broadcast %1025 : vector<2x1xf32> to vector<2x30xf32>
    %1028 = vector.broadcast %1026 : vector<1x30xf32> to vector<2x30xf32>
    %1029 = arith.mulf %1027, %1028 : vector<2x30xf32>
    %1030 = arith.addf %998, %1029 : vector<2x30xf32>
    %1031 = vector.extract_strided_slice %123 {offsets = [56, 0], sizes = [2, 128], strides = [1, 1]} : vector<64x128xf32> to vector<2x128xf32>
    %1032 = arith.truncf %1021 : vector<2x32xf32> to vector<2x32xbf16>
    %cst_216 = arith.constant dense<0.000000e+00> : vector<2x128xf32>
    %1033 = tpu.matmul %1032, %124, %cst_216 {dimension_numbers = #tpu.dot_dimension_numbers<[1], [0], [0], [1], [0, 0, 1, 1], [], []>} : vector<2x32xbf16>, vector<32x128xbf16>, vector<2x128xf32> -> vector<2x128xf32>
    %1034 = arith.addf %1031, %1033 : vector<2x128xf32>
    %cst_217 = arith.constant 5.000000e-01 : f32
    %1035 = vector.broadcast %cst_217 : f32 to vector<2x128xf32>
    %1036 = arith.mulf %1035, %1034 : vector<2x128xf32>
    %1037 = vector.shape_cast %131 : vector<1x128xi1> to vector<1x128xi1>
    %1038 = vector.broadcast %1037 : vector<1x128xi1> to vector<2x128xi1>
    %1039 = arith.select %1038, %1034, %1036 : vector<2x128xi1>, vector<2x128xf32>
    %1040 = math.tanh %1039 : vector<2x128xf32>
    %cst_218 = arith.constant 5.000000e-01 : f32
    %1041 = vector.broadcast %cst_218 : f32 to vector<2x128xf32>
    %1042 = arith.mulf %1041, %1040 : vector<2x128xf32>
    %cst_219 = arith.constant 5.000000e-01 : f32
    %1043 = vector.broadcast %cst_219 : f32 to vector<2x128xf32>
    %1044 = arith.addf %1042, %1043 : vector<2x128xf32>
    %1045 = vector.extract_strided_slice %1044 {offsets = [0, 0], sizes = [2, 32], strides = [1, 1]} : vector<2x128xf32> to vector<2x32xf32>
    %1046 = vector.extract_strided_slice %1044 {offsets = [0, 32], sizes = [2, 32], strides = [1, 1]} : vector<2x128xf32> to vector<2x32xf32>
    %1047 = vector.extract_strided_slice %1040 {offsets = [0, 64], sizes = [2, 32], strides = [1, 1]} : vector<2x128xf32> to vector<2x32xf32>
    %1048 = vector.extract_strided_slice %1044 {offsets = [0, 96], sizes = [2, 32], strides = [1, 1]} : vector<2x128xf32> to vector<2x32xf32>
    %1049 = arith.mulf %1046, %1019 : vector<2x32xf32>
    %1050 = arith.mulf %1045, %1047 : vector<2x32xf32>
    %1051 = arith.addf %1049, %1050 : vector<2x32xf32>
    %1052 = math.tanh %1051 : vector<2x32xf32>
    %1053 = arith.mulf %1048, %1052 : vector<2x32xf32>
    %cst_220 = arith.constant dense<0.000000e+00> : vector<2xf32>
    %1054 = vector.multi_reduction <add>, %1053, %cst_220 [1] : vector<2x32xf32> to vector<2xf32>
    %1055 = vector.shape_cast %1054 : vector<2xf32> to vector<2x1xf32>
    %cst_221 = arith.constant 3.125000e-02 : f32
    %1056 = vector.broadcast %cst_221 : f32 to vector<2x1xf32>
    %1057 = arith.mulf %1055, %1056 : vector<2x1xf32>
    %1058 = vector.extract_strided_slice %125 {offsets = [28, 0], sizes = [1, 30], strides = [1, 1]} : vector<32x30xf32> to vector<1x30xf32>
    %1059 = vector.broadcast %1057 : vector<2x1xf32> to vector<2x30xf32>
    %1060 = vector.broadcast %1058 : vector<1x30xf32> to vector<2x30xf32>
    %1061 = arith.mulf %1059, %1060 : vector<2x30xf32>
    %1062 = arith.addf %1030, %1061 : vector<2x30xf32>
    %1063 = vector.extract_strided_slice %123 {offsets = [58, 0], sizes = [2, 128], strides = [1, 1]} : vector<64x128xf32> to vector<2x128xf32>
    %1064 = arith.truncf %1053 : vector<2x32xf32> to vector<2x32xbf16>
    %cst_222 = arith.constant dense<0.000000e+00> : vector<2x128xf32>
    %1065 = tpu.matmul %1064, %124, %cst_222 {dimension_numbers = #tpu.dot_dimension_numbers<[1], [0], [0], [1], [0, 0, 1, 1], [], []>} : vector<2x32xbf16>, vector<32x128xbf16>, vector<2x128xf32> -> vector<2x128xf32>
    %1066 = arith.addf %1063, %1065 : vector<2x128xf32>
    %cst_223 = arith.constant 5.000000e-01 : f32
    %1067 = vector.broadcast %cst_223 : f32 to vector<2x128xf32>
    %1068 = arith.mulf %1067, %1066 : vector<2x128xf32>
    %1069 = vector.shape_cast %131 : vector<1x128xi1> to vector<1x128xi1>
    %1070 = vector.broadcast %1069 : vector<1x128xi1> to vector<2x128xi1>
    %1071 = arith.select %1070, %1066, %1068 : vector<2x128xi1>, vector<2x128xf32>
    %1072 = math.tanh %1071 : vector<2x128xf32>
    %cst_224 = arith.constant 5.000000e-01 : f32
    %1073 = vector.broadcast %cst_224 : f32 to vector<2x128xf32>
    %1074 = arith.mulf %1073, %1072 : vector<2x128xf32>
    %cst_225 = arith.constant 5.000000e-01 : f32
    %1075 = vector.broadcast %cst_225 : f32 to vector<2x128xf32>
    %1076 = arith.addf %1074, %1075 : vector<2x128xf32>
    %1077 = vector.extract_strided_slice %1076 {offsets = [0, 0], sizes = [2, 32], strides = [1, 1]} : vector<2x128xf32> to vector<2x32xf32>
    %1078 = vector.extract_strided_slice %1076 {offsets = [0, 32], sizes = [2, 32], strides = [1, 1]} : vector<2x128xf32> to vector<2x32xf32>
    %1079 = vector.extract_strided_slice %1072 {offsets = [0, 64], sizes = [2, 32], strides = [1, 1]} : vector<2x128xf32> to vector<2x32xf32>
    %1080 = vector.extract_strided_slice %1076 {offsets = [0, 96], sizes = [2, 32], strides = [1, 1]} : vector<2x128xf32> to vector<2x32xf32>
    %1081 = arith.mulf %1078, %1051 : vector<2x32xf32>
    %1082 = arith.mulf %1077, %1079 : vector<2x32xf32>
    %1083 = arith.addf %1081, %1082 : vector<2x32xf32>
    %1084 = math.tanh %1083 : vector<2x32xf32>
    %1085 = arith.mulf %1080, %1084 : vector<2x32xf32>
    %cst_226 = arith.constant dense<0.000000e+00> : vector<2xf32>
    %1086 = vector.multi_reduction <add>, %1085, %cst_226 [1] : vector<2x32xf32> to vector<2xf32>
    %1087 = vector.shape_cast %1086 : vector<2xf32> to vector<2x1xf32>
    %cst_227 = arith.constant 3.125000e-02 : f32
    %1088 = vector.broadcast %cst_227 : f32 to vector<2x1xf32>
    %1089 = arith.mulf %1087, %1088 : vector<2x1xf32>
    %1090 = vector.extract_strided_slice %125 {offsets = [29, 0], sizes = [1, 30], strides = [1, 1]} : vector<32x30xf32> to vector<1x30xf32>
    %1091 = vector.broadcast %1089 : vector<2x1xf32> to vector<2x30xf32>
    %1092 = vector.broadcast %1090 : vector<1x30xf32> to vector<2x30xf32>
    %1093 = arith.mulf %1091, %1092 : vector<2x30xf32>
    %1094 = arith.addf %1062, %1093 : vector<2x30xf32>
    %1095 = vector.extract_strided_slice %123 {offsets = [60, 0], sizes = [2, 128], strides = [1, 1]} : vector<64x128xf32> to vector<2x128xf32>
    %1096 = arith.truncf %1085 : vector<2x32xf32> to vector<2x32xbf16>
    %cst_228 = arith.constant dense<0.000000e+00> : vector<2x128xf32>
    %1097 = tpu.matmul %1096, %124, %cst_228 {dimension_numbers = #tpu.dot_dimension_numbers<[1], [0], [0], [1], [0, 0, 1, 1], [], []>} : vector<2x32xbf16>, vector<32x128xbf16>, vector<2x128xf32> -> vector<2x128xf32>
    %1098 = arith.addf %1095, %1097 : vector<2x128xf32>
    %cst_229 = arith.constant 5.000000e-01 : f32
    %1099 = vector.broadcast %cst_229 : f32 to vector<2x128xf32>
    %1100 = arith.mulf %1099, %1098 : vector<2x128xf32>
    %1101 = vector.shape_cast %131 : vector<1x128xi1> to vector<1x128xi1>
    %1102 = vector.broadcast %1101 : vector<1x128xi1> to vector<2x128xi1>
    %1103 = arith.select %1102, %1098, %1100 : vector<2x128xi1>, vector<2x128xf32>
    %1104 = math.tanh %1103 : vector<2x128xf32>
    %cst_230 = arith.constant 5.000000e-01 : f32
    %1105 = vector.broadcast %cst_230 : f32 to vector<2x128xf32>
    %1106 = arith.mulf %1105, %1104 : vector<2x128xf32>
    %cst_231 = arith.constant 5.000000e-01 : f32
    %1107 = vector.broadcast %cst_231 : f32 to vector<2x128xf32>
    %1108 = arith.addf %1106, %1107 : vector<2x128xf32>
    %1109 = vector.extract_strided_slice %1108 {offsets = [0, 0], sizes = [2, 32], strides = [1, 1]} : vector<2x128xf32> to vector<2x32xf32>
    %1110 = vector.extract_strided_slice %1108 {offsets = [0, 32], sizes = [2, 32], strides = [1, 1]} : vector<2x128xf32> to vector<2x32xf32>
    %1111 = vector.extract_strided_slice %1104 {offsets = [0, 64], sizes = [2, 32], strides = [1, 1]} : vector<2x128xf32> to vector<2x32xf32>
    %1112 = vector.extract_strided_slice %1108 {offsets = [0, 96], sizes = [2, 32], strides = [1, 1]} : vector<2x128xf32> to vector<2x32xf32>
    %1113 = arith.mulf %1110, %1083 : vector<2x32xf32>
    %1114 = arith.mulf %1109, %1111 : vector<2x32xf32>
    %1115 = arith.addf %1113, %1114 : vector<2x32xf32>
    %1116 = math.tanh %1115 : vector<2x32xf32>
    %1117 = arith.mulf %1112, %1116 : vector<2x32xf32>
    %cst_232 = arith.constant dense<0.000000e+00> : vector<2xf32>
    %1118 = vector.multi_reduction <add>, %1117, %cst_232 [1] : vector<2x32xf32> to vector<2xf32>
    %1119 = vector.shape_cast %1118 : vector<2xf32> to vector<2x1xf32>
    %cst_233 = arith.constant 3.125000e-02 : f32
    %1120 = vector.broadcast %cst_233 : f32 to vector<2x1xf32>
    %1121 = arith.mulf %1119, %1120 : vector<2x1xf32>
    %1122 = vector.extract_strided_slice %125 {offsets = [30, 0], sizes = [1, 30], strides = [1, 1]} : vector<32x30xf32> to vector<1x30xf32>
    %1123 = vector.broadcast %1121 : vector<2x1xf32> to vector<2x30xf32>
    %1124 = vector.broadcast %1122 : vector<1x30xf32> to vector<2x30xf32>
    %1125 = arith.mulf %1123, %1124 : vector<2x30xf32>
    %1126 = arith.addf %1094, %1125 : vector<2x30xf32>
    %1127 = vector.extract_strided_slice %123 {offsets = [62, 0], sizes = [2, 128], strides = [1, 1]} : vector<64x128xf32> to vector<2x128xf32>
    %1128 = arith.truncf %1117 : vector<2x32xf32> to vector<2x32xbf16>
    %cst_234 = arith.constant dense<0.000000e+00> : vector<2x128xf32>
    %1129 = tpu.matmul %1128, %124, %cst_234 {dimension_numbers = #tpu.dot_dimension_numbers<[1], [0], [0], [1], [0, 0, 1, 1], [], []>} : vector<2x32xbf16>, vector<32x128xbf16>, vector<2x128xf32> -> vector<2x128xf32>
    %1130 = arith.addf %1127, %1129 : vector<2x128xf32>
    %cst_235 = arith.constant 5.000000e-01 : f32
    %1131 = vector.broadcast %cst_235 : f32 to vector<2x128xf32>
    %1132 = arith.mulf %1131, %1130 : vector<2x128xf32>
    %1133 = vector.shape_cast %131 : vector<1x128xi1> to vector<1x128xi1>
    %1134 = vector.broadcast %1133 : vector<1x128xi1> to vector<2x128xi1>
    %1135 = arith.select %1134, %1130, %1132 : vector<2x128xi1>, vector<2x128xf32>
    %1136 = math.tanh %1135 : vector<2x128xf32>
    %cst_236 = arith.constant 5.000000e-01 : f32
    %1137 = vector.broadcast %cst_236 : f32 to vector<2x128xf32>
    %1138 = arith.mulf %1137, %1136 : vector<2x128xf32>
    %cst_237 = arith.constant 5.000000e-01 : f32
    %1139 = vector.broadcast %cst_237 : f32 to vector<2x128xf32>
    %1140 = arith.addf %1138, %1139 : vector<2x128xf32>
    %1141 = vector.extract_strided_slice %1140 {offsets = [0, 0], sizes = [2, 32], strides = [1, 1]} : vector<2x128xf32> to vector<2x32xf32>
    %1142 = vector.extract_strided_slice %1140 {offsets = [0, 32], sizes = [2, 32], strides = [1, 1]} : vector<2x128xf32> to vector<2x32xf32>
    %1143 = vector.extract_strided_slice %1136 {offsets = [0, 64], sizes = [2, 32], strides = [1, 1]} : vector<2x128xf32> to vector<2x32xf32>
    %1144 = vector.extract_strided_slice %1140 {offsets = [0, 96], sizes = [2, 32], strides = [1, 1]} : vector<2x128xf32> to vector<2x32xf32>
    %1145 = arith.mulf %1142, %1115 : vector<2x32xf32>
    %1146 = arith.mulf %1141, %1143 : vector<2x32xf32>
    %1147 = arith.addf %1145, %1146 : vector<2x32xf32>
    %1148 = math.tanh %1147 : vector<2x32xf32>
    %1149 = arith.mulf %1144, %1148 : vector<2x32xf32>
    %cst_238 = arith.constant dense<0.000000e+00> : vector<2xf32>
    %1150 = vector.multi_reduction <add>, %1149, %cst_238 [1] : vector<2x32xf32> to vector<2xf32>
    %1151 = vector.shape_cast %1150 : vector<2xf32> to vector<2x1xf32>
    %cst_239 = arith.constant 3.125000e-02 : f32
    %1152 = vector.broadcast %cst_239 : f32 to vector<2x1xf32>
    %1153 = arith.mulf %1151, %1152 : vector<2x1xf32>
    %1154 = vector.extract_strided_slice %125 {offsets = [31, 0], sizes = [1, 30], strides = [1, 1]} : vector<32x30xf32> to vector<1x30xf32>
    %1155 = vector.broadcast %1153 : vector<2x1xf32> to vector<2x30xf32>
    %1156 = vector.broadcast %1154 : vector<1x30xf32> to vector<2x30xf32>
    %1157 = arith.mulf %1155, %1156 : vector<2x30xf32>
    %1158 = arith.addf %1126, %1157 : vector<2x30xf32>
    %c0_240 = arith.constant 0 : index
    %c0_241 = arith.constant 0 : index
    %1159 = vector.load %arg12[%c0_240, %c0_241] : memref<1x30xf32, #tpu.memory_space<vmem>>, vector<1x30xf32>
    %1160 = vector.broadcast %1159 : vector<1x30xf32> to vector<2x30xf32>
    %1161 = arith.addf %1158, %1160 : vector<2x30xf32>
    %cst_242 = arith.constant 0.000000e+00 : f32
    %1162 = vector.broadcast %cst_242 : f32 to vector<2x30xf32>
    %1163 = arith.maximumf %1161, %1162 : vector<2x30xf32>
    %c0_243 = arith.constant 0 : index
    %c0_244 = arith.constant 0 : index
    %1164 = vector.load %arg13[%c0_243, %c0_244] : memref<2x30xf32, #tpu.memory_space<vmem>>, vector<2x30xf32>
    tpu.vector_store %arg13[%c0_243, %c0_244], %1163 {strides = array<i32>} : memref<2x30xf32, #tpu.memory_space<vmem>>, vector<2x30xf32>,
    return
  }
}

</mosaic_0001>

<llo_original>
// kernel: rnn_model_forward.1
$region0: #{rnn_model_forward.1}
  #allocation0 [shape = 'u32[]', space=smem, size = 0x4, offset = 0x4, fixed_abs, tag = 'smem constant byte address 0x4 - core index']
  #allocation1 [shape = 'u32[144,128]{1,0:T(1,128)}', space=vmem, size = 0x12000, scoped, tag = 'internal scratch']
  %s0 = inlined_call_operand.vmem [shape: bf16[40,1024], index: 0, kind: input, shape index: {}]
  %s1 = inlined_call_operand.vmem [shape: bf16[64,40], index: 1, kind: input, shape index: {}]
  %s2 = inlined_call_operand.vmem [shape: f32[64,1], index: 2, kind: input, shape index: {}]
  %s3 = inlined_call_operand.vmem [shape: f32[64,1], index: 3, kind: input, shape index: {}]
  %s4 = inlined_call_operand.vmem [shape: bf16[64,320], index: 4, kind: input, shape index: {}]
  %s5 = inlined_call_operand.vmem [shape: f32[64,1], index: 5, kind: input, shape index: {}]
  %s6 = inlined_call_operand.vmem [shape: f32[64,1], index: 6, kind: input, shape index: {}]
  %s7 = inlined_call_operand.vmem [shape: f32[64,64], index: 7, kind: input, shape index: {}]
  %s8 = inlined_call_operand.vmem [shape: bf16[248,128], index: 8, kind: input, shape index: {}]
  %s9 = inlined_call_operand.vmem [shape: bf16[32,128], index: 9, kind: input, shape index: {}]
  %s10 = inlined_call_operand.vmem [shape: f32[1,128], index: 10, kind: input, shape index: {}]
  %s11 = inlined_call_operand.vmem [shape: f32[32,30], index: 11, kind: input, shape index: {}]
  %s12 = inlined_call_operand.vmem [shape: f32[1,30], index: 12, kind: input, shape index: {}]
  %s13 = inlined_call_operand.hbm [shape: f32[2,30], index: 13, kind: output, shape index: {}]
  %s14 = sld [smem:[#allocation0]]
  $region62: #{rnn_model_forward.1} parent=0
    _
  %s16 = ssub.s32 1, %s14
  %s17 = scalar_select 0, %s16, %s14
  $region1: #{rnn_model_forward.1} parent=0
    #allocation2 [shape = 'u8[1024]{0}', space=vmem, size = 0x400, scoped, tag = 'output window, operand 0, single buffered']
    #allocation3 [shape = 's32[1]{0}', space=sflag, size = 0x4, scoped, tag = 'scoped memory for rnn_model_forward.1']
    %18 = vsyncpa [#allocation3], 0
    // Predicated region
    $region2: #{rnn_model_forward.1} parent=1 // pred_check
      _
    $region3: #{rnn_model_forward.1} parent=1 // pred_check_branch
      %20 = sbr.rel (0) target = $region5
    $region4: #{rnn_model_forward.1} parent=1 // pred_region
      _
    $region5: #{rnn_model_forward.1} parent=1 // pred_fallthru
      _
    // Predicated region
    $region6: #{rnn_model_forward.1} parent=1 // pred_check
      _
    $region7: #{rnn_model_forward.1} parent=1 // pred_check_branch
      %22 = sbr.rel (0) target = $region9
    $region8: #{rnn_model_forward.1} parent=1 // pred_region
      _
    $region9: #{rnn_model_forward.1} parent=1 // pred_fallthru
      _
    // Predicated region
    $region10: #{rnn_model_forward.1} parent=1 // pred_check
      _
    $region11: #{rnn_model_forward.1} parent=1 // pred_check_branch
      %24 = sbr.rel (0) target = $region13
    $region12: #{rnn_model_forward.1} parent=1 // pred_region
      _
    $region13: #{rnn_model_forward.1} parent=1 // pred_fallthru
      _
    // Predicated region
    $region14: #{rnn_model_forward.1} parent=1 // pred_check
      _
    $region15: #{rnn_model_forward.1} parent=1 // pred_check_branch
      %26 = sbr.rel (0) target = $region17
    $region16: #{rnn_model_forward.1} parent=1 // pred_region
      _
    $region17: #{rnn_model_forward.1} parent=1 // pred_fallthru
      _
    // Predicated region
    $region18: #{rnn_model_forward.1} parent=1 // pred_check
      _
    $region19: #{rnn_model_forward.1} parent=1 // pred_check_branch
      %28 = sbr.rel (0) target = $region21
    $region20: #{rnn_model_forward.1} parent=1 // pred_region
      _
    $region21: #{rnn_model_forward.1} parent=1 // pred_fallthru
      _
    // Predicated region
    $region22: #{rnn_model_forward.1} parent=1 // pred_check
      _
    $region23: #{rnn_model_forward.1} parent=1 // pred_check_branch
      %30 = sbr.rel (0) target = $region25
    $region24: #{rnn_model_forward.1} parent=1 // pred_region
      _
    $region25: #{rnn_model_forward.1} parent=1 // pred_fallthru
      _
    // Predicated region
    $region26: #{rnn_model_forward.1} parent=1 // pred_check
      _
    $region27: #{rnn_model_forward.1} parent=1 // pred_check_branch
      %32 = sbr.rel (0) target = $region29
    $region28: #{rnn_model_forward.1} parent=1 // pred_region
      _
    $region29: #{rnn_model_forward.1} parent=1 // pred_fallthru
      _
    // Predicated region
    $region30: #{rnn_model_forward.1} parent=1 // pred_check
      _
    $region31: #{rnn_model_forward.1} parent=1 // pred_check_branch
      %34 = sbr.rel (0) target = $region33
    $region32: #{rnn_model_forward.1} parent=1 // pred_region
      _
    $region33: #{rnn_model_forward.1} parent=1 // pred_fallthru
      _
    // Predicated region
    $region34: #{rnn_model_forward.1} parent=1 // pred_check
      _
    $region35: #{rnn_model_forward.1} parent=1 // pred_check_branch
      %36 = sbr.rel (0) target = $region37
    $region36: #{rnn_model_forward.1} parent=1 // pred_region
      _
    $region37: #{rnn_model_forward.1} parent=1 // pred_fallthru
      _
    // Predicated region
    $region38: #{rnn_model_forward.1} parent=1 // pred_check
      _
    $region39: #{rnn_model_forward.1} parent=1 // pred_check_branch
      %38 = sbr.rel (0) target = $region41
    $region40: #{rnn_model_forward.1} parent=1 // pred_region
      _
    $region41: #{rnn_model_forward.1} parent=1 // pred_fallthru
      _
    // Predicated region
    $region42: #{rnn_model_forward.1} parent=1 // pred_check
      _
    $region43: #{rnn_model_forward.1} parent=1 // pred_check_branch
      %40 = sbr.rel (0) target = $region45
    $region44: #{rnn_model_forward.1} parent=1 // pred_region
      _
    $region45: #{rnn_model_forward.1} parent=1 // pred_fallthru
      _
    // Predicated region
    $region46: #{rnn_model_forward.1} parent=1 // pred_check
      _
    $region47: #{rnn_model_forward.1} parent=1 // pred_check_branch
      %42 = sbr.rel (0) target = $region49
    $region48: #{rnn_model_forward.1} parent=1 // pred_region
      _
    $region49: #{rnn_model_forward.1} parent=1 // pred_fallthru
      _
    // Predicated region
    $region50: #{rnn_model_forward.1} parent=1 // pred_check
      _
    $region51: #{rnn_model_forward.1} parent=1 // pred_check_branch
      %44 = sbr.rel (0) target = $region53
    $region52: #{rnn_model_forward.1} parent=1 // pred_region
      _
    $region53: #{rnn_model_forward.1} parent=1 // pred_fallthru
      _
    %v46 = vld [vmem:[%s1] sm:$0xf]
    %v47 = vld [vmem:[%s1 + $0x4] sm:$0xf]
    %v48 = vld [vmem:[%s1 + $0x8] sm:$0xf]
    %v49 = vld [vmem:[%s1 + $0xc] sm:$0xf]
    %v50 = vld [vmem:[%s1 + $0x10] sm:$0xf]
    %v51 = vld [vmem:[%s1 + $0x14] sm:$0xf]
    %v52 = vld [vmem:[%s1 + $0x18] sm:$0xf]
    %v53 = vld [vmem:[%s1 + $0x1c] sm:$0xf]
    %v54 = vld [vmem:[%s0] sm:$0xff]
    %v55 = vld [vmem:[%s0 + $0x8] sm:$0xff]
    %v56 = vld [vmem:[%s0 + $0x10] sm:$0xff]
    %v57 = vld [vmem:[%s0 + $0x18] sm:$0xff]
    %v58 = vld [vmem:[%s0 + $0x20] sm:$0xff]
    %v59 = vld [vmem:[%s0 + $0x28] sm:$0xff]
    %v60 = vld [vmem:[%s0 + $0x30] sm:$0xff]
    %v61 = vld [vmem:[%s0 + $0x38] sm:$0xff]
    %v62 = vld [vmem:[%s0 + $0x40] sm:$0xff]
    %v63 = vld [vmem:[%s0 + $0x48] sm:$0xff]
    %v64 = vld [vmem:[%s0 + $0x50] sm:$0xff]
    %v65 = vld [vmem:[%s0 + $0x58] sm:$0xff]
    %v66 = vld [vmem:[%s0 + $0x60] sm:$0xff]
    %v67 = vld [vmem:[%s0 + $0x68] sm:$0xff]
    %v68 = vld [vmem:[%s0 + $0x70] sm:$0xff]
    %v69 = vld [vmem:[%s0 + $0x78] sm:$0xff]
    %v70 = vld [vmem:[%s0 + $0x80] sm:$0xff]
    %v71 = vld [vmem:[%s0 + $0x88] sm:$0xff]
    %v72 = vld [vmem:[%s0 + $0x90] sm:$0xff]
    %v73 = vld [vmem:[%s0 + $0x98] sm:$0xff]
    %v82 = vunpack.c.l.b16 %v46
    %v83 = vunpack.c.l.b16 %v47
    %v84 = vunpack.c.l.b16 %v48
    %v85 = vunpack.c.l.b16 %v49
    %v86 = vunpack.c.l.b16 %v50
    %v87 = vunpack.c.l.b16 %v51
    %v88 = vunpack.c.l.b16 %v52
    %v89 = vunpack.c.l.b16 %v53
    %v90 = vpack.c.b16 %v83, %v82
    %v91 = vpack.c.b16 %v85, %v84
    %v92 = vpack.c.b16 %v87, %v86
    %v93 = vpack.c.b16 %v89, %v88
    %v114 = vunpack.c.l.b16 %v54
    %v115 = vunpack.c.h.b16 %v54
    %v116 = vunpack.c.l.b16 %v55
    %v117 = vunpack.c.h.b16 %v55
    %v118 = vunpack.c.l.b16 %v56
    %v119 = vunpack.c.h.b16 %v56
    %v120 = vunpack.c.l.b16 %v57
    %v121 = vunpack.c.h.b16 %v57
    %v122 = vunpack.c.l.b16 %v58
    %v123 = vunpack.c.h.b16 %v58
    %v124 = vunpack.c.l.b16 %v59
    %v125 = vunpack.c.h.b16 %v59
    %v126 = vunpack.c.l.b16 %v60
    %v127 = vunpack.c.h.b16 %v60
    %v128 = vunpack.c.l.b16 %v61
    %v129 = vunpack.c.h.b16 %v61
    %v130 = vunpack.c.l.b16 %v62
    %v131 = vunpack.c.h.b16 %v62
    %v132 = vunpack.c.l.b16 %v63
    %v133 = vunpack.c.h.b16 %v63
    %v134 = vunpack.c.l.b16 %v64
    %v135 = vunpack.c.h.b16 %v64
    %v136 = vunpack.c.l.b16 %v65
    %v137 = vunpack.c.h.b16 %v65
    %v138 = vunpack.c.l.b16 %v66
    %v139 = vunpack.c.h.b16 %v66
    %v140 = vunpack.c.l.b16 %v67
    %v141 = vunpack.c.h.b16 %v67
    %v142 = vunpack.c.l.b16 %v68
    %v143 = vunpack.c.h.b16 %v68
    %v144 = vunpack.c.l.b16 %v69
    %v145 = vunpack.c.h.b16 %v69
    %v146 = vunpack.c.l.b16 %v70
    %v147 = vunpack.c.h.b16 %v70
    %v148 = vunpack.c.l.b16 %v71
    %v149 = vunpack.c.h.b16 %v71
    %v150 = vunpack.c.l.b16 %v72
    %v151 = vunpack.c.h.b16 %v72
    %v152 = vunpack.c.l.b16 %v73
    %v153 = vunpack.c.h.b16 %v73
    %v154 = vpack.c.b16 %v122, %v114
    %v155 = vpack.c.b16 %v123, %v115
    %v156 = vpack.c.b16 %v124, %v116
    %v157 = vpack.c.b16 %v125, %v117
    %v158 = vpack.c.b16 %v126, %v118
    %v159 = vpack.c.b16 %v127, %v119
    %v160 = vpack.c.b16 %v128, %v120
    %v161 = vpack.c.b16 %v129, %v121
    %v162 = vpack.c.b16 %v138, %v130
    %v163 = vpack.c.b16 %v139, %v131
    %v164 = vpack.c.b16 %v140, %v132
    %v165 = vpack.c.b16 %v141, %v133
    %v166 = vpack.c.b16 %v142, %v134
    %v167 = vpack.c.b16 %v143, %v135
    %v168 = vpack.c.b16 %v144, %v136
    %v169 = vpack.c.b16 %v145, %v137
    %v170 = vpack.c.b16 %v146, %v146
    %v171 = vpack.c.b16 %v147, %v147
    %v172 = vpack.c.b16 %v148, %v148
    %v173 = vpack.c.b16 %v149, %v149
    %v174 = vpack.c.b16 %v150, %v150
    %v175 = vpack.c.b16 %v151, %v151
    %v176 = vpack.c.b16 %v152, %v152
    %v177 = vpack.c.b16 %v153, %v153
    %vm194 = vcmask 326656
    %v196 = vsel %vm194, %v90, 0
    %v199 = vsel %vm194, %v91, 0
    %v202 = vsel %vm194, %v92, 0
    %v205 = vsel %vm194, %v93, 0
    %vm207 = vcmask 1043456
    %v209 = vsel %vm207, %v170, 0
    %v212 = vsel %vm207, %v171, 0
    %v215 = vsel %vm207, %v172, 0
    %v218 = vsel %vm207, %v173, 0
    %v221 = vsel %vm207, %v174, 0
    %v224 = vsel %vm207, %v175, 0
    %v227 = vsel %vm207, %v176, 0
    %v230 = vsel %vm207, %v177, 0
    %232 = vmatprep.subr.bf16.mxu0 0
    %233 = vmatpush1.bf16.msra.mxu0 0
    %234 = vmatprep.subr.bf16.mxu0 0
    %235 = vmatpush1.bf16.msra.mxu0 0
    %236 = vmatprep.subr.bf16.mxu0 0
    %237 = vmatpush1.bf16.msra.mxu0 0
    %238 = vmatprep.subr.bf16.mxu0 0
    %239 = vmatpush1.bf16.msra.mxu0 0
    %240 = vmatprep.subr.bf16.mxu0 0
    %241 = vmatpush1.bf16.msra.mxu0 0
    %242 = vmatprep.subr.bf16.mxu0 %v212
    %243 = vmatpush1.bf16.msra.mxu0 %v209
    %244 = vmatprep.subr.bf16.mxu0 %v163
    %245 = vmatpush1.bf16.msra.mxu0 %v162
    %246 = vmatprep.subr.bf16.mxu0 %v155
    %247 = vmatpush1.bf16.msra.mxu0 %v154
    %248 = vmatprep.subr.bf16.mxu0 0
    %249 = vmatpush2.bf16.msra.mxu0 0
    %250 = vmatprep.subr.bf16.mxu0 0
    %251 = vmatpush2.bf16.msra.mxu0 0
    %252 = vmatprep.subr.bf16.mxu0 0
    %253 = vmatpush2.bf16.msra.mxu0 0
    %254 = vmatprep.subr.bf16.mxu0 0
    %255 = vmatpush2.bf16.msra.mxu0 0
    %256 = vmatprep.subr.bf16.mxu0 0
    %257 = vmatpush2.bf16.msra.mxu0 0
    %258 = vmatprep.subr.bf16.mxu0 0
    %259 = vmatpush2.bf16.msra.mxu0 0
    %260 = vmatprep.subr.bf16.mxu0 0
    %261 = vmatpush2.bf16.msra.mxu0 0
    %262 = vmatprep.subr.bf16.mxu0 0
    %263 = vmatpush2.bf16.msra.mxu0 0
    %264 = vmatprep.mubr.bf16.mxu0 0
    %265 = vmatmul.mubr.bf16.gmra.mxu0 %v196
    %v266 = vpop.f32.mrf.mxu0
    %v267 = vadd.f32 0.0, %v266
    %v268 = vpop.f32.mrf.mxu0
    %v269 = vadd.f32 0.0, %v268
    %v270 = vpop.f32.mrf.mxu0
    %v271 = vadd.f32 0.0, %v270
    %v272 = vpop.f32.mrf.mxu0
    %v273 = vadd.f32 0.0, %v272
    %274 = vmatprep.mubr.bf16.mxu0 0
    %275 = vmatmul.mubr.bf16.gmra.mxu0 %v199
    %v276 = vpop.f32.mrf.mxu0
    %v277 = vadd.f32 0.0, %v276
    %v278 = vpop.f32.mrf.mxu0
    %v279 = vadd.f32 0.0, %v278
    %v280 = vpop.f32.mrf.mxu0
    %v281 = vadd.f32 0.0, %v280
    %v282 = vpop.f32.mrf.mxu0
    %v283 = vadd.f32 0.0, %v282
    %284 = vmatprep.mubr.bf16.mxu0 0
    %285 = vmatmul.mubr.bf16.gmra.mxu0 %v202
    %v286 = vpop.f32.mrf.mxu0
    %v287 = vadd.f32 0.0, %v286
    %v288 = vpop.f32.mrf.mxu0
    %v289 = vadd.f32 0.0, %v288
    %v290 = vpop.f32.mrf.mxu0
    %v291 = vadd.f32 0.0, %v290
    %v292 = vpop.f32.mrf.mxu0
    %v293 = vadd.f32 0.0, %v292
    %294 = vmatprep.mubr.bf16.mxu0 0
    %295 = vmatmul.mubr.bf16.gmra.mxu0 %v205
    %v296 = vpop.f32.mrf.mxu0
    %v297 = vadd.f32 0.0, %v296
    %v298 = vpop.f32.mrf.mxu0
    %v299 = vadd.f32 0.0, %v298
    %v300 = vpop.f32.mrf.mxu0
    %v301 = vadd.f32 0.0, %v300
    %v302 = vpop.f32.mrf.mxu0
    %v303 = vadd.f32 0.0, %v302
    %304 = vdwg.mxu0
    %305 = vmatprep.subr.bf16.mxu0 0
    %306 = vmatpush1.bf16.msra.mxu0 0
    %307 = vmatprep.subr.bf16.mxu0 0
    %308 = vmatpush1.bf16.msra.mxu0 0
    %309 = vmatprep.subr.bf16.mxu0 0
    %310 = vmatpush1.bf16.msra.mxu0 0
    %311 = vmatprep.subr.bf16.mxu0 0
    %312 = vmatpush1.bf16.msra.mxu0 0
    %313 = vmatprep.subr.bf16.mxu0 0
    %314 = vmatpush1.bf16.msra.mxu0 0
    %315 = vmatprep.subr.bf16.mxu0 %v218
    %316 = vmatpush1.bf16.msra.mxu0 %v215
    %317 = vmatprep.subr.bf16.mxu0 %v165
    %318 = vmatpush1.bf16.msra.mxu0 %v164
    %319 = vmatprep.subr.bf16.mxu0 %v157
    %320 = vmatpush1.bf16.msra.mxu0 %v156
    %321 = vmatprep.subr.bf16.mxu0 0
    %322 = vmatpush2.bf16.msra.mxu0 0
    %323 = vmatprep.subr.bf16.mxu0 0
    %324 = vmatpush2.bf16.msra.mxu0 0
    %325 = vmatprep.subr.bf16.mxu0 0
    %326 = vmatpush2.bf16.msra.mxu0 0
    %327 = vmatprep.subr.bf16.mxu0 0
    %328 = vmatpush2.bf16.msra.mxu0 0
    %329 = vmatprep.subr.bf16.mxu0 0
    %330 = vmatpush2.bf16.msra.mxu0 0
    %331 = vmatprep.subr.bf16.mxu0 0
    %332 = vmatpush2.bf16.msra.mxu0 0
    %333 = vmatprep.subr.bf16.mxu0 0
    %334 = vmatpush2.bf16.msra.mxu0 0
    %335 = vmatprep.subr.bf16.mxu0 0
    %336 = vmatpush2.bf16.msra.mxu0 0
    %337 = vmatprep.mubr.bf16.mxu0 0
    %338 = vmatmul.mubr.bf16.gmra.mxu0 %v196
    %v339 = vpop.f32.mrf.mxu0
    %v340 = vadd.f32 0.0, %v339
    %v341 = vpop.f32.mrf.mxu0
    %v342 = vadd.f32 0.0, %v341
    %v343 = vpop.f32.mrf.mxu0
    %v344 = vadd.f32 0.0, %v343
    %v345 = vpop.f32.mrf.mxu0
    %v346 = vadd.f32 0.0, %v345
    %347 = vmatprep.mubr.bf16.mxu0 0
    %348 = vmatmul.mubr.bf16.gmra.mxu0 %v199
    %v349 = vpop.f32.mrf.mxu0
    %v350 = vadd.f32 0.0, %v349
    %v351 = vpop.f32.mrf.mxu0
    %v352 = vadd.f32 0.0, %v351
    %v353 = vpop.f32.mrf.mxu0
    %v354 = vadd.f32 0.0, %v353
    %v355 = vpop.f32.mrf.mxu0
    %v356 = vadd.f32 0.0, %v355
    %357 = vmatprep.mubr.bf16.mxu0 0
    %358 = vmatmul.mubr.bf16.gmra.mxu0 %v202
    %v359 = vpop.f32.mrf.mxu0
    %v360 = vadd.f32 0.0, %v359
    %v361 = vpop.f32.mrf.mxu0
    %v362 = vadd.f32 0.0, %v361
    %v363 = vpop.f32.mrf.mxu0
    %v364 = vadd.f32 0.0, %v363
    %v365 = vpop.f32.mrf.mxu0
    %v366 = vadd.f32 0.0, %v365
    %367 = vmatprep.mubr.bf16.mxu0 0
    %368 = vmatmul.mubr.bf16.gmra.mxu0 %v205
    %v369 = vpop.f32.mrf.mxu0
    %v370 = vadd.f32 0.0, %v369
    %v371 = vpop.f32.mrf.mxu0
    %v372 = vadd.f32 0.0, %v371
    %v373 = vpop.f32.mrf.mxu0
    %v374 = vadd.f32 0.0, %v373
    %v375 = vpop.f32.mrf.mxu0
    %v376 = vadd.f32 0.0, %v375
    %377 = vdwg.mxu0
    %378 = vmatprep.subr.bf16.mxu0 0
    %379 = vmatpush1.bf16.msra.mxu0 0
    %380 = vmatprep.subr.bf16.mxu0 0
    %381 = vmatpush1.bf16.msra.mxu0 0
    %382 = vmatprep.subr.bf16.mxu0 0
    %383 = vmatpush1.bf16.msra.mxu0 0
    %384 = vmatprep.subr.bf16.mxu0 0
    %385 = vmatpush1.bf16.msra.mxu0 0
    %386 = vmatprep.subr.bf16.mxu0 0
    %387 = vmatpush1.bf16.msra.mxu0 0
    %388 = vmatprep.subr.bf16.mxu0 %v224
    %389 = vmatpush1.bf16.msra.mxu0 %v221
    %390 = vmatprep.subr.bf16.mxu0 %v167
    %391 = vmatpush1.bf16.msra.mxu0 %v166
    %392 = vmatprep.subr.bf16.mxu0 %v159
    %393 = vmatpush1.bf16.msra.mxu0 %v158
    %394 = vmatprep.subr.bf16.mxu0 0
    %395 = vmatpush2.bf16.msra.mxu0 0
    %396 = vmatprep.subr.bf16.mxu0 0
    %397 = vmatpush2.bf16.msra.mxu0 0
    %398 = vmatprep.subr.bf16.mxu0 0
    %399 = vmatpush2.bf16.msra.mxu0 0
    %400 = vmatprep.subr.bf16.mxu0 0
    %401 = vmatpush2.bf16.msra.mxu0 0
    %402 = vmatprep.subr.bf16.mxu0 0
    %403 = vmatpush2.bf16.msra.mxu0 0
    %404 = vmatprep.subr.bf16.mxu0 0
    %405 = vmatpush2.bf16.msra.mxu0 0
    %406 = vmatprep.subr.bf16.mxu0 0
    %407 = vmatpush2.bf16.msra.mxu0 0
    %408 = vmatprep.subr.bf16.mxu0 0
    %409 = vmatpush2.bf16.msra.mxu0 0
    %410 = vmatprep.mubr.bf16.mxu0 0
    %411 = vmatmul.mubr.bf16.gmra.mxu0 %v196
    %v412 = vpop.f32.mrf.mxu0
    %v413 = vadd.f32 0.0, %v412
    %v414 = vpop.f32.mrf.mxu0
    %v415 = vadd.f32 0.0, %v414
    %v416 = vpop.f32.mrf.mxu0
    %v417 = vadd.f32 0.0, %v416
    %v418 = vpop.f32.mrf.mxu0
    %v419 = vadd.f32 0.0, %v418
    %420 = vmatprep.mubr.bf16.mxu0 0
    %421 = vmatmul.mubr.bf16.gmra.mxu0 %v199
    %v422 = vpop.f32.mrf.mxu0
    %v423 = vadd.f32 0.0, %v422
    %v424 = vpop.f32.mrf.mxu0
    %v425 = vadd.f32 0.0, %v424
    %v426 = vpop.f32.mrf.mxu0
    %v427 = vadd.f32 0.0, %v426
    %v428 = vpop.f32.mrf.mxu0
    %v429 = vadd.f32 0.0, %v428
    %430 = vmatprep.mubr.bf16.mxu0 0
    %431 = vmatmul.mubr.bf16.gmra.mxu0 %v202
    %v432 = vpop.f32.mrf.mxu0
    %v433 = vadd.f32 0.0, %v432
    %v434 = vpop.f32.mrf.mxu0
    %v435 = vadd.f32 0.0, %v434
    %v436 = vpop.f32.mrf.mxu0
    %v437 = vadd.f32 0.0, %v436
    %v438 = vpop.f32.mrf.mxu0
    %v439 = vadd.f32 0.0, %v438
    %440 = vmatprep.mubr.bf16.mxu0 0
    %441 = vmatmul.mubr.bf16.gmra.mxu0 %v205
    %v442 = vpop.f32.mrf.mxu0
    %v443 = vadd.f32 0.0, %v442
    %v444 = vpop.f32.mrf.mxu0
    %v445 = vadd.f32 0.0, %v444
    %v446 = vpop.f32.mrf.mxu0
    %v447 = vadd.f32 0.0, %v446
    %v448 = vpop.f32.mrf.mxu0
    %v449 = vadd.f32 0.0, %v448
    %450 = vdwg.mxu0
    %451 = vmatprep.subr.bf16.mxu0 0
    %452 = vmatpush1.bf16.msra.mxu0 0
    %453 = vmatprep.subr.bf16.mxu0 0
    %454 = vmatpush1.bf16.msra.mxu0 0
    %455 = vmatprep.subr.bf16.mxu0 0
    %456 = vmatpush1.bf16.msra.mxu0 0
    %457 = vmatprep.subr.bf16.mxu0 0
    %458 = vmatpush1.bf16.msra.mxu0 0
    %459 = vmatprep.subr.bf16.mxu0 0
    %460 = vmatpush1.bf16.msra.mxu0 0
    %461 = vmatprep.subr.bf16.mxu0 %v230
    %462 = vmatpush1.bf16.msra.mxu0 %v227
    %463 = vmatprep.subr.bf16.mxu0 %v169
    %464 = vmatpush1.bf16.msra.mxu0 %v168
    %465 = vmatprep.subr.bf16.mxu0 %v161
    %466 = vmatpush1.bf16.msra.mxu0 %v160
    %467 = vmatprep.subr.bf16.mxu0 0
    %468 = vmatpush2.bf16.msra.mxu0 0
    %469 = vmatprep.subr.bf16.mxu0 0
    %470 = vmatpush2.bf16.msra.mxu0 0
    %471 = vmatprep.subr.bf16.mxu0 0
    %472 = vmatpush2.bf16.msra.mxu0 0
    %473 = vmatprep.subr.bf16.mxu0 0
    %474 = vmatpush2.bf16.msra.mxu0 0
    %475 = vmatprep.subr.bf16.mxu0 0
    %476 = vmatpush2.bf16.msra.mxu0 0
    %477 = vmatprep.subr.bf16.mxu0 0
    %478 = vmatpush2.bf16.msra.mxu0 0
    %479 = vmatprep.subr.bf16.mxu0 0
    %480 = vmatpush2.bf16.msra.mxu0 0
    %481 = vmatprep.subr.bf16.mxu0 0
    %482 = vmatpush2.bf16.msra.mxu0 0
    %483 = vmatprep.mubr.bf16.mxu0 0
    %484 = vmatmul.mubr.bf16.gmra.mxu0 %v196
    %v485 = vpop.f32.mrf.mxu0
    %v486 = vadd.f32 0.0, %v485
    %v487 = vpop.f32.mrf.mxu0
    %v488 = vadd.f32 0.0, %v487
    %v489 = vpop.f32.mrf.mxu0
    %v490 = vadd.f32 0.0, %v489
    %v491 = vpop.f32.mrf.mxu0
    %v492 = vadd.f32 0.0, %v491
    %493 = vmatprep.mubr.bf16.mxu0 0
    %494 = vmatmul.mubr.bf16.gmra.mxu0 %v199
    %v495 = vpop.f32.mrf.mxu0
    %v496 = vadd.f32 0.0, %v495
    %v497 = vpop.f32.mrf.mxu0
    %v498 = vadd.f32 0.0, %v497
    %v499 = vpop.f32.mrf.mxu0
    %v500 = vadd.f32 0.0, %v499
    %v501 = vpop.f32.mrf.mxu0
    %v502 = vadd.f32 0.0, %v501
    %503 = vmatprep.mubr.bf16.mxu0 0
    %504 = vmatmul.mubr.bf16.gmra.mxu0 %v202
    %v505 = vpop.f32.mrf.mxu0
    %v506 = vadd.f32 0.0, %v505
    %v507 = vpop.f32.mrf.mxu0
    %v508 = vadd.f32 0.0, %v507
    %v509 = vpop.f32.mrf.mxu0
    %v510 = vadd.f32 0.0, %v509
    %v511 = vpop.f32.mrf.mxu0
    %v512 = vadd.f32 0.0, %v511
    %513 = vmatprep.mubr.bf16.mxu0 0
    %514 = vmatmul.mubr.bf16.gmra.mxu0 %v205
    %v515 = vpop.f32.mrf.mxu0
    %v516 = vadd.f32 0.0, %v515
    %v517 = vpop.f32.mrf.mxu0
    %v518 = vadd.f32 0.0, %v517
    %v519 = vpop.f32.mrf.mxu0
    %v520 = vadd.f32 0.0, %v519
    %v521 = vpop.f32.mrf.mxu0
    %v522 = vadd.f32 0.0, %v521
    %523 = vdwg.mxu0
    %v524 = vld [vmem:[%s7] sm:$0xff]
    %v525 = vld [vmem:[%s7 + $0x8] sm:$0xff]
    %v526 = vld [vmem:[%s7 + $0x10] sm:$0xff]
    %v527 = vld [vmem:[%s7 + $0x18] sm:$0xff]
    %v528 = vld [vmem:[%s7 + $0x20] sm:$0xff]
    %v529 = vld [vmem:[%s7 + $0x28] sm:$0xff]
    %v530 = vld [vmem:[%s7 + $0x30] sm:$0xff]
    %v531 = vld [vmem:[%s7 + $0x38] sm:$0xff]
    %v532 = vadd.f32 %v267, %v269
    %v533 = vadd.f32 %v532, %v340
    %v534 = vadd.f32 %v533, %v342
    %v535 = vadd.f32 %v534, %v413
    %v536 = vadd.f32 %v535, %v415
    %v537 = vadd.f32 %v536, %v486
    %v538 = vadd.f32 %v537, %v488
    %539 = vadd.xlane.f32.xlu0 %v538
    %v540 = vpop.xlane.xlu0 %539
    %v541 = vadd.f32 %v271, %v273
    %v542 = vadd.f32 %v541, %v344
    %v543 = vadd.f32 %v542, %v346
    %v544 = vadd.f32 %v543, %v417
    %v545 = vadd.f32 %v544, %v419
    %v546 = vadd.f32 %v545, %v490
    %v547 = vadd.f32 %v546, %v492
    %548 = vadd.xlane.f32.xlu0 %v547
    %v549 = vpop.xlane.xlu0 %548
    %v550 = vadd.f32 %v277, %v279
    %v551 = vadd.f32 %v550, %v350
    %v552 = vadd.f32 %v551, %v352
    %v553 = vadd.f32 %v552, %v423
    %v554 = vadd.f32 %v553, %v425
    %v555 = vadd.f32 %v554, %v496
    %v556 = vadd.f32 %v555, %v498
    %557 = vadd.xlane.f32.xlu0 %v556
    %v558 = vpop.xlane.xlu0 %557
    %v559 = vadd.f32 %v281, %v283
    %v560 = vadd.f32 %v559, %v354
    %v561 = vadd.f32 %v560, %v356
    %v562 = vadd.f32 %v561, %v427
    %v563 = vadd.f32 %v562, %v429
    %v564 = vadd.f32 %v563, %v500
    %v565 = vadd.f32 %v564, %v502
    %566 = vadd.xlane.f32.xlu0 %v565
    %v567 = vpop.xlane.xlu0 %566
    %v568 = vadd.f32 %v287, %v289
    %v569 = vadd.f32 %v568, %v360
    %v570 = vadd.f32 %v569, %v362
    %v571 = vadd.f32 %v570, %v433
    %v572 = vadd.f32 %v571, %v435
    %v573 = vadd.f32 %v572, %v506
    %v574 = vadd.f32 %v573, %v508
    %575 = vadd.xlane.f32.xlu0 %v574
    %v576 = vpop.xlane.xlu0 %575
    %v577 = vadd.f32 %v291, %v293
    %v578 = vadd.f32 %v577, %v364
    %v579 = vadd.f32 %v578, %v366
    %v580 = vadd.f32 %v579, %v437
    %v581 = vadd.f32 %v580, %v439
    %v582 = vadd.f32 %v581, %v510
    %v583 = vadd.f32 %v582, %v512
    %584 = vadd.xlane.f32.xlu0 %v583
    %v585 = vpop.xlane.xlu0 %584
    %v586 = vadd.f32 %v297, %v299
    %v587 = vadd.f32 %v586, %v370
    %v588 = vadd.f32 %v587, %v372
    %v589 = vadd.f32 %v588, %v443
    %v590 = vadd.f32 %v589, %v445
    %v591 = vadd.f32 %v590, %v516
    %v592 = vadd.f32 %v591, %v518
    %593 = vadd.xlane.f32.xlu0 %v592
    %v594 = vpop.xlane.xlu0 %593
    %v595 = vadd.f32 %v301, %v303
    %v596 = vadd.f32 %v595, %v374
    %v597 = vadd.f32 %v596, %v376
    %v598 = vadd.f32 %v597, %v447
    %v599 = vadd.f32 %v598, %v449
    %v600 = vadd.f32 %v599, %v520
    %v601 = vadd.f32 %v600, %v522
    %602 = vadd.xlane.f32.xlu0 %v601
    %v603 = vpop.xlane.xlu0 %602
    %v604 = vmul.f32 %v267, %v267
    %v605 = vmul.f32 %v269, %v269
    %v606 = vmul.f32 %v340, %v340
    %v607 = vmul.f32 %v342, %v342
    %v608 = vmul.f32 %v413, %v413
    %v609 = vmul.f32 %v415, %v415
    %v610 = vmul.f32 %v486, %v486
    %v611 = vmul.f32 %v488, %v488
    %v612 = vmul.f32 %v271, %v271
    %v613 = vmul.f32 %v273, %v273
    %v614 = vmul.f32 %v344, %v344
    %v615 = vmul.f32 %v346, %v346
    %v616 = vmul.f32 %v417, %v417
    %v617 = vmul.f32 %v419, %v419
    %v618 = vmul.f32 %v490, %v490
    %v619 = vmul.f32 %v492, %v492
    %v620 = vmul.f32 %v277, %v277
    %v621 = vmul.f32 %v279, %v279
    %v622 = vmul.f32 %v350, %v350
    %v623 = vmul.f32 %v352, %v352
    %v624 = vmul.f32 %v423, %v423
    %v625 = vmul.f32 %v425, %v425
    %v626 = vmul.f32 %v496, %v496
    %v627 = vmul.f32 %v498, %v498
    %v628 = vmul.f32 %v281, %v281
    %v629 = vmul.f32 %v283, %v283
    %v630 = vmul.f32 %v354, %v354
    %v631 = vmul.f32 %v356, %v356
    %v632 = vmul.f32 %v427, %v427
    %v633 = vmul.f32 %v429, %v429
    %v634 = vmul.f32 %v500, %v500
    %v635 = vmul.f32 %v502, %v502
    %v636 = vmul.f32 %v287, %v287
    %v637 = vmul.f32 %v289, %v289
    %v638 = vmul.f32 %v360, %v360
    %v639 = vmul.f32 %v362, %v362
    %v640 = vmul.f32 %v433, %v433
    %v641 = vmul.f32 %v435, %v435
    %v642 = vmul.f32 %v506, %v506
    %v643 = vmul.f32 %v508, %v508
    %v644 = vmul.f32 %v291, %v291
    %v645 = vmul.f32 %v293, %v293
    %v646 = vmul.f32 %v364, %v364
    %v647 = vmul.f32 %v366, %v366
    %v648 = vmul.f32 %v437, %v437
    %v649 = vmul.f32 %v439, %v439
    %v650 = vmul.f32 %v510, %v510
    %v651 = vmul.f32 %v512, %v512
    %v652 = vmul.f32 %v297, %v297
    %v653 = vmul.f32 %v299, %v299
    %v654 = vmul.f32 %v370, %v370
    %v655 = vmul.f32 %v372, %v372
    %v656 = vmul.f32 %v443, %v443
    %v657 = vmul.f32 %v445, %v445
    %v658 = vmul.f32 %v516, %v516
    %v659 = vmul.f32 %v518, %v518
    %v660 = vmul.f32 %v301, %v301
    %v661 = vmul.f32 %v303, %v303
    %v662 = vmul.f32 %v374, %v374
    %v663 = vmul.f32 %v376, %v376
    %v664 = vmul.f32 %v447, %v447
    %v665 = vmul.f32 %v449, %v449
    %v666 = vmul.f32 %v520, %v520
    %v667 = vmul.f32 %v522, %v522
    %v668 = vadd.f32 %v604, %v605
    %v669 = vadd.f32 %v668, %v606
    %v670 = vadd.f32 %v669, %v607
    %v671 = vadd.f32 %v670, %v608
    %v672 = vadd.f32 %v671, %v609
    %v673 = vadd.f32 %v672, %v610
    %v674 = vadd.f32 %v673, %v611
    %675 = vadd.xlane.f32.xlu0 %v674
    %v676 = vpop.xlane.xlu0 %675
    %v677 = vadd.f32 %v612, %v613
    %v678 = vadd.f32 %v677, %v614
    %v679 = vadd.f32 %v678, %v615
    %v680 = vadd.f32 %v679, %v616
    %v681 = vadd.f32 %v680, %v617
    %v682 = vadd.f32 %v681, %v618
    %v683 = vadd.f32 %v682, %v619
    %684 = vadd.xlane.f32.xlu0 %v683
    %v685 = vpop.xlane.xlu0 %684
    %v686 = vadd.f32 %v620, %v621
    %v687 = vadd.f32 %v686, %v622
    %v688 = vadd.f32 %v687, %v623
    %v689 = vadd.f32 %v688, %v624
    %v690 = vadd.f32 %v689, %v625
    %v691 = vadd.f32 %v690, %v626
    %v692 = vadd.f32 %v691, %v627
    %693 = vadd.xlane.f32.xlu0 %v692
    %v694 = vpop.xlane.xlu0 %693
    %v695 = vadd.f32 %v628, %v629
    %v696 = vadd.f32 %v695, %v630
    %v697 = vadd.f32 %v696, %v631
    %v698 = vadd.f32 %v697, %v632
    %v699 = vadd.f32 %v698, %v633
    %v700 = vadd.f32 %v699, %v634
    %v701 = vadd.f32 %v700, %v635
    %702 = vadd.xlane.f32.xlu0 %v701
    %v703 = vpop.xlane.xlu0 %702
    %v704 = vadd.f32 %v636, %v637
    %v705 = vadd.f32 %v704, %v638
    %v706 = vadd.f32 %v705, %v639
    %v707 = vadd.f32 %v706, %v640
    %v708 = vadd.f32 %v707, %v641
    %v709 = vadd.f32 %v708, %v642
    %v710 = vadd.f32 %v709, %v643
    %711 = vadd.xlane.f32.xlu0 %v710
    %v712 = vpop.xlane.xlu0 %711
    %v713 = vadd.f32 %v644, %v645
    %v714 = vadd.f32 %v713, %v646
    %v715 = vadd.f32 %v714, %v647
    %v716 = vadd.f32 %v715, %v648
    %v717 = vadd.f32 %v716, %v649
    %v718 = vadd.f32 %v717, %v650
    %v719 = vadd.f32 %v718, %v651
    %720 = vadd.xlane.f32.xlu0 %v719
    %v721 = vpop.xlane.xlu0 %720
    %v722 = vadd.f32 %v652, %v653
    %v723 = vadd.f32 %v722, %v654
    %v724 = vadd.f32 %v723, %v655
    %v725 = vadd.f32 %v724, %v656
    %v726 = vadd.f32 %v725, %v657
    %v727 = vadd.f32 %v726, %v658
    %v728 = vadd.f32 %v727, %v659
    %729 = vadd.xlane.f32.xlu0 %v728
    %v730 = vpop.xlane.xlu0 %729
    %v731 = vadd.f32 %v660, %v661
    %v732 = vadd.f32 %v731, %v662
    %v733 = vadd.f32 %v732, %v663
    %v734 = vadd.f32 %v733, %v664
    %v735 = vadd.f32 %v734, %v665
    %v736 = vadd.f32 %v735, %v666
    %v737 = vadd.f32 %v736, %v667
    %738 = vadd.xlane.f32.xlu0 %v737
    %v739 = vpop.xlane.xlu0 %738
    %vm740 = vcmask 7168
    %v741 = vsel %vm740, %v540, %v676
    %v742 = vsel %vm740, %v549, %v685
    %v743 = vsel %vm740, %v558, %v694
    %v744 = vsel %vm740, %v567, %v703
    %v745 = vsel %vm740, %v576, %v712
    %v746 = vsel %vm740, %v585, %v721
    %v747 = vsel %vm740, %v594, %v730
    %v748 = vsel %vm740, %v603, %v739
    %vm749 = vcmask 523264
    %v751 = vsel %vm749, %v524, 0
    %v754 = vsel %vm749, %v525, 0
    %v757 = vsel %vm749, %v526, 0
    %v760 = vsel %vm749, %v527, 0
    %v763 = vsel %vm749, %v528, 0
    %v766 = vsel %vm749, %v529, 0
    %v769 = vsel %vm749, %v530, 0
    %v772 = vsel %vm749, %v531, 0
    %774 = vmatprep.subr.mxu0 0.0
    %775 = vmatpush1.msra.mxu0 0.0
    %776 = vmatprep.subr.mxu0 0.0
    %777 = vmatpush1.msra.mxu0 0.0
    %778 = vmatprep.subr.mxu0 0.0
    %779 = vmatpush1.msra.mxu0 0.0
    %780 = vmatprep.subr.mxu0 0.0
    %781 = vmatpush1.msra.mxu0 0.0
    %782 = vmatprep.subr.mxu0 0.0
    %783 = vmatpush1.msra.mxu0 0.0
    %784 = vmatprep.subr.mxu0 0.0
    %785 = vmatpush1.msra.mxu0 0.0
    %786 = vmatprep.subr.mxu0 0.0
    %787 = vmatpush1.msra.mxu0 0.0
    %788 = vmatprep.subr.mxu0 0.0
    %789 = vmatpush1.msra.mxu0 0.0
    %790 = vmatprep.subr.mxu0 0.0
    %791 = vmatpush1.msra.mxu0 %v748
    %792 = vmatprep.subr.mxu0 0.0
    %793 = vmatpush1.msra.mxu0 %v747
    %794 = vmatprep.subr.mxu0 0.0
    %795 = vmatpush1.msra.mxu0 %v746
    %796 = vmatprep.subr.mxu0 0.0
    %797 = vmatpush1.msra.mxu0 %v745
    %798 = vmatprep.subr.mxu0 0.0
    %799 = vmatpush1.msra.mxu0 %v744
    %800 = vmatprep.subr.mxu0 0.0
    %801 = vmatpush1.msra.mxu0 %v743
    %802 = vmatprep.subr.mxu0 0.0
    %803 = vmatpush1.msra.mxu0 %v742
    %804 = vmatprep.subr.mxu0 0.0
    %805 = vmatpush1.msra.mxu0 %v741
    %806 = vmatprep.subr.mxu0 0.0
    %807 = vmatpush2.msra.mxu0 0.0
    %808 = vmatprep.subr.mxu0 0.0
    %809 = vmatpush2.msra.mxu0 0.0
    %810 = vmatprep.subr.mxu0 0.0
    %811 = vmatpush2.msra.mxu0 0.0
    %812 = vmatprep.subr.mxu0 0.0
    %813 = vmatpush2.msra.mxu0 0.0
    %814 = vmatprep.subr.mxu0 0.0
    %815 = vmatpush2.msra.mxu0 0.0
    %816 = vmatprep.subr.mxu0 0.0
    %817 = vmatpush2.msra.mxu0 0.0
    %818 = vmatprep.subr.mxu0 0.0
    %819 = vmatpush2.msra.mxu0 0.0
    %820 = vmatprep.subr.mxu0 0.0
    %821 = vmatpush2.msra.mxu0 0.0
    %822 = vmatprep.subr.mxu0 0.0
    %823 = vmatpush2.msra.mxu0 0.0
    %824 = vmatprep.subr.mxu0 0.0
    %825 = vmatpush2.msra.mxu0 0.0
    %826 = vmatprep.subr.mxu0 0.0
    %827 = vmatpush2.msra.mxu0 0.0
    %828 = vmatprep.subr.mxu0 0.0
    %829 = vmatpush2.msra.mxu0 0.0
    %830 = vmatprep.subr.mxu0 0.0
    %831 = vmatpush2.msra.mxu0 0.0
    %832 = vmatprep.subr.mxu0 0.0
    %833 = vmatpush2.msra.mxu0 0.0
    %834 = vmatprep.subr.mxu0 0.0
    %835 = vmatpush2.msra.mxu0 0.0
    %836 = vmatprep.subr.mxu0 0.0
    %837 = vmatpush2.msra.mxu0 0.0
    %838 = vmatprep.mubr.f32.mxu0 0.0
    %839 = vmatmul.mubr.f32.gmra.mxu0 %v751
    %v840 = vpop.f32.mrf.mxu0
    %v841 = vadd.f32 0.0, %v840
    %v842 = vpop.f32.mrf.mxu0
    %843 = vmatprep.mubr.f32.mxu0 0.0
    %844 = vmatmul.mubr.f32.gmra.mxu0 %v754
    %v845 = vpop.f32.mrf.mxu0
    %v846 = vadd.f32 0.0, %v845
    %v847 = vpop.f32.mrf.mxu0
    %848 = vmatprep.mubr.f32.mxu0 0.0
    %849 = vmatmul.mubr.f32.gmra.mxu0 %v757
    %v850 = vpop.f32.mrf.mxu0
    %v851 = vadd.f32 0.0, %v850
    %v852 = vpop.f32.mrf.mxu0
    %853 = vmatprep.mubr.f32.mxu0 0.0
    %854 = vmatmul.mubr.f32.gmra.mxu0 %v760
    %v855 = vpop.f32.mrf.mxu0
    %v856 = vadd.f32 0.0, %v855
    %v857 = vpop.f32.mrf.mxu0
    %858 = vmatprep.mubr.f32.mxu0 0.0
    %859 = vmatmul.mubr.f32.gmra.mxu0 %v763
    %v860 = vpop.f32.mrf.mxu0
    %v861 = vadd.f32 0.0, %v860
    %v862 = vpop.f32.mrf.mxu0
    %863 = vmatprep.mubr.f32.mxu0 0.0
    %864 = vmatmul.mubr.f32.gmra.mxu0 %v766
    %v865 = vpop.f32.mrf.mxu0
    %v866 = vadd.f32 0.0, %v865
    %v867 = vpop.f32.mrf.mxu0
    %868 = vmatprep.mubr.f32.mxu0 0.0
    %869 = vmatmul.mubr.f32.gmra.mxu0 %v769
    %v870 = vpop.f32.mrf.mxu0
    %v871 = vadd.f32 0.0, %v870
    %v872 = vpop.f32.mrf.mxu0
    %873 = vmatprep.mubr.f32.mxu0 0.0
    %874 = vmatmul.mubr.f32.gmra.mxu0 %v772
    %v875 = vpop.f32.mrf.mxu0
    %v876 = vadd.f32 0.0, %v875
    %v877 = vpop.f32.mrf.mxu0
    %878 = vdwg.mxu0
    %v879 = vrcp.pop 1992.0
    %v880 = vmul.f32 %v841, %v879
    %v881 = vmul.f32 %v846, %v879
    %v882 = vmul.f32 %v851, %v879
    %v883 = vmul.f32 %v856, %v879
    %v884 = vmul.f32 %v861, %v879
    %v885 = vmul.f32 %v866, %v879
    %v886 = vmul.f32 %v871, %v879
    %v887 = vmul.f32 %v876, %v879
    %v888 = vmul.f32 %v880, %v880
    %v889 = vmul.f32 %v881, %v881
    %v890 = vmul.f32 %v882, %v882
    %v891 = vmul.f32 %v883, %v883
    %v892 = vmul.f32 %v884, %v884
    %v893 = vmul.f32 %v885, %v885
    %v894 = vmul.f32 %v886, %v886
    %v895 = vmul.f32 %v887, %v887
    %904 = vrot.lane.b32.xlu0 %v888, 1
    %v905 = vpop.permute.xlu0 %904
    %906 = vrot.lane.b32.xlu0 %v889, 1
    %v907 = vpop.permute.xlu0 %906
    %908 = vrot.lane.b32.xlu0 %v890, 1
    %v909 = vpop.permute.xlu0 %908
    %910 = vrot.lane.b32.xlu0 %v891, 1
    %v911 = vpop.permute.xlu0 %910
    %912 = vrot.lane.b32.xlu0 %v892, 1
    %v913 = vpop.permute.xlu0 %912
    %914 = vrot.lane.b32.xlu0 %v893, 1
    %v915 = vpop.permute.xlu0 %914
    %916 = vrot.lane.b32.xlu0 %v894, 1
    %v917 = vpop.permute.xlu0 %916
    %918 = vrot.lane.b32.xlu0 %v895, 1
    %v919 = vpop.permute.xlu0 %918
    %v928 = vsub.f32 %v880, %v905
    %v929 = vsub.f32 %v881, %v907
    %v930 = vsub.f32 %v882, %v909
    %v931 = vsub.f32 %v883, %v911
    %v932 = vsub.f32 %v884, %v913
    %v933 = vsub.f32 %v885, %v915
    %v934 = vsub.f32 %v886, %v917
    %v935 = vsub.f32 %v887, %v919
    %v936 = vadd.f32 %v928, 1e-05
    %v937 = vadd.f32 %v929, 1e-05
    %v938 = vadd.f32 %v930, 1e-05
    %v939 = vadd.f32 %v931, 1e-05
    %v940 = vadd.f32 %v932, 1e-05
    %v941 = vadd.f32 %v933, 1e-05
    %v942 = vadd.f32 %v934, 1e-05
    %v943 = vadd.f32 %v935, 1e-05
    %v944 = vrsqrt.pop %v936
    %v945 = vrsqrt.pop %v937
    %v946 = vrsqrt.pop %v938
    %v947 = vrsqrt.pop %v939
    %v948 = vrsqrt.pop %v940
    %v949 = vrsqrt.pop %v941
    %v950 = vrsqrt.pop %v942
    %v951 = vrsqrt.pop %v943
    %v952 = vld [vmem:[%s2] sm:$0xff]
    %v953 = vld [vmem:[%s2 + $0x8] sm:$0xff]
    %v954 = vld [vmem:[%s2 + $0x10] sm:$0xff]
    %v955 = vld [vmem:[%s2 + $0x18] sm:$0xff]
    %v956 = vld [vmem:[%s2 + $0x20] sm:$0xff]
    %v957 = vld [vmem:[%s2 + $0x28] sm:$0xff]
    %v958 = vld [vmem:[%s2 + $0x30] sm:$0xff]
    %v959 = vld [vmem:[%s2 + $0x38] sm:$0xff]
    %968 = vrot.lane.b32.xlu0 %v944, 127
    %v969 = vpop.permute.xlu0 %968
    %970 = vrot.lane.b32.xlu0 %v945, 127
    %v971 = vpop.permute.xlu0 %970
    %972 = vrot.lane.b32.xlu0 %v946, 127
    %v973 = vpop.permute.xlu0 %972
    %974 = vrot.lane.b32.xlu0 %v947, 127
    %v975 = vpop.permute.xlu0 %974
    %976 = vrot.lane.b32.xlu0 %v948, 127
    %v977 = vpop.permute.xlu0 %976
    %978 = vrot.lane.b32.xlu0 %v949, 127
    %v979 = vpop.permute.xlu0 %978
    %980 = vrot.lane.b32.xlu0 %v950, 127
    %v981 = vpop.permute.xlu0 %980
    %982 = vrot.lane.b32.xlu0 %v951, 127
    %v983 = vpop.permute.xlu0 %982
    %v992 = vmul.f32 %v952, %v969
    %v993 = vmul.f32 %v953, %v971
    %v994 = vmul.f32 %v954, %v973
    %v995 = vmul.f32 %v955, %v975
    %v996 = vmul.f32 %v956, %v977
    %v997 = vmul.f32 %v957, %v979
    %v998 = vmul.f32 %v958, %v981
    %v999 = vmul.f32 %v959, %v983
    %v1000 = vld [vmem:[%s3] sm:$0xff]
    %v1001 = vld [vmem:[%s3 + $0x8] sm:$0xff]
    %v1002 = vld [vmem:[%s3 + $0x10] sm:$0xff]
    %v1003 = vld [vmem:[%s3 + $0x18] sm:$0xff]
    %v1004 = vld [vmem:[%s3 + $0x20] sm:$0xff]
    %v1005 = vld [vmem:[%s3 + $0x28] sm:$0xff]
    %v1006 = vld [vmem:[%s3 + $0x30] sm:$0xff]
    %v1007 = vld [vmem:[%s3 + $0x38] sm:$0xff]
    %v1008 = vmul.f32 %v880, %v992
    %v1009 = vmul.f32 %v881, %v993
    %v1010 = vmul.f32 %v882, %v994
    %v1011 = vmul.f32 %v883, %v995
    %v1012 = vmul.f32 %v884, %v996
    %v1013 = vmul.f32 %v885, %v997
    %v1014 = vmul.f32 %v886, %v998
    %v1015 = vmul.f32 %v887, %v999
    %v1016 = vsub.f32 %v1000, %v1008
    %v1017 = vsub.f32 %v1001, %v1009
    %v1018 = vsub.f32 %v1002, %v1010
    %v1019 = vsub.f32 %v1003, %v1011
    %v1020 = vsub.f32 %v1004, %v1012
    %v1021 = vsub.f32 %v1005, %v1013
    %v1022 = vsub.f32 %v1006, %v1014
    %v1023 = vsub.f32 %v1007, %v1015
    %1025 = vset.pattern.permute.xlu0 0
    %1026 = vperm.xlu0 %1025, %v992
    %v1027 = vpop.permute.xlu0 %1026
    %1030 = vset.pattern.permute.xlu0 0
    %1031 = vperm.xlu0 %1030, %v993
    %v1032 = vpop.permute.xlu0 %1031
    %1035 = vset.pattern.permute.xlu0 0
    %1036 = vperm.xlu0 %1035, %v994
    %v1037 = vpop.permute.xlu0 %1036
    %1040 = vset.pattern.permute.xlu0 0
    %1041 = vperm.xlu0 %1040, %v995
    %v1042 = vpop.permute.xlu0 %1041
    %1045 = vset.pattern.permute.xlu0 0
    %1046 = vperm.xlu0 %1045, %v996
    %v1047 = vpop.permute.xlu0 %1046
    %1050 = vset.pattern.permute.xlu0 0
    %1051 = vperm.xlu0 %1050, %v997
    %v1052 = vpop.permute.xlu0 %1051
    %1055 = vset.pattern.permute.xlu0 0
    %1056 = vperm.xlu0 %1055, %v998
    %v1057 = vpop.permute.xlu0 %1056
    %1060 = vset.pattern.permute.xlu0 0
    %1061 = vperm.xlu0 %1060, %v999
    %v1062 = vpop.permute.xlu0 %1061
    %v1064 = vmul.f32 %v267, %v1027
    %v1065 = vmul.f32 %v269, %v1027
    %v1066 = vmul.f32 %v340, %v1027
    %v1067 = vmul.f32 %v342, %v1027
    %v1068 = vmul.f32 %v413, %v1027
    %v1069 = vmul.f32 %v415, %v1027
    %v1070 = vmul.f32 %v486, %v1027
    %v1071 = vmul.f32 %v488, %v1027
    %v1072 = vmul.f32 %v271, %v1032
    %v1073 = vmul.f32 %v273, %v1032
    %v1074 = vmul.f32 %v344, %v1032
    %v1075 = vmul.f32 %v346, %v1032
    %v1076 = vmul.f32 %v417, %v1032
    %v1077 = vmul.f32 %v419, %v1032
    %v1078 = vmul.f32 %v490, %v1032
    %v1079 = vmul.f32 %v492, %v1032
    %v1080 = vmul.f32 %v277, %v1037
    %v1081 = vmul.f32 %v279, %v1037
    %v1082 = vmul.f32 %v350, %v1037
    %v1083 = vmul.f32 %v352, %v1037
    %v1084 = vmul.f32 %v423, %v1037
    %v1085 = vmul.f32 %v425, %v1037
    %v1086 = vmul.f32 %v496, %v1037
    %v1087 = vmul.f32 %v498, %v1037
    %v1088 = vmul.f32 %v281, %v1042
    %v1089 = vmul.f32 %v283, %v1042
    %v1090 = vmul.f32 %v354, %v1042
    %v1091 = vmul.f32 %v356, %v1042
    %v1092 = vmul.f32 %v427, %v1042
    %v1093 = vmul.f32 %v429, %v1042
    %v1094 = vmul.f32 %v500, %v1042
    %v1095 = vmul.f32 %v502, %v1042
    %v1096 = vmul.f32 %v287, %v1047
    %v1097 = vmul.f32 %v289, %v1047
    %v1098 = vmul.f32 %v360, %v1047
    %v1099 = vmul.f32 %v362, %v1047
    %v1100 = vmul.f32 %v433, %v1047
    %v1101 = vmul.f32 %v435, %v1047
    %v1102 = vmul.f32 %v506, %v1047
    %v1103 = vmul.f32 %v508, %v1047
    %v1104 = vmul.f32 %v291, %v1052
    %v1105 = vmul.f32 %v293, %v1052
    %v1106 = vmul.f32 %v364, %v1052
    %v1107 = vmul.f32 %v366, %v1052
    %v1108 = vmul.f32 %v437, %v1052
    %v1109 = vmul.f32 %v439, %v1052
    %v1110 = vmul.f32 %v510, %v1052
    %v1111 = vmul.f32 %v512, %v1052
    %v1112 = vmul.f32 %v297, %v1057
    %v1113 = vmul.f32 %v299, %v1057
    %v1114 = vmul.f32 %v370, %v1057
    %v1115 = vmul.f32 %v372, %v1057
    %v1116 = vmul.f32 %v443, %v1057
    %v1117 = vmul.f32 %v445, %v1057
    %v1118 = vmul.f32 %v516, %v1057
    %v1119 = vmul.f32 %v518, %v1057
    %v1120 = vmul.f32 %v301, %v1062
    %v1121 = vmul.f32 %v303, %v1062
    %v1122 = vmul.f32 %v374, %v1062
    %v1123 = vmul.f32 %v376, %v1062
    %v1124 = vmul.f32 %v447, %v1062
    %v1125 = vmul.f32 %v449, %v1062
    %v1126 = vmul.f32 %v520, %v1062
    %v1127 = vmul.f32 %v522, %v1062
    %1129 = vset.pattern.permute.xlu0 0
    %1130 = vperm.xlu0 %1129, %v1016
    %v1131 = vpop.permute.xlu0 %1130
    %1134 = vset.pattern.permute.xlu0 0
    %1135 = vperm.xlu0 %1134, %v1017
    %v1136 = vpop.permute.xlu0 %1135
    %1139 = vset.pattern.permute.xlu0 0
    %1140 = vperm.xlu0 %1139, %v1018
    %v1141 = vpop.permute.xlu0 %1140
    %1144 = vset.pattern.permute.xlu0 0
    %1145 = vperm.xlu0 %1144, %v1019
    %v1146 = vpop.permute.xlu0 %1145
    %1149 = vset.pattern.permute.xlu0 0
    %1150 = vperm.xlu0 %1149, %v1020
    %v1151 = vpop.permute.xlu0 %1150
    %1154 = vset.pattern.permute.xlu0 0
    %1155 = vperm.xlu0 %1154, %v1021
    %v1156 = vpop.permute.xlu0 %1155
    %1159 = vset.pattern.permute.xlu0 0
    %1160 = vperm.xlu0 %1159, %v1022
    %v1161 = vpop.permute.xlu0 %1160
    %1164 = vset.pattern.permute.xlu0 0
    %1165 = vperm.xlu0 %1164, %v1023
    %v1166 = vpop.permute.xlu0 %1165
    %v1168 = vadd.f32 %v1064, %v1131
    %v1169 = vadd.f32 %v1065, %v1131
    %v1170 = vadd.f32 %v1066, %v1131
    %v1171 = vadd.f32 %v1067, %v1131
    %v1172 = vadd.f32 %v1068, %v1131
    %v1173 = vadd.f32 %v1069, %v1131
    %v1174 = vadd.f32 %v1070, %v1131
    %v1175 = vadd.f32 %v1071, %v1131
    %v1176 = vadd.f32 %v1072, %v1136
    %v1177 = vadd.f32 %v1073, %v1136
    %v1178 = vadd.f32 %v1074, %v1136
    %v1179 = vadd.f32 %v1075, %v1136
    %v1180 = vadd.f32 %v1076, %v1136
    %v1181 = vadd.f32 %v1077, %v1136
    %v1182 = vadd.f32 %v1078, %v1136
    %v1183 = vadd.f32 %v1079, %v1136
    %v1184 = vadd.f32 %v1080, %v1141
    %v1185 = vadd.f32 %v1081, %v1141
    %v1186 = vadd.f32 %v1082, %v1141
    %v1187 = vadd.f32 %v1083, %v1141
    %v1188 = vadd.f32 %v1084, %v1141
    %v1189 = vadd.f32 %v1085, %v1141
    %v1190 = vadd.f32 %v1086, %v1141
    %v1191 = vadd.f32 %v1087, %v1141
    %v1192 = vadd.f32 %v1088, %v1146
    %v1193 = vadd.f32 %v1089, %v1146
    %v1194 = vadd.f32 %v1090, %v1146
    %v1195 = vadd.f32 %v1091, %v1146
    %v1196 = vadd.f32 %v1092, %v1146
    %v1197 = vadd.f32 %v1093, %v1146
    %v1198 = vadd.f32 %v1094, %v1146
    %v1199 = vadd.f32 %v1095, %v1146
    %v1200 = vadd.f32 %v1096, %v1151
    %v1201 = vadd.f32 %v1097, %v1151
    %v1202 = vadd.f32 %v1098, %v1151
    %v1203 = vadd.f32 %v1099, %v1151
    %v1204 = vadd.f32 %v1100, %v1151
    %v1205 = vadd.f32 %v1101, %v1151
    %v1206 = vadd.f32 %v1102, %v1151
    %v1207 = vadd.f32 %v1103, %v1151
    %v1208 = vadd.f32 %v1104, %v1156
    %v1209 = vadd.f32 %v1105, %v1156
    %v1210 = vadd.f32 %v1106, %v1156
    %v1211 = vadd.f32 %v1107, %v1156
    %v1212 = vadd.f32 %v1108, %v1156
    %v1213 = vadd.f32 %v1109, %v1156
    %v1214 = vadd.f32 %v1110, %v1156
    %v1215 = vadd.f32 %v1111, %v1156
    %v1216 = vadd.f32 %v1112, %v1161
    %v1217 = vadd.f32 %v1113, %v1161
    %v1218 = vadd.f32 %v1114, %v1161
    %v1219 = vadd.f32 %v1115, %v1161
    %v1220 = vadd.f32 %v1116, %v1161
    %v1221 = vadd.f32 %v1117, %v1161
    %v1222 = vadd.f32 %v1118, %v1161
    %v1223 = vadd.f32 %v1119, %v1161
    %v1224 = vadd.f32 %v1120, %v1166
    %v1225 = vadd.f32 %v1121, %v1166
    %v1226 = vadd.f32 %v1122, %v1166
    %v1227 = vadd.f32 %v1123, %v1166
    %v1228 = vadd.f32 %v1124, %v1166
    %v1229 = vadd.f32 %v1125, %v1166
    %v1230 = vadd.f32 %v1126, %v1166
    %v1231 = vadd.f32 %v1127, %v1166
    %v1232 = vxor.u32 %v1168, 2147483648
    %v1233 = vxor.u32 %v1169, 2147483648
    %v1234 = vxor.u32 %v1170, 2147483648
    %v1235 = vxor.u32 %v1171, 2147483648
    %v1236 = vxor.u32 %v1172, 2147483648
    %v1237 = vxor.u32 %v1173, 2147483648
    %v1238 = vxor.u32 %v1174, 2147483648
    %v1239 = vxor.u32 %v1175, 2147483648
    %v1240 = vxor.u32 %v1176, 2147483648
    %v1241 = vxor.u32 %v1177, 2147483648
    %v1242 = vxor.u32 %v1178, 2147483648
    %v1243 = vxor.u32 %v1179, 2147483648
    %v1244 = vxor.u32 %v1180, 2147483648
    %v1245 = vxor.u32 %v1181, 2147483648
    %v1246 = vxor.u32 %v1182, 2147483648
    %v1247 = vxor.u32 %v1183, 2147483648
    %v1248 = vxor.u32 %v1184, 2147483648
    %v1249 = vxor.u32 %v1185, 2147483648
    %v1250 = vxor.u32 %v1186, 2147483648
    %v1251 = vxor.u32 %v1187, 2147483648
    %v1252 = vxor.u32 %v1188, 2147483648
    %v1253 = vxor.u32 %v1189, 2147483648
    %v1254 = vxor.u32 %v1190, 2147483648
    %v1255 = vxor.u32 %v1191, 2147483648
    %v1256 = vxor.u32 %v1192, 2147483648
    %v1257 = vxor.u32 %v1193, 2147483648
    %v1258 = vxor.u32 %v1194, 2147483648
    %v1259 = vxor.u32 %v1195, 2147483648
    %v1260 = vxor.u32 %v1196, 2147483648
    %v1261 = vxor.u32 %v1197, 2147483648
    %v1262 = vxor.u32 %v1198, 2147483648
    %v1263 = vxor.u32 %v1199, 2147483648
    %v1264 = vxor.u32 %v1200, 2147483648
    %v1265 = vxor.u32 %v1201, 2147483648
    %v1266 = vxor.u32 %v1202, 2147483648
    %v1267 = vxor.u32 %v1203, 2147483648
    %v1268 = vxor.u32 %v1204, 2147483648
    %v1269 = vxor.u32 %v1205, 2147483648
    %v1270 = vxor.u32 %v1206, 2147483648
    %v1271 = vxor.u32 %v1207, 2147483648
    %v1272 = vxor.u32 %v1208, 2147483648
    %v1273 = vxor.u32 %v1209, 2147483648
    %v1274 = vxor.u32 %v1210, 2147483648
    %v1275 = vxor.u32 %v1211, 2147483648
    %v1276 = vxor.u32 %v1212, 2147483648
    %v1277 = vxor.u32 %v1213, 2147483648
    %v1278 = vxor.u32 %v1214, 2147483648
    %v1279 = vxor.u32 %v1215, 2147483648
    %v1280 = vxor.u32 %v1216, 2147483648
    %v1281 = vxor.u32 %v1217, 2147483648
    %v1282 = vxor.u32 %v1218, 2147483648
    %v1283 = vxor.u32 %v1219, 2147483648
    %v1284 = vxor.u32 %v1220, 2147483648
    %v1285 = vxor.u32 %v1221, 2147483648
    %v1286 = vxor.u32 %v1222, 2147483648
    %v1287 = vxor.u32 %v1223, 2147483648
    %v1288 = vxor.u32 %v1224, 2147483648
    %v1289 = vxor.u32 %v1225, 2147483648
    %v1290 = vxor.u32 %v1226, 2147483648
    %v1291 = vxor.u32 %v1227, 2147483648
    %v1292 = vxor.u32 %v1228, 2147483648
    %v1293 = vxor.u32 %v1229, 2147483648
    %v1294 = vxor.u32 %v1230, 2147483648
    %v1295 = vxor.u32 %v1231, 2147483648
    %v1296 = vmul.f32 %v1232, 1.442695
    %v1297 = vpow.pop %v1296
    %v1298 = vmul.f32 %v1233, 1.442695
    %v1299 = vpow.pop %v1298
    %v1300 = vmul.f32 %v1234, 1.442695
    %v1301 = vpow.pop %v1300
    %v1302 = vmul.f32 %v1235, 1.442695
    %v1303 = vpow.pop %v1302
    %v1304 = vmul.f32 %v1236, 1.442695
    %v1305 = vpow.pop %v1304
    %v1306 = vmul.f32 %v1237, 1.442695
    %v1307 = vpow.pop %v1306
    %v1308 = vmul.f32 %v1238, 1.442695
    %v1309 = vpow.pop %v1308
    %v1310 = vmul.f32 %v1239, 1.442695
    %v1311 = vpow.pop %v1310
    %v1312 = vmul.f32 %v1240, 1.442695
    %v1313 = vpow.pop %v1312
    %v1314 = vmul.f32 %v1241, 1.442695
    %v1315 = vpow.pop %v1314
    %v1316 = vmul.f32 %v1242, 1.442695
    %v1317 = vpow.pop %v1316
    %v1318 = vmul.f32 %v1243, 1.442695
    %v1319 = vpow.pop %v1318
    %v1320 = vmul.f32 %v1244, 1.442695
    %v1321 = vpow.pop %v1320
    %v1322 = vmul.f32 %v1245, 1.442695
    %v1323 = vpow.pop %v1322
    %v1324 = vmul.f32 %v1246, 1.442695
    %v1325 = vpow.pop %v1324
    %v1326 = vmul.f32 %v1247, 1.442695
    %v1327 = vpow.pop %v1326
    %v1328 = vmul.f32 %v1248, 1.442695
    %v1329 = vpow.pop %v1328
    %v1330 = vmul.f32 %v1249, 1.442695
    %v1331 = vpow.pop %v1330
    %v1332 = vmul.f32 %v1250, 1.442695
    %v1333 = vpow.pop %v1332
    %v1334 = vmul.f32 %v1251, 1.442695
    %v1335 = vpow.pop %v1334
    %v1336 = vmul.f32 %v1252, 1.442695
    %v1337 = vpow.pop %v1336
    %v1338 = vmul.f32 %v1253, 1.442695
    %v1339 = vpow.pop %v1338
    %v1340 = vmul.f32 %v1254, 1.442695
    %v1341 = vpow.pop %v1340
    %v1342 = vmul.f32 %v1255, 1.442695
    %v1343 = vpow.pop %v1342
    %v1344 = vmul.f32 %v1256, 1.442695
    %v1345 = vpow.pop %v1344
    %v1346 = vmul.f32 %v1257, 1.442695
    %v1347 = vpow.pop %v1346
    %v1348 = vmul.f32 %v1258, 1.442695
    %v1349 = vpow.pop %v1348
    %v1350 = vmul.f32 %v1259, 1.442695
    %v1351 = vpow.pop %v1350
    %v1352 = vmul.f32 %v1260, 1.442695
    %v1353 = vpow.pop %v1352
    %v1354 = vmul.f32 %v1261, 1.442695
    %v1355 = vpow.pop %v1354
    %v1356 = vmul.f32 %v1262, 1.442695
    %v1357 = vpow.pop %v1356
    %v1358 = vmul.f32 %v1263, 1.442695
    %v1359 = vpow.pop %v1358
    %v1360 = vmul.f32 %v1264, 1.442695
    %v1361 = vpow.pop %v1360
    %v1362 = vmul.f32 %v1265, 1.442695
    %v1363 = vpow.pop %v1362
    %v1364 = vmul.f32 %v1266, 1.442695
    %v1365 = vpow.pop %v1364
    %v1366 = vmul.f32 %v1267, 1.442695
    %v1367 = vpow.pop %v1366
    %v1368 = vmul.f32 %v1268, 1.442695
    %v1369 = vpow.pop %v1368
    %v1370 = vmul.f32 %v1269, 1.442695
    %v1371 = vpow.pop %v1370
    %v1372 = vmul.f32 %v1270, 1.442695
    %v1373 = vpow.pop %v1372
    %v1374 = vmul.f32 %v1271, 1.442695
    %v1375 = vpow.pop %v1374
    %v1376 = vmul.f32 %v1272, 1.442695
    %v1377 = vpow.pop %v1376
    %v1378 = vmul.f32 %v1273, 1.442695
    %v1379 = vpow.pop %v1378
    %v1380 = vmul.f32 %v1274, 1.442695
    %v1381 = vpow.pop %v1380
    %v1382 = vmul.f32 %v1275, 1.442695
    %v1383 = vpow.pop %v1382
    %v1384 = vmul.f32 %v1276, 1.442695
    %v1385 = vpow.pop %v1384
    %v1386 = vmul.f32 %v1277, 1.442695
    %v1387 = vpow.pop %v1386
    %v1388 = vmul.f32 %v1278, 1.442695
    %v1389 = vpow.pop %v1388
    %v1390 = vmul.f32 %v1279, 1.442695
    %v1391 = vpow.pop %v1390
    %v1392 = vmul.f32 %v1280, 1.442695
    %v1393 = vpow.pop %v1392
    %v1394 = vmul.f32 %v1281, 1.442695
    %v1395 = vpow.pop %v1394
    %v1396 = vmul.f32 %v1282, 1.442695
    %v1397 = vpow.pop %v1396
    %v1398 = vmul.f32 %v1283, 1.442695
    %v1399 = vpow.pop %v1398
    %v1400 = vmul.f32 %v1284, 1.442695
    %v1401 = vpow.pop %v1400
    %v1402 = vmul.f32 %v1285, 1.442695
    %v1403 = vpow.pop %v1402
    %v1404 = vmul.f32 %v1286, 1.442695
    %v1405 = vpow.pop %v1404
    %v1406 = vmul.f32 %v1287, 1.442695
    %v1407 = vpow.pop %v1406
    %v1408 = vmul.f32 %v1288, 1.442695
    %v1409 = vpow.pop %v1408
    %v1410 = vmul.f32 %v1289, 1.442695
    %v1411 = vpow.pop %v1410
    %v1412 = vmul.f32 %v1290, 1.442695
    %v1413 = vpow.pop %v1412
    %v1414 = vmul.f32 %v1291, 1.442695
    %v1415 = vpow.pop %v1414
    %v1416 = vmul.f32 %v1292, 1.442695
    %v1417 = vpow.pop %v1416
    %v1418 = vmul.f32 %v1293, 1.442695
    %v1419 = vpow.pop %v1418
    %v1420 = vmul.f32 %v1294, 1.442695
    %v1421 = vpow.pop %v1420
    %v1422 = vmul.f32 %v1295, 1.442695
    %v1423 = vpow.pop %v1422
    %v1424 = vadd.f32 %v1297, 1.0
    %v1425 = vadd.f32 %v1299, 1.0
    %v1426 = vadd.f32 %v1301, 1.0
    %v1427 = vadd.f32 %v1303, 1.0
    %v1428 = vadd.f32 %v1305, 1.0
    %v1429 = vadd.f32 %v1307, 1.0
    %v1430 = vadd.f32 %v1309, 1.0
    %v1431 = vadd.f32 %v1311, 1.0
    %v1432 = vadd.f32 %v1313, 1.0
    %v1433 = vadd.f32 %v1315, 1.0
    %v1434 = vadd.f32 %v1317, 1.0
    %v1435 = vadd.f32 %v1319, 1.0
    %v1436 = vadd.f32 %v1321, 1.0
    %v1437 = vadd.f32 %v1323, 1.0
    %v1438 = vadd.f32 %v1325, 1.0
    %v1439 = vadd.f32 %v1327, 1.0
    %v1440 = vadd.f32 %v1329, 1.0
    %v1441 = vadd.f32 %v1331, 1.0
    %v1442 = vadd.f32 %v1333, 1.0
    %v1443 = vadd.f32 %v1335, 1.0
    %v1444 = vadd.f32 %v1337, 1.0
    %v1445 = vadd.f32 %v1339, 1.0
    %v1446 = vadd.f32 %v1341, 1.0
    %v1447 = vadd.f32 %v1343, 1.0
    %v1448 = vadd.f32 %v1345, 1.0
    %v1449 = vadd.f32 %v1347, 1.0
    %v1450 = vadd.f32 %v1349, 1.0
    %v1451 = vadd.f32 %v1351, 1.0
    %v1452 = vadd.f32 %v1353, 1.0
    %v1453 = vadd.f32 %v1355, 1.0
    %v1454 = vadd.f32 %v1357, 1.0
    %v1455 = vadd.f32 %v1359, 1.0
    %v1456 = vadd.f32 %v1361, 1.0
    %v1457 = vadd.f32 %v1363, 1.0
    %v1458 = vadd.f32 %v1365, 1.0
    %v1459 = vadd.f32 %v1367, 1.0
    %v1460 = vadd.f32 %v1369, 1.0
    %v1461 = vadd.f32 %v1371, 1.0
    %v1462 = vadd.f32 %v1373, 1.0
    %v1463 = vadd.f32 %v1375, 1.0
    %v1464 = vadd.f32 %v1377, 1.0
    %v1465 = vadd.f32 %v1379, 1.0
    %v1466 = vadd.f32 %v1381, 1.0
    %v1467 = vadd.f32 %v1383, 1.0
    %v1468 = vadd.f32 %v1385, 1.0
    %v1469 = vadd.f32 %v1387, 1.0
    %v1470 = vadd.f32 %v1389, 1.0
    %v1471 = vadd.f32 %v1391, 1.0
    %v1472 = vadd.f32 %v1393, 1.0
    %v1473 = vadd.f32 %v1395, 1.0
    %v1474 = vadd.f32 %v1397, 1.0
    %v1475 = vadd.f32 %v1399, 1.0
    %v1476 = vadd.f32 %v1401, 1.0
    %v1477 = vadd.f32 %v1403, 1.0
    %v1478 = vadd.f32 %v1405, 1.0
    %v1479 = vadd.f32 %v1407, 1.0
    %v1480 = vadd.f32 %v1409, 1.0
    %v1481 = vadd.f32 %v1411, 1.0
    %v1482 = vadd.f32 %v1413, 1.0
    %v1483 = vadd.f32 %v1415, 1.0
    %v1484 = vadd.f32 %v1417, 1.0
    %v1485 = vadd.f32 %v1419, 1.0
    %v1486 = vadd.f32 %v1421, 1.0
    %v1487 = vadd.f32 %v1423, 1.0
    %v1488 = vrcp.pop %v1424
    %v1489 = vmul.f32 1.0, %v1488
    %v1490 = vrcp.pop %v1425
    %v1491 = vmul.f32 1.0, %v1490
    %v1492 = vrcp.pop %v1426
    %v1493 = vmul.f32 1.0, %v1492
    %v1494 = vrcp.pop %v1427
    %v1495 = vmul.f32 1.0, %v1494
    %v1496 = vrcp.pop %v1428
    %v1497 = vmul.f32 1.0, %v1496
    %v1498 = vrcp.pop %v1429
    %v1499 = vmul.f32 1.0, %v1498
    %v1500 = vrcp.pop %v1430
    %v1501 = vmul.f32 1.0, %v1500
    %v1502 = vrcp.pop %v1431
    %v1503 = vmul.f32 1.0, %v1502
    %v1504 = vrcp.pop %v1432
    %v1505 = vmul.f32 1.0, %v1504
    %v1506 = vrcp.pop %v1433
    %v1507 = vmul.f32 1.0, %v1506
    %v1508 = vrcp.pop %v1434
    %v1509 = vmul.f32 1.0, %v1508
    %v1510 = vrcp.pop %v1435
    %v1511 = vmul.f32 1.0, %v1510
    %v1512 = vrcp.pop %v1436
    %v1513 = vmul.f32 1.0, %v1512
    %v1514 = vrcp.pop %v1437
    %v1515 = vmul.f32 1.0, %v1514
    %v1516 = vrcp.pop %v1438
    %v1517 = vmul.f32 1.0, %v1516
    %v1518 = vrcp.pop %v1439
    %v1519 = vmul.f32 1.0, %v1518
    %v1520 = vrcp.pop %v1440
    %v1521 = vmul.f32 1.0, %v1520
    %v1522 = vrcp.pop %v1441
    %v1523 = vmul.f32 1.0, %v1522
    %v1524 = vrcp.pop %v1442
    %v1525 = vmul.f32 1.0, %v1524
    %v1526 = vrcp.pop %v1443
    %v1527 = vmul.f32 1.0, %v1526
    %v1528 = vrcp.pop %v1444
    %v1529 = vmul.f32 1.0, %v1528
    %v1530 = vrcp.pop %v1445
    %v1531 = vmul.f32 1.0, %v1530
    %v1532 = vrcp.pop %v1446
    %v1533 = vmul.f32 1.0, %v1532
    %v1534 = vrcp.pop %v1447
    %v1535 = vmul.f32 1.0, %v1534
    %v1536 = vrcp.pop %v1448
    %v1537 = vmul.f32 1.0, %v1536
    %v1538 = vrcp.pop %v1449
    %v1539 = vmul.f32 1.0, %v1538
    %v1540 = vrcp.pop %v1450
    %v1541 = vmul.f32 1.0, %v1540
    %v1542 = vrcp.pop %v1451
    %v1543 = vmul.f32 1.0, %v1542
    %v1544 = vrcp.pop %v1452
    %v1545 = vmul.f32 1.0, %v1544
    %v1546 = vrcp.pop %v1453
    %v1547 = vmul.f32 1.0, %v1546
    %v1548 = vrcp.pop %v1454
    %v1549 = vmul.f32 1.0, %v1548
    %v1550 = vrcp.pop %v1455
    %v1551 = vmul.f32 1.0, %v1550
    %v1552 = vrcp.pop %v1456
    %v1553 = vmul.f32 1.0, %v1552
    %v1554 = vrcp.pop %v1457
    %v1555 = vmul.f32 1.0, %v1554
    %v1556 = vrcp.pop %v1458
    %v1557 = vmul.f32 1.0, %v1556
    %v1558 = vrcp.pop %v1459
    %v1559 = vmul.f32 1.0, %v1558
    %v1560 = vrcp.pop %v1460
    %v1561 = vmul.f32 1.0, %v1560
    %v1562 = vrcp.pop %v1461
    %v1563 = vmul.f32 1.0, %v1562
    %v1564 = vrcp.pop %v1462
    %v1565 = vmul.f32 1.0, %v1564
    %v1566 = vrcp.pop %v1463
    %v1567 = vmul.f32 1.0, %v1566
    %v1568 = vrcp.pop %v1464
    %v1569 = vmul.f32 1.0, %v1568
    %v1570 = vrcp.pop %v1465
    %v1571 = vmul.f32 1.0, %v1570
    %v1572 = vrcp.pop %v1466
    %v1573 = vmul.f32 1.0, %v1572
    %v1574 = vrcp.pop %v1467
    %v1575 = vmul.f32 1.0, %v1574
    %v1576 = vrcp.pop %v1468
    %v1577 = vmul.f32 1.0, %v1576
    %v1578 = vrcp.pop %v1469
    %v1579 = vmul.f32 1.0, %v1578
    %v1580 = vrcp.pop %v1470
    %v1581 = vmul.f32 1.0, %v1580
    %v1582 = vrcp.pop %v1471
    %v1583 = vmul.f32 1.0, %v1582
    %v1584 = vrcp.pop %v1472
    %v1585 = vmul.f32 1.0, %v1584
    %v1586 = vrcp.pop %v1473
    %v1587 = vmul.f32 1.0, %v1586
    %v1588 = vrcp.pop %v1474
    %v1589 = vmul.f32 1.0, %v1588
    %v1590 = vrcp.pop %v1475
    %v1591 = vmul.f32 1.0, %v1590
    %v1592 = vrcp.pop %v1476
    %v1593 = vmul.f32 1.0, %v1592
    %v1594 = vrcp.pop %v1477
    %v1595 = vmul.f32 1.0, %v1594
    %v1596 = vrcp.pop %v1478
    %v1597 = vmul.f32 1.0, %v1596
    %v1598 = vrcp.pop %v1479
    %v1599 = vmul.f32 1.0, %v1598
    %v1600 = vrcp.pop %v1480
    %v1601 = vmul.f32 1.0, %v1600
    %v1602 = vrcp.pop %v1481
    %v1603 = vmul.f32 1.0, %v1602
    %v1604 = vrcp.pop %v1482
    %v1605 = vmul.f32 1.0, %v1604
    %v1606 = vrcp.pop %v1483
    %v1607 = vmul.f32 1.0, %v1606
    %v1608 = vrcp.pop %v1484
    %v1609 = vmul.f32 1.0, %v1608
    %v1610 = vrcp.pop %v1485
    %v1611 = vmul.f32 1.0, %v1610
    %v1612 = vrcp.pop %v1486
    %v1613 = vmul.f32 1.0, %v1612
    %v1614 = vrcp.pop %v1487
    %v1615 = vmul.f32 1.0, %v1614
    %v1616 = vmul.f32 %v1168, %v1489
    %v1617 = vmul.f32 %v1169, %v1491
    %v1618 = vmul.f32 %v1170, %v1493
    %v1619 = vmul.f32 %v1171, %v1495
    %v1620 = vmul.f32 %v1172, %v1497
    %v1621 = vmul.f32 %v1173, %v1499
    %v1622 = vmul.f32 %v1174, %v1501
    %v1623 = vmul.f32 %v1175, %v1503
    %v1624 = vmul.f32 %v1176, %v1505
    %v1625 = vmul.f32 %v1177, %v1507
    %v1626 = vmul.f32 %v1178, %v1509
    %v1627 = vmul.f32 %v1179, %v1511
    %v1628 = vmul.f32 %v1180, %v1513
    %v1629 = vmul.f32 %v1181, %v1515
    %v1630 = vmul.f32 %v1182, %v1517
    %v1631 = vmul.f32 %v1183, %v1519
    %v1632 = vmul.f32 %v1184, %v1521
    %v1633 = vmul.f32 %v1185, %v1523
    %v1634 = vmul.f32 %v1186, %v1525
    %v1635 = vmul.f32 %v1187, %v1527
    %v1636 = vmul.f32 %v1188, %v1529
    %v1637 = vmul.f32 %v1189, %v1531
    %v1638 = vmul.f32 %v1190, %v1533
    %v1639 = vmul.f32 %v1191, %v1535
    %v1640 = vmul.f32 %v1192, %v1537
    %v1641 = vmul.f32 %v1193, %v1539
    %v1642 = vmul.f32 %v1194, %v1541
    %v1643 = vmul.f32 %v1195, %v1543
    %v1644 = vmul.f32 %v1196, %v1545
    %v1645 = vmul.f32 %v1197, %v1547
    %v1646 = vmul.f32 %v1198, %v1549
    %v1647 = vmul.f32 %v1199, %v1551
    %v1648 = vmul.f32 %v1200, %v1553
    %v1649 = vmul.f32 %v1201, %v1555
    %v1650 = vmul.f32 %v1202, %v1557
    %v1651 = vmul.f32 %v1203, %v1559
    %v1652 = vmul.f32 %v1204, %v1561
    %v1653 = vmul.f32 %v1205, %v1563
    %v1654 = vmul.f32 %v1206, %v1565
    %v1655 = vmul.f32 %v1207, %v1567
    %v1656 = vmul.f32 %v1208, %v1569
    %v1657 = vmul.f32 %v1209, %v1571
    %v1658 = vmul.f32 %v1210, %v1573
    %v1659 = vmul.f32 %v1211, %v1575
    %v1660 = vmul.f32 %v1212, %v1577
    %v1661 = vmul.f32 %v1213, %v1579
    %v1662 = vmul.f32 %v1214, %v1581
    %v1663 = vmul.f32 %v1215, %v1583
    %v1664 = vmul.f32 %v1216, %v1585
    %v1665 = vmul.f32 %v1217, %v1587
    %v1666 = vmul.f32 %v1218, %v1589
    %v1667 = vmul.f32 %v1219, %v1591
    %v1668 = vmul.f32 %v1220, %v1593
    %v1669 = vmul.f32 %v1221, %v1595
    %v1670 = vmul.f32 %v1222, %v1597
    %v1671 = vmul.f32 %v1223, %v1599
    %v1672 = vmul.f32 %v1224, %v1601
    %v1673 = vmul.f32 %v1225, %v1603
    %v1674 = vmul.f32 %v1226, %v1605
    %v1675 = vmul.f32 %v1227, %v1607
    %v1676 = vmul.f32 %v1228, %v1609
    %v1677 = vmul.f32 %v1229, %v1611
    %v1678 = vmul.f32 %v1230, %v1613
    %v1679 = vmul.f32 %v1231, %v1615
    %v1680 = vmax.f32 %v1616, %v1618
    %v1681 = vmax.f32 %v1617, %v1619
    %v1682 = vmax.f32 %v1624, %v1626
    %v1683 = vmax.f32 %v1625, %v1627
    %v1684 = vmax.f32 %v1632, %v1634
    %v1685 = vmax.f32 %v1633, %v1635
    %v1686 = vmax.f32 %v1640, %v1642
    %v1687 = vmax.f32 %v1641, %v1643
    %v1688 = vmax.f32 %v1648, %v1650
    %v1689 = vmax.f32 %v1649, %v1651
    %v1690 = vmax.f32 %v1656, %v1658
    %v1691 = vmax.f32 %v1657, %v1659
    %v1692 = vmax.f32 %v1664, %v1666
    %v1693 = vmax.f32 %v1665, %v1667
    %v1694 = vmax.f32 %v1672, %v1674
    %v1695 = vmax.f32 %v1673, %v1675
    %v1696 = vmax.f32 %v1620, %v1622
    %v1697 = vmax.f32 %v1621, %v1623
    %v1698 = vmax.f32 %v1628, %v1630
    %v1699 = vmax.f32 %v1629, %v1631
    %v1700 = vmax.f32 %v1636, %v1638
    %v1701 = vmax.f32 %v1637, %v1639
    %v1702 = vmax.f32 %v1644, %v1646
    %v1703 = vmax.f32 %v1645, %v1647
    %v1704 = vmax.f32 %v1652, %v1654
    %v1705 = vmax.f32 %v1653, %v1655
    %v1706 = vmax.f32 %v1660, %v1662
    %v1707 = vmax.f32 %v1661, %v1663
    %v1708 = vmax.f32 %v1668, %v1670
    %v1709 = vmax.f32 %v1669, %v1671
    %v1710 = vmax.f32 %v1676, %v1678
    %v1711 = vmax.f32 %v1677, %v1679
    %v1712 = vlaneseq
    %v1713 = vand.u32 %v1712, 127
    %v1714 = vadd.s32 %v1713, 128
    %vm1715 = vcmask 1048512
    %1716 = vrot.lane.b32.xlu0 %v1680, 120
    %v1717 = vpop.permute.xlu0 %1716
    %v1718 = vsel %vm1715, %v1717, %v1681
    %1719 = vrot.lane.b32.xlu0 %v1682, 120
    %v1720 = vpop.permute.xlu0 %1719
    %v1721 = vsel %vm1715, %v1720, %v1683
    %1722 = vrot.lane.b32.xlu0 %v1684, 120
    %v1723 = vpop.permute.xlu0 %1722
    %v1724 = vsel %vm1715, %v1723, %v1685
    %1725 = vrot.lane.b32.xlu0 %v1686, 120
    %v1726 = vpop.permute.xlu0 %1725
    %v1727 = vsel %vm1715, %v1726, %v1687
    %1728 = vrot.lane.b32.xlu0 %v1688, 120
    %v1729 = vpop.permute.xlu0 %1728
    %v1730 = vsel %vm1715, %v1729, %v1689
    %1731 = vrot.lane.b32.xlu0 %v1690, 120
    %v1732 = vpop.permute.xlu0 %1731
    %v1733 = vsel %vm1715, %v1732, %v1691
    %1734 = vrot.lane.b32.xlu0 %v1692, 120
    %v1735 = vpop.permute.xlu0 %1734
    %v1736 = vsel %vm1715, %v1735, %v1693
    %1737 = vrot.lane.b32.xlu0 %v1694, 120
    %v1738 = vpop.permute.xlu0 %1737
    %v1739 = vsel %vm1715, %v1738, %v1695
    %1740 = vrot.lane.b32.xlu0 %v1718, 120
    %v1741 = vpop.permute.xlu0 %1740
    %1742 = vrot.lane.b32.xlu0 %v1721, 120
    %v1743 = vpop.permute.xlu0 %1742
    %1744 = vrot.lane.b32.xlu0 %v1724, 120
    %v1745 = vpop.permute.xlu0 %1744
    %1746 = vrot.lane.b32.xlu0 %v1727, 120
    %v1747 = vpop.permute.xlu0 %1746
    %1748 = vrot.lane.b32.xlu0 %v1730, 120
    %v1749 = vpop.permute.xlu0 %1748
    %1750 = vrot.lane.b32.xlu0 %v1733, 120
    %v1751 = vpop.permute.xlu0 %1750
    %1752 = vrot.lane.b32.xlu0 %v1736, 120
    %v1753 = vpop.permute.xlu0 %1752
    %1754 = vrot.lane.b32.xlu0 %v1739, 120
    %v1755 = vpop.permute.xlu0 %1754
    %v1756 = vsel %vm1715, %v1741, %v1717
    %v1757 = vsel %vm1715, %v1743, %v1720
    %v1758 = vsel %vm1715, %v1745, %v1723
    %v1759 = vsel %vm1715, %v1747, %v1726
    %v1760 = vsel %vm1715, %v1749, %v1729
    %v1761 = vsel %vm1715, %v1751, %v1732
    %v1762 = vsel %vm1715, %v1753, %v1735
    %v1763 = vsel %vm1715, %v1755, %v1738
    %vm1764 = vcmp.eq.s32.totalorder %v1713, 0
    %vm1765 = vcmp.eq.s32.totalorder %v1714, 0
    %1790 = vrot.lane.b32.xlu0 %v1718, 9
    %v1791 = vpop.permute.xlu0 %1790
    %1792 = vrot.lane.b32.xlu0 %v1756, 9
    %v1793 = vpop.permute.xlu0 %1792
    %1794 = vrot.lane.b32.xlu0 %v1741, 9
    %v1795 = vpop.permute.xlu0 %1794
    %1796 = vrot.lane.b32.xlu0 %v1721, 9
    %v1797 = vpop.permute.xlu0 %1796
    %1798 = vrot.lane.b32.xlu0 %v1757, 9
    %v1799 = vpop.permute.xlu0 %1798
    %1800 = vrot.lane.b32.xlu0 %v1743, 9
    %v1801 = vpop.permute.xlu0 %1800
    %1802 = vrot.lane.b32.xlu0 %v1724, 9
    %v1803 = vpop.permute.xlu0 %1802
    %1804 = vrot.lane.b32.xlu0 %v1758, 9
    %v1805 = vpop.permute.xlu0 %1804
    %1806 = vrot.lane.b32.xlu0 %v1745, 9
    %v1807 = vpop.permute.xlu0 %1806
    %1808 = vrot.lane.b32.xlu0 %v1727, 9
    %v1809 = vpop.permute.xlu0 %1808
    %1810 = vrot.lane.b32.xlu0 %v1759, 9
    %v1811 = vpop.permute.xlu0 %1810
    %1812 = vrot.lane.b32.xlu0 %v1747, 9
    %v1813 = vpop.permute.xlu0 %1812
    %1814 = vrot.lane.b32.xlu0 %v1730, 9
    %v1815 = vpop.permute.xlu0 %1814
    %1816 = vrot.lane.b32.xlu0 %v1760, 9
    %v1817 = vpop.permute.xlu0 %1816
    %1818 = vrot.lane.b32.xlu0 %v1749, 9
    %v1819 = vpop.permute.xlu0 %1818
    %1820 = vrot.lane.b32.xlu0 %v1733, 9
    %v1821 = vpop.permute.xlu0 %1820
    %1822 = vrot.lane.b32.xlu0 %v1761, 9
    %v1823 = vpop.permute.xlu0 %1822
    %1824 = vrot.lane.b32.xlu0 %v1751, 9
    %v1825 = vpop.permute.xlu0 %1824
    %1826 = vrot.lane.b32.xlu0 %v1736, 9
    %v1827 = vpop.permute.xlu0 %1826
    %1828 = vrot.lane.b32.xlu0 %v1762, 9
    %v1829 = vpop.permute.xlu0 %1828
    %1830 = vrot.lane.b32.xlu0 %v1753, 9
    %v1831 = vpop.permute.xlu0 %1830
    %1832 = vrot.lane.b32.xlu0 %v1739, 9
    %v1833 = vpop.permute.xlu0 %1832
    %1834 = vrot.lane.b32.xlu0 %v1763, 9
    %v1835 = vpop.permute.xlu0 %1834
    %1836 = vrot.lane.b32.xlu0 %v1755, 9
    %v1837 = vpop.permute.xlu0 %1836
    %vm1838 = vcmask 72704
    %v1839 = vsel %vm1838, %v1791, %v1793
    %v1840 = vsel %vm1838, %v1793, %v1795
    %v1841 = vsel %vm1838, %v1797, %v1799
    %v1842 = vsel %vm1838, %v1799, %v1801
    %v1843 = vsel %vm1838, %v1803, %v1805
    %v1844 = vsel %vm1838, %v1805, %v1807
    %v1845 = vsel %vm1838, %v1809, %v1811
    %v1846 = vsel %vm1838, %v1811, %v1813
    %v1847 = vsel %vm1838, %v1815, %v1817
    %v1848 = vsel %vm1838, %v1817, %v1819
    %v1849 = vsel %vm1838, %v1821, %v1823
    %v1850 = vsel %vm1838, %v1823, %v1825
    %v1851 = vsel %vm1838, %v1827, %v1829
    %v1852 = vsel %vm1838, %v1829, %v1831
    %v1853 = vsel %vm1838, %v1833, %v1835
    %v1854 = vsel %vm1838, %v1835, %v1837
    %v1871 = vsel %vm1764, 0.0, %v1839
    %v1872 = vsel %vm1765, 0.0, %v1840
    %v1873 = vsel %vm1764, 0.0, %v1841
    %v1874 = vsel %vm1765, 0.0, %v1842
    %v1875 = vsel %vm1764, 0.0, %v1843
    %v1876 = vsel %vm1765, 0.0, %v1844
    %v1877 = vsel %vm1764, 0.0, %v1845
    %v1878 = vsel %vm1765, 0.0, %v1846
    %v1879 = vsel %vm1764, 0.0, %v1847
    %v1880 = vsel %vm1765, 0.0, %v1848
    %v1881 = vsel %vm1764, 0.0, %v1849
    %v1882 = vsel %vm1765, 0.0, %v1850
    %v1883 = vsel %vm1764, 0.0, %v1851
    %v1884 = vsel %vm1765, 0.0, %v1852
    %v1885 = vsel %vm1764, 0.0, %v1853
    %v1886 = vsel %vm1765, 0.0, %v1854
    %v1887 = vpack.c.bf16 %v1873, %v1871
    %v1888 = vpack.c.bf16 %v1874, %v1872
    %v1889 = vpack.c.bf16 %v1877, %v1875
    %v1890 = vpack.c.bf16 %v1878, %v1876
    %v1891 = vpack.c.bf16 %v1881, %v1879
    %v1892 = vpack.c.bf16 %v1882, %v1880
    %v1893 = vpack.c.bf16 %v1885, %v1883
    %v1894 = vpack.c.bf16 %v1886, %v1884
    %v1895 = vpack.c.bf16 %v1682, %v1680
    %v1896 = vpack.c.bf16 %v1683, %v1681
    %v1897 = vpack.c.bf16 %v1686, %v1684
    %v1898 = vpack.c.bf16 %v1687, %v1685
    %v1899 = vpack.c.bf16 %v1690, %v1688
    %v1900 = vpack.c.bf16 %v1691, %v1689
    %v1901 = vpack.c.bf16 %v1694, %v1692
    %v1902 = vpack.c.bf16 %v1695, %v1693
    %1903 = vrot.lane.b32.xlu0 %v1696, 120
    %v1904 = vpop.permute.xlu0 %1903
    %v1905 = vsel %vm1715, %v1904, %v1697
    %1906 = vrot.lane.b32.xlu0 %v1698, 120
    %v1907 = vpop.permute.xlu0 %1906
    %v1908 = vsel %vm1715, %v1907, %v1699
    %1909 = vrot.lane.b32.xlu0 %v1700, 120
    %v1910 = vpop.permute.xlu0 %1909
    %v1911 = vsel %vm1715, %v1910, %v1701
    %1912 = vrot.lane.b32.xlu0 %v1702, 120
    %v1913 = vpop.permute.xlu0 %1912
    %v1914 = vsel %vm1715, %v1913, %v1703
    %1915 = vrot.lane.b32.xlu0 %v1704, 120
    %v1916 = vpop.permute.xlu0 %1915
    %v1917 = vsel %vm1715, %v1916, %v1705
    %1918 = vrot.lane.b32.xlu0 %v1706, 120
    %v1919 = vpop.permute.xlu0 %1918
    %v1920 = vsel %vm1715, %v1919, %v1707
    %1921 = vrot.lane.b32.xlu0 %v1708, 120
    %v1922 = vpop.permute.xlu0 %1921
    %v1923 = vsel %vm1715, %v1922, %v1709
    %1924 = vrot.lane.b32.xlu0 %v1710, 120
    %v1925 = vpop.permute.xlu0 %1924
    %v1926 = vsel %vm1715, %v1925, %v1711
    %1927 = vrot.lane.b32.xlu0 %v1905, 120
    %v1928 = vpop.permute.xlu0 %1927
    %1929 = vrot.lane.b32.xlu0 %v1908, 120
    %v1930 = vpop.permute.xlu0 %1929
    %1931 = vrot.lane.b32.xlu0 %v1911, 120
    %v1932 = vpop.permute.xlu0 %1931
    %1933 = vrot.lane.b32.xlu0 %v1914, 120
    %v1934 = vpop.permute.xlu0 %1933
    %1935 = vrot.lane.b32.xlu0 %v1917, 120
    %v1936 = vpop.permute.xlu0 %1935
    %1937 = vrot.lane.b32.xlu0 %v1920, 120
    %v1938 = vpop.permute.xlu0 %1937
    %1939 = vrot.lane.b32.xlu0 %v1923, 120
    %v1940 = vpop.permute.xlu0 %1939
    %1941 = vrot.lane.b32.xlu0 %v1926, 120
    %v1942 = vpop.permute.xlu0 %1941
    %v1943 = vsel %vm1715, %v1928, %v1904
    %v1944 = vsel %vm1715, %v1930, %v1907
    %v1945 = vsel %vm1715, %v1932, %v1910
    %v1946 = vsel %vm1715, %v1934, %v1913
    %v1947 = vsel %vm1715, %v1936, %v1916
    %v1948 = vsel %vm1715, %v1938, %v1919
    %v1949 = vsel %vm1715, %v1940, %v1922
    %v1950 = vsel %vm1715, %v1942, %v1925
    %1975 = vrot.lane.b32.xlu0 %v1905, 9
    %v1976 = vpop.permute.xlu0 %1975
    %1977 = vrot.lane.b32.xlu0 %v1943, 9
    %v1978 = vpop.permute.xlu0 %1977
    %1979 = vrot.lane.b32.xlu0 %v1928, 9
    %v1980 = vpop.permute.xlu0 %1979
    %1981 = vrot.lane.b32.xlu0 %v1908, 9
    %v1982 = vpop.permute.xlu0 %1981
    %1983 = vrot.lane.b32.xlu0 %v1944, 9
    %v1984 = vpop.permute.xlu0 %1983
    %1985 = vrot.lane.b32.xlu0 %v1930, 9
    %v1986 = vpop.permute.xlu0 %1985
    %1987 = vrot.lane.b32.xlu0 %v1911, 9
    %v1988 = vpop.permute.xlu0 %1987
    %1989 = vrot.lane.b32.xlu0 %v1945, 9
    %v1990 = vpop.permute.xlu0 %1989
    %1991 = vrot.lane.b32.xlu0 %v1932, 9
    %v1992 = vpop.permute.xlu0 %1991
    %1993 = vrot.lane.b32.xlu0 %v1914, 9
    %v1994 = vpop.permute.xlu0 %1993
    %1995 = vrot.lane.b32.xlu0 %v1946, 9
    %v1996 = vpop.permute.xlu0 %1995
    %1997 = vrot.lane.b32.xlu0 %v1934, 9
    %v1998 = vpop.permute.xlu0 %1997
    %1999 = vrot.lane.b32.xlu0 %v1917, 9
    %v2000 = vpop.permute.xlu0 %1999
    %2001 = vrot.lane.b32.xlu0 %v1947, 9
    %v2002 = vpop.permute.xlu0 %2001
    %2003 = vrot.lane.b32.xlu0 %v1936, 9
    %v2004 = vpop.permute.xlu0 %2003
    %2005 = vrot.lane.b32.xlu0 %v1920, 9
    %v2006 = vpop.permute.xlu0 %2005
    %2007 = vrot.lane.b32.xlu0 %v1948, 9
    %v2008 = vpop.permute.xlu0 %2007
    %2009 = vrot.lane.b32.xlu0 %v1938, 9
    %v2010 = vpop.permute.xlu0 %2009
    %2011 = vrot.lane.b32.xlu0 %v1923, 9
    %v2012 = vpop.permute.xlu0 %2011
    %2013 = vrot.lane.b32.xlu0 %v1949, 9
    %v2014 = vpop.permute.xlu0 %2013
    %2015 = vrot.lane.b32.xlu0 %v1940, 9
    %v2016 = vpop.permute.xlu0 %2015
    %2017 = vrot.lane.b32.xlu0 %v1926, 9
    %v2018 = vpop.permute.xlu0 %2017
    %2019 = vrot.lane.b32.xlu0 %v1950, 9
    %v2020 = vpop.permute.xlu0 %2019
    %2021 = vrot.lane.b32.xlu0 %v1942, 9
    %v2022 = vpop.permute.xlu0 %2021
    %v2023 = vsel %vm1838, %v1976, %v1978
    %v2024 = vsel %vm1838, %v1978, %v1980
    %v2025 = vsel %vm1838, %v1982, %v1984
    %v2026 = vsel %vm1838, %v1984, %v1986
    %v2027 = vsel %vm1838, %v1988, %v1990
    %v2028 = vsel %vm1838, %v1990, %v1992
    %v2029 = vsel %vm1838, %v1994, %v1996
    %v2030 = vsel %vm1838, %v1996, %v1998
    %v2031 = vsel %vm1838, %v2000, %v2002
    %v2032 = vsel %vm1838, %v2002, %v2004
    %v2033 = vsel %vm1838, %v2006, %v2008
    %v2034 = vsel %vm1838, %v2008, %v2010
    %v2035 = vsel %vm1838, %v2012, %v2014
    %v2036 = vsel %vm1838, %v2014, %v2016
    %v2037 = vsel %vm1838, %v2018, %v2020
    %v2038 = vsel %vm1838, %v2020, %v2022
    %v2055 = vsel %vm1764, 0.0, %v2023
    %v2056 = vsel %vm1765, 0.0, %v2024
    %v2057 = vsel %vm1764, 0.0, %v2025
    %v2058 = vsel %vm1765, 0.0, %v2026
    %v2059 = vsel %vm1764, 0.0, %v2027
    %v2060 = vsel %vm1765, 0.0, %v2028
    %v2061 = vsel %vm1764, 0.0, %v2029
    %v2062 = vsel %vm1765, 0.0, %v2030
    %v2063 = vsel %vm1764, 0.0, %v2031
    %v2064 = vsel %vm1765, 0.0, %v2032
    %v2065 = vsel %vm1764, 0.0, %v2033
    %v2066 = vsel %vm1765, 0.0, %v2034
    %v2067 = vsel %vm1764, 0.0, %v2035
    %v2068 = vsel %vm1765, 0.0, %v2036
    %v2069 = vsel %vm1764, 0.0, %v2037
    %v2070 = vsel %vm1765, 0.0, %v2038
    %v2071 = vpack.c.bf16 %v2057, %v2055
    %v2072 = vpack.c.bf16 %v2058, %v2056
    %v2073 = vpack.c.bf16 %v2061, %v2059
    %v2074 = vpack.c.bf16 %v2062, %v2060
    %v2075 = vpack.c.bf16 %v2065, %v2063
    %v2076 = vpack.c.bf16 %v2066, %v2064
    %v2077 = vpack.c.bf16 %v2069, %v2067
    %v2078 = vpack.c.bf16 %v2070, %v2068
    %v2079 = vpack.c.bf16 %v1698, %v1696
    %v2080 = vpack.c.bf16 %v1699, %v1697
    %v2081 = vpack.c.bf16 %v1702, %v1700
    %v2082 = vpack.c.bf16 %v1703, %v1701
    %v2083 = vpack.c.bf16 %v1706, %v1704
    %v2084 = vpack.c.bf16 %v1707, %v1705
    %v2085 = vpack.c.bf16 %v1710, %v1708
    %v2086 = vpack.c.bf16 %v1711, %v1709
    %2095 = vrot.lane.b32.xlu0 %v1895, 127
    %v2096 = vpop.permute.xlu0 %2095
    %2097 = vrot.lane.b32.xlu0 %v1896, 127
    %v2098 = vpop.permute.xlu0 %2097
    %2099 = vrot.lane.b32.xlu0 %v1897, 127
    %v2100 = vpop.permute.xlu0 %2099
    %2101 = vrot.lane.b32.xlu0 %v1898, 127
    %v2102 = vpop.permute.xlu0 %2101
    %2103 = vrot.lane.b32.xlu0 %v1899, 127
    %v2104 = vpop.permute.xlu0 %2103
    %2105 = vrot.lane.b32.xlu0 %v1900, 127
    %v2106 = vpop.permute.xlu0 %2105
    %2107 = vrot.lane.b32.xlu0 %v1901, 127
    %v2108 = vpop.permute.xlu0 %2107
    %2109 = vrot.lane.b32.xlu0 %v1902, 127
    %v2110 = vpop.permute.xlu0 %2109
    %vm2111 = vcmask 1039360
    %v2112 = vsel %vm2111, %v2096, %v2098
    %v2113 = vsel %vm2111, %v2100, %v2102
    %v2114 = vsel %vm2111, %v2104, %v2106
    %v2115 = vsel %vm2111, %v2108, %v2110
    %2132 = vrot.lane.b32.xlu0 %v2079, 127
    %v2133 = vpop.permute.xlu0 %2132
    %2134 = vrot.lane.b32.xlu0 %v2080, 127
    %v2135 = vpop.permute.xlu0 %2134
    %2136 = vrot.lane.b32.xlu0 %v2081, 127
    %v2137 = vpop.permute.xlu0 %2136
    %2138 = vrot.lane.b32.xlu0 %v2082, 127
    %v2139 = vpop.permute.xlu0 %2138
    %2140 = vrot.lane.b32.xlu0 %v2083, 127
    %v2141 = vpop.permute.xlu0 %2140
    %2142 = vrot.lane.b32.xlu0 %v2084, 127
    %v2143 = vpop.permute.xlu0 %2142
    %2144 = vrot.lane.b32.xlu0 %v2085, 127
    %v2145 = vpop.permute.xlu0 %2144
    %2146 = vrot.lane.b32.xlu0 %v2086, 127
    %v2147 = vpop.permute.xlu0 %2146
    %v2148 = vsel %vm2111, %v2133, %v2135
    %v2149 = vsel %vm2111, %v2137, %v2139
    %v2150 = vsel %vm2111, %v2141, %v2143
    %v2151 = vsel %vm2111, %v2145, %v2147
    %v2160 = vld [vmem:[%s4] sm:$0xff]
    %v2161 = vld [vmem:[%s4 + $0x8] sm:$0xf]
    %v2162 = vld [vmem:[%s4 + $0xc] sm:$0xff]
    %v2163 = vld [vmem:[%s4 + $0x14] sm:$0xf]
    %v2164 = vld [vmem:[%s4 + $0x18] sm:$0xff]
    %v2165 = vld [vmem:[%s4 + $0x20] sm:$0xf]
    %v2166 = vld [vmem:[%s4 + $0x24] sm:$0xff]
    %v2167 = vld [vmem:[%s4 + $0x2c] sm:$0xf]
    %v2168 = vld [vmem:[%s4 + $0x30] sm:$0xff]
    %v2169 = vld [vmem:[%s4 + $0x38] sm:$0xf]
    %v2170 = vld [vmem:[%s4 + $0x3c] sm:$0xff]
    %v2171 = vld [vmem:[%s4 + $0x44] sm:$0xf]
    %v2172 = vld [vmem:[%s4 + $0x48] sm:$0xff]
    %v2173 = vld [vmem:[%s4 + $0x50] sm:$0xf]
    %v2174 = vld [vmem:[%s4 + $0x54] sm:$0xff]
    %v2175 = vld [vmem:[%s4 + $0x5c] sm:$0xf]
    %v2192 = vunpack.c.l.b16 %v2160
    %v2193 = vunpack.c.h.b16 %v2160
    %v2194 = vunpack.c.l.b16 %v2161
    %v2195 = vunpack.c.l.b16 %v2162
    %v2196 = vunpack.c.h.b16 %v2162
    %v2197 = vunpack.c.l.b16 %v2163
    %v2198 = vunpack.c.l.b16 %v2164
    %v2199 = vunpack.c.h.b16 %v2164
    %v2200 = vunpack.c.l.b16 %v2165
    %v2201 = vunpack.c.l.b16 %v2166
    %v2202 = vunpack.c.h.b16 %v2166
    %v2203 = vunpack.c.l.b16 %v2167
    %v2204 = vunpack.c.l.b16 %v2168
    %v2205 = vunpack.c.h.b16 %v2168
    %v2206 = vunpack.c.l.b16 %v2169
    %v2207 = vunpack.c.l.b16 %v2170
    %v2208 = vunpack.c.h.b16 %v2170
    %v2209 = vunpack.c.l.b16 %v2171
    %v2210 = vunpack.c.l.b16 %v2172
    %v2211 = vunpack.c.h.b16 %v2172
    %v2212 = vunpack.c.l.b16 %v2173
    %v2213 = vunpack.c.l.b16 %v2174
    %v2214 = vunpack.c.h.b16 %v2174
    %v2215 = vunpack.c.l.b16 %v2175
    %v2216 = vpack.c.b16 %v2195, %v2192
    %v2217 = vpack.c.b16 %v2196, %v2193
    %v2218 = vpack.c.b16 %v2197, %v2194
    %v2219 = vpack.c.b16 %v2201, %v2198
    %v2220 = vpack.c.b16 %v2202, %v2199
    %v2221 = vpack.c.b16 %v2203, %v2200
    %v2222 = vpack.c.b16 %v2207, %v2204
    %v2223 = vpack.c.b16 %v2208, %v2205
    %v2224 = vpack.c.b16 %v2209, %v2206
    %v2225 = vpack.c.b16 %v2213, %v2210
    %v2226 = vpack.c.b16 %v2214, %v2211
    %v2227 = vpack.c.b16 %v2215, %v2212
    %v2237 = vsel %vm749, %v2218, 0
    %v2240 = vsel %vm749, %v2221, 0
    %v2243 = vsel %vm749, %v2224, 0
    %v2246 = vsel %vm749, %v2227, 0
    %2248 = vmatprep.subr.bf16.mxu0 %v2078
    %2249 = vmatpush1.bf16.msra.mxu0 %v2077
    %2250 = vmatprep.subr.bf16.mxu0 %v2076
    %2251 = vmatpush1.bf16.msra.mxu0 %v2075
    %2252 = vmatprep.subr.bf16.mxu0 %v2074
    %2253 = vmatpush1.bf16.msra.mxu0 %v2073
    %2254 = vmatprep.subr.bf16.mxu0 %v2072
    %2255 = vmatpush1.bf16.msra.mxu0 %v2071
    %2256 = vmatprep.subr.bf16.mxu0 %v1894
    %2257 = vmatpush1.bf16.msra.mxu0 %v1893
    %2258 = vmatprep.subr.bf16.mxu0 %v1892
    %2259 = vmatpush1.bf16.msra.mxu0 %v1891
    %2260 = vmatprep.subr.bf16.mxu0 %v1890
    %2261 = vmatpush1.bf16.msra.mxu0 %v1889
    %2262 = vmatprep.subr.bf16.mxu0 %v1888
    %2263 = vmatpush1.bf16.msra.mxu0 %v1887
    %2264 = vmatprep.subr.bf16.mxu0 %v2086
    %2265 = vmatpush2.bf16.msra.mxu0 %v2085
    %2266 = vmatprep.subr.bf16.mxu0 %v2084
    %2267 = vmatpush2.bf16.msra.mxu0 %v2083
    %2268 = vmatprep.subr.bf16.mxu0 %v2082
    %2269 = vmatpush2.bf16.msra.mxu0 %v2081
    %2270 = vmatprep.subr.bf16.mxu0 %v2080
    %2271 = vmatpush2.bf16.msra.mxu0 %v2079
    %2272 = vmatprep.subr.bf16.mxu0 %v1902
    %2273 = vmatpush2.bf16.msra.mxu0 %v1901
    %2274 = vmatprep.subr.bf16.mxu0 %v1900
    %2275 = vmatpush2.bf16.msra.mxu0 %v1899
    %2276 = vmatprep.subr.bf16.mxu0 %v1898
    %2277 = vmatpush2.bf16.msra.mxu0 %v1897
    %2278 = vmatprep.subr.bf16.mxu0 %v1896
    %2279 = vmatpush2.bf16.msra.mxu0 %v1895
    %2280 = vmatprep.mubr.bf16.mxu0 %v2217
    %2281 = vmatmul.mubr.bf16.gmra.mxu0 %v2216
    %v2282 = vpop.f32.mrf.mxu0
    %v2283 = vadd.f32 0.0, %v2282
    %v2284 = vpop.f32.mrf.mxu0
    %v2285 = vadd.f32 0.0, %v2284
    %v2286 = vpop.f32.mrf.mxu0
    %v2287 = vadd.f32 0.0, %v2286
    %v2288 = vpop.f32.mrf.mxu0
    %v2289 = vadd.f32 0.0, %v2288
    %2290 = vmatprep.mubr.bf16.mxu0 %v2220
    %2291 = vmatmul.mubr.bf16.gmra.mxu0 %v2219
    %v2292 = vpop.f32.mrf.mxu0
    %v2293 = vadd.f32 0.0, %v2292
    %v2294 = vpop.f32.mrf.mxu0
    %v2295 = vadd.f32 0.0, %v2294
    %v2296 = vpop.f32.mrf.mxu0
    %v2297 = vadd.f32 0.0, %v2296
    %v2298 = vpop.f32.mrf.mxu0
    %v2299 = vadd.f32 0.0, %v2298
    %2300 = vmatprep.mubr.bf16.mxu0 %v2223
    %2301 = vmatmul.mubr.bf16.gmra.mxu0 %v2222
    %v2302 = vpop.f32.mrf.mxu0
    %v2303 = vadd.f32 0.0, %v2302
    %v2304 = vpop.f32.mrf.mxu0
    %v2305 = vadd.f32 0.0, %v2304
    %v2306 = vpop.f32.mrf.mxu0
    %v2307 = vadd.f32 0.0, %v2306
    %v2308 = vpop.f32.mrf.mxu0
    %v2309 = vadd.f32 0.0, %v2308
    %2310 = vmatprep.mubr.bf16.mxu0 %v2226
    %2311 = vmatmul.mubr.bf16.gmra.mxu0 %v2225
    %v2312 = vpop.f32.mrf.mxu0
    %v2313 = vadd.f32 0.0, %v2312
    %v2314 = vpop.f32.mrf.mxu0
    %v2315 = vadd.f32 0.0, %v2314
    %v2316 = vpop.f32.mrf.mxu0
    %v2317 = vadd.f32 0.0, %v2316
    %v2318 = vpop.f32.mrf.mxu0
    %v2319 = vadd.f32 0.0, %v2318
    %2320 = vdwg.mxu0
    %2321 = vmatprep.subr.bf16.mxu0 0
    %2322 = vmatpush1.bf16.msra.mxu0 0
    %2323 = vmatprep.subr.bf16.mxu0 0
    %2324 = vmatpush1.bf16.msra.mxu0 0
    %2325 = vmatprep.subr.bf16.mxu0 0
    %2326 = vmatpush1.bf16.msra.mxu0 0
    %2327 = vmatprep.subr.bf16.mxu0 0
    %2328 = vmatpush1.bf16.msra.mxu0 0
    %2329 = vmatprep.subr.bf16.mxu0 %v2110
    %2330 = vmatpush1.bf16.msra.mxu0 %v2115
    %2331 = vmatprep.subr.bf16.mxu0 %v2106
    %2332 = vmatpush1.bf16.msra.mxu0 %v2114
    %2333 = vmatprep.subr.bf16.mxu0 %v2102
    %2334 = vmatpush1.bf16.msra.mxu0 %v2113
    %2335 = vmatprep.subr.bf16.mxu0 %v2098
    %2336 = vmatpush1.bf16.msra.mxu0 %v2112
    %2337 = vmatprep.subr.bf16.mxu0 0
    %2338 = vmatpush2.bf16.msra.mxu0 0
    %2339 = vmatprep.subr.bf16.mxu0 0
    %2340 = vmatpush2.bf16.msra.mxu0 0
    %2341 = vmatprep.subr.bf16.mxu0 0
    %2342 = vmatpush2.bf16.msra.mxu0 0
    %2343 = vmatprep.subr.bf16.mxu0 0
    %2344 = vmatpush2.bf16.msra.mxu0 0
    %2345 = vmatprep.subr.bf16.mxu0 0
    %2346 = vmatpush2.bf16.msra.mxu0 0
    %2347 = vmatprep.subr.bf16.mxu0 0
    %2348 = vmatpush2.bf16.msra.mxu0 0
    %2349 = vmatprep.subr.bf16.mxu0 0
    %2350 = vmatpush2.bf16.msra.mxu0 0
    %2351 = vmatprep.subr.bf16.mxu0 0
    %2352 = vmatpush2.bf16.msra.mxu0 0
    %2353 = vmatprep.mubr.bf16.mxu0 0
    %2354 = vmatmul.mubr.bf16.gmra.mxu0 %v2237
    %v2355 = vpop.f32.mrf.mxu0
    %v2356 = vadd.f32 %v2283, %v2355
    %v2357 = vpop.f32.mrf.mxu0
    %v2358 = vadd.f32 %v2285, %v2357
    %v2359 = vpop.f32.mrf.mxu0
    %v2360 = vadd.f32 %v2287, %v2359
    %v2361 = vpop.f32.mrf.mxu0
    %v2362 = vadd.f32 %v2289, %v2361
    %2363 = vmatprep.mubr.bf16.mxu0 0
    %2364 = vmatmul.mubr.bf16.gmra.mxu0 %v2240
    %v2365 = vpop.f32.mrf.mxu0
    %v2366 = vadd.f32 %v2293, %v2365
    %v2367 = vpop.f32.mrf.mxu0
    %v2368 = vadd.f32 %v2295, %v2367
    %v2369 = vpop.f32.mrf.mxu0
    %v2370 = vadd.f32 %v2297, %v2369
    %v2371 = vpop.f32.mrf.mxu0
    %v2372 = vadd.f32 %v2299, %v2371
    %2373 = vmatprep.mubr.bf16.mxu0 0
    %2374 = vmatmul.mubr.bf16.gmra.mxu0 %v2243
    %v2375 = vpop.f32.mrf.mxu0
    %v2376 = vadd.f32 %v2303, %v2375
    %v2377 = vpop.f32.mrf.mxu0
    %v2378 = vadd.f32 %v2305, %v2377
    %v2379 = vpop.f32.mrf.mxu0
    %v2380 = vadd.f32 %v2307, %v2379
    %v2381 = vpop.f32.mrf.mxu0
    %v2382 = vadd.f32 %v2309, %v2381
    %2383 = vmatprep.mubr.bf16.mxu0 0
    %2384 = vmatmul.mubr.bf16.gmra.mxu0 %v2246
    %v2385 = vpop.f32.mrf.mxu0
    %v2386 = vadd.f32 %v2313, %v2385
    %v2387 = vpop.f32.mrf.mxu0
    %v2388 = vadd.f32 %v2315, %v2387
    %v2389 = vpop.f32.mrf.mxu0
    %v2390 = vadd.f32 %v2317, %v2389
    %v2391 = vpop.f32.mrf.mxu0
    %v2392 = vadd.f32 %v2319, %v2391
    %2393 = vdwg.mxu0
    %2394 = vmatprep.subr.bf16.mxu0 %v1902
    %2395 = vmatpush1.bf16.msra.mxu0 %v1901
    %2396 = vmatprep.subr.bf16.mxu0 %v1900
    %2397 = vmatpush1.bf16.msra.mxu0 %v1899
    %2398 = vmatprep.subr.bf16.mxu0 %v1898
    %2399 = vmatpush1.bf16.msra.mxu0 %v1897
    %2400 = vmatprep.subr.bf16.mxu0 %v1896
    %2401 = vmatpush1.bf16.msra.mxu0 %v1895
    %2402 = vmatprep.subr.bf16.mxu0 %v2078
    %2403 = vmatpush1.bf16.msra.mxu0 %v2077
    %2404 = vmatprep.subr.bf16.mxu0 %v2076
    %2405 = vmatpush1.bf16.msra.mxu0 %v2075
    %2406 = vmatprep.subr.bf16.mxu0 %v2074
    %2407 = vmatpush1.bf16.msra.mxu0 %v2073
    %2408 = vmatprep.subr.bf16.mxu0 %v2072
    %2409 = vmatpush1.bf16.msra.mxu0 %v2071
    %2410 = vmatprep.subr.bf16.mxu0 %v2110
    %2411 = vmatpush2.bf16.msra.mxu0 %v2115
    %2412 = vmatprep.subr.bf16.mxu0 %v2106
    %2413 = vmatpush2.bf16.msra.mxu0 %v2114
    %2414 = vmatprep.subr.bf16.mxu0 %v2102
    %2415 = vmatpush2.bf16.msra.mxu0 %v2113
    %2416 = vmatprep.subr.bf16.mxu0 %v2098
    %2417 = vmatpush2.bf16.msra.mxu0 %v2112
    %2418 = vmatprep.subr.bf16.mxu0 %v2086
    %2419 = vmatpush2.bf16.msra.mxu0 %v2085
    %2420 = vmatprep.subr.bf16.mxu0 %v2084
    %2421 = vmatpush2.bf16.msra.mxu0 %v2083
    %2422 = vmatprep.subr.bf16.mxu0 %v2082
    %2423 = vmatpush2.bf16.msra.mxu0 %v2081
    %2424 = vmatprep.subr.bf16.mxu0 %v2080
    %2425 = vmatpush2.bf16.msra.mxu0 %v2079
    %2426 = vmatprep.mubr.bf16.mxu0 %v2217
    %2427 = vmatmul.mubr.bf16.gmra.mxu0 %v2216
    %v2428 = vpop.f32.mrf.mxu0
    %v2429 = vadd.f32 0.0, %v2428
    %v2430 = vpop.f32.mrf.mxu0
    %v2431 = vadd.f32 0.0, %v2430
    %v2432 = vpop.f32.mrf.mxu0
    %v2433 = vadd.f32 0.0, %v2432
    %v2434 = vpop.f32.mrf.mxu0
    %v2435 = vadd.f32 0.0, %v2434
    %2436 = vmatprep.mubr.bf16.mxu0 %v2220
    %2437 = vmatmul.mubr.bf16.gmra.mxu0 %v2219
    %v2438 = vpop.f32.mrf.mxu0
    %v2439 = vadd.f32 0.0, %v2438
    %v2440 = vpop.f32.mrf.mxu0
    %v2441 = vadd.f32 0.0, %v2440
    %v2442 = vpop.f32.mrf.mxu0
    %v2443 = vadd.f32 0.0, %v2442
    %v2444 = vpop.f32.mrf.mxu0
    %v2445 = vadd.f32 0.0, %v2444
    %2446 = vmatprep.mubr.bf16.mxu0 %v2223
    %2447 = vmatmul.mubr.bf16.gmra.mxu0 %v2222
    %v2448 = vpop.f32.mrf.mxu0
    %v2449 = vadd.f32 0.0, %v2448
    %v2450 = vpop.f32.mrf.mxu0
    %v2451 = vadd.f32 0.0, %v2450
    %v2452 = vpop.f32.mrf.mxu0
    %v2453 = vadd.f32 0.0, %v2452
    %v2454 = vpop.f32.mrf.mxu0
    %v2455 = vadd.f32 0.0, %v2454
    %2456 = vmatprep.mubr.bf16.mxu0 %v2226
    %2457 = vmatmul.mubr.bf16.gmra.mxu0 %v2225
    %v2458 = vpop.f32.mrf.mxu0
    %v2459 = vadd.f32 0.0, %v2458
    %v2460 = vpop.f32.mrf.mxu0
    %v2461 = vadd.f32 0.0, %v2460
    %v2462 = vpop.f32.mrf.mxu0
    %v2463 = vadd.f32 0.0, %v2462
    %v2464 = vpop.f32.mrf.mxu0
    %v2465 = vadd.f32 0.0, %v2464
    %2466 = vdwg.mxu0
    %2467 = vmatprep.subr.bf16.mxu0 0
    %2468 = vmatpush1.bf16.msra.mxu0 0
    %2469 = vmatprep.subr.bf16.mxu0 0
    %2470 = vmatpush1.bf16.msra.mxu0 0
    %2471 = vmatprep.subr.bf16.mxu0 0
    %2472 = vmatpush1.bf16.msra.mxu0 0
    %2473 = vmatprep.subr.bf16.mxu0 0
    %2474 = vmatpush1.bf16.msra.mxu0 0
    %2475 = vmatprep.subr.bf16.mxu0 %v2147
    %2476 = vmatpush1.bf16.msra.mxu0 %v2151
    %2477 = vmatprep.subr.bf16.mxu0 %v2143
    %2478 = vmatpush1.bf16.msra.mxu0 %v2150
    %2479 = vmatprep.subr.bf16.mxu0 %v2139
    %2480 = vmatpush1.bf16.msra.mxu0 %v2149
    %2481 = vmatprep.subr.bf16.mxu0 %v2135
    %2482 = vmatpush1.bf16.msra.mxu0 %v2148
    %2483 = vmatprep.subr.bf16.mxu0 0
    %2484 = vmatpush2.bf16.msra.mxu0 0
    %2485 = vmatprep.subr.bf16.mxu0 0
    %2486 = vmatpush2.bf16.msra.mxu0 0
    %2487 = vmatprep.subr.bf16.mxu0 0
    %2488 = vmatpush2.bf16.msra.mxu0 0
    %2489 = vmatprep.subr.bf16.mxu0 0
    %2490 = vmatpush2.bf16.msra.mxu0 0
    %2491 = vmatprep.subr.bf16.mxu0 0
    %2492 = vmatpush2.bf16.msra.mxu0 0
    %2493 = vmatprep.subr.bf16.mxu0 0
    %2494 = vmatpush2.bf16.msra.mxu0 0
    %2495 = vmatprep.subr.bf16.mxu0 0
    %2496 = vmatpush2.bf16.msra.mxu0 0
    %2497 = vmatprep.subr.bf16.mxu0 0
    %2498 = vmatpush2.bf16.msra.mxu0 0
    %2499 = vmatprep.mubr.bf16.mxu0 0
    %2500 = vmatmul.mubr.bf16.gmra.mxu0 %v2237
    %v2501 = vpop.f32.mrf.mxu0
    %v2502 = vadd.f32 %v2429, %v2501
    %v2503 = vpop.f32.mrf.mxu0
    %v2504 = vadd.f32 %v2431, %v2503
    %v2505 = vpop.f32.mrf.mxu0
    %v2506 = vadd.f32 %v2433, %v2505
    %v2507 = vpop.f32.mrf.mxu0
    %v2508 = vadd.f32 %v2435, %v2507
    %2509 = vmatprep.mubr.bf16.mxu0 0
    %2510 = vmatmul.mubr.bf16.gmra.mxu0 %v2240
    %v2511 = vpop.f32.mrf.mxu0
    %v2512 = vadd.f32 %v2439, %v2511
    %v2513 = vpop.f32.mrf.mxu0
    %v2514 = vadd.f32 %v2441, %v2513
    %v2515 = vpop.f32.mrf.mxu0
    %v2516 = vadd.f32 %v2443, %v2515
    %v2517 = vpop.f32.mrf.mxu0
    %v2518 = vadd.f32 %v2445, %v2517
    %2519 = vmatprep.mubr.bf16.mxu0 0
    %2520 = vmatmul.mubr.bf16.gmra.mxu0 %v2243
    %v2521 = vpop.f32.mrf.mxu0
    %v2522 = vadd.f32 %v2449, %v2521
    %v2523 = vpop.f32.mrf.mxu0
    %v2524 = vadd.f32 %v2451, %v2523
    %v2525 = vpop.f32.mrf.mxu0
    %v2526 = vadd.f32 %v2453, %v2525
    %v2527 = vpop.f32.mrf.mxu0
    %v2528 = vadd.f32 %v2455, %v2527
    %2529 = vmatprep.mubr.bf16.mxu0 0
    %2530 = vmatmul.mubr.bf16.gmra.mxu0 %v2246
    %v2531 = vpop.f32.mrf.mxu0
    %v2532 = vadd.f32 %v2459, %v2531
    %v2533 = vpop.f32.mrf.mxu0
    %v2534 = vadd.f32 %v2461, %v2533
    %v2535 = vpop.f32.mrf.mxu0
    %v2536 = vadd.f32 %v2463, %v2535
    %v2537 = vpop.f32.mrf.mxu0
    %v2538 = vadd.f32 %v2465, %v2537
    %2539 = vdwg.mxu0
    %vm2540 = vcmask 982016
    %v2541 = vsel %vm2540, %v2358, 0.0
    %v2542 = vadd.f32 %v2356, %v2541
    %2543 = vadd.xlane.f32.xlu0 %v2542
    %v2544 = vpop.xlane.xlu0 %2543
    %v2545 = vsel %vm2540, %v2362, 0.0
    %v2546 = vadd.f32 %v2360, %v2545
    %2547 = vadd.xlane.f32.xlu0 %v2546
    %v2548 = vpop.xlane.xlu0 %2547
    %v2549 = vsel %vm2540, %v2368, 0.0
    %v2550 = vadd.f32 %v2366, %v2549
    %2551 = vadd.xlane.f32.xlu0 %v2550
    %v2552 = vpop.xlane.xlu0 %2551
    %v2553 = vsel %vm2540, %v2372, 0.0
    %v2554 = vadd.f32 %v2370, %v2553
    %2555 = vadd.xlane.f32.xlu0 %v2554
    %v2556 = vpop.xlane.xlu0 %2555
    %v2557 = vsel %vm2540, %v2378, 0.0
    %v2558 = vadd.f32 %v2376, %v2557
    %2559 = vadd.xlane.f32.xlu0 %v2558
    %v2560 = vpop.xlane.xlu0 %2559
    %v2561 = vsel %vm2540, %v2382, 0.0
    %v2562 = vadd.f32 %v2380, %v2561
    %2563 = vadd.xlane.f32.xlu0 %v2562
    %v2564 = vpop.xlane.xlu0 %2563
    %v2565 = vsel %vm2540, %v2388, 0.0
    %v2566 = vadd.f32 %v2386, %v2565
    %2567 = vadd.xlane.f32.xlu0 %v2566
    %v2568 = vpop.xlane.xlu0 %2567
    %v2569 = vsel %vm2540, %v2392, 0.0
    %v2570 = vadd.f32 %v2390, %v2569
    %2571 = vadd.xlane.f32.xlu0 %v2570
    %v2572 = vpop.xlane.xlu0 %2571
    %v2573 = vsel %vm2540, %v2504, 0.0
    %v2574 = vadd.f32 %v2502, %v2573
    %2575 = vadd.xlane.f32.xlu0 %v2574
    %v2576 = vpop.xlane.xlu0 %2575
    %v2577 = vsel %vm2540, %v2508, 0.0
    %v2578 = vadd.f32 %v2506, %v2577
    %2579 = vadd.xlane.f32.xlu0 %v2578
    %v2580 = vpop.xlane.xlu0 %2579
    %v2581 = vsel %vm2540, %v2514, 0.0
    %v2582 = vadd.f32 %v2512, %v2581
    %2583 = vadd.xlane.f32.xlu0 %v2582
    %v2584 = vpop.xlane.xlu0 %2583
    %v2585 = vsel %vm2540, %v2518, 0.0
    %v2586 = vadd.f32 %v2516, %v2585
    %2587 = vadd.xlane.f32.xlu0 %v2586
    %v2588 = vpop.xlane.xlu0 %2587
    %v2589 = vsel %vm2540, %v2524, 0.0
    %v2590 = vadd.f32 %v2522, %v2589
    %2591 = vadd.xlane.f32.xlu0 %v2590
    %v2592 = vpop.xlane.xlu0 %2591
    %v2593 = vsel %vm2540, %v2528, 0.0
    %v2594 = vadd.f32 %v2526, %v2593
    %2595 = vadd.xlane.f32.xlu0 %v2594
    %v2596 = vpop.xlane.xlu0 %2595
    %v2597 = vsel %vm2540, %v2534, 0.0
    %v2598 = vadd.f32 %v2532, %v2597
    %2599 = vadd.xlane.f32.xlu0 %v2598
    %v2600 = vpop.xlane.xlu0 %2599
    %v2601 = vsel %vm2540, %v2538, 0.0
    %v2602 = vadd.f32 %v2536, %v2601
    %2603 = vadd.xlane.f32.xlu0 %v2602
    %v2604 = vpop.xlane.xlu0 %2603
    %v2605 = vadd.f32 %v2544, %v2576
    %v2606 = vadd.f32 %v2548, %v2580
    %v2607 = vadd.f32 %v2552, %v2584
    %v2608 = vadd.f32 %v2556, %v2588
    %v2609 = vadd.f32 %v2560, %v2592
    %v2610 = vadd.f32 %v2564, %v2596
    %v2611 = vadd.f32 %v2568, %v2600
    %v2612 = vadd.f32 %v2572, %v2604
    %v2613 = vmul.f32 %v2356, %v2356
    %v2614 = vmul.f32 %v2358, %v2358
    %v2615 = vmul.f32 %v2360, %v2360
    %v2616 = vmul.f32 %v2362, %v2362
    %v2617 = vmul.f32 %v2366, %v2366
    %v2618 = vmul.f32 %v2368, %v2368
    %v2619 = vmul.f32 %v2370, %v2370
    %v2620 = vmul.f32 %v2372, %v2372
    %v2621 = vmul.f32 %v2376, %v2376
    %v2622 = vmul.f32 %v2378, %v2378
    %v2623 = vmul.f32 %v2380, %v2380
    %v2624 = vmul.f32 %v2382, %v2382
    %v2625 = vmul.f32 %v2386, %v2386
    %v2626 = vmul.f32 %v2388, %v2388
    %v2627 = vmul.f32 %v2390, %v2390
    %v2628 = vmul.f32 %v2392, %v2392
    %v2629 = vsel %vm2540, %v2614, 0.0
    %v2630 = vadd.f32 %v2613, %v2629
    %2631 = vadd.xlane.f32.xlu0 %v2630
    %v2632 = vpop.xlane.xlu0 %2631
    %v2633 = vsel %vm2540, %v2616, 0.0
    %v2634 = vadd.f32 %v2615, %v2633
    %2635 = vadd.xlane.f32.xlu0 %v2634
    %v2636 = vpop.xlane.xlu0 %2635
    %v2637 = vsel %vm2540, %v2618, 0.0
    %v2638 = vadd.f32 %v2617, %v2637
    %2639 = vadd.xlane.f32.xlu0 %v2638
    %v2640 = vpop.xlane.xlu0 %2639
    %v2641 = vsel %vm2540, %v2620, 0.0
    %v2642 = vadd.f32 %v2619, %v2641
    %2643 = vadd.xlane.f32.xlu0 %v2642
    %v2644 = vpop.xlane.xlu0 %2643
    %v2645 = vsel %vm2540, %v2622, 0.0
    %v2646 = vadd.f32 %v2621, %v2645
    %2647 = vadd.xlane.f32.xlu0 %v2646
    %v2648 = vpop.xlane.xlu0 %2647
    %v2649 = vsel %vm2540, %v2624, 0.0
    %v2650 = vadd.f32 %v2623, %v2649
    %2651 = vadd.xlane.f32.xlu0 %v2650
    %v2652 = vpop.xlane.xlu0 %2651
    %v2653 = vsel %vm2540, %v2626, 0.0
    %v2654 = vadd.f32 %v2625, %v2653
    %2655 = vadd.xlane.f32.xlu0 %v2654
    %v2656 = vpop.xlane.xlu0 %2655
    %v2657 = vsel %vm2540, %v2628, 0.0
    %v2658 = vadd.f32 %v2627, %v2657
    %2659 = vadd.xlane.f32.xlu0 %v2658
    %v2660 = vpop.xlane.xlu0 %2659
    %v2661 = vmul.f32 %v2502, %v2502
    %v2662 = vmul.f32 %v2504, %v2504
    %v2663 = vmul.f32 %v2506, %v2506
    %v2664 = vmul.f32 %v2508, %v2508
    %v2665 = vmul.f32 %v2512, %v2512
    %v2666 = vmul.f32 %v2514, %v2514
    %v2667 = vmul.f32 %v2516, %v2516
    %v2668 = vmul.f32 %v2518, %v2518
    %v2669 = vmul.f32 %v2522, %v2522
    %v2670 = vmul.f32 %v2524, %v2524
    %v2671 = vmul.f32 %v2526, %v2526
    %v2672 = vmul.f32 %v2528, %v2528
    %v2673 = vmul.f32 %v2532, %v2532
    %v2674 = vmul.f32 %v2534, %v2534
    %v2675 = vmul.f32 %v2536, %v2536
    %v2676 = vmul.f32 %v2538, %v2538
    %v2677 = vsel %vm2540, %v2662, 0.0
    %v2678 = vadd.f32 %v2661, %v2677
    %2679 = vadd.xlane.f32.xlu0 %v2678
    %v2680 = vpop.xlane.xlu0 %2679
    %v2681 = vsel %vm2540, %v2664, 0.0
    %v2682 = vadd.f32 %v2663, %v2681
    %2683 = vadd.xlane.f32.xlu0 %v2682
    %v2684 = vpop.xlane.xlu0 %2683
    %v2685 = vsel %vm2540, %v2666, 0.0
    %v2686 = vadd.f32 %v2665, %v2685
    %2687 = vadd.xlane.f32.xlu0 %v2686
    %v2688 = vpop.xlane.xlu0 %2687
    %v2689 = vsel %vm2540, %v2668, 0.0
    %v2690 = vadd.f32 %v2667, %v2689
    %2691 = vadd.xlane.f32.xlu0 %v2690
    %v2692 = vpop.xlane.xlu0 %2691
    %v2693 = vsel %vm2540, %v2670, 0.0
    %v2694 = vadd.f32 %v2669, %v2693
    %2695 = vadd.xlane.f32.xlu0 %v2694
    %v2696 = vpop.xlane.xlu0 %2695
    %v2697 = vsel %vm2540, %v2672, 0.0
    %v2698 = vadd.f32 %v2671, %v2697
    %2699 = vadd.xlane.f32.xlu0 %v2698
    %v2700 = vpop.xlane.xlu0 %2699
    %v2701 = vsel %vm2540, %v2674, 0.0
    %v2702 = vadd.f32 %v2673, %v2701
    %2703 = vadd.xlane.f32.xlu0 %v2702
    %v2704 = vpop.xlane.xlu0 %2703
    %v2705 = vsel %vm2540, %v2676, 0.0
    %v2706 = vadd.f32 %v2675, %v2705
    %2707 = vadd.xlane.f32.xlu0 %v2706
    %v2708 = vpop.xlane.xlu0 %2707
    %v2709 = vadd.f32 %v2632, %v2680
    %v2710 = vadd.f32 %v2636, %v2684
    %v2711 = vadd.f32 %v2640, %v2688
    %v2712 = vadd.f32 %v2644, %v2692
    %v2713 = vadd.f32 %v2648, %v2696
    %v2714 = vadd.f32 %v2652, %v2700
    %v2715 = vadd.f32 %v2656, %v2704
    %v2716 = vadd.f32 %v2660, %v2708
    %v2717 = vsel %vm740, %v2605, %v2709
    %v2718 = vsel %vm740, %v2606, %v2710
    %v2719 = vsel %vm740, %v2607, %v2711
    %v2720 = vsel %vm740, %v2608, %v2712
    %v2721 = vsel %vm740, %v2609, %v2713
    %v2722 = vsel %vm740, %v2610, %v2714
    %v2723 = vsel %vm740, %v2611, %v2715
    %v2724 = vsel %vm740, %v2612, %v2716
    %2725 = vmatprep.subr.mxu0 0.0
    %2726 = vmatpush1.msra.mxu0 0.0
    %2727 = vmatprep.subr.mxu0 0.0
    %2728 = vmatpush1.msra.mxu0 0.0
    %2729 = vmatprep.subr.mxu0 0.0
    %2730 = vmatpush1.msra.mxu0 0.0
    %2731 = vmatprep.subr.mxu0 0.0
    %2732 = vmatpush1.msra.mxu0 0.0
    %2733 = vmatprep.subr.mxu0 0.0
    %2734 = vmatpush1.msra.mxu0 0.0
    %2735 = vmatprep.subr.mxu0 0.0
    %2736 = vmatpush1.msra.mxu0 0.0
    %2737 = vmatprep.subr.mxu0 0.0
    %2738 = vmatpush1.msra.mxu0 0.0
    %2739 = vmatprep.subr.mxu0 0.0
    %2740 = vmatpush1.msra.mxu0 0.0
    %2741 = vmatprep.subr.mxu0 0.0
    %2742 = vmatpush1.msra.mxu0 %v2724
    %2743 = vmatprep.subr.mxu0 0.0
    %2744 = vmatpush1.msra.mxu0 %v2723
    %2745 = vmatprep.subr.mxu0 0.0
    %2746 = vmatpush1.msra.mxu0 %v2722
    %2747 = vmatprep.subr.mxu0 0.0
    %2748 = vmatpush1.msra.mxu0 %v2721
    %2749 = vmatprep.subr.mxu0 0.0
    %2750 = vmatpush1.msra.mxu0 %v2720
    %2751 = vmatprep.subr.mxu0 0.0
    %2752 = vmatpush1.msra.mxu0 %v2719
    %2753 = vmatprep.subr.mxu0 0.0
    %2754 = vmatpush1.msra.mxu0 %v2718
    %2755 = vmatprep.subr.mxu0 0.0
    %2756 = vmatpush1.msra.mxu0 %v2717
    %2757 = vmatprep.subr.mxu0 0.0
    %2758 = vmatpush2.msra.mxu0 0.0
    %2759 = vmatprep.subr.mxu0 0.0
    %2760 = vmatpush2.msra.mxu0 0.0
    %2761 = vmatprep.subr.mxu0 0.0
    %2762 = vmatpush2.msra.mxu0 0.0
    %2763 = vmatprep.subr.mxu0 0.0
    %2764 = vmatpush2.msra.mxu0 0.0
    %2765 = vmatprep.subr.mxu0 0.0
    %2766 = vmatpush2.msra.mxu0 0.0
    %2767 = vmatprep.subr.mxu0 0.0
    %2768 = vmatpush2.msra.mxu0 0.0
    %2769 = vmatprep.subr.mxu0 0.0
    %2770 = vmatpush2.msra.mxu0 0.0
    %2771 = vmatprep.subr.mxu0 0.0
    %2772 = vmatpush2.msra.mxu0 0.0
    %2773 = vmatprep.subr.mxu0 0.0
    %2774 = vmatpush2.msra.mxu0 0.0
    %2775 = vmatprep.subr.mxu0 0.0
    %2776 = vmatpush2.msra.mxu0 0.0
    %2777 = vmatprep.subr.mxu0 0.0
    %2778 = vmatpush2.msra.mxu0 0.0
    %2779 = vmatprep.subr.mxu0 0.0
    %2780 = vmatpush2.msra.mxu0 0.0
    %2781 = vmatprep.subr.mxu0 0.0
    %2782 = vmatpush2.msra.mxu0 0.0
    %2783 = vmatprep.subr.mxu0 0.0
    %2784 = vmatpush2.msra.mxu0 0.0
    %2785 = vmatprep.subr.mxu0 0.0
    %2786 = vmatpush2.msra.mxu0 0.0
    %2787 = vmatprep.subr.mxu0 0.0
    %2788 = vmatpush2.msra.mxu0 0.0
    %2789 = vmatprep.mubr.f32.mxu0 0.0
    %2790 = vmatmul.mubr.f32.gmra.mxu0 %v751
    %v2791 = vpop.f32.mrf.mxu0
    %v2792 = vadd.f32 0.0, %v2791
    %v2793 = vpop.f32.mrf.mxu0
    %2794 = vmatprep.mubr.f32.mxu0 0.0
    %2795 = vmatmul.mubr.f32.gmra.mxu0 %v754
    %v2796 = vpop.f32.mrf.mxu0
    %v2797 = vadd.f32 0.0, %v2796
    %v2798 = vpop.f32.mrf.mxu0
    %2799 = vmatprep.mubr.f32.mxu0 0.0
    %2800 = vmatmul.mubr.f32.gmra.mxu0 %v757
    %v2801 = vpop.f32.mrf.mxu0
    %v2802 = vadd.f32 0.0, %v2801
    %v2803 = vpop.f32.mrf.mxu0
    %2804 = vmatprep.mubr.f32.mxu0 0.0
    %2805 = vmatmul.mubr.f32.gmra.mxu0 %v760
    %v2806 = vpop.f32.mrf.mxu0
    %v2807 = vadd.f32 0.0, %v2806
    %v2808 = vpop.f32.mrf.mxu0
    %2809 = vmatprep.mubr.f32.mxu0 0.0
    %2810 = vmatmul.mubr.f32.gmra.mxu0 %v763
    %v2811 = vpop.f32.mrf.mxu0
    %v2812 = vadd.f32 0.0, %v2811
    %v2813 = vpop.f32.mrf.mxu0
    %2814 = vmatprep.mubr.f32.mxu0 0.0
    %2815 = vmatmul.mubr.f32.gmra.mxu0 %v766
    %v2816 = vpop.f32.mrf.mxu0
    %v2817 = vadd.f32 0.0, %v2816
    %v2818 = vpop.f32.mrf.mxu0
    %2819 = vmatprep.mubr.f32.mxu0 0.0
    %2820 = vmatmul.mubr.f32.gmra.mxu0 %v769
    %v2821 = vpop.f32.mrf.mxu0
    %v2822 = vadd.f32 0.0, %v2821
    %v2823 = vpop.f32.mrf.mxu0
    %2824 = vmatprep.mubr.f32.mxu0 0.0
    %2825 = vmatmul.mubr.f32.gmra.mxu0 %v772
    %v2826 = vpop.f32.mrf.mxu0
    %v2827 = vadd.f32 0.0, %v2826
    %v2828 = vpop.f32.mrf.mxu0
    %2829 = vdwg.mxu0
    %v2830 = vrcp.pop 992.0
    %v2831 = vmul.f32 %v2792, %v2830
    %v2832 = vmul.f32 %v2797, %v2830
    %v2833 = vmul.f32 %v2802, %v2830
    %v2834 = vmul.f32 %v2807, %v2830
    %v2835 = vmul.f32 %v2812, %v2830
    %v2836 = vmul.f32 %v2817, %v2830
    %v2837 = vmul.f32 %v2822, %v2830
    %v2838 = vmul.f32 %v2827, %v2830
    %v2839 = vmul.f32 %v2831, %v2831
    %v2840 = vmul.f32 %v2832, %v2832
    %v2841 = vmul.f32 %v2833, %v2833
    %v2842 = vmul.f32 %v2834, %v2834
    %v2843 = vmul.f32 %v2835, %v2835
    %v2844 = vmul.f32 %v2836, %v2836
    %v2845 = vmul.f32 %v2837, %v2837
    %v2846 = vmul.f32 %v2838, %v2838
    %2855 = vrot.lane.b32.xlu0 %v2839, 1
    %v2856 = vpop.permute.xlu0 %2855
    %2857 = vrot.lane.b32.xlu0 %v2840, 1
    %v2858 = vpop.permute.xlu0 %2857
    %2859 = vrot.lane.b32.xlu0 %v2841, 1
    %v2860 = vpop.permute.xlu0 %2859
    %2861 = vrot.lane.b32.xlu0 %v2842, 1
    %v2862 = vpop.permute.xlu0 %2861
    %2863 = vrot.lane.b32.xlu0 %v2843, 1
    %v2864 = vpop.permute.xlu0 %2863
    %2865 = vrot.lane.b32.xlu0 %v2844, 1
    %v2866 = vpop.permute.xlu0 %2865
    %2867 = vrot.lane.b32.xlu0 %v2845, 1
    %v2868 = vpop.permute.xlu0 %2867
    %2869 = vrot.lane.b32.xlu0 %v2846, 1
    %v2870 = vpop.permute.xlu0 %2869
    %v2879 = vsub.f32 %v2831, %v2856
    %v2880 = vsub.f32 %v2832, %v2858
    %v2881 = vsub.f32 %v2833, %v2860
    %v2882 = vsub.f32 %v2834, %v2862
    %v2883 = vsub.f32 %v2835, %v2864
    %v2884 = vsub.f32 %v2836, %v2866
    %v2885 = vsub.f32 %v2837, %v2868
    %v2886 = vsub.f32 %v2838, %v2870
    %v2887 = vadd.f32 %v2879, 1e-05
    %v2888 = vadd.f32 %v2880, 1e-05
    %v2889 = vadd.f32 %v2881, 1e-05
    %v2890 = vadd.f32 %v2882, 1e-05
    %v2891 = vadd.f32 %v2883, 1e-05
    %v2892 = vadd.f32 %v2884, 1e-05
    %v2893 = vadd.f32 %v2885, 1e-05
    %v2894 = vadd.f32 %v2886, 1e-05
    %v2895 = vrsqrt.pop %v2887
    %v2896 = vrsqrt.pop %v2888
    %v2897 = vrsqrt.pop %v2889
    %v2898 = vrsqrt.pop %v2890
    %v2899 = vrsqrt.pop %v2891
    %v2900 = vrsqrt.pop %v2892
    %v2901 = vrsqrt.pop %v2893
    %v2902 = vrsqrt.pop %v2894
    %v2903 = vld [vmem:[%s5] sm:$0xff]
    %v2904 = vld [vmem:[%s5 + $0x8] sm:$0xff]
    %v2905 = vld [vmem:[%s5 + $0x10] sm:$0xff]
    %v2906 = vld [vmem:[%s5 + $0x18] sm:$0xff]
    %v2907 = vld [vmem:[%s5 + $0x20] sm:$0xff]
    %v2908 = vld [vmem:[%s5 + $0x28] sm:$0xff]
    %v2909 = vld [vmem:[%s5 + $0x30] sm:$0xff]
    %v2910 = vld [vmem:[%s5 + $0x38] sm:$0xff]
    %2919 = vrot.lane.b32.xlu0 %v2895, 127
    %v2920 = vpop.permute.xlu0 %2919
    %2921 = vrot.lane.b32.xlu0 %v2896, 127
    %v2922 = vpop.permute.xlu0 %2921
    %2923 = vrot.lane.b32.xlu0 %v2897, 127
    %v2924 = vpop.permute.xlu0 %2923
    %2925 = vrot.lane.b32.xlu0 %v2898, 127
    %v2926 = vpop.permute.xlu0 %2925
    %2927 = vrot.lane.b32.xlu0 %v2899, 127
    %v2928 = vpop.permute.xlu0 %2927
    %2929 = vrot.lane.b32.xlu0 %v2900, 127
    %v2930 = vpop.permute.xlu0 %2929
    %2931 = vrot.lane.b32.xlu0 %v2901, 127
    %v2932 = vpop.permute.xlu0 %2931
    %2933 = vrot.lane.b32.xlu0 %v2902, 127
    %v2934 = vpop.permute.xlu0 %2933
    %v2943 = vmul.f32 %v2903, %v2920
    %v2944 = vmul.f32 %v2904, %v2922
    %v2945 = vmul.f32 %v2905, %v2924
    %v2946 = vmul.f32 %v2906, %v2926
    %v2947 = vmul.f32 %v2907, %v2928
    %v2948 = vmul.f32 %v2908, %v2930
    %v2949 = vmul.f32 %v2909, %v2932
    %v2950 = vmul.f32 %v2910, %v2934
    %v2951 = vld [vmem:[%s6] sm:$0xff]
    %v2952 = vld [vmem:[%s6 + $0x8] sm:$0xff]
    %v2953 = vld [vmem:[%s6 + $0x10] sm:$0xff]
    %v2954 = vld [vmem:[%s6 + $0x18] sm:$0xff]
    %v2955 = vld [vmem:[%s6 + $0x20] sm:$0xff]
    %v2956 = vld [vmem:[%s6 + $0x28] sm:$0xff]
    %v2957 = vld [vmem:[%s6 + $0x30] sm:$0xff]
    %v2958 = vld [vmem:[%s6 + $0x38] sm:$0xff]
    %v2959 = vmul.f32 %v2831, %v2943
    %v2960 = vmul.f32 %v2832, %v2944
    %v2961 = vmul.f32 %v2833, %v2945
    %v2962 = vmul.f32 %v2834, %v2946
    %v2963 = vmul.f32 %v2835, %v2947
    %v2964 = vmul.f32 %v2836, %v2948
    %v2965 = vmul.f32 %v2837, %v2949
    %v2966 = vmul.f32 %v2838, %v2950
    %v2967 = vsub.f32 %v2951, %v2959
    %v2968 = vsub.f32 %v2952, %v2960
    %v2969 = vsub.f32 %v2953, %v2961
    %v2970 = vsub.f32 %v2954, %v2962
    %v2971 = vsub.f32 %v2955, %v2963
    %v2972 = vsub.f32 %v2956, %v2964
    %v2973 = vsub.f32 %v2957, %v2965
    %v2974 = vsub.f32 %v2958, %v2966
    %2976 = vset.pattern.permute.xlu0 0
    %2977 = vperm.xlu0 %2976, %v2943
    %v2978 = vpop.permute.xlu0 %2977
    %2981 = vset.pattern.permute.xlu0 0
    %2982 = vperm.xlu0 %2981, %v2944
    %v2983 = vpop.permute.xlu0 %2982
    %2986 = vset.pattern.permute.xlu0 0
    %2987 = vperm.xlu0 %2986, %v2945
    %v2988 = vpop.permute.xlu0 %2987
    %2991 = vset.pattern.permute.xlu0 0
    %2992 = vperm.xlu0 %2991, %v2946
    %v2993 = vpop.permute.xlu0 %2992
    %2996 = vset.pattern.permute.xlu0 0
    %2997 = vperm.xlu0 %2996, %v2947
    %v2998 = vpop.permute.xlu0 %2997
    %3001 = vset.pattern.permute.xlu0 0
    %3002 = vperm.xlu0 %3001, %v2948
    %v3003 = vpop.permute.xlu0 %3002
    %3006 = vset.pattern.permute.xlu0 0
    %3007 = vperm.xlu0 %3006, %v2949
    %v3008 = vpop.permute.xlu0 %3007
    %3011 = vset.pattern.permute.xlu0 0
    %3012 = vperm.xlu0 %3011, %v2950
    %v3013 = vpop.permute.xlu0 %3012
    %v3015 = vmul.f32 %v2356, %v2978
    %v3016 = vmul.f32 %v2358, %v2978
    %v3017 = vmul.f32 %v2360, %v2983
    %v3018 = vmul.f32 %v2362, %v2983
    %v3019 = vmul.f32 %v2366, %v2988
    %v3020 = vmul.f32 %v2368, %v2988
    %v3021 = vmul.f32 %v2370, %v2993
    %v3022 = vmul.f32 %v2372, %v2993
    %v3023 = vmul.f32 %v2376, %v2998
    %v3024 = vmul.f32 %v2378, %v2998
    %v3025 = vmul.f32 %v2380, %v3003
    %v3026 = vmul.f32 %v2382, %v3003
    %v3027 = vmul.f32 %v2386, %v3008
    %v3028 = vmul.f32 %v2388, %v3008
    %v3029 = vmul.f32 %v2390, %v3013
    %v3030 = vmul.f32 %v2392, %v3013
    %3032 = vset.pattern.permute.xlu0 0
    %3033 = vperm.xlu0 %3032, %v2967
    %v3034 = vpop.permute.xlu0 %3033
    %3037 = vset.pattern.permute.xlu0 0
    %3038 = vperm.xlu0 %3037, %v2968
    %v3039 = vpop.permute.xlu0 %3038
    %3042 = vset.pattern.permute.xlu0 0
    %3043 = vperm.xlu0 %3042, %v2969
    %v3044 = vpop.permute.xlu0 %3043
    %3047 = vset.pattern.permute.xlu0 0
    %3048 = vperm.xlu0 %3047, %v2970
    %v3049 = vpop.permute.xlu0 %3048
    %3052 = vset.pattern.permute.xlu0 0
    %3053 = vperm.xlu0 %3052, %v2971
    %v3054 = vpop.permute.xlu0 %3053
    %3057 = vset.pattern.permute.xlu0 0
    %3058 = vperm.xlu0 %3057, %v2972
    %v3059 = vpop.permute.xlu0 %3058
    %3062 = vset.pattern.permute.xlu0 0
    %3063 = vperm.xlu0 %3062, %v2973
    %v3064 = vpop.permute.xlu0 %3063
    %3067 = vset.pattern.permute.xlu0 0
    %3068 = vperm.xlu0 %3067, %v2974
    %v3069 = vpop.permute.xlu0 %3068
    %v3071 = vadd.f32 %v3015, %v3034
    %v3072 = vadd.f32 %v3016, %v3034
    %v3073 = vadd.f32 %v3017, %v3039
    %v3074 = vadd.f32 %v3018, %v3039
    %v3075 = vadd.f32 %v3019, %v3044
    %v3076 = vadd.f32 %v3020, %v3044
    %v3077 = vadd.f32 %v3021, %v3049
    %v3078 = vadd.f32 %v3022, %v3049
    %v3079 = vadd.f32 %v3023, %v3054
    %v3080 = vadd.f32 %v3024, %v3054
    %v3081 = vadd.f32 %v3025, %v3059
    %v3082 = vadd.f32 %v3026, %v3059
    %v3083 = vadd.f32 %v3027, %v3064
    %v3084 = vadd.f32 %v3028, %v3064
    %v3085 = vadd.f32 %v3029, %v3069
    %v3086 = vadd.f32 %v3030, %v3069
    %v3087 = vxor.u32 %v3071, 2147483648
    %v3088 = vxor.u32 %v3072, 2147483648
    %v3089 = vxor.u32 %v3073, 2147483648
    %v3090 = vxor.u32 %v3074, 2147483648
    %v3091 = vxor.u32 %v3075, 2147483648
    %v3092 = vxor.u32 %v3076, 2147483648
    %v3093 = vxor.u32 %v3077, 2147483648
    %v3094 = vxor.u32 %v3078, 2147483648
    %v3095 = vxor.u32 %v3079, 2147483648
    %v3096 = vxor.u32 %v3080, 2147483648
    %v3097 = vxor.u32 %v3081, 2147483648
    %v3098 = vxor.u32 %v3082, 2147483648
    %v3099 = vxor.u32 %v3083, 2147483648
    %v3100 = vxor.u32 %v3084, 2147483648
    %v3101 = vxor.u32 %v3085, 2147483648
    %v3102 = vxor.u32 %v3086, 2147483648
    %v3103 = vmul.f32 %v3087, 1.442695
    %v3104 = vpow.pop %v3103
    %v3105 = vmul.f32 %v3088, 1.442695
    %v3106 = vpow.pop %v3105
    %v3107 = vmul.f32 %v3089, 1.442695
    %v3108 = vpow.pop %v3107
    %v3109 = vmul.f32 %v3090, 1.442695
    %v3110 = vpow.pop %v3109
    %v3111 = vmul.f32 %v3091, 1.442695
    %v3112 = vpow.pop %v3111
    %v3113 = vmul.f32 %v3092, 1.442695
    %v3114 = vpow.pop %v3113
    %v3115 = vmul.f32 %v3093, 1.442695
    %v3116 = vpow.pop %v3115
    %v3117 = vmul.f32 %v3094, 1.442695
    %v3118 = vpow.pop %v3117
    %v3119 = vmul.f32 %v3095, 1.442695
    %v3120 = vpow.pop %v3119
    %v3121 = vmul.f32 %v3096, 1.442695
    %v3122 = vpow.pop %v3121
    %v3123 = vmul.f32 %v3097, 1.442695
    %v3124 = vpow.pop %v3123
    %v3125 = vmul.f32 %v3098, 1.442695
    %v3126 = vpow.pop %v3125
    %v3127 = vmul.f32 %v3099, 1.442695
    %v3128 = vpow.pop %v3127
    %v3129 = vmul.f32 %v3100, 1.442695
    %v3130 = vpow.pop %v3129
    %v3131 = vmul.f32 %v3101, 1.442695
    %v3132 = vpow.pop %v3131
    %v3133 = vmul.f32 %v3102, 1.442695
    %v3134 = vpow.pop %v3133
    %v3135 = vadd.f32 %v3104, 1.0
    %v3136 = vadd.f32 %v3106, 1.0
    %v3137 = vadd.f32 %v3108, 1.0
    %v3138 = vadd.f32 %v3110, 1.0
    %v3139 = vadd.f32 %v3112, 1.0
    %v3140 = vadd.f32 %v3114, 1.0
    %v3141 = vadd.f32 %v3116, 1.0
    %v3142 = vadd.f32 %v3118, 1.0
    %v3143 = vadd.f32 %v3120, 1.0
    %v3144 = vadd.f32 %v3122, 1.0
    %v3145 = vadd.f32 %v3124, 1.0
    %v3146 = vadd.f32 %v3126, 1.0
    %v3147 = vadd.f32 %v3128, 1.0
    %v3148 = vadd.f32 %v3130, 1.0
    %v3149 = vadd.f32 %v3132, 1.0
    %v3150 = vadd.f32 %v3134, 1.0
    %v3151 = vrcp.pop %v3135
    %v3152 = vmul.f32 1.0, %v3151
    %v3153 = vrcp.pop %v3136
    %v3154 = vmul.f32 1.0, %v3153
    %v3155 = vrcp.pop %v3137
    %v3156 = vmul.f32 1.0, %v3155
    %v3157 = vrcp.pop %v3138
    %v3158 = vmul.f32 1.0, %v3157
    %v3159 = vrcp.pop %v3139
    %v3160 = vmul.f32 1.0, %v3159
    %v3161 = vrcp.pop %v3140
    %v3162 = vmul.f32 1.0, %v3161
    %v3163 = vrcp.pop %v3141
    %v3164 = vmul.f32 1.0, %v3163
    %v3165 = vrcp.pop %v3142
    %v3166 = vmul.f32 1.0, %v3165
    %v3167 = vrcp.pop %v3143
    %v3168 = vmul.f32 1.0, %v3167
    %v3169 = vrcp.pop %v3144
    %v3170 = vmul.f32 1.0, %v3169
    %v3171 = vrcp.pop %v3145
    %v3172 = vmul.f32 1.0, %v3171
    %v3173 = vrcp.pop %v3146
    %v3174 = vmul.f32 1.0, %v3173
    %v3175 = vrcp.pop %v3147
    %v3176 = vmul.f32 1.0, %v3175
    %v3177 = vrcp.pop %v3148
    %v3178 = vmul.f32 1.0, %v3177
    %v3179 = vrcp.pop %v3149
    %v3180 = vmul.f32 1.0, %v3179
    %v3181 = vrcp.pop %v3150
    %v3182 = vmul.f32 1.0, %v3181
    %v3183 = vmul.f32 %v3071, %v3152
    %v3184 = vmul.f32 %v3072, %v3154
    %v3185 = vmul.f32 %v3073, %v3156
    %v3186 = vmul.f32 %v3074, %v3158
    %v3187 = vmul.f32 %v3075, %v3160
    %v3188 = vmul.f32 %v3076, %v3162
    %v3189 = vmul.f32 %v3077, %v3164
    %v3190 = vmul.f32 %v3078, %v3166
    %v3191 = vmul.f32 %v3079, %v3168
    %v3192 = vmul.f32 %v3080, %v3170
    %v3193 = vmul.f32 %v3081, %v3172
    %v3194 = vmul.f32 %v3082, %v3174
    %v3195 = vmul.f32 %v3083, %v3176
    %v3196 = vmul.f32 %v3084, %v3178
    %v3197 = vmul.f32 %v3085, %v3180
    %v3198 = vmul.f32 %v3086, %v3182
    %v3199 = vmul.f32 %v2502, %v2978
    %v3200 = vmul.f32 %v2504, %v2978
    %v3201 = vmul.f32 %v2506, %v2983
    %v3202 = vmul.f32 %v2508, %v2983
    %v3203 = vmul.f32 %v2512, %v2988
    %v3204 = vmul.f32 %v2514, %v2988
    %v3205 = vmul.f32 %v2516, %v2993
    %v3206 = vmul.f32 %v2518, %v2993
    %v3207 = vmul.f32 %v2522, %v2998
    %v3208 = vmul.f32 %v2524, %v2998
    %v3209 = vmul.f32 %v2526, %v3003
    %v3210 = vmul.f32 %v2528, %v3003
    %v3211 = vmul.f32 %v2532, %v3008
    %v3212 = vmul.f32 %v2534, %v3008
    %v3213 = vmul.f32 %v2536, %v3013
    %v3214 = vmul.f32 %v2538, %v3013
    %v3215 = vadd.f32 %v3199, %v3034
    %v3216 = vadd.f32 %v3200, %v3034
    %v3217 = vadd.f32 %v3201, %v3039
    %v3218 = vadd.f32 %v3202, %v3039
    %v3219 = vadd.f32 %v3203, %v3044
    %v3220 = vadd.f32 %v3204, %v3044
    %v3221 = vadd.f32 %v3205, %v3049
    %v3222 = vadd.f32 %v3206, %v3049
    %v3223 = vadd.f32 %v3207, %v3054
    %v3224 = vadd.f32 %v3208, %v3054
    %v3225 = vadd.f32 %v3209, %v3059
    %v3226 = vadd.f32 %v3210, %v3059
    %v3227 = vadd.f32 %v3211, %v3064
    %v3228 = vadd.f32 %v3212, %v3064
    %v3229 = vadd.f32 %v3213, %v3069
    %v3230 = vadd.f32 %v3214, %v3069
    %v3231 = vxor.u32 %v3215, 2147483648
    %v3232 = vxor.u32 %v3216, 2147483648
    %v3233 = vxor.u32 %v3217, 2147483648
    %v3234 = vxor.u32 %v3218, 2147483648
    %v3235 = vxor.u32 %v3219, 2147483648
    %v3236 = vxor.u32 %v3220, 2147483648
    %v3237 = vxor.u32 %v3221, 2147483648
    %v3238 = vxor.u32 %v3222, 2147483648
    %v3239 = vxor.u32 %v3223, 2147483648
    %v3240 = vxor.u32 %v3224, 2147483648
    %v3241 = vxor.u32 %v3225, 2147483648
    %v3242 = vxor.u32 %v3226, 2147483648
    %v3243 = vxor.u32 %v3227, 2147483648
    %v3244 = vxor.u32 %v3228, 2147483648
    %v3245 = vxor.u32 %v3229, 2147483648
    %v3246 = vxor.u32 %v3230, 2147483648
    %v3247 = vmul.f32 %v3231, 1.442695
    %v3248 = vpow.pop %v3247
    %v3249 = vmul.f32 %v3232, 1.442695
    %v3250 = vpow.pop %v3249
    %v3251 = vmul.f32 %v3233, 1.442695
    %v3252 = vpow.pop %v3251
    %v3253 = vmul.f32 %v3234, 1.442695
    %v3254 = vpow.pop %v3253
    %v3255 = vmul.f32 %v3235, 1.442695
    %v3256 = vpow.pop %v3255
    %v3257 = vmul.f32 %v3236, 1.442695
    %v3258 = vpow.pop %v3257
    %v3259 = vmul.f32 %v3237, 1.442695
    %v3260 = vpow.pop %v3259
    %v3261 = vmul.f32 %v3238, 1.442695
    %v3262 = vpow.pop %v3261
    %v3263 = vmul.f32 %v3239, 1.442695
    %v3264 = vpow.pop %v3263
    %v3265 = vmul.f32 %v3240, 1.442695
    %v3266 = vpow.pop %v3265
    %v3267 = vmul.f32 %v3241, 1.442695
    %v3268 = vpow.pop %v3267
    %v3269 = vmul.f32 %v3242, 1.442695
    %v3270 = vpow.pop %v3269
    %v3271 = vmul.f32 %v3243, 1.442695
    %v3272 = vpow.pop %v3271
    %v3273 = vmul.f32 %v3244, 1.442695
    %v3274 = vpow.pop %v3273
    %v3275 = vmul.f32 %v3245, 1.442695
    %v3276 = vpow.pop %v3275
    %v3277 = vmul.f32 %v3246, 1.442695
    %v3278 = vpow.pop %v3277
    %v3279 = vadd.f32 %v3248, 1.0
    %v3280 = vadd.f32 %v3250, 1.0
    %v3281 = vadd.f32 %v3252, 1.0
    %v3282 = vadd.f32 %v3254, 1.0
    %v3283 = vadd.f32 %v3256, 1.0
    %v3284 = vadd.f32 %v3258, 1.0
    %v3285 = vadd.f32 %v3260, 1.0
    %v3286 = vadd.f32 %v3262, 1.0
    %v3287 = vadd.f32 %v3264, 1.0
    %v3288 = vadd.f32 %v3266, 1.0
    %v3289 = vadd.f32 %v3268, 1.0
    %v3290 = vadd.f32 %v3270, 1.0
    %v3291 = vadd.f32 %v3272, 1.0
    %v3292 = vadd.f32 %v3274, 1.0
    %v3293 = vadd.f32 %v3276, 1.0
    %v3294 = vadd.f32 %v3278, 1.0
    %v3295 = vrcp.pop %v3279
    %v3296 = vmul.f32 1.0, %v3295
    %v3297 = vrcp.pop %v3280
    %v3298 = vmul.f32 1.0, %v3297
    %v3299 = vrcp.pop %v3281
    %v3300 = vmul.f32 1.0, %v3299
    %v3301 = vrcp.pop %v3282
    %v3302 = vmul.f32 1.0, %v3301
    %v3303 = vrcp.pop %v3283
    %v3304 = vmul.f32 1.0, %v3303
    %v3305 = vrcp.pop %v3284
    %v3306 = vmul.f32 1.0, %v3305
    %v3307 = vrcp.pop %v3285
    %v3308 = vmul.f32 1.0, %v3307
    %v3309 = vrcp.pop %v3286
    %v3310 = vmul.f32 1.0, %v3309
    %v3311 = vrcp.pop %v3287
    %v3312 = vmul.f32 1.0, %v3311
    %v3313 = vrcp.pop %v3288
    %v3314 = vmul.f32 1.0, %v3313
    %v3315 = vrcp.pop %v3289
    %v3316 = vmul.f32 1.0, %v3315
    %v3317 = vrcp.pop %v3290
    %v3318 = vmul.f32 1.0, %v3317
    %v3319 = vrcp.pop %v3291
    %v3320 = vmul.f32 1.0, %v3319
    %v3321 = vrcp.pop %v3292
    %v3322 = vmul.f32 1.0, %v3321
    %v3323 = vrcp.pop %v3293
    %v3324 = vmul.f32 1.0, %v3323
    %v3325 = vrcp.pop %v3294
    %v3326 = vmul.f32 1.0, %v3325
    %v3327 = vmul.f32 %v3215, %v3296
    %v3328 = vmul.f32 %v3216, %v3298
    %v3329 = vmul.f32 %v3217, %v3300
    %v3330 = vmul.f32 %v3218, %v3302
    %v3331 = vmul.f32 %v3219, %v3304
    %v3332 = vmul.f32 %v3220, %v3306
    %v3333 = vmul.f32 %v3221, %v3308
    %v3334 = vmul.f32 %v3222, %v3310
    %v3335 = vmul.f32 %v3223, %v3312
    %v3336 = vmul.f32 %v3224, %v3314
    %v3337 = vmul.f32 %v3225, %v3316
    %v3338 = vmul.f32 %v3226, %v3318
    %v3339 = vmul.f32 %v3227, %v3320
    %v3340 = vmul.f32 %v3228, %v3322
    %v3341 = vmul.f32 %v3229, %v3324
    %v3342 = vmul.f32 %v3230, %v3326
    %v3343 = vmax.f32 %v3183, %v3327
    %v3344 = vmax.f32 %v3184, %v3328
    %v3345 = vmax.f32 %v3185, %v3329
    %v3346 = vmax.f32 %v3186, %v3330
    %v3347 = vmax.f32 %v3187, %v3331
    %v3348 = vmax.f32 %v3188, %v3332
    %v3349 = vmax.f32 %v3189, %v3333
    %v3350 = vmax.f32 %v3190, %v3334
    %v3351 = vmax.f32 %v3191, %v3335
    %v3352 = vmax.f32 %v3192, %v3336
    %v3353 = vmax.f32 %v3193, %v3337
    %v3354 = vmax.f32 %v3194, %v3338
    %v3355 = vmax.f32 %v3195, %v3339
    %v3356 = vmax.f32 %v3196, %v3340
    %v3357 = vmax.f32 %v3197, %v3341
    %v3358 = vmax.f32 %v3198, %v3342
    %v3359 = vpack.c.bf16 %v3345, %v3343
    %v3360 = vpack.c.bf16 %v3346, %v3344
    %v3361 = vpack.c.bf16 %v3349, %v3347
    %v3362 = vpack.c.bf16 %v3350, %v3348
    %v3363 = vpack.c.bf16 %v3353, %v3351
    %v3364 = vpack.c.bf16 %v3354, %v3352
    %v3365 = vpack.c.bf16 %v3357, %v3355
    %v3366 = vpack.c.bf16 %v3358, %v3356
    %v3367 = vld [vmem:[%s8] sm:$0xf]
    %v3368 = vld [vmem:[%s8 + $0x4] sm:$0xf]
    %v3369 = vld [vmem:[%s8 + $0x8] sm:$0xf]
    %v3370 = vld [vmem:[%s8 + $0xc] sm:$0xf]
    %v3371 = vld [vmem:[%s8 + $0x10] sm:$0xf]
    %v3372 = vld [vmem:[%s8 + $0x14] sm:$0xf]
    %v3373 = vld [vmem:[%s8 + $0x18] sm:$0xf]
    %v3374 = vld [vmem:[%s8 + $0x1c] sm:$0xf]
    %v3375 = vld [vmem:[%s8 + $0x20] sm:$0xf]
    %v3376 = vld [vmem:[%s8 + $0x24] sm:$0xf]
    %v3377 = vld [vmem:[%s8 + $0x28] sm:$0xf]
    %v3378 = vld [vmem:[%s8 + $0x2c] sm:$0xf]
    %v3379 = vld [vmem:[%s8 + $0x30] sm:$0xf]
    %v3380 = vld [vmem:[%s8 + $0x34] sm:$0xf]
    %v3381 = vld [vmem:[%s8 + $0x38] sm:$0xf]
    %v3382 = vld [vmem:[%s8 + $0x3c] sm:$0xf]
    %v3383 = vld [vmem:[%s8 + $0x40] sm:$0xf]
    %v3384 = vld [vmem:[%s8 + $0x44] sm:$0xf]
    %v3385 = vld [vmem:[%s8 + $0x48] sm:$0xf]
    %v3386 = vld [vmem:[%s8 + $0x4c] sm:$0xf]
    %v3387 = vld [vmem:[%s8 + $0x50] sm:$0xf]
    %v3388 = vld [vmem:[%s8 + $0x54] sm:$0xf]
    %v3389 = vld [vmem:[%s8 + $0x58] sm:$0xf]
    %v3390 = vld [vmem:[%s8 + $0x5c] sm:$0xf]
    %v3391 = vld [vmem:[%s8 + $0x60] sm:$0xf]
    %v3392 = vld [vmem:[%s8 + $0x64] sm:$0xf]
    %v3393 = vld [vmem:[%s8 + $0x68] sm:$0xf]
    %v3394 = vld [vmem:[%s8 + $0x6c] sm:$0xf]
    %v3395 = vld [vmem:[%s8 + $0x70] sm:$0xf]
    %v3396 = vld [vmem:[%s8 + $0x74] sm:$0xf]
    %v3397 = vld [vmem:[%s8 + $0x78] sm:$0xf]
    %v3398 = vld [vmem:[%s10] sm:$0x1]
    %v3400 = vlaneseq
    %v3401 = vshrl.u32 %v3400, 7
    %v3402 = vsub.s32 0, %v3401
    %v3403 = vrot.slane %v3398, %v3402
    %v3436 = vunpack.c.l.b16 %v3367
    %v3437 = vunpack.c.l.b16 %v3368
    %v3438 = vunpack.c.l.b16 %v3369
    %v3439 = vunpack.c.l.b16 %v3370
    %v3440 = vunpack.c.l.b16 %v3371
    %v3441 = vunpack.c.l.b16 %v3372
    %v3442 = vunpack.c.l.b16 %v3373
    %v3443 = vunpack.c.l.b16 %v3374
    %v3444 = vunpack.c.l.b16 %v3375
    %v3445 = vunpack.c.l.b16 %v3376
    %v3446 = vunpack.c.l.b16 %v3377
    %v3447 = vunpack.c.l.b16 %v3378
    %v3448 = vunpack.c.l.b16 %v3379
    %v3449 = vunpack.c.l.b16 %v3380
    %v3450 = vunpack.c.l.b16 %v3381
    %v3451 = vunpack.c.l.b16 %v3382
    %v3452 = vunpack.c.l.b16 %v3383
    %v3453 = vunpack.c.l.b16 %v3384
    %v3454 = vunpack.c.l.b16 %v3385
    %v3455 = vunpack.c.l.b16 %v3386
    %v3456 = vunpack.c.l.b16 %v3387
    %v3457 = vunpack.c.l.b16 %v3388
    %v3458 = vunpack.c.l.b16 %v3389
    %v3459 = vunpack.c.l.b16 %v3390
    %v3460 = vunpack.c.l.b16 %v3391
    %v3461 = vunpack.c.l.b16 %v3392
    %v3462 = vunpack.c.l.b16 %v3393
    %v3463 = vunpack.c.l.b16 %v3394
    %v3464 = vunpack.c.l.b16 %v3395
    %v3465 = vunpack.c.l.b16 %v3396
    %v3466 = vunpack.c.l.b16 %v3397
    %v3467 = vpack.c.b16 %v3437, %v3436
    %v3468 = vpack.c.b16 %v3439, %v3438
    %v3469 = vpack.c.b16 %v3441, %v3440
    %v3470 = vpack.c.b16 %v3443, %v3442
    %v3471 = vpack.c.b16 %v3445, %v3444
    %v3472 = vpack.c.b16 %v3447, %v3446
    %v3473 = vpack.c.b16 %v3449, %v3448
    %v3474 = vpack.c.b16 %v3451, %v3450
    %v3475 = vpack.c.b16 %v3453, %v3452
    %v3476 = vpack.c.b16 %v3455, %v3454
    %v3477 = vpack.c.b16 %v3457, %v3456
    %v3478 = vpack.c.b16 %v3459, %v3458
    %v3479 = vpack.c.b16 %v3461, %v3460
    %v3480 = vpack.c.b16 %v3463, %v3462
    %v3481 = vpack.c.b16 %v3465, %v3464
    %v3482 = vpack.c.b16 %v3466, %v3466
    %v3499 = vsel %vm2540, %v3360, 0
    %v3502 = vsel %vm2540, %v3362, 0
    %v3505 = vsel %vm2540, %v3364, 0
    %v3508 = vsel %vm2540, %v3366, 0
    %v3511 = vsel %vm207, %v3482, 0
    %3513 = vmatprep.subr.bf16.mxu0 0
    %3514 = vmatpush1.bf16.msra.mxu0 %v3474
    %3515 = vmatprep.subr.bf16.mxu0 0
    %3516 = vmatpush1.bf16.msra.mxu0 %v3473
    %3517 = vmatprep.subr.bf16.mxu0 0
    %3518 = vmatpush1.bf16.msra.mxu0 %v3472
    %3519 = vmatprep.subr.bf16.mxu0 0
    %3520 = vmatpush1.bf16.msra.mxu0 %v3471
    %3521 = vmatprep.subr.bf16.mxu0 0
    %3522 = vmatpush1.bf16.msra.mxu0 %v3470
    %3523 = vmatprep.subr.bf16.mxu0 0
    %3524 = vmatpush1.bf16.msra.mxu0 %v3469
    %3525 = vmatprep.subr.bf16.mxu0 0
    %3526 = vmatpush1.bf16.msra.mxu0 %v3468
    %3527 = vmatprep.subr.bf16.mxu0 0
    %3528 = vmatpush1.bf16.msra.mxu0 %v3467
    %3529 = vmatprep.subr.bf16.mxu0 0
    %3530 = vmatpush2.bf16.msra.mxu0 %v3511
    %3531 = vmatprep.subr.bf16.mxu0 0
    %3532 = vmatpush2.bf16.msra.mxu0 %v3481
    %3533 = vmatprep.subr.bf16.mxu0 0
    %3534 = vmatpush2.bf16.msra.mxu0 %v3480
    %3535 = vmatprep.subr.bf16.mxu0 0
    %3536 = vmatpush2.bf16.msra.mxu0 %v3479
    %3537 = vmatprep.subr.bf16.mxu0 0
    %3538 = vmatpush2.bf16.msra.mxu0 %v3478
    %3539 = vmatprep.subr.bf16.mxu0 0
    %3540 = vmatpush2.bf16.msra.mxu0 %v3477
    %3541 = vmatprep.subr.bf16.mxu0 0
    %3542 = vmatpush2.bf16.msra.mxu0 %v3476
    %3543 = vmatprep.subr.bf16.mxu0 0
    %3544 = vmatpush2.bf16.msra.mxu0 %v3475
    %3545 = vmatprep.mubr.bf16.mxu0 %v3499
    %3546 = vmatmul.mubr.bf16.gmra.mxu0 %v3359
    %v3547 = vpop.f32.mrf.mxu0
    %v3548 = vadd.f32 %v3403, %v3547
    %v3549 = vpop.f32.mrf.mxu0
    %v3550 = vpop.f32.mrf.mxu0
    %v3551 = vadd.f32 %v3403, %v3550
    %v3552 = vpop.f32.mrf.mxu0
    %3553 = vmatprep.mubr.bf16.mxu0 %v3502
    %3554 = vmatmul.mubr.bf16.gmra.mxu0 %v3361
    %v3555 = vpop.f32.mrf.mxu0
    %v3556 = vadd.f32 %v3403, %v3555
    %v3557 = vpop.f32.mrf.mxu0
    %v3558 = vpop.f32.mrf.mxu0
    %v3559 = vadd.f32 %v3403, %v3558
    %v3560 = vpop.f32.mrf.mxu0
    %3561 = vmatprep.mubr.bf16.mxu0 %v3505
    %3562 = vmatmul.mubr.bf16.gmra.mxu0 %v3363
    %v3563 = vpop.f32.mrf.mxu0
    %v3564 = vadd.f32 %v3403, %v3563
    %v3565 = vpop.f32.mrf.mxu0
    %v3566 = vpop.f32.mrf.mxu0
    %v3567 = vadd.f32 %v3403, %v3566
    %v3568 = vpop.f32.mrf.mxu0
    %3569 = vmatprep.mubr.bf16.mxu0 %v3508
    %3570 = vmatmul.mubr.bf16.gmra.mxu0 %v3365
    %v3571 = vpop.f32.mrf.mxu0
    %v3572 = vadd.f32 %v3403, %v3571
    %v3573 = vpop.f32.mrf.mxu0
    %v3574 = vpop.f32.mrf.mxu0
    %v3575 = vadd.f32 %v3403, %v3574
    %v3576 = vpop.f32.mrf.mxu0
    %3577 = vdwg.mxu0
    %v3578 = vld [vmem:[%s9] sm:$0xf]
    %v3579 = vld [vmem:[%s9 + $0x4] sm:$0xf]
    %v3580 = vld [vmem:[%s9 + $0x8] sm:$0xf]
    %v3581 = vld [vmem:[%s9 + $0xc] sm:$0xf]
    %v3582 = vld [vmem:[%s11] sm:$0xff]
    %v3583 = vld [vmem:[%s11 + $0x8] sm:$0xff]
    %v3584 = vld [vmem:[%s11 + $0x10] sm:$0xff]
    %v3585 = vld [vmem:[%s11 + $0x18] sm:$0xff]
    %vm3586 = vcmp.ge.s32.totalorder %v1713, 64
    %vm3587 = vcmp.lt.s32.totalorder %v1713, 96
    %vm3588 = vmand %vm3586, %vm3587
    %v3593 = vunpack.c.l.b16 %v3578
    %v3594 = vunpack.c.l.b16 %v3579
    %v3595 = vunpack.c.l.b16 %v3580
    %v3596 = vunpack.c.l.b16 %v3581
    %v3597 = vpack.c.b16 %v3594, %v3593
    %v3598 = vpack.c.b16 %v3596, %v3595
    %vm3601 = vcmask 261120
    %v3603 = vsel %vm3601, 0, 0
    %3605 = vmatprep.subr.bf16.mxu0 0
    %3606 = vmatpush1.bf16.msra.mxu0 0
    %3607 = vmatprep.subr.bf16.mxu0 0
    %3608 = vmatpush1.bf16.msra.mxu0 0
    %3609 = vmatprep.subr.bf16.mxu0 0
    %3610 = vmatpush1.bf16.msra.mxu0 0
    %3611 = vmatprep.subr.bf16.mxu0 0
    %3612 = vmatpush1.bf16.msra.mxu0 0
    %3613 = vmatprep.subr.bf16.mxu0 0
    %3614 = vmatpush1.bf16.msra.mxu0 0
    %3615 = vmatprep.subr.bf16.mxu0 0
    %3616 = vmatpush1.bf16.msra.mxu0 0
    %3617 = vmatprep.subr.bf16.mxu0 0
    %3618 = vmatpush1.bf16.msra.mxu0 %v3598
    %3619 = vmatprep.subr.bf16.mxu0 0
    %3620 = vmatpush1.bf16.msra.mxu0 %v3597
    %3621 = vmatprep.subr.bf16.mxu0 0
    %3622 = vmatpush2.bf16.msra.mxu0 0
    %3623 = vmatprep.subr.bf16.mxu0 0
    %3624 = vmatpush2.bf16.msra.mxu0 0
    %3625 = vmatprep.subr.bf16.mxu0 0
    %3626 = vmatpush2.bf16.msra.mxu0 0
    %3627 = vmatprep.subr.bf16.mxu0 0
    %3628 = vmatpush2.bf16.msra.mxu0 0
    %3629 = vmatprep.subr.bf16.mxu0 0
    %3630 = vmatpush2.bf16.msra.mxu0 0
    %3631 = vmatprep.subr.bf16.mxu0 0
    %3632 = vmatpush2.bf16.msra.mxu0 0
    %3633 = vmatprep.subr.bf16.mxu0 0
    %3634 = vmatpush2.bf16.msra.mxu0 0
    %3635 = vmatprep.subr.bf16.mxu0 0
    %3636 = vmatpush2.bf16.msra.mxu0 0
    %3637 = vmatprep.mubr.bf16.mxu0 0
    %3638 = vmatmul.mubr.bf16.gmra.mxu0 %v3603
    %v3639 = vpop.f32.mrf.mxu0
    %v3640 = vadd.f32 0.0, %v3639
    %v3641 = vpop.f32.mrf.mxu0
    %v3642 = vpop.f32.mrf.mxu0
    %v3643 = vpop.f32.mrf.mxu0
    %3644 = vdwg.mxu0
    %v3645 = vadd.f32 %v3548, %v3640
    %v3646 = vmul.f32 %v3645, 0.5
    %v3647 = vsel %vm3588, 1, 0
    %vm3648 = vcmp.eq.s32.totalorder %v3647, 1
    %v3649 = vsel %vm3648, %v3645, %v3646
    %v3650 = vtanh.pop %v3649
    %v3651 = vmul.f32 %v3650, 0.5
    %v3652 = vadd.f32 %v3651, 0.5
    %v3653 = vmul.f32 %v3652, 0.0
    %3655 = vrot.lane.b32.xlu0 %v3650, 64
    %v3656 = vpop.permute.xlu0 %3655
    %v3658 = vmul.f32 %v3652, %v3656
    %3660 = vrot.lane.b32.xlu0 %v3658, 32
    %v3661 = vpop.permute.xlu0 %3660
    %v3663 = vadd.f32 %v3653, %v3661
    %v3664 = vtanh.pop %v3663
    %3666 = vrot.lane.b32.xlu0 %v3664, 64
    %v3667 = vpop.permute.xlu0 %3666
    %v3669 = vmul.f32 %v3652, %v3667
    %3671 = vrot.lane.b32.xlu0 %v3669, 32
    %v3672 = vpop.permute.xlu0 %3671
    %vm3674 = vcmask 254976
    %v3675 = vsel %vm3674, %v3672, 0.0
    %3676 = vadd.xlane.f32.xlu0 %v3675
    %v3677 = vpop.xlane.xlu0 %3676
    %v3678 = vmul.f32 %v3677, 0.03125
    %v3679 = vlaneseq
    %v3680 = vshrl.u32 %v3679, 7
    %v3681 = vsub.s32 0, %v3680
    %v3682 = vrot.slane %v3582, %v3681
    %v3683 = vmul.f32 %v3678, %v3682
    %v3684 = vadd.f32 %v3683, 0.0
    %v3685 = vpack.c.bf16 %v3669, %v3669
    %3687 = vrot.lane.b32.xlu0 %v3685, 32
    %v3688 = vpop.permute.xlu0 %3687
    %v3690 = vsel %vm3601, %v3688, 0
    %3692 = vmatprep.subr.bf16.mxu0 0
    %3693 = vmatpush1.bf16.msra.mxu0 0
    %3694 = vmatprep.subr.bf16.mxu0 0
    %3695 = vmatpush1.bf16.msra.mxu0 0
    %3696 = vmatprep.subr.bf16.mxu0 0
    %3697 = vmatpush1.bf16.msra.mxu0 0
    %3698 = vmatprep.subr.bf16.mxu0 0
    %3699 = vmatpush1.bf16.msra.mxu0 0
    %3700 = vmatprep.subr.bf16.mxu0 0
    %3701 = vmatpush1.bf16.msra.mxu0 0
    %3702 = vmatprep.subr.bf16.mxu0 0
    %3703 = vmatpush1.bf16.msra.mxu0 0
    %3704 = vmatprep.subr.bf16.mxu0 0
    %3705 = vmatpush1.bf16.msra.mxu0 %v3598
    %3706 = vmatprep.subr.bf16.mxu0 0
    %3707 = vmatpush1.bf16.msra.mxu0 %v3597
    %3708 = vmatprep.subr.bf16.mxu0 0
    %3709 = vmatpush2.bf16.msra.mxu0 0
    %3710 = vmatprep.subr.bf16.mxu0 0
    %3711 = vmatpush2.bf16.msra.mxu0 0
    %3712 = vmatprep.subr.bf16.mxu0 0
    %3713 = vmatpush2.bf16.msra.mxu0 0
    %3714 = vmatprep.subr.bf16.mxu0 0
    %3715 = vmatpush2.bf16.msra.mxu0 0
    %3716 = vmatprep.subr.bf16.mxu0 0
    %3717 = vmatpush2.bf16.msra.mxu0 0
    %3718 = vmatprep.subr.bf16.mxu0 0
    %3719 = vmatpush2.bf16.msra.mxu0 0
    %3720 = vmatprep.subr.bf16.mxu0 0
    %3721 = vmatpush2.bf16.msra.mxu0 0
    %3722 = vmatprep.subr.bf16.mxu0 0
    %3723 = vmatpush2.bf16.msra.mxu0 0
    %3724 = vmatprep.mubr.bf16.mxu0 0
    %3725 = vmatmul.mubr.bf16.gmra.mxu0 %v3690
    %v3726 = vpop.f32.mrf.mxu0
    %v3727 = vadd.f32 0.0, %v3726
    %v3728 = vpop.f32.mrf.mxu0
    %v3729 = vpop.f32.mrf.mxu0
    %v3730 = vpop.f32.mrf.mxu0
    %3731 = vdwg.mxu0
    %v3733 = vrot.slane %v3727, 6
    %v3735 = vadd.f32 %v3548, %v3733
    %v3736 = vmul.f32 %v3735, 0.5
    %v3737 = vsel %vm3648, %v3735, %v3736
    %v3738 = vtanh.pop %v3737
    %v3739 = vmul.f32 %v3738, 0.5
    %v3740 = vadd.f32 %v3739, 0.5
    %v3742 = vrot.slane %v3663, 6
    %v3744 = vmul.f32 %v3740, %v3742
    %3746 = vrot.lane.b32.xlu0 %v3738, 64
    %v3747 = vpop.permute.xlu0 %3746
    %v3749 = vmul.f32 %v3740, %v3747
    %3751 = vrot.lane.b32.xlu0 %v3749, 32
    %v3752 = vpop.permute.xlu0 %3751
    %v3754 = vadd.f32 %v3744, %v3752
    %v3755 = vtanh.pop %v3754
    %3757 = vrot.lane.b32.xlu0 %v3755, 64
    %v3758 = vpop.permute.xlu0 %3757
    %v3760 = vmul.f32 %v3740, %v3758
    %3762 = vrot.lane.b32.xlu0 %v3760, 32
    %v3763 = vpop.permute.xlu0 %3762
    %vm3765 = vcmask 257026
    %v3766 = vsel %vm3765, %v3763, 0.0
    %3767 = vadd.xlane.f32.xlu0 %v3766
    %v3768 = vpop.xlane.xlu0 %3767
    %v3769 = vmul.f32 %v3768, 0.03125
    %v3770 = vlaneseq
    %v3771 = vshrl.u32 %v3770, 7
    %v3772 = vsub.s32 1, %v3771
    %v3773 = vrot.slane %v3582, %v3772
    %v3774 = vmul.f32 %v3769, %v3773
    %v3776 = vrot.slane %v3774, 2
    %v3778 = vadd.f32 %v3684, %v3776
    %v3779 = vpack.c.bf16 %v3760, %v3760
    %v3781 = vrot.slane %v3779, 1
    %3782 = vrot.lane.b32.xlu0 %v3781, 32
    %v3783 = vpop.permute.xlu0 %3782
    %v3785 = vsel %vm3601, %v3783, 0
    %3787 = vmatprep.subr.bf16.mxu0 0
    %3788 = vmatpush1.bf16.msra.mxu0 0
    %3789 = vmatprep.subr.bf16.mxu0 0
    %3790 = vmatpush1.bf16.msra.mxu0 0
    %3791 = vmatprep.subr.bf16.mxu0 0
    %3792 = vmatpush1.bf16.msra.mxu0 0
    %3793 = vmatprep.subr.bf16.mxu0 0
    %3794 = vmatpush1.bf16.msra.mxu0 0
    %3795 = vmatprep.subr.bf16.mxu0 0
    %3796 = vmatpush1.bf16.msra.mxu0 0
    %3797 = vmatprep.subr.bf16.mxu0 0
    %3798 = vmatpush1.bf16.msra.mxu0 0
    %3799 = vmatprep.subr.bf16.mxu0 0
    %3800 = vmatpush1.bf16.msra.mxu0 %v3598
    %3801 = vmatprep.subr.bf16.mxu0 0
    %3802 = vmatpush1.bf16.msra.mxu0 %v3597
    %3803 = vmatprep.subr.bf16.mxu0 0
    %3804 = vmatpush2.bf16.msra.mxu0 0
    %3805 = vmatprep.subr.bf16.mxu0 0
    %3806 = vmatpush2.bf16.msra.mxu0 0
    %3807 = vmatprep.subr.bf16.mxu0 0
    %3808 = vmatpush2.bf16.msra.mxu0 0
    %3809 = vmatprep.subr.bf16.mxu0 0
    %3810 = vmatpush2.bf16.msra.mxu0 0
    %3811 = vmatprep.subr.bf16.mxu0 0
    %3812 = vmatpush2.bf16.msra.mxu0 0
    %3813 = vmatprep.subr.bf16.mxu0 0
    %3814 = vmatpush2.bf16.msra.mxu0 0
    %3815 = vmatprep.subr.bf16.mxu0 0
    %3816 = vmatpush2.bf16.msra.mxu0 0
    %3817 = vmatprep.subr.bf16.mxu0 0
    %3818 = vmatpush2.bf16.msra.mxu0 0
    %3819 = vmatprep.mubr.bf16.mxu0 0
    %3820 = vmatmul.mubr.bf16.gmra.mxu0 %v3785
    %v3821 = vpop.f32.mrf.mxu0
    %v3822 = vadd.f32 0.0, %v3821
    %v3823 = vpop.f32.mrf.mxu0
    %v3824 = vpop.f32.mrf.mxu0
    %v3825 = vpop.f32.mrf.mxu0
    %3826 = vdwg.mxu0
    %v3828 = vrot.slane %v3822, 4
    %v3830 = vadd.f32 %v3548, %v3828
    %v3831 = vmul.f32 %v3830, 0.5
    %v3832 = vsel %vm3648, %v3830, %v3831
    %v3833 = vtanh.pop %v3832
    %v3834 = vmul.f32 %v3833, 0.5
    %v3835 = vadd.f32 %v3834, 0.5
    %v3837 = vrot.slane %v3754, 6
    %v3839 = vmul.f32 %v3835, %v3837
    %3841 = vrot.lane.b32.xlu0 %v3833, 64
    %v3842 = vpop.permute.xlu0 %3841
    %v3844 = vmul.f32 %v3835, %v3842
    %3846 = vrot.lane.b32.xlu0 %v3844, 32
    %v3847 = vpop.permute.xlu0 %3846
    %v3849 = vadd.f32 %v3839, %v3847
    %v3850 = vtanh.pop %v3849
    %3852 = vrot.lane.b32.xlu0 %v3850, 64
    %v3853 = vpop.permute.xlu0 %3852
    %v3855 = vmul.f32 %v3835, %v3853
    %3857 = vrot.lane.b32.xlu0 %v3855, 32
    %v3858 = vpop.permute.xlu0 %3857
    %vm3860 = vcmask 259076
    %v3861 = vsel %vm3860, %v3858, 0.0
    %3862 = vadd.xlane.f32.xlu0 %v3861
    %v3863 = vpop.xlane.xlu0 %3862
    %v3864 = vmul.f32 %v3863, 0.03125
    %v3865 = vlaneseq
    %v3866 = vshrl.u32 %v3865, 7
    %v3867 = vsub.s32 2, %v3866
    %v3868 = vrot.slane %v3582, %v3867
    %v3869 = vmul.f32 %v3864, %v3868
    %v3871 = vrot.slane %v3869, 4
    %v3873 = vadd.f32 %v3778, %v3871
    %v3874 = vpack.c.bf16 %v3855, %v3855
    %v3876 = vrot.slane %v3874, 2
    %3877 = vrot.lane.b32.xlu0 %v3876, 32
    %v3878 = vpop.permute.xlu0 %3877
    %v3880 = vsel %vm3601, %v3878, 0
    %3882 = vmatprep.subr.bf16.mxu0 0
    %3883 = vmatpush1.bf16.msra.mxu0 0
    %3884 = vmatprep.subr.bf16.mxu0 0
    %3885 = vmatpush1.bf16.msra.mxu0 0
    %3886 = vmatprep.subr.bf16.mxu0 0
    %3887 = vmatpush1.bf16.msra.mxu0 0
    %3888 = vmatprep.subr.bf16.mxu0 0
    %3889 = vmatpush1.bf16.msra.mxu0 0
    %3890 = vmatprep.subr.bf16.mxu0 0
    %3891 = vmatpush1.bf16.msra.mxu0 0
    %3892 = vmatprep.subr.bf16.mxu0 0
    %3893 = vmatpush1.bf16.msra.mxu0 0
    %3894 = vmatprep.subr.bf16.mxu0 0
    %3895 = vmatpush1.bf16.msra.mxu0 %v3598
    %3896 = vmatprep.subr.bf16.mxu0 0
    %3897 = vmatpush1.bf16.msra.mxu0 %v3597
    %3898 = vmatprep.subr.bf16.mxu0 0
    %3899 = vmatpush2.bf16.msra.mxu0 0
    %3900 = vmatprep.subr.bf16.mxu0 0
    %3901 = vmatpush2.bf16.msra.mxu0 0
    %3902 = vmatprep.subr.bf16.mxu0 0
    %3903 = vmatpush2.bf16.msra.mxu0 0
    %3904 = vmatprep.subr.bf16.mxu0 0
    %3905 = vmatpush2.bf16.msra.mxu0 0
    %3906 = vmatprep.subr.bf16.mxu0 0
    %3907 = vmatpush2.bf16.msra.mxu0 0
    %3908 = vmatprep.subr.bf16.mxu0 0
    %3909 = vmatpush2.bf16.msra.mxu0 0
    %3910 = vmatprep.subr.bf16.mxu0 0
    %3911 = vmatpush2.bf16.msra.mxu0 0
    %3912 = vmatprep.subr.bf16.mxu0 0
    %3913 = vmatpush2.bf16.msra.mxu0 0
    %3914 = vmatprep.mubr.bf16.mxu0 0
    %3915 = vmatmul.mubr.bf16.gmra.mxu0 %v3880
    %v3916 = vpop.f32.mrf.mxu0
    %v3917 = vadd.f32 0.0, %v3916
    %v3918 = vpop.f32.mrf.mxu0
    %v3919 = vpop.f32.mrf.mxu0
    %v3920 = vpop.f32.mrf.mxu0
    %3921 = vdwg.mxu0
    %v3923 = vrot.slane %v3917, 2
    %v3925 = vadd.f32 %v3548, %v3923
    %v3926 = vmul.f32 %v3925, 0.5
    %v3927 = vsel %vm3648, %v3925, %v3926
    %v3928 = vtanh.pop %v3927
    %v3929 = vmul.f32 %v3928, 0.5
    %v3930 = vadd.f32 %v3929, 0.5
    %v3932 = vrot.slane %v3849, 6
    %v3934 = vmul.f32 %v3930, %v3932
    %3936 = vrot.lane.b32.xlu0 %v3928, 64
    %v3937 = vpop.permute.xlu0 %3936
    %v3939 = vmul.f32 %v3930, %v3937
    %3941 = vrot.lane.b32.xlu0 %v3939, 32
    %v3942 = vpop.permute.xlu0 %3941
    %v3944 = vadd.f32 %v3934, %v3942
    %v3945 = vtanh.pop %v3944
    %3947 = vrot.lane.b32.xlu0 %v3945, 64
    %v3948 = vpop.permute.xlu0 %3947
    %v3950 = vmul.f32 %v3930, %v3948
    %3952 = vrot.lane.b32.xlu0 %v3950, 32
    %v3953 = vpop.permute.xlu0 %3952
    %vm3955 = vcmask 261126
    %v3956 = vsel %vm3955, %v3953, 0.0
    %3957 = vadd.xlane.f32.xlu0 %v3956
    %v3958 = vpop.xlane.xlu0 %3957
    %v3959 = vmul.f32 %v3958, 0.03125
    %v3960 = vlaneseq
    %v3961 = vshrl.u32 %v3960, 7
    %v3962 = vsub.s32 3, %v3961
    %v3963 = vrot.slane %v3582, %v3962
    %v3964 = vmul.f32 %v3959, %v3963
    %v3966 = vrot.slane %v3964, 6
    %v3968 = vadd.f32 %v3873, %v3966
    %v3969 = vpack.c.bf16 %v3950, %v3950
    %v3971 = vrot.slane %v3969, 3
    %3972 = vrot.lane.b32.xlu0 %v3971, 32
    %v3973 = vpop.permute.xlu0 %3972
    %v3975 = vsel %vm3601, %v3973, 0
    %3977 = vmatprep.subr.bf16.mxu0 0
    %3978 = vmatpush1.bf16.msra.mxu0 0
    %3979 = vmatprep.subr.bf16.mxu0 0
    %3980 = vmatpush1.bf16.msra.mxu0 0
    %3981 = vmatprep.subr.bf16.mxu0 0
    %3982 = vmatpush1.bf16.msra.mxu0 0
    %3983 = vmatprep.subr.bf16.mxu0 0
    %3984 = vmatpush1.bf16.msra.mxu0 0
    %3985 = vmatprep.subr.bf16.mxu0 0
    %3986 = vmatpush1.bf16.msra.mxu0 0
    %3987 = vmatprep.subr.bf16.mxu0 0
    %3988 = vmatpush1.bf16.msra.mxu0 0
    %3989 = vmatprep.subr.bf16.mxu0 0
    %3990 = vmatpush1.bf16.msra.mxu0 %v3598
    %3991 = vmatprep.subr.bf16.mxu0 0
    %3992 = vmatpush1.bf16.msra.mxu0 %v3597
    %3993 = vmatprep.subr.bf16.mxu0 0
    %3994 = vmatpush2.bf16.msra.mxu0 0
    %3995 = vmatprep.subr.bf16.mxu0 0
    %3996 = vmatpush2.bf16.msra.mxu0 0
    %3997 = vmatprep.subr.bf16.mxu0 0
    %3998 = vmatpush2.bf16.msra.mxu0 0
    %3999 = vmatprep.subr.bf16.mxu0 0
    %4000 = vmatpush2.bf16.msra.mxu0 0
    %4001 = vmatprep.subr.bf16.mxu0 0
    %4002 = vmatpush2.bf16.msra.mxu0 0
    %4003 = vmatprep.subr.bf16.mxu0 0
    %4004 = vmatpush2.bf16.msra.mxu0 0
    %4005 = vmatprep.subr.bf16.mxu0 0
    %4006 = vmatpush2.bf16.msra.mxu0 0
    %4007 = vmatprep.subr.bf16.mxu0 0
    %4008 = vmatpush2.bf16.msra.mxu0 0
    %4009 = vmatprep.mubr.bf16.mxu0 0
    %4010 = vmatmul.mubr.bf16.gmra.mxu0 %v3975
    %v4011 = vpop.f32.mrf.mxu0
    %v4012 = vadd.f32 0.0, %v4011
    %v4013 = vpop.f32.mrf.mxu0
    %v4014 = vpop.f32.mrf.mxu0
    %v4015 = vpop.f32.mrf.mxu0
    %4016 = vdwg.mxu0
    %v4017 = vadd.f32 %v3551, %v4012
    %v4018 = vmul.f32 %v4017, 0.5
    %v4019 = vsel %vm3648, %v4017, %v4018
    %v4020 = vtanh.pop %v4019
    %v4021 = vmul.f32 %v4020, 0.5
    %v4022 = vadd.f32 %v4021, 0.5
    %v4024 = vrot.slane %v3944, 6
    %v4026 = vmul.f32 %v4022, %v4024
    %4028 = vrot.lane.b32.xlu0 %v4020, 64
    %v4029 = vpop.permute.xlu0 %4028
    %v4031 = vmul.f32 %v4022, %v4029
    %4033 = vrot.lane.b32.xlu0 %v4031, 32
    %v4034 = vpop.permute.xlu0 %4033
    %v4036 = vadd.f32 %v4026, %v4034
    %v4037 = vtanh.pop %v4036
    %4039 = vrot.lane.b32.xlu0 %v4037, 64
    %v4040 = vpop.permute.xlu0 %4039
    %v4042 = vmul.f32 %v4022, %v4040
    %4044 = vrot.lane.b32.xlu0 %v4042, 32
    %v4045 = vpop.permute.xlu0 %4044
    %v4047 = vsel %vm3674, %v4045, 0.0
    %4048 = vadd.xlane.f32.xlu0 %v4047
    %v4049 = vpop.xlane.xlu0 %4048
    %v4050 = vmul.f32 %v4049, 0.03125
    %v4051 = vlaneseq
    %v4052 = vshrl.u32 %v4051, 7
    %v4053 = vsub.s32 4, %v4052
    %v4054 = vrot.slane %v3582, %v4053
    %v4055 = vmul.f32 %v4050, %v4054
    %v4056 = vadd.f32 %v3968, %v4055
    %v4057 = vpack.c.bf16 %v4042, %v4042
    %4059 = vrot.lane.b32.xlu0 %v4057, 32
    %v4060 = vpop.permute.xlu0 %4059
    %v4062 = vsel %vm3601, %v4060, 0
    %4064 = vmatprep.subr.bf16.mxu0 0
    %4065 = vmatpush1.bf16.msra.mxu0 0
    %4066 = vmatprep.subr.bf16.mxu0 0
    %4067 = vmatpush1.bf16.msra.mxu0 0
    %4068 = vmatprep.subr.bf16.mxu0 0
    %4069 = vmatpush1.bf16.msra.mxu0 0
    %4070 = vmatprep.subr.bf16.mxu0 0
    %4071 = vmatpush1.bf16.msra.mxu0 0
    %4072 = vmatprep.subr.bf16.mxu0 0
    %4073 = vmatpush1.bf16.msra.mxu0 0
    %4074 = vmatprep.subr.bf16.mxu0 0
    %4075 = vmatpush1.bf16.msra.mxu0 0
    %4076 = vmatprep.subr.bf16.mxu0 0
    %4077 = vmatpush1.bf16.msra.mxu0 %v3598
    %4078 = vmatprep.subr.bf16.mxu0 0
    %4079 = vmatpush1.bf16.msra.mxu0 %v3597
    %4080 = vmatprep.subr.bf16.mxu0 0
    %4081 = vmatpush2.bf16.msra.mxu0 0
    %4082 = vmatprep.subr.bf16.mxu0 0
    %4083 = vmatpush2.bf16.msra.mxu0 0
    %4084 = vmatprep.subr.bf16.mxu0 0
    %4085 = vmatpush2.bf16.msra.mxu0 0
    %4086 = vmatprep.subr.bf16.mxu0 0
    %4087 = vmatpush2.bf16.msra.mxu0 0
    %4088 = vmatprep.subr.bf16.mxu0 0
    %4089 = vmatpush2.bf16.msra.mxu0 0
    %4090 = vmatprep.subr.bf16.mxu0 0
    %4091 = vmatpush2.bf16.msra.mxu0 0
    %4092 = vmatprep.subr.bf16.mxu0 0
    %4093 = vmatpush2.bf16.msra.mxu0 0
    %4094 = vmatprep.subr.bf16.mxu0 0
    %4095 = vmatpush2.bf16.msra.mxu0 0
    %4096 = vmatprep.mubr.bf16.mxu0 0
    %4097 = vmatmul.mubr.bf16.gmra.mxu0 %v4062
    %v4098 = vpop.f32.mrf.mxu0
    %v4099 = vadd.f32 0.0, %v4098
    %v4100 = vpop.f32.mrf.mxu0
    %v4101 = vpop.f32.mrf.mxu0
    %v4102 = vpop.f32.mrf.mxu0
    %4103 = vdwg.mxu0
    %v4105 = vrot.slane %v4099, 6
    %v4107 = vadd.f32 %v3551, %v4105
    %v4108 = vmul.f32 %v4107, 0.5
    %v4109 = vsel %vm3648, %v4107, %v4108
    %v4110 = vtanh.pop %v4109
    %v4111 = vmul.f32 %v4110, 0.5
    %v4112 = vadd.f32 %v4111, 0.5
    %v4114 = vrot.slane %v4036, 6
    %v4116 = vmul.f32 %v4112, %v4114
    %4118 = vrot.lane.b32.xlu0 %v4110, 64
    %v4119 = vpop.permute.xlu0 %4118
    %v4121 = vmul.f32 %v4112, %v4119
    %4123 = vrot.lane.b32.xlu0 %v4121, 32
    %v4124 = vpop.permute.xlu0 %4123
    %v4126 = vadd.f32 %v4116, %v4124
    %v4127 = vtanh.pop %v4126
    %4129 = vrot.lane.b32.xlu0 %v4127, 64
    %v4130 = vpop.permute.xlu0 %4129
    %v4132 = vmul.f32 %v4112, %v4130
    %4134 = vrot.lane.b32.xlu0 %v4132, 32
    %v4135 = vpop.permute.xlu0 %4134
    %v4137 = vsel %vm3765, %v4135, 0.0
    %4138 = vadd.xlane.f32.xlu0 %v4137
    %v4139 = vpop.xlane.xlu0 %4138
    %v4140 = vmul.f32 %v4139, 0.03125
    %v4141 = vlaneseq
    %v4142 = vshrl.u32 %v4141, 7
    %v4143 = vsub.s32 5, %v4142
    %v4144 = vrot.slane %v3582, %v4143
    %v4145 = vmul.f32 %v4140, %v4144
    %v4147 = vrot.slane %v4145, 2
    %v4149 = vadd.f32 %v4056, %v4147
    %v4150 = vpack.c.bf16 %v4132, %v4132
    %v4152 = vrot.slane %v4150, 1
    %4153 = vrot.lane.b32.xlu0 %v4152, 32
    %v4154 = vpop.permute.xlu0 %4153
    %v4156 = vsel %vm3601, %v4154, 0
    %4158 = vmatprep.subr.bf16.mxu0 0
    %4159 = vmatpush1.bf16.msra.mxu0 0
    %4160 = vmatprep.subr.bf16.mxu0 0
    %4161 = vmatpush1.bf16.msra.mxu0 0
    %4162 = vmatprep.subr.bf16.mxu0 0
    %4163 = vmatpush1.bf16.msra.mxu0 0
    %4164 = vmatprep.subr.bf16.mxu0 0
    %4165 = vmatpush1.bf16.msra.mxu0 0
    %4166 = vmatprep.subr.bf16.mxu0 0
    %4167 = vmatpush1.bf16.msra.mxu0 0
    %4168 = vmatprep.subr.bf16.mxu0 0
    %4169 = vmatpush1.bf16.msra.mxu0 0
    %4170 = vmatprep.subr.bf16.mxu0 0
    %4171 = vmatpush1.bf16.msra.mxu0 %v3598
    %4172 = vmatprep.subr.bf16.mxu0 0
    %4173 = vmatpush1.bf16.msra.mxu0 %v3597
    %4174 = vmatprep.subr.bf16.mxu0 0
    %4175 = vmatpush2.bf16.msra.mxu0 0
    %4176 = vmatprep.subr.bf16.mxu0 0
    %4177 = vmatpush2.bf16.msra.mxu0 0
    %4178 = vmatprep.subr.bf16.mxu0 0
    %4179 = vmatpush2.bf16.msra.mxu0 0
    %4180 = vmatprep.subr.bf16.mxu0 0
    %4181 = vmatpush2.bf16.msra.mxu0 0
    %4182 = vmatprep.subr.bf16.mxu0 0
    %4183 = vmatpush2.bf16.msra.mxu0 0
    %4184 = vmatprep.subr.bf16.mxu0 0
    %4185 = vmatpush2.bf16.msra.mxu0 0
    %4186 = vmatprep.subr.bf16.mxu0 0
    %4187 = vmatpush2.bf16.msra.mxu0 0
    %4188 = vmatprep.subr.bf16.mxu0 0
    %4189 = vmatpush2.bf16.msra.mxu0 0
    %4190 = vmatprep.mubr.bf16.mxu0 0
    %4191 = vmatmul.mubr.bf16.gmra.mxu0 %v4156
    %v4192 = vpop.f32.mrf.mxu0
    %v4193 = vadd.f32 0.0, %v4192
    %v4194 = vpop.f32.mrf.mxu0
    %v4195 = vpop.f32.mrf.mxu0
    %v4196 = vpop.f32.mrf.mxu0
    %4197 = vdwg.mxu0
    %v4199 = vrot.slane %v4193, 4
    %v4201 = vadd.f32 %v3551, %v4199
    %v4202 = vmul.f32 %v4201, 0.5
    %v4203 = vsel %vm3648, %v4201, %v4202
    %v4204 = vtanh.pop %v4203
    %v4205 = vmul.f32 %v4204, 0.5
    %v4206 = vadd.f32 %v4205, 0.5
    %v4208 = vrot.slane %v4126, 6
    %v4210 = vmul.f32 %v4206, %v4208
    %4212 = vrot.lane.b32.xlu0 %v4204, 64
    %v4213 = vpop.permute.xlu0 %4212
    %v4215 = vmul.f32 %v4206, %v4213
    %4217 = vrot.lane.b32.xlu0 %v4215, 32
    %v4218 = vpop.permute.xlu0 %4217
    %v4220 = vadd.f32 %v4210, %v4218
    %v4221 = vtanh.pop %v4220
    %4223 = vrot.lane.b32.xlu0 %v4221, 64
    %v4224 = vpop.permute.xlu0 %4223
    %v4226 = vmul.f32 %v4206, %v4224
    %4228 = vrot.lane.b32.xlu0 %v4226, 32
    %v4229 = vpop.permute.xlu0 %4228
    %v4231 = vsel %vm3860, %v4229, 0.0
    %4232 = vadd.xlane.f32.xlu0 %v4231
    %v4233 = vpop.xlane.xlu0 %4232
    %v4234 = vmul.f32 %v4233, 0.03125
    %v4235 = vlaneseq
    %v4236 = vshrl.u32 %v4235, 7
    %v4237 = vsub.s32 6, %v4236
    %v4238 = vrot.slane %v3582, %v4237
    %v4239 = vmul.f32 %v4234, %v4238
    %v4241 = vrot.slane %v4239, 4
    %v4243 = vadd.f32 %v4149, %v4241
    %v4244 = vpack.c.bf16 %v4226, %v4226
    %v4246 = vrot.slane %v4244, 2
    %4247 = vrot.lane.b32.xlu0 %v4246, 32
    %v4248 = vpop.permute.xlu0 %4247
    %v4250 = vsel %vm3601, %v4248, 0
    %4252 = vmatprep.subr.bf16.mxu0 0
    %4253 = vmatpush1.bf16.msra.mxu0 0
    %4254 = vmatprep.subr.bf16.mxu0 0
    %4255 = vmatpush1.bf16.msra.mxu0 0
    %4256 = vmatprep.subr.bf16.mxu0 0
    %4257 = vmatpush1.bf16.msra.mxu0 0
    %4258 = vmatprep.subr.bf16.mxu0 0
    %4259 = vmatpush1.bf16.msra.mxu0 0
    %4260 = vmatprep.subr.bf16.mxu0 0
    %4261 = vmatpush1.bf16.msra.mxu0 0
    %4262 = vmatprep.subr.bf16.mxu0 0
    %4263 = vmatpush1.bf16.msra.mxu0 0
    %4264 = vmatprep.subr.bf16.mxu0 0
    %4265 = vmatpush1.bf16.msra.mxu0 %v3598
    %4266 = vmatprep.subr.bf16.mxu0 0
    %4267 = vmatpush1.bf16.msra.mxu0 %v3597
    %4268 = vmatprep.subr.bf16.mxu0 0
    %4269 = vmatpush2.bf16.msra.mxu0 0
    %4270 = vmatprep.subr.bf16.mxu0 0
    %4271 = vmatpush2.bf16.msra.mxu0 0
    %4272 = vmatprep.subr.bf16.mxu0 0
    %4273 = vmatpush2.bf16.msra.mxu0 0
    %4274 = vmatprep.subr.bf16.mxu0 0
    %4275 = vmatpush2.bf16.msra.mxu0 0
    %4276 = vmatprep.subr.bf16.mxu0 0
    %4277 = vmatpush2.bf16.msra.mxu0 0
    %4278 = vmatprep.subr.bf16.mxu0 0
    %4279 = vmatpush2.bf16.msra.mxu0 0
    %4280 = vmatprep.subr.bf16.mxu0 0
    %4281 = vmatpush2.bf16.msra.mxu0 0
    %4282 = vmatprep.subr.bf16.mxu0 0
    %4283 = vmatpush2.bf16.msra.mxu0 0
    %4284 = vmatprep.mubr.bf16.mxu0 0
    %4285 = vmatmul.mubr.bf16.gmra.mxu0 %v4250
    %v4286 = vpop.f32.mrf.mxu0
    %v4287 = vadd.f32 0.0, %v4286
    %v4288 = vpop.f32.mrf.mxu0
    %v4289 = vpop.f32.mrf.mxu0
    %v4290 = vpop.f32.mrf.mxu0
    %4291 = vdwg.mxu0
    %v4293 = vrot.slane %v4287, 2
    %v4295 = vadd.f32 %v3551, %v4293
    %v4296 = vmul.f32 %v4295, 0.5
    %v4297 = vsel %vm3648, %v4295, %v4296
    %v4298 = vtanh.pop %v4297
    %v4299 = vmul.f32 %v4298, 0.5
    %v4300 = vadd.f32 %v4299, 0.5
    %v4302 = vrot.slane %v4220, 6
    %v4304 = vmul.f32 %v4300, %v4302
    %4306 = vrot.lane.b32.xlu0 %v4298, 64
    %v4307 = vpop.permute.xlu0 %4306
    %v4309 = vmul.f32 %v4300, %v4307
    %4311 = vrot.lane.b32.xlu0 %v4309, 32
    %v4312 = vpop.permute.xlu0 %4311
    %v4314 = vadd.f32 %v4304, %v4312
    %v4315 = vtanh.pop %v4314
    %4317 = vrot.lane.b32.xlu0 %v4315, 64
    %v4318 = vpop.permute.xlu0 %4317
    %v4320 = vmul.f32 %v4300, %v4318
    %4322 = vrot.lane.b32.xlu0 %v4320, 32
    %v4323 = vpop.permute.xlu0 %4322
    %v4325 = vsel %vm3955, %v4323, 0.0
    %4326 = vadd.xlane.f32.xlu0 %v4325
    %v4327 = vpop.xlane.xlu0 %4326
    %v4328 = vmul.f32 %v4327, 0.03125
    %v4329 = vlaneseq
    %v4330 = vshrl.u32 %v4329, 7
    %v4331 = vsub.s32 7, %v4330
    %v4332 = vrot.slane %v3582, %v4331
    %v4333 = vmul.f32 %v4328, %v4332
    %v4335 = vrot.slane %v4333, 6
    %v4337 = vadd.f32 %v4243, %v4335
    %v4338 = vpack.c.bf16 %v4320, %v4320
    %v4340 = vrot.slane %v4338, 3
    %4341 = vrot.lane.b32.xlu0 %v4340, 32
    %v4342 = vpop.permute.xlu0 %4341
    %v4344 = vsel %vm3601, %v4342, 0
    %4346 = vmatprep.subr.bf16.mxu0 0
    %4347 = vmatpush1.bf16.msra.mxu0 0
    %4348 = vmatprep.subr.bf16.mxu0 0
    %4349 = vmatpush1.bf16.msra.mxu0 0
    %4350 = vmatprep.subr.bf16.mxu0 0
    %4351 = vmatpush1.bf16.msra.mxu0 0
    %4352 = vmatprep.subr.bf16.mxu0 0
    %4353 = vmatpush1.bf16.msra.mxu0 0
    %4354 = vmatprep.subr.bf16.mxu0 0
    %4355 = vmatpush1.bf16.msra.mxu0 0
    %4356 = vmatprep.subr.bf16.mxu0 0
    %4357 = vmatpush1.bf16.msra.mxu0 0
    %4358 = vmatprep.subr.bf16.mxu0 0
    %4359 = vmatpush1.bf16.msra.mxu0 %v3598
    %4360 = vmatprep.subr.bf16.mxu0 0
    %4361 = vmatpush1.bf16.msra.mxu0 %v3597
    %4362 = vmatprep.subr.bf16.mxu0 0
    %4363 = vmatpush2.bf16.msra.mxu0 0
    %4364 = vmatprep.subr.bf16.mxu0 0
    %4365 = vmatpush2.bf16.msra.mxu0 0
    %4366 = vmatprep.subr.bf16.mxu0 0
    %4367 = vmatpush2.bf16.msra.mxu0 0
    %4368 = vmatprep.subr.bf16.mxu0 0
    %4369 = vmatpush2.bf16.msra.mxu0 0
    %4370 = vmatprep.subr.bf16.mxu0 0
    %4371 = vmatpush2.bf16.msra.mxu0 0
    %4372 = vmatprep.subr.bf16.mxu0 0
    %4373 = vmatpush2.bf16.msra.mxu0 0
    %4374 = vmatprep.subr.bf16.mxu0 0
    %4375 = vmatpush2.bf16.msra.mxu0 0
    %4376 = vmatprep.subr.bf16.mxu0 0
    %4377 = vmatpush2.bf16.msra.mxu0 0
    %4378 = vmatprep.mubr.bf16.mxu0 0
    %4379 = vmatmul.mubr.bf16.gmra.mxu0 %v4344
    %v4380 = vpop.f32.mrf.mxu0
    %v4381 = vadd.f32 0.0, %v4380
    %v4382 = vpop.f32.mrf.mxu0
    %v4383 = vpop.f32.mrf.mxu0
    %v4384 = vpop.f32.mrf.mxu0
    %4385 = vdwg.mxu0
    %v4386 = vadd.f32 %v3556, %v4381
    %v4387 = vmul.f32 %v4386, 0.5
    %v4388 = vsel %vm3648, %v4386, %v4387
    %v4389 = vtanh.pop %v4388
    %v4390 = vmul.f32 %v4389, 0.5
    %v4391 = vadd.f32 %v4390, 0.5
    %v4393 = vrot.slane %v4314, 6
    %v4395 = vmul.f32 %v4391, %v4393
    %4397 = vrot.lane.b32.xlu0 %v4389, 64
    %v4398 = vpop.permute.xlu0 %4397
    %v4400 = vmul.f32 %v4391, %v4398
    %4402 = vrot.lane.b32.xlu0 %v4400, 32
    %v4403 = vpop.permute.xlu0 %4402
    %v4405 = vadd.f32 %v4395, %v4403
    %v4406 = vtanh.pop %v4405
    %4408 = vrot.lane.b32.xlu0 %v4406, 64
    %v4409 = vpop.permute.xlu0 %4408
    %v4411 = vmul.f32 %v4391, %v4409
    %4413 = vrot.lane.b32.xlu0 %v4411, 32
    %v4414 = vpop.permute.xlu0 %4413
    %v4416 = vsel %vm3674, %v4414, 0.0
    %4417 = vadd.xlane.f32.xlu0 %v4416
    %v4418 = vpop.xlane.xlu0 %4417
    %v4419 = vmul.f32 %v4418, 0.03125
    %v4420 = vlaneseq
    %v4421 = vshrl.u32 %v4420, 7
    %v4422 = vsub.s32 0, %v4421
    %v4423 = vrot.slane %v3583, %v4422
    %v4424 = vmul.f32 %v4419, %v4423
    %v4425 = vadd.f32 %v4337, %v4424
    %v4426 = vpack.c.bf16 %v4411, %v4411
    %4428 = vrot.lane.b32.xlu0 %v4426, 32
    %v4429 = vpop.permute.xlu0 %4428
    %v4431 = vsel %vm3601, %v4429, 0
    %4433 = vmatprep.subr.bf16.mxu0 0
    %4434 = vmatpush1.bf16.msra.mxu0 0
    %4435 = vmatprep.subr.bf16.mxu0 0
    %4436 = vmatpush1.bf16.msra.mxu0 0
    %4437 = vmatprep.subr.bf16.mxu0 0
    %4438 = vmatpush1.bf16.msra.mxu0 0
    %4439 = vmatprep.subr.bf16.mxu0 0
    %4440 = vmatpush1.bf16.msra.mxu0 0
    %4441 = vmatprep.subr.bf16.mxu0 0
    %4442 = vmatpush1.bf16.msra.mxu0 0
    %4443 = vmatprep.subr.bf16.mxu0 0
    %4444 = vmatpush1.bf16.msra.mxu0 0
    %4445 = vmatprep.subr.bf16.mxu0 0
    %4446 = vmatpush1.bf16.msra.mxu0 %v3598
    %4447 = vmatprep.subr.bf16.mxu0 0
    %4448 = vmatpush1.bf16.msra.mxu0 %v3597
    %4449 = vmatprep.subr.bf16.mxu0 0
    %4450 = vmatpush2.bf16.msra.mxu0 0
    %4451 = vmatprep.subr.bf16.mxu0 0
    %4452 = vmatpush2.bf16.msra.mxu0 0
    %4453 = vmatprep.subr.bf16.mxu0 0
    %4454 = vmatpush2.bf16.msra.mxu0 0
    %4455 = vmatprep.subr.bf16.mxu0 0
    %4456 = vmatpush2.bf16.msra.mxu0 0
    %4457 = vmatprep.subr.bf16.mxu0 0
    %4458 = vmatpush2.bf16.msra.mxu0 0
    %4459 = vmatprep.subr.bf16.mxu0 0
    %4460 = vmatpush2.bf16.msra.mxu0 0
    %4461 = vmatprep.subr.bf16.mxu0 0
    %4462 = vmatpush2.bf16.msra.mxu0 0
    %4463 = vmatprep.subr.bf16.mxu0 0
    %4464 = vmatpush2.bf16.msra.mxu0 0
    %4465 = vmatprep.mubr.bf16.mxu0 0
    %4466 = vmatmul.mubr.bf16.gmra.mxu0 %v4431
    %v4467 = vpop.f32.mrf.mxu0
    %v4468 = vadd.f32 0.0, %v4467
    %v4469 = vpop.f32.mrf.mxu0
    %v4470 = vpop.f32.mrf.mxu0
    %v4471 = vpop.f32.mrf.mxu0
    %4472 = vdwg.mxu0
    %v4474 = vrot.slane %v4468, 6
    %v4476 = vadd.f32 %v3556, %v4474
    %v4477 = vmul.f32 %v4476, 0.5
    %v4478 = vsel %vm3648, %v4476, %v4477
    %v4479 = vtanh.pop %v4478
    %v4480 = vmul.f32 %v4479, 0.5
    %v4481 = vadd.f32 %v4480, 0.5
    %v4483 = vrot.slane %v4405, 6
    %v4485 = vmul.f32 %v4481, %v4483
    %4487 = vrot.lane.b32.xlu0 %v4479, 64
    %v4488 = vpop.permute.xlu0 %4487
    %v4490 = vmul.f32 %v4481, %v4488
    %4492 = vrot.lane.b32.xlu0 %v4490, 32
    %v4493 = vpop.permute.xlu0 %4492
    %v4495 = vadd.f32 %v4485, %v4493
    %v4496 = vtanh.pop %v4495
    %4498 = vrot.lane.b32.xlu0 %v4496, 64
    %v4499 = vpop.permute.xlu0 %4498
    %v4501 = vmul.f32 %v4481, %v4499
    %4503 = vrot.lane.b32.xlu0 %v4501, 32
    %v4504 = vpop.permute.xlu0 %4503
    %v4506 = vsel %vm3765, %v4504, 0.0
    %4507 = vadd.xlane.f32.xlu0 %v4506
    %v4508 = vpop.xlane.xlu0 %4507
    %v4509 = vmul.f32 %v4508, 0.03125
    %v4510 = vlaneseq
    %v4511 = vshrl.u32 %v4510, 7
    %v4512 = vsub.s32 1, %v4511
    %v4513 = vrot.slane %v3583, %v4512
    %v4514 = vmul.f32 %v4509, %v4513
    %v4516 = vrot.slane %v4514, 2
    %v4518 = vadd.f32 %v4425, %v4516
    %v4519 = vpack.c.bf16 %v4501, %v4501
    %v4521 = vrot.slane %v4519, 1
    %4522 = vrot.lane.b32.xlu0 %v4521, 32
    %v4523 = vpop.permute.xlu0 %4522
    %v4525 = vsel %vm3601, %v4523, 0
    %4527 = vmatprep.subr.bf16.mxu0 0
    %4528 = vmatpush1.bf16.msra.mxu0 0
    %4529 = vmatprep.subr.bf16.mxu0 0
    %4530 = vmatpush1.bf16.msra.mxu0 0
    %4531 = vmatprep.subr.bf16.mxu0 0
    %4532 = vmatpush1.bf16.msra.mxu0 0
    %4533 = vmatprep.subr.bf16.mxu0 0
    %4534 = vmatpush1.bf16.msra.mxu0 0
    %4535 = vmatprep.subr.bf16.mxu0 0
    %4536 = vmatpush1.bf16.msra.mxu0 0
    %4537 = vmatprep.subr.bf16.mxu0 0
    %4538 = vmatpush1.bf16.msra.mxu0 0
    %4539 = vmatprep.subr.bf16.mxu0 0
    %4540 = vmatpush1.bf16.msra.mxu0 %v3598
    %4541 = vmatprep.subr.bf16.mxu0 0
    %4542 = vmatpush1.bf16.msra.mxu0 %v3597
    %4543 = vmatprep.subr.bf16.mxu0 0
    %4544 = vmatpush2.bf16.msra.mxu0 0
    %4545 = vmatprep.subr.bf16.mxu0 0
    %4546 = vmatpush2.bf16.msra.mxu0 0
    %4547 = vmatprep.subr.bf16.mxu0 0
    %4548 = vmatpush2.bf16.msra.mxu0 0
    %4549 = vmatprep.subr.bf16.mxu0 0
    %4550 = vmatpush2.bf16.msra.mxu0 0
    %4551 = vmatprep.subr.bf16.mxu0 0
    %4552 = vmatpush2.bf16.msra.mxu0 0
    %4553 = vmatprep.subr.bf16.mxu0 0
    %4554 = vmatpush2.bf16.msra.mxu0 0
    %4555 = vmatprep.subr.bf16.mxu0 0
    %4556 = vmatpush2.bf16.msra.mxu0 0
    %4557 = vmatprep.subr.bf16.mxu0 0
    %4558 = vmatpush2.bf16.msra.mxu0 0
    %4559 = vmatprep.mubr.bf16.mxu0 0
    %4560 = vmatmul.mubr.bf16.gmra.mxu0 %v4525
    %v4561 = vpop.f32.mrf.mxu0
    %v4562 = vadd.f32 0.0, %v4561
    %v4563 = vpop.f32.mrf.mxu0
    %v4564 = vpop.f32.mrf.mxu0
    %v4565 = vpop.f32.mrf.mxu0
    %4566 = vdwg.mxu0
    %v4568 = vrot.slane %v4562, 4
    %v4570 = vadd.f32 %v3556, %v4568
    %v4571 = vmul.f32 %v4570, 0.5
    %v4572 = vsel %vm3648, %v4570, %v4571
    %v4573 = vtanh.pop %v4572
    %v4574 = vmul.f32 %v4573, 0.5
    %v4575 = vadd.f32 %v4574, 0.5
    %v4577 = vrot.slane %v4495, 6
    %v4579 = vmul.f32 %v4575, %v4577
    %4581 = vrot.lane.b32.xlu0 %v4573, 64
    %v4582 = vpop.permute.xlu0 %4581
    %v4584 = vmul.f32 %v4575, %v4582
    %4586 = vrot.lane.b32.xlu0 %v4584, 32
    %v4587 = vpop.permute.xlu0 %4586
    %v4589 = vadd.f32 %v4579, %v4587
    %v4590 = vtanh.pop %v4589
    %4592 = vrot.lane.b32.xlu0 %v4590, 64
    %v4593 = vpop.permute.xlu0 %4592
    %v4595 = vmul.f32 %v4575, %v4593
    %4597 = vrot.lane.b32.xlu0 %v4595, 32
    %v4598 = vpop.permute.xlu0 %4597
    %v4600 = vsel %vm3860, %v4598, 0.0
    %4601 = vadd.xlane.f32.xlu0 %v4600
    %v4602 = vpop.xlane.xlu0 %4601
    %v4603 = vmul.f32 %v4602, 0.03125
    %v4604 = vlaneseq
    %v4605 = vshrl.u32 %v4604, 7
    %v4606 = vsub.s32 2, %v4605
    %v4607 = vrot.slane %v3583, %v4606
    %v4608 = vmul.f32 %v4603, %v4607
    %v4610 = vrot.slane %v4608, 4
    %v4612 = vadd.f32 %v4518, %v4610
    %v4613 = vpack.c.bf16 %v4595, %v4595
    %v4615 = vrot.slane %v4613, 2
    %4616 = vrot.lane.b32.xlu0 %v4615, 32
    %v4617 = vpop.permute.xlu0 %4616
    %v4619 = vsel %vm3601, %v4617, 0
    %4621 = vmatprep.subr.bf16.mxu0 0
    %4622 = vmatpush1.bf16.msra.mxu0 0
    %4623 = vmatprep.subr.bf16.mxu0 0
    %4624 = vmatpush1.bf16.msra.mxu0 0
    %4625 = vmatprep.subr.bf16.mxu0 0
    %4626 = vmatpush1.bf16.msra.mxu0 0
    %4627 = vmatprep.subr.bf16.mxu0 0
    %4628 = vmatpush1.bf16.msra.mxu0 0
    %4629 = vmatprep.subr.bf16.mxu0 0
    %4630 = vmatpush1.bf16.msra.mxu0 0
    %4631 = vmatprep.subr.bf16.mxu0 0
    %4632 = vmatpush1.bf16.msra.mxu0 0
    %4633 = vmatprep.subr.bf16.mxu0 0
    %4634 = vmatpush1.bf16.msra.mxu0 %v3598
    %4635 = vmatprep.subr.bf16.mxu0 0
    %4636 = vmatpush1.bf16.msra.mxu0 %v3597
    %4637 = vmatprep.subr.bf16.mxu0 0
    %4638 = vmatpush2.bf16.msra.mxu0 0
    %4639 = vmatprep.subr.bf16.mxu0 0
    %4640 = vmatpush2.bf16.msra.mxu0 0
    %4641 = vmatprep.subr.bf16.mxu0 0
    %4642 = vmatpush2.bf16.msra.mxu0 0
    %4643 = vmatprep.subr.bf16.mxu0 0
    %4644 = vmatpush2.bf16.msra.mxu0 0
    %4645 = vmatprep.subr.bf16.mxu0 0
    %4646 = vmatpush2.bf16.msra.mxu0 0
    %4647 = vmatprep.subr.bf16.mxu0 0
    %4648 = vmatpush2.bf16.msra.mxu0 0
    %4649 = vmatprep.subr.bf16.mxu0 0
    %4650 = vmatpush2.bf16.msra.mxu0 0
    %4651 = vmatprep.subr.bf16.mxu0 0
    %4652 = vmatpush2.bf16.msra.mxu0 0
    %4653 = vmatprep.mubr.bf16.mxu0 0
    %4654 = vmatmul.mubr.bf16.gmra.mxu0 %v4619
    %v4655 = vpop.f32.mrf.mxu0
    %v4656 = vadd.f32 0.0, %v4655
    %v4657 = vpop.f32.mrf.mxu0
    %v4658 = vpop.f32.mrf.mxu0
    %v4659 = vpop.f32.mrf.mxu0
    %4660 = vdwg.mxu0
    %v4662 = vrot.slane %v4656, 2
    %v4664 = vadd.f32 %v3556, %v4662
    %v4665 = vmul.f32 %v4664, 0.5
    %v4666 = vsel %vm3648, %v4664, %v4665
    %v4667 = vtanh.pop %v4666
    %v4668 = vmul.f32 %v4667, 0.5
    %v4669 = vadd.f32 %v4668, 0.5
    %v4671 = vrot.slane %v4589, 6
    %v4673 = vmul.f32 %v4669, %v4671
    %4675 = vrot.lane.b32.xlu0 %v4667, 64
    %v4676 = vpop.permute.xlu0 %4675
    %v4678 = vmul.f32 %v4669, %v4676
    %4680 = vrot.lane.b32.xlu0 %v4678, 32
    %v4681 = vpop.permute.xlu0 %4680
    %v4683 = vadd.f32 %v4673, %v4681
    %v4684 = vtanh.pop %v4683
    %4686 = vrot.lane.b32.xlu0 %v4684, 64
    %v4687 = vpop.permute.xlu0 %4686
    %v4689 = vmul.f32 %v4669, %v4687
    %4691 = vrot.lane.b32.xlu0 %v4689, 32
    %v4692 = vpop.permute.xlu0 %4691
    %v4694 = vsel %vm3955, %v4692, 0.0
    %4695 = vadd.xlane.f32.xlu0 %v4694
    %v4696 = vpop.xlane.xlu0 %4695
    %v4697 = vmul.f32 %v4696, 0.03125
    %v4698 = vlaneseq
    %v4699 = vshrl.u32 %v4698, 7
    %v4700 = vsub.s32 3, %v4699
    %v4701 = vrot.slane %v3583, %v4700
    %v4702 = vmul.f32 %v4697, %v4701
    %v4704 = vrot.slane %v4702, 6
    %v4706 = vadd.f32 %v4612, %v4704
    %v4707 = vpack.c.bf16 %v4689, %v4689
    %v4709 = vrot.slane %v4707, 3
    %4710 = vrot.lane.b32.xlu0 %v4709, 32
    %v4711 = vpop.permute.xlu0 %4710
    %v4713 = vsel %vm3601, %v4711, 0
    %4715 = vmatprep.subr.bf16.mxu0 0
    %4716 = vmatpush1.bf16.msra.mxu0 0
    %4717 = vmatprep.subr.bf16.mxu0 0
    %4718 = vmatpush1.bf16.msra.mxu0 0
    %4719 = vmatprep.subr.bf16.mxu0 0
    %4720 = vmatpush1.bf16.msra.mxu0 0
    %4721 = vmatprep.subr.bf16.mxu0 0
    %4722 = vmatpush1.bf16.msra.mxu0 0
    %4723 = vmatprep.subr.bf16.mxu0 0
    %4724 = vmatpush1.bf16.msra.mxu0 0
    %4725 = vmatprep.subr.bf16.mxu0 0
    %4726 = vmatpush1.bf16.msra.mxu0 0
    %4727 = vmatprep.subr.bf16.mxu0 0
    %4728 = vmatpush1.bf16.msra.mxu0 %v3598
    %4729 = vmatprep.subr.bf16.mxu0 0
    %4730 = vmatpush1.bf16.msra.mxu0 %v3597
    %4731 = vmatprep.subr.bf16.mxu0 0
    %4732 = vmatpush2.bf16.msra.mxu0 0
    %4733 = vmatprep.subr.bf16.mxu0 0
    %4734 = vmatpush2.bf16.msra.mxu0 0
    %4735 = vmatprep.subr.bf16.mxu0 0
    %4736 = vmatpush2.bf16.msra.mxu0 0
    %4737 = vmatprep.subr.bf16.mxu0 0
    %4738 = vmatpush2.bf16.msra.mxu0 0
    %4739 = vmatprep.subr.bf16.mxu0 0
    %4740 = vmatpush2.bf16.msra.mxu0 0
    %4741 = vmatprep.subr.bf16.mxu0 0
    %4742 = vmatpush2.bf16.msra.mxu0 0
    %4743 = vmatprep.subr.bf16.mxu0 0
    %4744 = vmatpush2.bf16.msra.mxu0 0
    %4745 = vmatprep.subr.bf16.mxu0 0
    %4746 = vmatpush2.bf16.msra.mxu0 0
    %4747 = vmatprep.mubr.bf16.mxu0 0
    %4748 = vmatmul.mubr.bf16.gmra.mxu0 %v4713
    %v4749 = vpop.f32.mrf.mxu0
    %v4750 = vadd.f32 0.0, %v4749
    %v4751 = vpop.f32.mrf.mxu0
    %v4752 = vpop.f32.mrf.mxu0
    %v4753 = vpop.f32.mrf.mxu0
    %4754 = vdwg.mxu0
    %v4755 = vadd.f32 %v3559, %v4750
    %v4756 = vmul.f32 %v4755, 0.5
    %v4757 = vsel %vm3648, %v4755, %v4756
    %v4758 = vtanh.pop %v4757
    %v4759 = vmul.f32 %v4758, 0.5
    %v4760 = vadd.f32 %v4759, 0.5
    %v4762 = vrot.slane %v4683, 6
    %v4764 = vmul.f32 %v4760, %v4762
    %4766 = vrot.lane.b32.xlu0 %v4758, 64
    %v4767 = vpop.permute.xlu0 %4766
    %v4769 = vmul.f32 %v4760, %v4767
    %4771 = vrot.lane.b32.xlu0 %v4769, 32
    %v4772 = vpop.permute.xlu0 %4771
    %v4774 = vadd.f32 %v4764, %v4772
    %v4775 = vtanh.pop %v4774
    %4777 = vrot.lane.b32.xlu0 %v4775, 64
    %v4778 = vpop.permute.xlu0 %4777
    %v4780 = vmul.f32 %v4760, %v4778
    %4782 = vrot.lane.b32.xlu0 %v4780, 32
    %v4783 = vpop.permute.xlu0 %4782
    %v4785 = vsel %vm3674, %v4783, 0.0
    %4786 = vadd.xlane.f32.xlu0 %v4785
    %v4787 = vpop.xlane.xlu0 %4786
    %v4788 = vmul.f32 %v4787, 0.03125
    %v4789 = vlaneseq
    %v4790 = vshrl.u32 %v4789, 7
    %v4791 = vsub.s32 4, %v4790
    %v4792 = vrot.slane %v3583, %v4791
    %v4793 = vmul.f32 %v4788, %v4792
    %v4794 = vadd.f32 %v4706, %v4793
    %v4795 = vpack.c.bf16 %v4780, %v4780
    %4797 = vrot.lane.b32.xlu0 %v4795, 32
    %v4798 = vpop.permute.xlu0 %4797
    %v4800 = vsel %vm3601, %v4798, 0
    %4802 = vmatprep.subr.bf16.mxu0 0
    %4803 = vmatpush1.bf16.msra.mxu0 0
    %4804 = vmatprep.subr.bf16.mxu0 0
    %4805 = vmatpush1.bf16.msra.mxu0 0
    %4806 = vmatprep.subr.bf16.mxu0 0
    %4807 = vmatpush1.bf16.msra.mxu0 0
    %4808 = vmatprep.subr.bf16.mxu0 0
    %4809 = vmatpush1.bf16.msra.mxu0 0
    %4810 = vmatprep.subr.bf16.mxu0 0
    %4811 = vmatpush1.bf16.msra.mxu0 0
    %4812 = vmatprep.subr.bf16.mxu0 0
    %4813 = vmatpush1.bf16.msra.mxu0 0
    %4814 = vmatprep.subr.bf16.mxu0 0
    %4815 = vmatpush1.bf16.msra.mxu0 %v3598
    %4816 = vmatprep.subr.bf16.mxu0 0
    %4817 = vmatpush1.bf16.msra.mxu0 %v3597
    %4818 = vmatprep.subr.bf16.mxu0 0
    %4819 = vmatpush2.bf16.msra.mxu0 0
    %4820 = vmatprep.subr.bf16.mxu0 0
    %4821 = vmatpush2.bf16.msra.mxu0 0
    %4822 = vmatprep.subr.bf16.mxu0 0
    %4823 = vmatpush2.bf16.msra.mxu0 0
    %4824 = vmatprep.subr.bf16.mxu0 0
    %4825 = vmatpush2.bf16.msra.mxu0 0
    %4826 = vmatprep.subr.bf16.mxu0 0
    %4827 = vmatpush2.bf16.msra.mxu0 0
    %4828 = vmatprep.subr.bf16.mxu0 0
    %4829 = vmatpush2.bf16.msra.mxu0 0
    %4830 = vmatprep.subr.bf16.mxu0 0
    %4831 = vmatpush2.bf16.msra.mxu0 0
    %4832 = vmatprep.subr.bf16.mxu0 0
    %4833 = vmatpush2.bf16.msra.mxu0 0
    %4834 = vmatprep.mubr.bf16.mxu0 0
    %4835 = vmatmul.mubr.bf16.gmra.mxu0 %v4800
    %v4836 = vpop.f32.mrf.mxu0
    %v4837 = vadd.f32 0.0, %v4836
    %v4838 = vpop.f32.mrf.mxu0
    %v4839 = vpop.f32.mrf.mxu0
    %v4840 = vpop.f32.mrf.mxu0
    %4841 = vdwg.mxu0
    %v4843 = vrot.slane %v4837, 6
    %v4845 = vadd.f32 %v3559, %v4843
    %v4846 = vmul.f32 %v4845, 0.5
    %v4847 = vsel %vm3648, %v4845, %v4846
    %v4848 = vtanh.pop %v4847
    %v4849 = vmul.f32 %v4848, 0.5
    %v4850 = vadd.f32 %v4849, 0.5
    %v4852 = vrot.slane %v4774, 6
    %v4854 = vmul.f32 %v4850, %v4852
    %4856 = vrot.lane.b32.xlu0 %v4848, 64
    %v4857 = vpop.permute.xlu0 %4856
    %v4859 = vmul.f32 %v4850, %v4857
    %4861 = vrot.lane.b32.xlu0 %v4859, 32
    %v4862 = vpop.permute.xlu0 %4861
    %v4864 = vadd.f32 %v4854, %v4862
    %v4865 = vtanh.pop %v4864
    %4867 = vrot.lane.b32.xlu0 %v4865, 64
    %v4868 = vpop.permute.xlu0 %4867
    %v4870 = vmul.f32 %v4850, %v4868
    %4872 = vrot.lane.b32.xlu0 %v4870, 32
    %v4873 = vpop.permute.xlu0 %4872
    %v4875 = vsel %vm3765, %v4873, 0.0
    %4876 = vadd.xlane.f32.xlu0 %v4875
    %v4877 = vpop.xlane.xlu0 %4876
    %v4878 = vmul.f32 %v4877, 0.03125
    %v4879 = vlaneseq
    %v4880 = vshrl.u32 %v4879, 7
    %v4881 = vsub.s32 5, %v4880
    %v4882 = vrot.slane %v3583, %v4881
    %v4883 = vmul.f32 %v4878, %v4882
    %v4885 = vrot.slane %v4883, 2
    %v4887 = vadd.f32 %v4794, %v4885
    %v4888 = vpack.c.bf16 %v4870, %v4870
    %v4890 = vrot.slane %v4888, 1
    %4891 = vrot.lane.b32.xlu0 %v4890, 32
    %v4892 = vpop.permute.xlu0 %4891
    %v4894 = vsel %vm3601, %v4892, 0
    %4896 = vmatprep.subr.bf16.mxu0 0
    %4897 = vmatpush1.bf16.msra.mxu0 0
    %4898 = vmatprep.subr.bf16.mxu0 0
    %4899 = vmatpush1.bf16.msra.mxu0 0
    %4900 = vmatprep.subr.bf16.mxu0 0
    %4901 = vmatpush1.bf16.msra.mxu0 0
    %4902 = vmatprep.subr.bf16.mxu0 0
    %4903 = vmatpush1.bf16.msra.mxu0 0
    %4904 = vmatprep.subr.bf16.mxu0 0
    %4905 = vmatpush1.bf16.msra.mxu0 0
    %4906 = vmatprep.subr.bf16.mxu0 0
    %4907 = vmatpush1.bf16.msra.mxu0 0
    %4908 = vmatprep.subr.bf16.mxu0 0
    %4909 = vmatpush1.bf16.msra.mxu0 %v3598
    %4910 = vmatprep.subr.bf16.mxu0 0
    %4911 = vmatpush1.bf16.msra.mxu0 %v3597
    %4912 = vmatprep.subr.bf16.mxu0 0
    %4913 = vmatpush2.bf16.msra.mxu0 0
    %4914 = vmatprep.subr.bf16.mxu0 0
    %4915 = vmatpush2.bf16.msra.mxu0 0
    %4916 = vmatprep.subr.bf16.mxu0 0
    %4917 = vmatpush2.bf16.msra.mxu0 0
    %4918 = vmatprep.subr.bf16.mxu0 0
    %4919 = vmatpush2.bf16.msra.mxu0 0
    %4920 = vmatprep.subr.bf16.mxu0 0
    %4921 = vmatpush2.bf16.msra.mxu0 0
    %4922 = vmatprep.subr.bf16.mxu0 0
    %4923 = vmatpush2.bf16.msra.mxu0 0
    %4924 = vmatprep.subr.bf16.mxu0 0
    %4925 = vmatpush2.bf16.msra.mxu0 0
    %4926 = vmatprep.subr.bf16.mxu0 0
    %4927 = vmatpush2.bf16.msra.mxu0 0
    %4928 = vmatprep.mubr.bf16.mxu0 0
    %4929 = vmatmul.mubr.bf16.gmra.mxu0 %v4894
    %v4930 = vpop.f32.mrf.mxu0
    %v4931 = vadd.f32 0.0, %v4930
    %v4932 = vpop.f32.mrf.mxu0
    %v4933 = vpop.f32.mrf.mxu0
    %v4934 = vpop.f32.mrf.mxu0
    %4935 = vdwg.mxu0
    %v4937 = vrot.slane %v4931, 4
    %v4939 = vadd.f32 %v3559, %v4937
    %v4940 = vmul.f32 %v4939, 0.5
    %v4941 = vsel %vm3648, %v4939, %v4940
    %v4942 = vtanh.pop %v4941
    %v4943 = vmul.f32 %v4942, 0.5
    %v4944 = vadd.f32 %v4943, 0.5
    %v4946 = vrot.slane %v4864, 6
    %v4948 = vmul.f32 %v4944, %v4946
    %4950 = vrot.lane.b32.xlu0 %v4942, 64
    %v4951 = vpop.permute.xlu0 %4950
    %v4953 = vmul.f32 %v4944, %v4951
    %4955 = vrot.lane.b32.xlu0 %v4953, 32
    %v4956 = vpop.permute.xlu0 %4955
    %v4958 = vadd.f32 %v4948, %v4956
    %v4959 = vtanh.pop %v4958
    %4961 = vrot.lane.b32.xlu0 %v4959, 64
    %v4962 = vpop.permute.xlu0 %4961
    %v4964 = vmul.f32 %v4944, %v4962
    %4966 = vrot.lane.b32.xlu0 %v4964, 32
    %v4967 = vpop.permute.xlu0 %4966
    %v4969 = vsel %vm3860, %v4967, 0.0
    %4970 = vadd.xlane.f32.xlu0 %v4969
    %v4971 = vpop.xlane.xlu0 %4970
    %v4972 = vmul.f32 %v4971, 0.03125
    %v4973 = vlaneseq
    %v4974 = vshrl.u32 %v4973, 7
    %v4975 = vsub.s32 6, %v4974
    %v4976 = vrot.slane %v3583, %v4975
    %v4977 = vmul.f32 %v4972, %v4976
    %v4979 = vrot.slane %v4977, 4
    %v4981 = vadd.f32 %v4887, %v4979
    %v4982 = vpack.c.bf16 %v4964, %v4964
    %v4984 = vrot.slane %v4982, 2
    %4985 = vrot.lane.b32.xlu0 %v4984, 32
    %v4986 = vpop.permute.xlu0 %4985
    %v4988 = vsel %vm3601, %v4986, 0
    %4990 = vmatprep.subr.bf16.mxu0 0
    %4991 = vmatpush1.bf16.msra.mxu0 0
    %4992 = vmatprep.subr.bf16.mxu0 0
    %4993 = vmatpush1.bf16.msra.mxu0 0
    %4994 = vmatprep.subr.bf16.mxu0 0
    %4995 = vmatpush1.bf16.msra.mxu0 0
    %4996 = vmatprep.subr.bf16.mxu0 0
    %4997 = vmatpush1.bf16.msra.mxu0 0
    %4998 = vmatprep.subr.bf16.mxu0 0
    %4999 = vmatpush1.bf16.msra.mxu0 0
    %5000 = vmatprep.subr.bf16.mxu0 0
    %5001 = vmatpush1.bf16.msra.mxu0 0
    %5002 = vmatprep.subr.bf16.mxu0 0
    %5003 = vmatpush1.bf16.msra.mxu0 %v3598
    %5004 = vmatprep.subr.bf16.mxu0 0
    %5005 = vmatpush1.bf16.msra.mxu0 %v3597
    %5006 = vmatprep.subr.bf16.mxu0 0
    %5007 = vmatpush2.bf16.msra.mxu0 0
    %5008 = vmatprep.subr.bf16.mxu0 0
    %5009 = vmatpush2.bf16.msra.mxu0 0
    %5010 = vmatprep.subr.bf16.mxu0 0
    %5011 = vmatpush2.bf16.msra.mxu0 0
    %5012 = vmatprep.subr.bf16.mxu0 0
    %5013 = vmatpush2.bf16.msra.mxu0 0
    %5014 = vmatprep.subr.bf16.mxu0 0
    %5015 = vmatpush2.bf16.msra.mxu0 0
    %5016 = vmatprep.subr.bf16.mxu0 0
    %5017 = vmatpush2.bf16.msra.mxu0 0
    %5018 = vmatprep.subr.bf16.mxu0 0
    %5019 = vmatpush2.bf16.msra.mxu0 0
    %5020 = vmatprep.subr.bf16.mxu0 0
    %5021 = vmatpush2.bf16.msra.mxu0 0
    %5022 = vmatprep.mubr.bf16.mxu0 0
    %5023 = vmatmul.mubr.bf16.gmra.mxu0 %v4988
    %v5024 = vpop.f32.mrf.mxu0
    %v5025 = vadd.f32 0.0, %v5024
    %v5026 = vpop.f32.mrf.mxu0
    %v5027 = vpop.f32.mrf.mxu0
    %v5028 = vpop.f32.mrf.mxu0
    %5029 = vdwg.mxu0
    %v5031 = vrot.slane %v5025, 2
    %v5033 = vadd.f32 %v3559, %v5031
    %v5034 = vmul.f32 %v5033, 0.5
    %v5035 = vsel %vm3648, %v5033, %v5034
    %v5036 = vtanh.pop %v5035
    %v5037 = vmul.f32 %v5036, 0.5
    %v5038 = vadd.f32 %v5037, 0.5
    %v5040 = vrot.slane %v4958, 6
    %v5042 = vmul.f32 %v5038, %v5040
    %5044 = vrot.lane.b32.xlu0 %v5036, 64
    %v5045 = vpop.permute.xlu0 %5044
    %v5047 = vmul.f32 %v5038, %v5045
    %5049 = vrot.lane.b32.xlu0 %v5047, 32
    %v5050 = vpop.permute.xlu0 %5049
    %v5052 = vadd.f32 %v5042, %v5050
    %v5053 = vtanh.pop %v5052
    %5055 = vrot.lane.b32.xlu0 %v5053, 64
    %v5056 = vpop.permute.xlu0 %5055
    %v5058 = vmul.f32 %v5038, %v5056
    %5060 = vrot.lane.b32.xlu0 %v5058, 32
    %v5061 = vpop.permute.xlu0 %5060
    %v5063 = vsel %vm3955, %v5061, 0.0
    %5064 = vadd.xlane.f32.xlu0 %v5063
    %v5065 = vpop.xlane.xlu0 %5064
    %v5066 = vmul.f32 %v5065, 0.03125
    %v5067 = vlaneseq
    %v5068 = vshrl.u32 %v5067, 7
    %v5069 = vsub.s32 7, %v5068
    %v5070 = vrot.slane %v3583, %v5069
    %v5071 = vmul.f32 %v5066, %v5070
    %v5073 = vrot.slane %v5071, 6
    %v5075 = vadd.f32 %v4981, %v5073
    %v5076 = vpack.c.bf16 %v5058, %v5058
    %v5078 = vrot.slane %v5076, 3
    %5079 = vrot.lane.b32.xlu0 %v5078, 32
    %v5080 = vpop.permute.xlu0 %5079
    %v5082 = vsel %vm3601, %v5080, 0
    %5084 = vmatprep.subr.bf16.mxu0 0
    %5085 = vmatpush1.bf16.msra.mxu0 0
    %5086 = vmatprep.subr.bf16.mxu0 0
    %5087 = vmatpush1.bf16.msra.mxu0 0
    %5088 = vmatprep.subr.bf16.mxu0 0
    %5089 = vmatpush1.bf16.msra.mxu0 0
    %5090 = vmatprep.subr.bf16.mxu0 0
    %5091 = vmatpush1.bf16.msra.mxu0 0
    %5092 = vmatprep.subr.bf16.mxu0 0
    %5093 = vmatpush1.bf16.msra.mxu0 0
    %5094 = vmatprep.subr.bf16.mxu0 0
    %5095 = vmatpush1.bf16.msra.mxu0 0
    %5096 = vmatprep.subr.bf16.mxu0 0
    %5097 = vmatpush1.bf16.msra.mxu0 %v3598
    %5098 = vmatprep.subr.bf16.mxu0 0
    %5099 = vmatpush1.bf16.msra.mxu0 %v3597
    %5100 = vmatprep.subr.bf16.mxu0 0
    %5101 = vmatpush2.bf16.msra.mxu0 0
    %5102 = vmatprep.subr.bf16.mxu0 0
    %5103 = vmatpush2.bf16.msra.mxu0 0
    %5104 = vmatprep.subr.bf16.mxu0 0
    %5105 = vmatpush2.bf16.msra.mxu0 0
    %5106 = vmatprep.subr.bf16.mxu0 0
    %5107 = vmatpush2.bf16.msra.mxu0 0
    %5108 = vmatprep.subr.bf16.mxu0 0
    %5109 = vmatpush2.bf16.msra.mxu0 0
    %5110 = vmatprep.subr.bf16.mxu0 0
    %5111 = vmatpush2.bf16.msra.mxu0 0
    %5112 = vmatprep.subr.bf16.mxu0 0
    %5113 = vmatpush2.bf16.msra.mxu0 0
    %5114 = vmatprep.subr.bf16.mxu0 0
    %5115 = vmatpush2.bf16.msra.mxu0 0
    %5116 = vmatprep.mubr.bf16.mxu0 0
    %5117 = vmatmul.mubr.bf16.gmra.mxu0 %v5082
    %v5118 = vpop.f32.mrf.mxu0
    %v5119 = vadd.f32 0.0, %v5118
    %v5120 = vpop.f32.mrf.mxu0
    %v5121 = vpop.f32.mrf.mxu0
    %v5122 = vpop.f32.mrf.mxu0
    %5123 = vdwg.mxu0
    %v5124 = vadd.f32 %v3564, %v5119
    %v5125 = vmul.f32 %v5124, 0.5
    %v5126 = vsel %vm3648, %v5124, %v5125
    %v5127 = vtanh.pop %v5126
    %v5128 = vmul.f32 %v5127, 0.5
    %v5129 = vadd.f32 %v5128, 0.5
    %v5131 = vrot.slane %v5052, 6
    %v5133 = vmul.f32 %v5129, %v5131
    %5135 = vrot.lane.b32.xlu0 %v5127, 64
    %v5136 = vpop.permute.xlu0 %5135
    %v5138 = vmul.f32 %v5129, %v5136
    %5140 = vrot.lane.b32.xlu0 %v5138, 32
    %v5141 = vpop.permute.xlu0 %5140
    %v5143 = vadd.f32 %v5133, %v5141
    %v5144 = vtanh.pop %v5143
    %5146 = vrot.lane.b32.xlu0 %v5144, 64
    %v5147 = vpop.permute.xlu0 %5146
    %v5149 = vmul.f32 %v5129, %v5147
    %5151 = vrot.lane.b32.xlu0 %v5149, 32
    %v5152 = vpop.permute.xlu0 %5151
    %v5154 = vsel %vm3674, %v5152, 0.0
    %5155 = vadd.xlane.f32.xlu0 %v5154
    %v5156 = vpop.xlane.xlu0 %5155
    %v5157 = vmul.f32 %v5156, 0.03125
    %v5158 = vlaneseq
    %v5159 = vshrl.u32 %v5158, 7
    %v5160 = vsub.s32 0, %v5159
    %v5161 = vrot.slane %v3584, %v5160
    %v5162 = vmul.f32 %v5157, %v5161
    %v5163 = vadd.f32 %v5075, %v5162
    %v5164 = vpack.c.bf16 %v5149, %v5149
    %5166 = vrot.lane.b32.xlu0 %v5164, 32
    %v5167 = vpop.permute.xlu0 %5166
    %v5169 = vsel %vm3601, %v5167, 0
    %5171 = vmatprep.subr.bf16.mxu0 0
    %5172 = vmatpush1.bf16.msra.mxu0 0
    %5173 = vmatprep.subr.bf16.mxu0 0
    %5174 = vmatpush1.bf16.msra.mxu0 0
    %5175 = vmatprep.subr.bf16.mxu0 0
    %5176 = vmatpush1.bf16.msra.mxu0 0
    %5177 = vmatprep.subr.bf16.mxu0 0
    %5178 = vmatpush1.bf16.msra.mxu0 0
    %5179 = vmatprep.subr.bf16.mxu0 0
    %5180 = vmatpush1.bf16.msra.mxu0 0
    %5181 = vmatprep.subr.bf16.mxu0 0
    %5182 = vmatpush1.bf16.msra.mxu0 0
    %5183 = vmatprep.subr.bf16.mxu0 0
    %5184 = vmatpush1.bf16.msra.mxu0 %v3598
    %5185 = vmatprep.subr.bf16.mxu0 0
    %5186 = vmatpush1.bf16.msra.mxu0 %v3597
    %5187 = vmatprep.subr.bf16.mxu0 0
    %5188 = vmatpush2.bf16.msra.mxu0 0
    %5189 = vmatprep.subr.bf16.mxu0 0
    %5190 = vmatpush2.bf16.msra.mxu0 0
    %5191 = vmatprep.subr.bf16.mxu0 0
    %5192 = vmatpush2.bf16.msra.mxu0 0
    %5193 = vmatprep.subr.bf16.mxu0 0
    %5194 = vmatpush2.bf16.msra.mxu0 0
    %5195 = vmatprep.subr.bf16.mxu0 0
    %5196 = vmatpush2.bf16.msra.mxu0 0
    %5197 = vmatprep.subr.bf16.mxu0 0
    %5198 = vmatpush2.bf16.msra.mxu0 0
    %5199 = vmatprep.subr.bf16.mxu0 0
    %5200 = vmatpush2.bf16.msra.mxu0 0
    %5201 = vmatprep.subr.bf16.mxu0 0
    %5202 = vmatpush2.bf16.msra.mxu0 0
    %5203 = vmatprep.mubr.bf16.mxu0 0
    %5204 = vmatmul.mubr.bf16.gmra.mxu0 %v5169
    %v5205 = vpop.f32.mrf.mxu0
    %v5206 = vadd.f32 0.0, %v5205
    %v5207 = vpop.f32.mrf.mxu0
    %v5208 = vpop.f32.mrf.mxu0
    %v5209 = vpop.f32.mrf.mxu0
    %5210 = vdwg.mxu0
    %v5212 = vrot.slane %v5206, 6
    %v5214 = vadd.f32 %v3564, %v5212
    %v5215 = vmul.f32 %v5214, 0.5
    %v5216 = vsel %vm3648, %v5214, %v5215
    %v5217 = vtanh.pop %v5216
    %v5218 = vmul.f32 %v5217, 0.5
    %v5219 = vadd.f32 %v5218, 0.5
    %v5221 = vrot.slane %v5143, 6
    %v5223 = vmul.f32 %v5219, %v5221
    %5225 = vrot.lane.b32.xlu0 %v5217, 64
    %v5226 = vpop.permute.xlu0 %5225
    %v5228 = vmul.f32 %v5219, %v5226
    %5230 = vrot.lane.b32.xlu0 %v5228, 32
    %v5231 = vpop.permute.xlu0 %5230
    %v5233 = vadd.f32 %v5223, %v5231
    %v5234 = vtanh.pop %v5233
    %5236 = vrot.lane.b32.xlu0 %v5234, 64
    %v5237 = vpop.permute.xlu0 %5236
    %v5239 = vmul.f32 %v5219, %v5237
    %5241 = vrot.lane.b32.xlu0 %v5239, 32
    %v5242 = vpop.permute.xlu0 %5241
    %v5244 = vsel %vm3765, %v5242, 0.0
    %5245 = vadd.xlane.f32.xlu0 %v5244
    %v5246 = vpop.xlane.xlu0 %5245
    %v5247 = vmul.f32 %v5246, 0.03125
    %v5248 = vlaneseq
    %v5249 = vshrl.u32 %v5248, 7
    %v5250 = vsub.s32 1, %v5249
    %v5251 = vrot.slane %v3584, %v5250
    %v5252 = vmul.f32 %v5247, %v5251
    %v5254 = vrot.slane %v5252, 2
    %v5256 = vadd.f32 %v5163, %v5254
    %v5257 = vpack.c.bf16 %v5239, %v5239
    %v5259 = vrot.slane %v5257, 1
    %5260 = vrot.lane.b32.xlu0 %v5259, 32
    %v5261 = vpop.permute.xlu0 %5260
    %v5263 = vsel %vm3601, %v5261, 0
    %5265 = vmatprep.subr.bf16.mxu0 0
    %5266 = vmatpush1.bf16.msra.mxu0 0
    %5267 = vmatprep.subr.bf16.mxu0 0
    %5268 = vmatpush1.bf16.msra.mxu0 0
    %5269 = vmatprep.subr.bf16.mxu0 0
    %5270 = vmatpush1.bf16.msra.mxu0 0
    %5271 = vmatprep.subr.bf16.mxu0 0
    %5272 = vmatpush1.bf16.msra.mxu0 0
    %5273 = vmatprep.subr.bf16.mxu0 0
    %5274 = vmatpush1.bf16.msra.mxu0 0
    %5275 = vmatprep.subr.bf16.mxu0 0
    %5276 = vmatpush1.bf16.msra.mxu0 0
    %5277 = vmatprep.subr.bf16.mxu0 0
    %5278 = vmatpush1.bf16.msra.mxu0 %v3598
    %5279 = vmatprep.subr.bf16.mxu0 0
    %5280 = vmatpush1.bf16.msra.mxu0 %v3597
    %5281 = vmatprep.subr.bf16.mxu0 0
    %5282 = vmatpush2.bf16.msra.mxu0 0
    %5283 = vmatprep.subr.bf16.mxu0 0
    %5284 = vmatpush2.bf16.msra.mxu0 0
    %5285 = vmatprep.subr.bf16.mxu0 0
    %5286 = vmatpush2.bf16.msra.mxu0 0
    %5287 = vmatprep.subr.bf16.mxu0 0
    %5288 = vmatpush2.bf16.msra.mxu0 0
    %5289 = vmatprep.subr.bf16.mxu0 0
    %5290 = vmatpush2.bf16.msra.mxu0 0
    %5291 = vmatprep.subr.bf16.mxu0 0
    %5292 = vmatpush2.bf16.msra.mxu0 0
    %5293 = vmatprep.subr.bf16.mxu0 0
    %5294 = vmatpush2.bf16.msra.mxu0 0
    %5295 = vmatprep.subr.bf16.mxu0 0
    %5296 = vmatpush2.bf16.msra.mxu0 0
    %5297 = vmatprep.mubr.bf16.mxu0 0
    %5298 = vmatmul.mubr.bf16.gmra.mxu0 %v5263
    %v5299 = vpop.f32.mrf.mxu0
    %v5300 = vadd.f32 0.0, %v5299
    %v5301 = vpop.f32.mrf.mxu0
    %v5302 = vpop.f32.mrf.mxu0
    %v5303 = vpop.f32.mrf.mxu0
    %5304 = vdwg.mxu0
    %v5306 = vrot.slane %v5300, 4
    %v5308 = vadd.f32 %v3564, %v5306
    %v5309 = vmul.f32 %v5308, 0.5
    %v5310 = vsel %vm3648, %v5308, %v5309
    %v5311 = vtanh.pop %v5310
    %v5312 = vmul.f32 %v5311, 0.5
    %v5313 = vadd.f32 %v5312, 0.5
    %v5315 = vrot.slane %v5233, 6
    %v5317 = vmul.f32 %v5313, %v5315
    %5319 = vrot.lane.b32.xlu0 %v5311, 64
    %v5320 = vpop.permute.xlu0 %5319
    %v5322 = vmul.f32 %v5313, %v5320
    %5324 = vrot.lane.b32.xlu0 %v5322, 32
    %v5325 = vpop.permute.xlu0 %5324
    %v5327 = vadd.f32 %v5317, %v5325
    %v5328 = vtanh.pop %v5327
    %5330 = vrot.lane.b32.xlu0 %v5328, 64
    %v5331 = vpop.permute.xlu0 %5330
    %v5333 = vmul.f32 %v5313, %v5331
    %5335 = vrot.lane.b32.xlu0 %v5333, 32
    %v5336 = vpop.permute.xlu0 %5335
    %v5338 = vsel %vm3860, %v5336, 0.0
    %5339 = vadd.xlane.f32.xlu0 %v5338
    %v5340 = vpop.xlane.xlu0 %5339
    %v5341 = vmul.f32 %v5340, 0.03125
    %v5342 = vlaneseq
    %v5343 = vshrl.u32 %v5342, 7
    %v5344 = vsub.s32 2, %v5343
    %v5345 = vrot.slane %v3584, %v5344
    %v5346 = vmul.f32 %v5341, %v5345
    %v5348 = vrot.slane %v5346, 4
    %v5350 = vadd.f32 %v5256, %v5348
    %v5351 = vpack.c.bf16 %v5333, %v5333
    %v5353 = vrot.slane %v5351, 2
    %5354 = vrot.lane.b32.xlu0 %v5353, 32
    %v5355 = vpop.permute.xlu0 %5354
    %v5357 = vsel %vm3601, %v5355, 0
    %5359 = vmatprep.subr.bf16.mxu0 0
    %5360 = vmatpush1.bf16.msra.mxu0 0
    %5361 = vmatprep.subr.bf16.mxu0 0
    %5362 = vmatpush1.bf16.msra.mxu0 0
    %5363 = vmatprep.subr.bf16.mxu0 0
    %5364 = vmatpush1.bf16.msra.mxu0 0
    %5365 = vmatprep.subr.bf16.mxu0 0
    %5366 = vmatpush1.bf16.msra.mxu0 0
    %5367 = vmatprep.subr.bf16.mxu0 0
    %5368 = vmatpush1.bf16.msra.mxu0 0
    %5369 = vmatprep.subr.bf16.mxu0 0
    %5370 = vmatpush1.bf16.msra.mxu0 0
    %5371 = vmatprep.subr.bf16.mxu0 0
    %5372 = vmatpush1.bf16.msra.mxu0 %v3598
    %5373 = vmatprep.subr.bf16.mxu0 0
    %5374 = vmatpush1.bf16.msra.mxu0 %v3597
    %5375 = vmatprep.subr.bf16.mxu0 0
    %5376 = vmatpush2.bf16.msra.mxu0 0
    %5377 = vmatprep.subr.bf16.mxu0 0
    %5378 = vmatpush2.bf16.msra.mxu0 0
    %5379 = vmatprep.subr.bf16.mxu0 0
    %5380 = vmatpush2.bf16.msra.mxu0 0
    %5381 = vmatprep.subr.bf16.mxu0 0
    %5382 = vmatpush2.bf16.msra.mxu0 0
    %5383 = vmatprep.subr.bf16.mxu0 0
    %5384 = vmatpush2.bf16.msra.mxu0 0
    %5385 = vmatprep.subr.bf16.mxu0 0
    %5386 = vmatpush2.bf16.msra.mxu0 0
    %5387 = vmatprep.subr.bf16.mxu0 0
    %5388 = vmatpush2.bf16.msra.mxu0 0
    %5389 = vmatprep.subr.bf16.mxu0 0
    %5390 = vmatpush2.bf16.msra.mxu0 0
    %5391 = vmatprep.mubr.bf16.mxu0 0
    %5392 = vmatmul.mubr.bf16.gmra.mxu0 %v5357
    %v5393 = vpop.f32.mrf.mxu0
    %v5394 = vadd.f32 0.0, %v5393
    %v5395 = vpop.f32.mrf.mxu0
    %v5396 = vpop.f32.mrf.mxu0
    %v5397 = vpop.f32.mrf.mxu0
    %5398 = vdwg.mxu0
    %v5400 = vrot.slane %v5394, 2
    %v5402 = vadd.f32 %v3564, %v5400
    %v5403 = vmul.f32 %v5402, 0.5
    %v5404 = vsel %vm3648, %v5402, %v5403
    %v5405 = vtanh.pop %v5404
    %v5406 = vmul.f32 %v5405, 0.5
    %v5407 = vadd.f32 %v5406, 0.5
    %v5409 = vrot.slane %v5327, 6
    %v5411 = vmul.f32 %v5407, %v5409
    %5413 = vrot.lane.b32.xlu0 %v5405, 64
    %v5414 = vpop.permute.xlu0 %5413
    %v5416 = vmul.f32 %v5407, %v5414
    %5418 = vrot.lane.b32.xlu0 %v5416, 32
    %v5419 = vpop.permute.xlu0 %5418
    %v5421 = vadd.f32 %v5411, %v5419
    %v5422 = vtanh.pop %v5421
    %5424 = vrot.lane.b32.xlu0 %v5422, 64
    %v5425 = vpop.permute.xlu0 %5424
    %v5427 = vmul.f32 %v5407, %v5425
    %5429 = vrot.lane.b32.xlu0 %v5427, 32
    %v5430 = vpop.permute.xlu0 %5429
    %v5432 = vsel %vm3955, %v5430, 0.0
    %5433 = vadd.xlane.f32.xlu0 %v5432
    %v5434 = vpop.xlane.xlu0 %5433
    %v5435 = vmul.f32 %v5434, 0.03125
    %v5436 = vlaneseq
    %v5437 = vshrl.u32 %v5436, 7
    %v5438 = vsub.s32 3, %v5437
    %v5439 = vrot.slane %v3584, %v5438
    %v5440 = vmul.f32 %v5435, %v5439
    %v5442 = vrot.slane %v5440, 6
    %v5444 = vadd.f32 %v5350, %v5442
    %v5445 = vpack.c.bf16 %v5427, %v5427
    %v5447 = vrot.slane %v5445, 3
    %5448 = vrot.lane.b32.xlu0 %v5447, 32
    %v5449 = vpop.permute.xlu0 %5448
    %v5451 = vsel %vm3601, %v5449, 0
    %5453 = vmatprep.subr.bf16.mxu0 0
    %5454 = vmatpush1.bf16.msra.mxu0 0
    %5455 = vmatprep.subr.bf16.mxu0 0
    %5456 = vmatpush1.bf16.msra.mxu0 0
    %5457 = vmatprep.subr.bf16.mxu0 0
    %5458 = vmatpush1.bf16.msra.mxu0 0
    %5459 = vmatprep.subr.bf16.mxu0 0
    %5460 = vmatpush1.bf16.msra.mxu0 0
    %5461 = vmatprep.subr.bf16.mxu0 0
    %5462 = vmatpush1.bf16.msra.mxu0 0
    %5463 = vmatprep.subr.bf16.mxu0 0
    %5464 = vmatpush1.bf16.msra.mxu0 0
    %5465 = vmatprep.subr.bf16.mxu0 0
    %5466 = vmatpush1.bf16.msra.mxu0 %v3598
    %5467 = vmatprep.subr.bf16.mxu0 0
    %5468 = vmatpush1.bf16.msra.mxu0 %v3597
    %5469 = vmatprep.subr.bf16.mxu0 0
    %5470 = vmatpush2.bf16.msra.mxu0 0
    %5471 = vmatprep.subr.bf16.mxu0 0
    %5472 = vmatpush2.bf16.msra.mxu0 0
    %5473 = vmatprep.subr.bf16.mxu0 0
    %5474 = vmatpush2.bf16.msra.mxu0 0
    %5475 = vmatprep.subr.bf16.mxu0 0
    %5476 = vmatpush2.bf16.msra.mxu0 0
    %5477 = vmatprep.subr.bf16.mxu0 0
    %5478 = vmatpush2.bf16.msra.mxu0 0
    %5479 = vmatprep.subr.bf16.mxu0 0
    %5480 = vmatpush2.bf16.msra.mxu0 0
    %5481 = vmatprep.subr.bf16.mxu0 0
    %5482 = vmatpush2.bf16.msra.mxu0 0
    %5483 = vmatprep.subr.bf16.mxu0 0
    %5484 = vmatpush2.bf16.msra.mxu0 0
    %5485 = vmatprep.mubr.bf16.mxu0 0
    %5486 = vmatmul.mubr.bf16.gmra.mxu0 %v5451
    %v5487 = vpop.f32.mrf.mxu0
    %v5488 = vadd.f32 0.0, %v5487
    %v5489 = vpop.f32.mrf.mxu0
    %v5490 = vpop.f32.mrf.mxu0
    %v5491 = vpop.f32.mrf.mxu0
    %5492 = vdwg.mxu0
    %v5493 = vadd.f32 %v3567, %v5488
    %v5494 = vmul.f32 %v5493, 0.5
    %v5495 = vsel %vm3648, %v5493, %v5494
    %v5496 = vtanh.pop %v5495
    %v5497 = vmul.f32 %v5496, 0.5
    %v5498 = vadd.f32 %v5497, 0.5
    %v5500 = vrot.slane %v5421, 6
    %v5502 = vmul.f32 %v5498, %v5500
    %5504 = vrot.lane.b32.xlu0 %v5496, 64
    %v5505 = vpop.permute.xlu0 %5504
    %v5507 = vmul.f32 %v5498, %v5505
    %5509 = vrot.lane.b32.xlu0 %v5507, 32
    %v5510 = vpop.permute.xlu0 %5509
    %v5512 = vadd.f32 %v5502, %v5510
    %v5513 = vtanh.pop %v5512
    %5515 = vrot.lane.b32.xlu0 %v5513, 64
    %v5516 = vpop.permute.xlu0 %5515
    %v5518 = vmul.f32 %v5498, %v5516
    %5520 = vrot.lane.b32.xlu0 %v5518, 32
    %v5521 = vpop.permute.xlu0 %5520
    %v5523 = vsel %vm3674, %v5521, 0.0
    %5524 = vadd.xlane.f32.xlu0 %v5523
    %v5525 = vpop.xlane.xlu0 %5524
    %v5526 = vmul.f32 %v5525, 0.03125
    %v5527 = vlaneseq
    %v5528 = vshrl.u32 %v5527, 7
    %v5529 = vsub.s32 4, %v5528
    %v5530 = vrot.slane %v3584, %v5529
    %v5531 = vmul.f32 %v5526, %v5530
    %v5532 = vadd.f32 %v5444, %v5531
    %v5533 = vpack.c.bf16 %v5518, %v5518
    %5535 = vrot.lane.b32.xlu0 %v5533, 32
    %v5536 = vpop.permute.xlu0 %5535
    %v5538 = vsel %vm3601, %v5536, 0
    %5540 = vmatprep.subr.bf16.mxu0 0
    %5541 = vmatpush1.bf16.msra.mxu0 0
    %5542 = vmatprep.subr.bf16.mxu0 0
    %5543 = vmatpush1.bf16.msra.mxu0 0
    %5544 = vmatprep.subr.bf16.mxu0 0
    %5545 = vmatpush1.bf16.msra.mxu0 0
    %5546 = vmatprep.subr.bf16.mxu0 0
    %5547 = vmatpush1.bf16.msra.mxu0 0
    %5548 = vmatprep.subr.bf16.mxu0 0
    %5549 = vmatpush1.bf16.msra.mxu0 0
    %5550 = vmatprep.subr.bf16.mxu0 0
    %5551 = vmatpush1.bf16.msra.mxu0 0
    %5552 = vmatprep.subr.bf16.mxu0 0
    %5553 = vmatpush1.bf16.msra.mxu0 %v3598
    %5554 = vmatprep.subr.bf16.mxu0 0
    %5555 = vmatpush1.bf16.msra.mxu0 %v3597
    %5556 = vmatprep.subr.bf16.mxu0 0
    %5557 = vmatpush2.bf16.msra.mxu0 0
    %5558 = vmatprep.subr.bf16.mxu0 0
    %5559 = vmatpush2.bf16.msra.mxu0 0
    %5560 = vmatprep.subr.bf16.mxu0 0
    %5561 = vmatpush2.bf16.msra.mxu0 0
    %5562 = vmatprep.subr.bf16.mxu0 0
    %5563 = vmatpush2.bf16.msra.mxu0 0
    %5564 = vmatprep.subr.bf16.mxu0 0
    %5565 = vmatpush2.bf16.msra.mxu0 0
    %5566 = vmatprep.subr.bf16.mxu0 0
    %5567 = vmatpush2.bf16.msra.mxu0 0
    %5568 = vmatprep.subr.bf16.mxu0 0
    %5569 = vmatpush2.bf16.msra.mxu0 0
    %5570 = vmatprep.subr.bf16.mxu0 0
    %5571 = vmatpush2.bf16.msra.mxu0 0
    %5572 = vmatprep.mubr.bf16.mxu0 0
    %5573 = vmatmul.mubr.bf16.gmra.mxu0 %v5538
    %v5574 = vpop.f32.mrf.mxu0
    %v5575 = vadd.f32 0.0, %v5574
    %v5576 = vpop.f32.mrf.mxu0
    %v5577 = vpop.f32.mrf.mxu0
    %v5578 = vpop.f32.mrf.mxu0
    %5579 = vdwg.mxu0
    %v5581 = vrot.slane %v5575, 6
    %v5583 = vadd.f32 %v3567, %v5581
    %v5584 = vmul.f32 %v5583, 0.5
    %v5585 = vsel %vm3648, %v5583, %v5584
    %v5586 = vtanh.pop %v5585
    %v5587 = vmul.f32 %v5586, 0.5
    %v5588 = vadd.f32 %v5587, 0.5
    %v5590 = vrot.slane %v5512, 6
    %v5592 = vmul.f32 %v5588, %v5590
    %5594 = vrot.lane.b32.xlu0 %v5586, 64
    %v5595 = vpop.permute.xlu0 %5594
    %v5597 = vmul.f32 %v5588, %v5595
    %5599 = vrot.lane.b32.xlu0 %v5597, 32
    %v5600 = vpop.permute.xlu0 %5599
    %v5602 = vadd.f32 %v5592, %v5600
    %v5603 = vtanh.pop %v5602
    %5605 = vrot.lane.b32.xlu0 %v5603, 64
    %v5606 = vpop.permute.xlu0 %5605
    %v5608 = vmul.f32 %v5588, %v5606
    %5610 = vrot.lane.b32.xlu0 %v5608, 32
    %v5611 = vpop.permute.xlu0 %5610
    %v5613 = vsel %vm3765, %v5611, 0.0
    %5614 = vadd.xlane.f32.xlu0 %v5613
    %v5615 = vpop.xlane.xlu0 %5614
    %v5616 = vmul.f32 %v5615, 0.03125
    %v5617 = vlaneseq
    %v5618 = vshrl.u32 %v5617, 7
    %v5619 = vsub.s32 5, %v5618
    %v5620 = vrot.slane %v3584, %v5619
    %v5621 = vmul.f32 %v5616, %v5620
    %v5623 = vrot.slane %v5621, 2
    %v5625 = vadd.f32 %v5532, %v5623
    %v5626 = vpack.c.bf16 %v5608, %v5608
    %v5628 = vrot.slane %v5626, 1
    %5629 = vrot.lane.b32.xlu0 %v5628, 32
    %v5630 = vpop.permute.xlu0 %5629
    %v5632 = vsel %vm3601, %v5630, 0
    %5634 = vmatprep.subr.bf16.mxu0 0
    %5635 = vmatpush1.bf16.msra.mxu0 0
    %5636 = vmatprep.subr.bf16.mxu0 0
    %5637 = vmatpush1.bf16.msra.mxu0 0
    %5638 = vmatprep.subr.bf16.mxu0 0
    %5639 = vmatpush1.bf16.msra.mxu0 0
    %5640 = vmatprep.subr.bf16.mxu0 0
    %5641 = vmatpush1.bf16.msra.mxu0 0
    %5642 = vmatprep.subr.bf16.mxu0 0
    %5643 = vmatpush1.bf16.msra.mxu0 0
    %5644 = vmatprep.subr.bf16.mxu0 0
    %5645 = vmatpush1.bf16.msra.mxu0 0
    %5646 = vmatprep.subr.bf16.mxu0 0
    %5647 = vmatpush1.bf16.msra.mxu0 %v3598
    %5648 = vmatprep.subr.bf16.mxu0 0
    %5649 = vmatpush1.bf16.msra.mxu0 %v3597
    %5650 = vmatprep.subr.bf16.mxu0 0
    %5651 = vmatpush2.bf16.msra.mxu0 0
    %5652 = vmatprep.subr.bf16.mxu0 0
    %5653 = vmatpush2.bf16.msra.mxu0 0
    %5654 = vmatprep.subr.bf16.mxu0 0
    %5655 = vmatpush2.bf16.msra.mxu0 0
    %5656 = vmatprep.subr.bf16.mxu0 0
    %5657 = vmatpush2.bf16.msra.mxu0 0
    %5658 = vmatprep.subr.bf16.mxu0 0
    %5659 = vmatpush2.bf16.msra.mxu0 0
    %5660 = vmatprep.subr.bf16.mxu0 0
    %5661 = vmatpush2.bf16.msra.mxu0 0
    %5662 = vmatprep.subr.bf16.mxu0 0
    %5663 = vmatpush2.bf16.msra.mxu0 0
    %5664 = vmatprep.subr.bf16.mxu0 0
    %5665 = vmatpush2.bf16.msra.mxu0 0
    %5666 = vmatprep.mubr.bf16.mxu0 0
    %5667 = vmatmul.mubr.bf16.gmra.mxu0 %v5632
    %v5668 = vpop.f32.mrf.mxu0
    %v5669 = vadd.f32 0.0, %v5668
    %v5670 = vpop.f32.mrf.mxu0
    %v5671 = vpop.f32.mrf.mxu0
    %v5672 = vpop.f32.mrf.mxu0
    %5673 = vdwg.mxu0
    %v5675 = vrot.slane %v5669, 4
    %v5677 = vadd.f32 %v3567, %v5675
    %v5678 = vmul.f32 %v5677, 0.5
    %v5679 = vsel %vm3648, %v5677, %v5678
    %v5680 = vtanh.pop %v5679
    %v5681 = vmul.f32 %v5680, 0.5
    %v5682 = vadd.f32 %v5681, 0.5
    %v5684 = vrot.slane %v5602, 6
    %v5686 = vmul.f32 %v5682, %v5684
    %5688 = vrot.lane.b32.xlu0 %v5680, 64
    %v5689 = vpop.permute.xlu0 %5688
    %v5691 = vmul.f32 %v5682, %v5689
    %5693 = vrot.lane.b32.xlu0 %v5691, 32
    %v5694 = vpop.permute.xlu0 %5693
    %v5696 = vadd.f32 %v5686, %v5694
    %v5697 = vtanh.pop %v5696
    %5699 = vrot.lane.b32.xlu0 %v5697, 64
    %v5700 = vpop.permute.xlu0 %5699
    %v5702 = vmul.f32 %v5682, %v5700
    %5704 = vrot.lane.b32.xlu0 %v5702, 32
    %v5705 = vpop.permute.xlu0 %5704
    %v5707 = vsel %vm3860, %v5705, 0.0
    %5708 = vadd.xlane.f32.xlu0 %v5707
    %v5709 = vpop.xlane.xlu0 %5708
    %v5710 = vmul.f32 %v5709, 0.03125
    %v5711 = vlaneseq
    %v5712 = vshrl.u32 %v5711, 7
    %v5713 = vsub.s32 6, %v5712
    %v5714 = vrot.slane %v3584, %v5713
    %v5715 = vmul.f32 %v5710, %v5714
    %v5717 = vrot.slane %v5715, 4
    %v5719 = vadd.f32 %v5625, %v5717
    %v5720 = vpack.c.bf16 %v5702, %v5702
    %v5722 = vrot.slane %v5720, 2
    %5723 = vrot.lane.b32.xlu0 %v5722, 32
    %v5724 = vpop.permute.xlu0 %5723
    %v5726 = vsel %vm3601, %v5724, 0
    %5728 = vmatprep.subr.bf16.mxu0 0
    %5729 = vmatpush1.bf16.msra.mxu0 0
    %5730 = vmatprep.subr.bf16.mxu0 0
    %5731 = vmatpush1.bf16.msra.mxu0 0
    %5732 = vmatprep.subr.bf16.mxu0 0
    %5733 = vmatpush1.bf16.msra.mxu0 0
    %5734 = vmatprep.subr.bf16.mxu0 0
    %5735 = vmatpush1.bf16.msra.mxu0 0
    %5736 = vmatprep.subr.bf16.mxu0 0
    %5737 = vmatpush1.bf16.msra.mxu0 0
    %5738 = vmatprep.subr.bf16.mxu0 0
    %5739 = vmatpush1.bf16.msra.mxu0 0
    %5740 = vmatprep.subr.bf16.mxu0 0
    %5741 = vmatpush1.bf16.msra.mxu0 %v3598
    %5742 = vmatprep.subr.bf16.mxu0 0
    %5743 = vmatpush1.bf16.msra.mxu0 %v3597
    %5744 = vmatprep.subr.bf16.mxu0 0
    %5745 = vmatpush2.bf16.msra.mxu0 0
    %5746 = vmatprep.subr.bf16.mxu0 0
    %5747 = vmatpush2.bf16.msra.mxu0 0
    %5748 = vmatprep.subr.bf16.mxu0 0
    %5749 = vmatpush2.bf16.msra.mxu0 0
    %5750 = vmatprep.subr.bf16.mxu0 0
    %5751 = vmatpush2.bf16.msra.mxu0 0
    %5752 = vmatprep.subr.bf16.mxu0 0
    %5753 = vmatpush2.bf16.msra.mxu0 0
    %5754 = vmatprep.subr.bf16.mxu0 0
    %5755 = vmatpush2.bf16.msra.mxu0 0
    %5756 = vmatprep.subr.bf16.mxu0 0
    %5757 = vmatpush2.bf16.msra.mxu0 0
    %5758 = vmatprep.subr.bf16.mxu0 0
    %5759 = vmatpush2.bf16.msra.mxu0 0
    %5760 = vmatprep.mubr.bf16.mxu0 0
    %5761 = vmatmul.mubr.bf16.gmra.mxu0 %v5726
    %v5762 = vpop.f32.mrf.mxu0
    %v5763 = vadd.f32 0.0, %v5762
    %v5764 = vpop.f32.mrf.mxu0
    %v5765 = vpop.f32.mrf.mxu0
    %v5766 = vpop.f32.mrf.mxu0
    %5767 = vdwg.mxu0
    %v5769 = vrot.slane %v5763, 2
    %v5771 = vadd.f32 %v3567, %v5769
    %v5772 = vmul.f32 %v5771, 0.5
    %v5773 = vsel %vm3648, %v5771, %v5772
    %v5774 = vtanh.pop %v5773
    %v5775 = vmul.f32 %v5774, 0.5
    %v5776 = vadd.f32 %v5775, 0.5
    %v5778 = vrot.slane %v5696, 6
    %v5780 = vmul.f32 %v5776, %v5778
    %5782 = vrot.lane.b32.xlu0 %v5774, 64
    %v5783 = vpop.permute.xlu0 %5782
    %v5785 = vmul.f32 %v5776, %v5783
    %5787 = vrot.lane.b32.xlu0 %v5785, 32
    %v5788 = vpop.permute.xlu0 %5787
    %v5790 = vadd.f32 %v5780, %v5788
    %v5791 = vtanh.pop %v5790
    %5793 = vrot.lane.b32.xlu0 %v5791, 64
    %v5794 = vpop.permute.xlu0 %5793
    %v5796 = vmul.f32 %v5776, %v5794
    %5798 = vrot.lane.b32.xlu0 %v5796, 32
    %v5799 = vpop.permute.xlu0 %5798
    %v5801 = vsel %vm3955, %v5799, 0.0
    %5802 = vadd.xlane.f32.xlu0 %v5801
    %v5803 = vpop.xlane.xlu0 %5802
    %v5804 = vmul.f32 %v5803, 0.03125
    %v5805 = vlaneseq
    %v5806 = vshrl.u32 %v5805, 7
    %v5807 = vsub.s32 7, %v5806
    %v5808 = vrot.slane %v3584, %v5807
    %v5809 = vmul.f32 %v5804, %v5808
    %v5811 = vrot.slane %v5809, 6
    %v5813 = vadd.f32 %v5719, %v5811
    %v5814 = vpack.c.bf16 %v5796, %v5796
    %v5816 = vrot.slane %v5814, 3
    %5817 = vrot.lane.b32.xlu0 %v5816, 32
    %v5818 = vpop.permute.xlu0 %5817
    %v5820 = vsel %vm3601, %v5818, 0
    %5822 = vmatprep.subr.bf16.mxu0 0
    %5823 = vmatpush1.bf16.msra.mxu0 0
    %5824 = vmatprep.subr.bf16.mxu0 0
    %5825 = vmatpush1.bf16.msra.mxu0 0
    %5826 = vmatprep.subr.bf16.mxu0 0
    %5827 = vmatpush1.bf16.msra.mxu0 0
    %5828 = vmatprep.subr.bf16.mxu0 0
    %5829 = vmatpush1.bf16.msra.mxu0 0
    %5830 = vmatprep.subr.bf16.mxu0 0
    %5831 = vmatpush1.bf16.msra.mxu0 0
    %5832 = vmatprep.subr.bf16.mxu0 0
    %5833 = vmatpush1.bf16.msra.mxu0 0
    %5834 = vmatprep.subr.bf16.mxu0 0
    %5835 = vmatpush1.bf16.msra.mxu0 %v3598
    %5836 = vmatprep.subr.bf16.mxu0 0
    %5837 = vmatpush1.bf16.msra.mxu0 %v3597
    %5838 = vmatprep.subr.bf16.mxu0 0
    %5839 = vmatpush2.bf16.msra.mxu0 0
    %5840 = vmatprep.subr.bf16.mxu0 0
    %5841 = vmatpush2.bf16.msra.mxu0 0
    %5842 = vmatprep.subr.bf16.mxu0 0
    %5843 = vmatpush2.bf16.msra.mxu0 0
    %5844 = vmatprep.subr.bf16.mxu0 0
    %5845 = vmatpush2.bf16.msra.mxu0 0
    %5846 = vmatprep.subr.bf16.mxu0 0
    %5847 = vmatpush2.bf16.msra.mxu0 0
    %5848 = vmatprep.subr.bf16.mxu0 0
    %5849 = vmatpush2.bf16.msra.mxu0 0
    %5850 = vmatprep.subr.bf16.mxu0 0
    %5851 = vmatpush2.bf16.msra.mxu0 0
    %5852 = vmatprep.subr.bf16.mxu0 0
    %5853 = vmatpush2.bf16.msra.mxu0 0
    %5854 = vmatprep.mubr.bf16.mxu0 0
    %5855 = vmatmul.mubr.bf16.gmra.mxu0 %v5820
    %v5856 = vpop.f32.mrf.mxu0
    %v5857 = vadd.f32 0.0, %v5856
    %v5858 = vpop.f32.mrf.mxu0
    %v5859 = vpop.f32.mrf.mxu0
    %v5860 = vpop.f32.mrf.mxu0
    %5861 = vdwg.mxu0
    %v5862 = vadd.f32 %v3572, %v5857
    %v5863 = vmul.f32 %v5862, 0.5
    %v5864 = vsel %vm3648, %v5862, %v5863
    %v5865 = vtanh.pop %v5864
    %v5866 = vmul.f32 %v5865, 0.5
    %v5867 = vadd.f32 %v5866, 0.5
    %v5869 = vrot.slane %v5790, 6
    %v5871 = vmul.f32 %v5867, %v5869
    %5873 = vrot.lane.b32.xlu0 %v5865, 64
    %v5874 = vpop.permute.xlu0 %5873
    %v5876 = vmul.f32 %v5867, %v5874
    %5878 = vrot.lane.b32.xlu0 %v5876, 32
    %v5879 = vpop.permute.xlu0 %5878
    %v5881 = vadd.f32 %v5871, %v5879
    %v5882 = vtanh.pop %v5881
    %5884 = vrot.lane.b32.xlu0 %v5882, 64
    %v5885 = vpop.permute.xlu0 %5884
    %v5887 = vmul.f32 %v5867, %v5885
    %5889 = vrot.lane.b32.xlu0 %v5887, 32
    %v5890 = vpop.permute.xlu0 %5889
    %v5892 = vsel %vm3674, %v5890, 0.0
    %5893 = vadd.xlane.f32.xlu0 %v5892
    %v5894 = vpop.xlane.xlu0 %5893
    %v5895 = vmul.f32 %v5894, 0.03125
    %v5896 = vlaneseq
    %v5897 = vshrl.u32 %v5896, 7
    %v5898 = vsub.s32 0, %v5897
    %v5899 = vrot.slane %v3585, %v5898
    %v5900 = vmul.f32 %v5895, %v5899
    %v5901 = vadd.f32 %v5813, %v5900
    %v5902 = vpack.c.bf16 %v5887, %v5887
    %5904 = vrot.lane.b32.xlu0 %v5902, 32
    %v5905 = vpop.permute.xlu0 %5904
    %v5907 = vsel %vm3601, %v5905, 0
    %5909 = vmatprep.subr.bf16.mxu0 0
    %5910 = vmatpush1.bf16.msra.mxu0 0
    %5911 = vmatprep.subr.bf16.mxu0 0
    %5912 = vmatpush1.bf16.msra.mxu0 0
    %5913 = vmatprep.subr.bf16.mxu0 0
    %5914 = vmatpush1.bf16.msra.mxu0 0
    %5915 = vmatprep.subr.bf16.mxu0 0
    %5916 = vmatpush1.bf16.msra.mxu0 0
    %5917 = vmatprep.subr.bf16.mxu0 0
    %5918 = vmatpush1.bf16.msra.mxu0 0
    %5919 = vmatprep.subr.bf16.mxu0 0
    %5920 = vmatpush1.bf16.msra.mxu0 0
    %5921 = vmatprep.subr.bf16.mxu0 0
    %5922 = vmatpush1.bf16.msra.mxu0 %v3598
    %5923 = vmatprep.subr.bf16.mxu0 0
    %5924 = vmatpush1.bf16.msra.mxu0 %v3597
    %5925 = vmatprep.subr.bf16.mxu0 0
    %5926 = vmatpush2.bf16.msra.mxu0 0
    %5927 = vmatprep.subr.bf16.mxu0 0
    %5928 = vmatpush2.bf16.msra.mxu0 0
    %5929 = vmatprep.subr.bf16.mxu0 0
    %5930 = vmatpush2.bf16.msra.mxu0 0
    %5931 = vmatprep.subr.bf16.mxu0 0
    %5932 = vmatpush2.bf16.msra.mxu0 0
    %5933 = vmatprep.subr.bf16.mxu0 0
    %5934 = vmatpush2.bf16.msra.mxu0 0
    %5935 = vmatprep.subr.bf16.mxu0 0
    %5936 = vmatpush2.bf16.msra.mxu0 0
    %5937 = vmatprep.subr.bf16.mxu0 0
    %5938 = vmatpush2.bf16.msra.mxu0 0
    %5939 = vmatprep.subr.bf16.mxu0 0
    %5940 = vmatpush2.bf16.msra.mxu0 0
    %5941 = vmatprep.mubr.bf16.mxu0 0
    %5942 = vmatmul.mubr.bf16.gmra.mxu0 %v5907
    %v5943 = vpop.f32.mrf.mxu0
    %v5944 = vadd.f32 0.0, %v5943
    %v5945 = vpop.f32.mrf.mxu0
    %v5946 = vpop.f32.mrf.mxu0
    %v5947 = vpop.f32.mrf.mxu0
    %5948 = vdwg.mxu0
    %v5950 = vrot.slane %v5944, 6
    %v5952 = vadd.f32 %v3572, %v5950
    %v5953 = vmul.f32 %v5952, 0.5
    %v5954 = vsel %vm3648, %v5952, %v5953
    %v5955 = vtanh.pop %v5954
    %v5956 = vmul.f32 %v5955, 0.5
    %v5957 = vadd.f32 %v5956, 0.5
    %v5959 = vrot.slane %v5881, 6
    %v5961 = vmul.f32 %v5957, %v5959
    %5963 = vrot.lane.b32.xlu0 %v5955, 64
    %v5964 = vpop.permute.xlu0 %5963
    %v5966 = vmul.f32 %v5957, %v5964
    %5968 = vrot.lane.b32.xlu0 %v5966, 32
    %v5969 = vpop.permute.xlu0 %5968
    %v5971 = vadd.f32 %v5961, %v5969
    %v5972 = vtanh.pop %v5971
    %5974 = vrot.lane.b32.xlu0 %v5972, 64
    %v5975 = vpop.permute.xlu0 %5974
    %v5977 = vmul.f32 %v5957, %v5975
    %5979 = vrot.lane.b32.xlu0 %v5977, 32
    %v5980 = vpop.permute.xlu0 %5979
    %v5982 = vsel %vm3765, %v5980, 0.0
    %5983 = vadd.xlane.f32.xlu0 %v5982
    %v5984 = vpop.xlane.xlu0 %5983
    %v5985 = vmul.f32 %v5984, 0.03125
    %v5986 = vlaneseq
    %v5987 = vshrl.u32 %v5986, 7
    %v5988 = vsub.s32 1, %v5987
    %v5989 = vrot.slane %v3585, %v5988
    %v5990 = vmul.f32 %v5985, %v5989
    %v5992 = vrot.slane %v5990, 2
    %v5994 = vadd.f32 %v5901, %v5992
    %v5995 = vpack.c.bf16 %v5977, %v5977
    %v5997 = vrot.slane %v5995, 1
    %5998 = vrot.lane.b32.xlu0 %v5997, 32
    %v5999 = vpop.permute.xlu0 %5998
    %v6001 = vsel %vm3601, %v5999, 0
    %6003 = vmatprep.subr.bf16.mxu0 0
    %6004 = vmatpush1.bf16.msra.mxu0 0
    %6005 = vmatprep.subr.bf16.mxu0 0
    %6006 = vmatpush1.bf16.msra.mxu0 0
    %6007 = vmatprep.subr.bf16.mxu0 0
    %6008 = vmatpush1.bf16.msra.mxu0 0
    %6009 = vmatprep.subr.bf16.mxu0 0
    %6010 = vmatpush1.bf16.msra.mxu0 0
    %6011 = vmatprep.subr.bf16.mxu0 0
    %6012 = vmatpush1.bf16.msra.mxu0 0
    %6013 = vmatprep.subr.bf16.mxu0 0
    %6014 = vmatpush1.bf16.msra.mxu0 0
    %6015 = vmatprep.subr.bf16.mxu0 0
    %6016 = vmatpush1.bf16.msra.mxu0 %v3598
    %6017 = vmatprep.subr.bf16.mxu0 0
    %6018 = vmatpush1.bf16.msra.mxu0 %v3597
    %6019 = vmatprep.subr.bf16.mxu0 0
    %6020 = vmatpush2.bf16.msra.mxu0 0
    %6021 = vmatprep.subr.bf16.mxu0 0
    %6022 = vmatpush2.bf16.msra.mxu0 0
    %6023 = vmatprep.subr.bf16.mxu0 0
    %6024 = vmatpush2.bf16.msra.mxu0 0
    %6025 = vmatprep.subr.bf16.mxu0 0
    %6026 = vmatpush2.bf16.msra.mxu0 0
    %6027 = vmatprep.subr.bf16.mxu0 0
    %6028 = vmatpush2.bf16.msra.mxu0 0
    %6029 = vmatprep.subr.bf16.mxu0 0
    %6030 = vmatpush2.bf16.msra.mxu0 0
    %6031 = vmatprep.subr.bf16.mxu0 0
    %6032 = vmatpush2.bf16.msra.mxu0 0
    %6033 = vmatprep.subr.bf16.mxu0 0
    %6034 = vmatpush2.bf16.msra.mxu0 0
    %6035 = vmatprep.mubr.bf16.mxu0 0
    %6036 = vmatmul.mubr.bf16.gmra.mxu0 %v6001
    %v6037 = vpop.f32.mrf.mxu0
    %v6038 = vadd.f32 0.0, %v6037
    %v6039 = vpop.f32.mrf.mxu0
    %v6040 = vpop.f32.mrf.mxu0
    %v6041 = vpop.f32.mrf.mxu0
    %6042 = vdwg.mxu0
    %v6044 = vrot.slane %v6038, 4
    %v6046 = vadd.f32 %v3572, %v6044
    %v6047 = vmul.f32 %v6046, 0.5
    %v6048 = vsel %vm3648, %v6046, %v6047
    %v6049 = vtanh.pop %v6048
    %v6050 = vmul.f32 %v6049, 0.5
    %v6051 = vadd.f32 %v6050, 0.5
    %v6053 = vrot.slane %v5971, 6
    %v6055 = vmul.f32 %v6051, %v6053
    %6057 = vrot.lane.b32.xlu0 %v6049, 64
    %v6058 = vpop.permute.xlu0 %6057
    %v6060 = vmul.f32 %v6051, %v6058
    %6062 = vrot.lane.b32.xlu0 %v6060, 32
    %v6063 = vpop.permute.xlu0 %6062
    %v6065 = vadd.f32 %v6055, %v6063
    %v6066 = vtanh.pop %v6065
    %6068 = vrot.lane.b32.xlu0 %v6066, 64
    %v6069 = vpop.permute.xlu0 %6068
    %v6071 = vmul.f32 %v6051, %v6069
    %6073 = vrot.lane.b32.xlu0 %v6071, 32
    %v6074 = vpop.permute.xlu0 %6073
    %v6076 = vsel %vm3860, %v6074, 0.0
    %6077 = vadd.xlane.f32.xlu0 %v6076
    %v6078 = vpop.xlane.xlu0 %6077
    %v6079 = vmul.f32 %v6078, 0.03125
    %v6080 = vlaneseq
    %v6081 = vshrl.u32 %v6080, 7
    %v6082 = vsub.s32 2, %v6081
    %v6083 = vrot.slane %v3585, %v6082
    %v6084 = vmul.f32 %v6079, %v6083
    %v6086 = vrot.slane %v6084, 4
    %v6088 = vadd.f32 %v5994, %v6086
    %v6089 = vpack.c.bf16 %v6071, %v6071
    %v6091 = vrot.slane %v6089, 2
    %6092 = vrot.lane.b32.xlu0 %v6091, 32
    %v6093 = vpop.permute.xlu0 %6092
    %v6095 = vsel %vm3601, %v6093, 0
    %6097 = vmatprep.subr.bf16.mxu0 0
    %6098 = vmatpush1.bf16.msra.mxu0 0
    %6099 = vmatprep.subr.bf16.mxu0 0
    %6100 = vmatpush1.bf16.msra.mxu0 0
    %6101 = vmatprep.subr.bf16.mxu0 0
    %6102 = vmatpush1.bf16.msra.mxu0 0
    %6103 = vmatprep.subr.bf16.mxu0 0
    %6104 = vmatpush1.bf16.msra.mxu0 0
    %6105 = vmatprep.subr.bf16.mxu0 0
    %6106 = vmatpush1.bf16.msra.mxu0 0
    %6107 = vmatprep.subr.bf16.mxu0 0
    %6108 = vmatpush1.bf16.msra.mxu0 0
    %6109 = vmatprep.subr.bf16.mxu0 0
    %6110 = vmatpush1.bf16.msra.mxu0 %v3598
    %6111 = vmatprep.subr.bf16.mxu0 0
    %6112 = vmatpush1.bf16.msra.mxu0 %v3597
    %6113 = vmatprep.subr.bf16.mxu0 0
    %6114 = vmatpush2.bf16.msra.mxu0 0
    %6115 = vmatprep.subr.bf16.mxu0 0
    %6116 = vmatpush2.bf16.msra.mxu0 0
    %6117 = vmatprep.subr.bf16.mxu0 0
    %6118 = vmatpush2.bf16.msra.mxu0 0
    %6119 = vmatprep.subr.bf16.mxu0 0
    %6120 = vmatpush2.bf16.msra.mxu0 0
    %6121 = vmatprep.subr.bf16.mxu0 0
    %6122 = vmatpush2.bf16.msra.mxu0 0
    %6123 = vmatprep.subr.bf16.mxu0 0
    %6124 = vmatpush2.bf16.msra.mxu0 0
    %6125 = vmatprep.subr.bf16.mxu0 0
    %6126 = vmatpush2.bf16.msra.mxu0 0
    %6127 = vmatprep.subr.bf16.mxu0 0
    %6128 = vmatpush2.bf16.msra.mxu0 0
    %6129 = vmatprep.mubr.bf16.mxu0 0
    %6130 = vmatmul.mubr.bf16.gmra.mxu0 %v6095
    %v6131 = vpop.f32.mrf.mxu0
    %v6132 = vadd.f32 0.0, %v6131
    %v6133 = vpop.f32.mrf.mxu0
    %v6134 = vpop.f32.mrf.mxu0
    %v6135 = vpop.f32.mrf.mxu0
    %6136 = vdwg.mxu0
    %v6138 = vrot.slane %v6132, 2
    %v6140 = vadd.f32 %v3572, %v6138
    %v6141 = vmul.f32 %v6140, 0.5
    %v6142 = vsel %vm3648, %v6140, %v6141
    %v6143 = vtanh.pop %v6142
    %v6144 = vmul.f32 %v6143, 0.5
    %v6145 = vadd.f32 %v6144, 0.5
    %v6147 = vrot.slane %v6065, 6
    %v6149 = vmul.f32 %v6145, %v6147
    %6151 = vrot.lane.b32.xlu0 %v6143, 64
    %v6152 = vpop.permute.xlu0 %6151
    %v6154 = vmul.f32 %v6145, %v6152
    %6156 = vrot.lane.b32.xlu0 %v6154, 32
    %v6157 = vpop.permute.xlu0 %6156
    %v6159 = vadd.f32 %v6149, %v6157
    %v6160 = vtanh.pop %v6159
    %6162 = vrot.lane.b32.xlu0 %v6160, 64
    %v6163 = vpop.permute.xlu0 %6162
    %v6165 = vmul.f32 %v6145, %v6163
    %6167 = vrot.lane.b32.xlu0 %v6165, 32
    %v6168 = vpop.permute.xlu0 %6167
    %v6170 = vsel %vm3955, %v6168, 0.0
    %6171 = vadd.xlane.f32.xlu0 %v6170
    %v6172 = vpop.xlane.xlu0 %6171
    %v6173 = vmul.f32 %v6172, 0.03125
    %v6174 = vlaneseq
    %v6175 = vshrl.u32 %v6174, 7
    %v6176 = vsub.s32 3, %v6175
    %v6177 = vrot.slane %v3585, %v6176
    %v6178 = vmul.f32 %v6173, %v6177
    %v6180 = vrot.slane %v6178, 6
    %v6182 = vadd.f32 %v6088, %v6180
    %v6183 = vpack.c.bf16 %v6165, %v6165
    %v6185 = vrot.slane %v6183, 3
    %6186 = vrot.lane.b32.xlu0 %v6185, 32
    %v6187 = vpop.permute.xlu0 %6186
    %v6189 = vsel %vm3601, %v6187, 0
    %6191 = vmatprep.subr.bf16.mxu0 0
    %6192 = vmatpush1.bf16.msra.mxu0 0
    %6193 = vmatprep.subr.bf16.mxu0 0
    %6194 = vmatpush1.bf16.msra.mxu0 0
    %6195 = vmatprep.subr.bf16.mxu0 0
    %6196 = vmatpush1.bf16.msra.mxu0 0
    %6197 = vmatprep.subr.bf16.mxu0 0
    %6198 = vmatpush1.bf16.msra.mxu0 0
    %6199 = vmatprep.subr.bf16.mxu0 0
    %6200 = vmatpush1.bf16.msra.mxu0 0
    %6201 = vmatprep.subr.bf16.mxu0 0
    %6202 = vmatpush1.bf16.msra.mxu0 0
    %6203 = vmatprep.subr.bf16.mxu0 0
    %6204 = vmatpush1.bf16.msra.mxu0 %v3598
    %6205 = vmatprep.subr.bf16.mxu0 0
    %6206 = vmatpush1.bf16.msra.mxu0 %v3597
    %6207 = vmatprep.subr.bf16.mxu0 0
    %6208 = vmatpush2.bf16.msra.mxu0 0
    %6209 = vmatprep.subr.bf16.mxu0 0
    %6210 = vmatpush2.bf16.msra.mxu0 0
    %6211 = vmatprep.subr.bf16.mxu0 0
    %6212 = vmatpush2.bf16.msra.mxu0 0
    %6213 = vmatprep.subr.bf16.mxu0 0
    %6214 = vmatpush2.bf16.msra.mxu0 0
    %6215 = vmatprep.subr.bf16.mxu0 0
    %6216 = vmatpush2.bf16.msra.mxu0 0
    %6217 = vmatprep.subr.bf16.mxu0 0
    %6218 = vmatpush2.bf16.msra.mxu0 0
    %6219 = vmatprep.subr.bf16.mxu0 0
    %6220 = vmatpush2.bf16.msra.mxu0 0
    %6221 = vmatprep.subr.bf16.mxu0 0
    %6222 = vmatpush2.bf16.msra.mxu0 0
    %6223 = vmatprep.mubr.bf16.mxu0 0
    %6224 = vmatmul.mubr.bf16.gmra.mxu0 %v6189
    %v6225 = vpop.f32.mrf.mxu0
    %v6226 = vadd.f32 0.0, %v6225
    %v6227 = vpop.f32.mrf.mxu0
    %v6228 = vpop.f32.mrf.mxu0
    %v6229 = vpop.f32.mrf.mxu0
    %6230 = vdwg.mxu0
    %v6231 = vadd.f32 %v3575, %v6226
    %v6232 = vmul.f32 %v6231, 0.5
    %v6233 = vsel %vm3648, %v6231, %v6232
    %v6234 = vtanh.pop %v6233
    %v6235 = vmul.f32 %v6234, 0.5
    %v6236 = vadd.f32 %v6235, 0.5
    %v6238 = vrot.slane %v6159, 6
    %v6240 = vmul.f32 %v6236, %v6238
    %6242 = vrot.lane.b32.xlu0 %v6234, 64
    %v6243 = vpop.permute.xlu0 %6242
    %v6245 = vmul.f32 %v6236, %v6243
    %6247 = vrot.lane.b32.xlu0 %v6245, 32
    %v6248 = vpop.permute.xlu0 %6247
    %v6250 = vadd.f32 %v6240, %v6248
    %v6251 = vtanh.pop %v6250
    %6253 = vrot.lane.b32.xlu0 %v6251, 64
    %v6254 = vpop.permute.xlu0 %6253
    %v6256 = vmul.f32 %v6236, %v6254
    %6258 = vrot.lane.b32.xlu0 %v6256, 32
    %v6259 = vpop.permute.xlu0 %6258
    %v6261 = vsel %vm3674, %v6259, 0.0
    %6262 = vadd.xlane.f32.xlu0 %v6261
    %v6263 = vpop.xlane.xlu0 %6262
    %v6264 = vmul.f32 %v6263, 0.03125
    %v6265 = vlaneseq
    %v6266 = vshrl.u32 %v6265, 7
    %v6267 = vsub.s32 4, %v6266
    %v6268 = vrot.slane %v3585, %v6267
    %v6269 = vmul.f32 %v6264, %v6268
    %v6270 = vadd.f32 %v6182, %v6269
    %v6271 = vpack.c.bf16 %v6256, %v6256
    %6273 = vrot.lane.b32.xlu0 %v6271, 32
    %v6274 = vpop.permute.xlu0 %6273
    %v6276 = vsel %vm3601, %v6274, 0
    %6278 = vmatprep.subr.bf16.mxu0 0
    %6279 = vmatpush1.bf16.msra.mxu0 0
    %6280 = vmatprep.subr.bf16.mxu0 0
    %6281 = vmatpush1.bf16.msra.mxu0 0
    %6282 = vmatprep.subr.bf16.mxu0 0
    %6283 = vmatpush1.bf16.msra.mxu0 0
    %6284 = vmatprep.subr.bf16.mxu0 0
    %6285 = vmatpush1.bf16.msra.mxu0 0
    %6286 = vmatprep.subr.bf16.mxu0 0
    %6287 = vmatpush1.bf16.msra.mxu0 0
    %6288 = vmatprep.subr.bf16.mxu0 0
    %6289 = vmatpush1.bf16.msra.mxu0 0
    %6290 = vmatprep.subr.bf16.mxu0 0
    %6291 = vmatpush1.bf16.msra.mxu0 %v3598
    %6292 = vmatprep.subr.bf16.mxu0 0
    %6293 = vmatpush1.bf16.msra.mxu0 %v3597
    %6294 = vmatprep.subr.bf16.mxu0 0
    %6295 = vmatpush2.bf16.msra.mxu0 0
    %6296 = vmatprep.subr.bf16.mxu0 0
    %6297 = vmatpush2.bf16.msra.mxu0 0
    %6298 = vmatprep.subr.bf16.mxu0 0
    %6299 = vmatpush2.bf16.msra.mxu0 0
    %6300 = vmatprep.subr.bf16.mxu0 0
    %6301 = vmatpush2.bf16.msra.mxu0 0
    %6302 = vmatprep.subr.bf16.mxu0 0
    %6303 = vmatpush2.bf16.msra.mxu0 0
    %6304 = vmatprep.subr.bf16.mxu0 0
    %6305 = vmatpush2.bf16.msra.mxu0 0
    %6306 = vmatprep.subr.bf16.mxu0 0
    %6307 = vmatpush2.bf16.msra.mxu0 0
    %6308 = vmatprep.subr.bf16.mxu0 0
    %6309 = vmatpush2.bf16.msra.mxu0 0
    %6310 = vmatprep.mubr.bf16.mxu0 0
    %6311 = vmatmul.mubr.bf16.gmra.mxu0 %v6276
    %v6312 = vpop.f32.mrf.mxu0
    %v6313 = vadd.f32 0.0, %v6312
    %v6314 = vpop.f32.mrf.mxu0
    %v6315 = vpop.f32.mrf.mxu0
    %v6316 = vpop.f32.mrf.mxu0
    %6317 = vdwg.mxu0
    %v6319 = vrot.slane %v6313, 6
    %v6321 = vadd.f32 %v3575, %v6319
    %v6322 = vmul.f32 %v6321, 0.5
    %v6323 = vsel %vm3648, %v6321, %v6322
    %v6324 = vtanh.pop %v6323
    %v6325 = vmul.f32 %v6324, 0.5
    %v6326 = vadd.f32 %v6325, 0.5
    %v6328 = vrot.slane %v6250, 6
    %v6330 = vmul.f32 %v6326, %v6328
    %6332 = vrot.lane.b32.xlu0 %v6324, 64
    %v6333 = vpop.permute.xlu0 %6332
    %v6335 = vmul.f32 %v6326, %v6333
    %6337 = vrot.lane.b32.xlu0 %v6335, 32
    %v6338 = vpop.permute.xlu0 %6337
    %v6340 = vadd.f32 %v6330, %v6338
    %v6341 = vtanh.pop %v6340
    %6343 = vrot.lane.b32.xlu0 %v6341, 64
    %v6344 = vpop.permute.xlu0 %6343
    %v6346 = vmul.f32 %v6326, %v6344
    %6348 = vrot.lane.b32.xlu0 %v6346, 32
    %v6349 = vpop.permute.xlu0 %6348
    %v6351 = vsel %vm3765, %v6349, 0.0
    %6352 = vadd.xlane.f32.xlu0 %v6351
    %v6353 = vpop.xlane.xlu0 %6352
    %v6354 = vmul.f32 %v6353, 0.03125
    %v6355 = vlaneseq
    %v6356 = vshrl.u32 %v6355, 7
    %v6357 = vsub.s32 5, %v6356
    %v6358 = vrot.slane %v3585, %v6357
    %v6359 = vmul.f32 %v6354, %v6358
    %v6361 = vrot.slane %v6359, 2
    %v6363 = vadd.f32 %v6270, %v6361
    %v6364 = vpack.c.bf16 %v6346, %v6346
    %v6366 = vrot.slane %v6364, 1
    %6367 = vrot.lane.b32.xlu0 %v6366, 32
    %v6368 = vpop.permute.xlu0 %6367
    %v6370 = vsel %vm3601, %v6368, 0
    %6372 = vmatprep.subr.bf16.mxu0 0
    %6373 = vmatpush1.bf16.msra.mxu0 0
    %6374 = vmatprep.subr.bf16.mxu0 0
    %6375 = vmatpush1.bf16.msra.mxu0 0
    %6376 = vmatprep.subr.bf16.mxu0 0
    %6377 = vmatpush1.bf16.msra.mxu0 0
    %6378 = vmatprep.subr.bf16.mxu0 0
    %6379 = vmatpush1.bf16.msra.mxu0 0
    %6380 = vmatprep.subr.bf16.mxu0 0
    %6381 = vmatpush1.bf16.msra.mxu0 0
    %6382 = vmatprep.subr.bf16.mxu0 0
    %6383 = vmatpush1.bf16.msra.mxu0 0
    %6384 = vmatprep.subr.bf16.mxu0 0
    %6385 = vmatpush1.bf16.msra.mxu0 %v3598
    %6386 = vmatprep.subr.bf16.mxu0 0
    %6387 = vmatpush1.bf16.msra.mxu0 %v3597
    %6388 = vmatprep.subr.bf16.mxu0 0
    %6389 = vmatpush2.bf16.msra.mxu0 0
    %6390 = vmatprep.subr.bf16.mxu0 0
    %6391 = vmatpush2.bf16.msra.mxu0 0
    %6392 = vmatprep.subr.bf16.mxu0 0
    %6393 = vmatpush2.bf16.msra.mxu0 0
    %6394 = vmatprep.subr.bf16.mxu0 0
    %6395 = vmatpush2.bf16.msra.mxu0 0
    %6396 = vmatprep.subr.bf16.mxu0 0
    %6397 = vmatpush2.bf16.msra.mxu0 0
    %6398 = vmatprep.subr.bf16.mxu0 0
    %6399 = vmatpush2.bf16.msra.mxu0 0
    %6400 = vmatprep.subr.bf16.mxu0 0
    %6401 = vmatpush2.bf16.msra.mxu0 0
    %6402 = vmatprep.subr.bf16.mxu0 0
    %6403 = vmatpush2.bf16.msra.mxu0 0
    %6404 = vmatprep.mubr.bf16.mxu0 0
    %6405 = vmatmul.mubr.bf16.gmra.mxu0 %v6370
    %v6406 = vpop.f32.mrf.mxu0
    %v6407 = vadd.f32 0.0, %v6406
    %v6408 = vpop.f32.mrf.mxu0
    %v6409 = vpop.f32.mrf.mxu0
    %v6410 = vpop.f32.mrf.mxu0
    %6411 = vdwg.mxu0
    %v6413 = vrot.slane %v6407, 4
    %v6415 = vadd.f32 %v3575, %v6413
    %v6416 = vmul.f32 %v6415, 0.5
    %v6417 = vsel %vm3648, %v6415, %v6416
    %v6418 = vtanh.pop %v6417
    %v6419 = vmul.f32 %v6418, 0.5
    %v6420 = vadd.f32 %v6419, 0.5
    %v6422 = vrot.slane %v6340, 6
    %v6424 = vmul.f32 %v6420, %v6422
    %6426 = vrot.lane.b32.xlu0 %v6418, 64
    %v6427 = vpop.permute.xlu0 %6426
    %v6429 = vmul.f32 %v6420, %v6427
    %6431 = vrot.lane.b32.xlu0 %v6429, 32
    %v6432 = vpop.permute.xlu0 %6431
    %v6434 = vadd.f32 %v6424, %v6432
    %v6435 = vtanh.pop %v6434
    %6437 = vrot.lane.b32.xlu0 %v6435, 64
    %v6438 = vpop.permute.xlu0 %6437
    %v6440 = vmul.f32 %v6420, %v6438
    %6442 = vrot.lane.b32.xlu0 %v6440, 32
    %v6443 = vpop.permute.xlu0 %6442
    %v6445 = vsel %vm3860, %v6443, 0.0
    %6446 = vadd.xlane.f32.xlu0 %v6445
    %v6447 = vpop.xlane.xlu0 %6446
    %v6448 = vmul.f32 %v6447, 0.03125
    %v6449 = vlaneseq
    %v6450 = vshrl.u32 %v6449, 7
    %v6451 = vsub.s32 6, %v6450
    %v6452 = vrot.slane %v3585, %v6451
    %v6453 = vmul.f32 %v6448, %v6452
    %v6455 = vrot.slane %v6453, 4
    %v6457 = vadd.f32 %v6363, %v6455
    %v6458 = vpack.c.bf16 %v6440, %v6440
    %v6460 = vrot.slane %v6458, 2
    %6461 = vrot.lane.b32.xlu0 %v6460, 32
    %v6462 = vpop.permute.xlu0 %6461
    %v6464 = vsel %vm3601, %v6462, 0
    %6466 = vmatprep.subr.bf16.mxu0 0
    %6467 = vmatpush1.bf16.msra.mxu0 0
    %6468 = vmatprep.subr.bf16.mxu0 0
    %6469 = vmatpush1.bf16.msra.mxu0 0
    %6470 = vmatprep.subr.bf16.mxu0 0
    %6471 = vmatpush1.bf16.msra.mxu0 0
    %6472 = vmatprep.subr.bf16.mxu0 0
    %6473 = vmatpush1.bf16.msra.mxu0 0
    %6474 = vmatprep.subr.bf16.mxu0 0
    %6475 = vmatpush1.bf16.msra.mxu0 0
    %6476 = vmatprep.subr.bf16.mxu0 0
    %6477 = vmatpush1.bf16.msra.mxu0 0
    %6478 = vmatprep.subr.bf16.mxu0 0
    %6479 = vmatpush1.bf16.msra.mxu0 %v3598
    %6480 = vmatprep.subr.bf16.mxu0 0
    %6481 = vmatpush1.bf16.msra.mxu0 %v3597
    %6482 = vmatprep.subr.bf16.mxu0 0
    %6483 = vmatpush2.bf16.msra.mxu0 0
    %6484 = vmatprep.subr.bf16.mxu0 0
    %6485 = vmatpush2.bf16.msra.mxu0 0
    %6486 = vmatprep.subr.bf16.mxu0 0
    %6487 = vmatpush2.bf16.msra.mxu0 0
    %6488 = vmatprep.subr.bf16.mxu0 0
    %6489 = vmatpush2.bf16.msra.mxu0 0
    %6490 = vmatprep.subr.bf16.mxu0 0
    %6491 = vmatpush2.bf16.msra.mxu0 0
    %6492 = vmatprep.subr.bf16.mxu0 0
    %6493 = vmatpush2.bf16.msra.mxu0 0
    %6494 = vmatprep.subr.bf16.mxu0 0
    %6495 = vmatpush2.bf16.msra.mxu0 0
    %6496 = vmatprep.subr.bf16.mxu0 0
    %6497 = vmatpush2.bf16.msra.mxu0 0
    %6498 = vmatprep.mubr.bf16.mxu0 0
    %6499 = vmatmul.mubr.bf16.gmra.mxu0 %v6464
    %v6500 = vpop.f32.mrf.mxu0
    %v6501 = vadd.f32 0.0, %v6500
    %v6502 = vpop.f32.mrf.mxu0
    %v6503 = vpop.f32.mrf.mxu0
    %v6504 = vpop.f32.mrf.mxu0
    %6505 = vdwg.mxu0
    %v6507 = vrot.slane %v6501, 2
    %v6509 = vadd.f32 %v3575, %v6507
    %v6510 = vmul.f32 %v6509, 0.5
    %v6511 = vsel %vm3648, %v6509, %v6510
    %v6512 = vtanh.pop %v6511
    %v6513 = vmul.f32 %v6512, 0.5
    %v6514 = vadd.f32 %v6513, 0.5
    %v6516 = vrot.slane %v6434, 6
    %v6518 = vmul.f32 %v6514, %v6516
    %6520 = vrot.lane.b32.xlu0 %v6512, 64
    %v6521 = vpop.permute.xlu0 %6520
    %v6523 = vmul.f32 %v6514, %v6521
    %6525 = vrot.lane.b32.xlu0 %v6523, 32
    %v6526 = vpop.permute.xlu0 %6525
    %v6528 = vadd.f32 %v6518, %v6526
    %v6529 = vtanh.pop %v6528
    %6531 = vrot.lane.b32.xlu0 %v6529, 64
    %v6532 = vpop.permute.xlu0 %6531
    %v6534 = vmul.f32 %v6514, %v6532
    %6536 = vrot.lane.b32.xlu0 %v6534, 32
    %v6537 = vpop.permute.xlu0 %6536
    %v6539 = vsel %vm3955, %v6537, 0.0
    %6540 = vadd.xlane.f32.xlu0 %v6539
    %v6541 = vpop.xlane.xlu0 %6540
    %v6542 = vmul.f32 %v6541, 0.03125
    %v6543 = vlaneseq
    %v6544 = vshrl.u32 %v6543, 7
    %v6545 = vsub.s32 7, %v6544
    %v6546 = vrot.slane %v3585, %v6545
    %v6547 = vmul.f32 %v6542, %v6546
    %v6549 = vrot.slane %v6547, 6
    %v6551 = vadd.f32 %v6457, %v6549
    %v6552 = vld [vmem:[%s12] sm:$0x1]
    %v6554 = vlaneseq
    %v6555 = vshrl.u32 %v6554, 7
    %v6556 = vsub.s32 0, %v6555
    %v6557 = vrot.slane %v6552, %v6556
    %v6559 = vadd.f32 %v6551, %v6557
    %v6560 = vmax.f32 %v6559, 0.0
    %vm6561 = vcmask 238592
    %6562 = vst.msk [vmem:[#allocation2] sm:$0x3] %vm6561, %v6560
    // Predicated region
    $region54: #{rnn_model_forward.1} parent=1 // pred_check
      _
    $region55: #{rnn_model_forward.1} parent=1 // pred_check_branch
      %6564 = sbr.rel (0) target = $region57
    $region56: #{rnn_model_forward.1} parent=1 // pred_region
      %s6566 = ssub.s32 32, 32
      %6567 = vsyncadd [#allocation3], %s6566
      %s6569 = sshll.u32 [#allocation2], 4
      %s6570 = int_to_ptr.vmem [resolvable:$true] %s6569
      %6572 = dma.vmem_to_hbm [thread:$0]  %s6570, 32, %s13, [#allocation3]
    $region57: #{rnn_model_forward.1} parent=1 // pred_fallthru
      _
    // Predicated region
    $region58: #{rnn_model_forward.1} parent=1 // pred_check
      _
    $region59: #{rnn_model_forward.1} parent=1 // pred_check_branch
      %6574 = sbr.rel (0) target = $region61
    $region60: #{rnn_model_forward.1} parent=1 // pred_region
      %6575 = dma.done [#allocation3], 32
    $region61: #{rnn_model_forward.1} parent=1 // pred_fallthru
      _
    %6576 = vsyncpa [#allocation3], 1

</llo_original>
